<compile_context>
chip_gen: v6e
topology: v6e:2x2x1
jax: 0.10.0
libtpu: 0.0.40
codegen_flags: <defaults>
</compile_context>

<pallas_src>
import math
from functools import partial

import jax
import jax.numpy as jnp
from jax import lax
from jax.experimental import pallas as pl
from jax.experimental.pallas import tpu as pltpu

# ---- configuration (consistent with the module: enc_inp_layers=3, n_obs_back=5) ----
ENC_IN_CH   = 3              # enc_inp_layers
CONV_CH     = 32
ENC_OUT_DIM = 128            # scaled down from 512 for a small runnable example
N_OBS_BACK  = 5
SEQ         = N_OBS_BACK + 1         # 6 real observations
SEQ_PAD     = 8                      # padded to one f32 sublane tile
FFN_DIM     = 256
NUM_ACTIONS = 16
IMG         = 16
KSIZE       = 3
STRIDE      = 2
H_OUT       = (IMG - KSIZE) // STRIDE + 1      # 7
N_SPATIAL   = H_OUT * H_OUT                    # 49
K_RAW       = KSIZE * KSIZE * ENC_IN_CH        # 27
K_PAD       = 32                               # im2col K padded (conv bias folded at col 27)
HEAD_W      = 128                              # lane-dense packed policy|value head width


# --------------------------- fused Pallas kernel ---------------------------

def _policy6_kernel(B, p_ref, wc_ref, fw_ref, fb_ref, pe_ref, mask_ref,
                    w_ref, w2_ref, vec_ref, o_ref):
    """Whole Policy6 forward in one grid step.

    p_ref : (N_SPATIAL, B*8, K_PAD)   im2col patches, constant-1 bias column folded in
    wc_ref: (N_SPATIAL, K_PAD, CONV_CH) conv weight broadcast over spatial, bias in row K_RAW
    fw_ref: (N_SPATIAL, CONV_CH, D)     encoder FC weight reshaped per spatial position
    fb_ref: (1, D)                      encoder FC bias
    pe_ref: (B*8, D)                    positional encoding tiled over the batch
    mask_ref: (8, 8)                    padded obs_mask (nonzero = keep)
    w_ref : (D, 896)  packed [wq|wk|wv|wo|w1|policy|value] weights
    w2_ref: (F, D)
    vec_ref: (9, 3D)  packed biases / LayerNorm vectors
    o_ref : (B*8, 128) lanes [0,A): softmax probs, lane A: value, rest: scratch
    """
    D, F, A, S = ENC_OUT_DIM, FFN_DIM, NUM_ACTIONS, SEQ_PAD

    # ---------------- encoder: conv3x3/s2 (im2col matmul) + ReLU + FC + ReLU -------------
    # Intermediates stay in VMEM/vregs; no HBM traffic between conv, FC and attention.
    conv = jnp.einsum('snk,skc->snc', p_ref[...], wc_ref[...],
                      preferred_element_type=jnp.float32)          # batched over spatial
    conv = jnp.maximum(conv, 0.0)                                  # conv bias already folded in
    fc = jnp.einsum('snc,scd->snd', conv, fw_ref[...],
                    preferred_element_type=jnp.float32)            # per-spatial FC contributions
    feat = jnp.maximum(jnp.sum(fc, axis=0) + fb_ref[...], 0.0)     # (B*8, D)

    # ---------------- pos_encoder_obs -----------------------------------------------------
    x = feat + pe_ref[...]                                         # (B*S, D)

    # packed weights: [ wq | wk | wv | wo | w1 | w_heads ] along the lane axis
    wqkv = w_ref[:, 0:3 * D]                                       # (D, 3D) fused Q/K/V
    wo   = w_ref[:, 3 * D:4 * D]
    w1   = w_ref[:, 4 * D:4 * D + F]
    wh   = w_ref[:, 4 * D + F:4 * D + F + HEAD_W]                  # policy|value, lane-padded

    # packed bias / LayerNorm vectors (one (9, 3D) array -> single DMA)
    bqkv = vec_ref[0:1, :3 * D]
    b1   = vec_ref[1:2, :F]
    bo   = vec_ref[2:3, :D]
    ln1g = vec_ref[3:4, :D]
    ln1b = vec_ref[4:5, :D]
    b2   = vec_ref[5:6, :D]
    ln2g = vec_ref[6:7, :D]
    ln2b = vec_ref[7:8, :D]
    bh   = vec_ref[8:9, :HEAD_W]

    # ---------------- single-head attention ----------------------------------------------
    # fused Q/K/V projection: one (B*S, D) @ (D, 3D) matmul (wide RHS for MXU occupancy)
    qkv = jnp.dot(x, wqkv, preferred_element_type=jnp.float32) + bqkv
    qkv = qkv.reshape(B, S, 3 * D)
    q = qkv[:, :, 0:D]
    k = qkv[:, :, D:2 * D]
    v = qkv[:, :, 2 * D:3 * D]

    # contract last dims directly (no explicit transpose of k)
    scores = jnp.einsum('bqd,bkd->bqk', q, k,
                        preferred_element_type=jnp.float32) * (1.0 / math.sqrt(D))
    scores = jnp.where(mask_ref[...] > 0.0, scores, -1e9)          # obs_mask: nonzero = keep
    m = jnp.max(scores, axis=-1, keepdims=True)
    e = jnp.exp(scores - m)
    attn = e * pl.reciprocal(jnp.sum(e, axis=-1, keepdims=True), approx=True)
    ctx = jnp.einsum('bqk,bkd->bqd', attn, v, preferred_element_type=jnp.float32)
    ctx = ctx.reshape(B * S, D)
    attn_out = jnp.dot(ctx, wo, preferred_element_type=jnp.float32) + bo

    # residual + LayerNorm 1
    h = x + attn_out
    mu = jnp.mean(h, axis=-1, keepdims=True)
    var = jnp.mean((h - mu) ** 2, axis=-1, keepdims=True)
    h = (h - mu) * lax.rsqrt(var + 1e-5) * ln1g + ln1b

    # FFN
    ff = jnp.maximum(jnp.dot(h, w1, preferred_element_type=jnp.float32) + b1, 0.0)
    ff = jnp.dot(ff, w2_ref[...], preferred_element_type=jnp.float32) + b2

    # residual + LayerNorm 2
    h2 = h + ff
    mu2 = jnp.mean(h2, axis=-1, keepdims=True)
    var2 = jnp.mean((h2 - mu2) ** 2, axis=-1, keepdims=True)
    y = (h2 - mu2) * lax.rsqrt(var2 + 1e-5) * ln2g + ln2b          # (B*S, D)

    # ---------------- fused policy/value heads --------------------------------------------
    # Computed for all rows so the output store is one full lane-dense (B*S, 128) tile;
    # the wrapper keeps only the seq-0 row of each batch element.
    head = jnp.dot(y, wh, preferred_element_type=jnp.float32) + bh
    lane = lax.broadcasted_iota(jnp.int32, head.shape, 1)
    is_act = lane < A
    z = jnp.where(is_act, head, -1e30)                             # softmax over first A lanes
    zm = jnp.max(z, axis=-1, keepdims=True)
    ez = jnp.exp(z - zm)
    probs = ez / jnp.sum(ez, axis=-1, keepdims=True)               # exact division
    # lanes [0, A): softmax probs; lane A: value head; lanes > A: unused
    o_ref[...] = jnp.where(is_act, probs, head)


def policy6_fused(patches, wc3, fw3, fb, pe_t, mask_p, w_pack, w2, vecs, batch):
    s, n, k = patches.shape
    c = wc3.shape[2]
    d = fw3.shape[2]
    return pl.pallas_call(
        partial(_policy6_kernel, batch),
        out_shape=jax.ShapeDtypeStruct((n, HEAD_W), jnp.float32),
        grid=(1,),
        in_specs=[pl.BlockSpec((s, n, k), lambda i: (0, 0, 0)),
                  pl.BlockSpec((s, k, c), lambda i: (0, 0, 0)),
                  pl.BlockSpec((s, c, d), lambda i: (0, 0, 0)),
                  pl.BlockSpec((1, d), lambda i: (0, 0)),
                  pl.BlockSpec((n, d), lambda i: (0, 0)),
                  pl.BlockSpec((SEQ_PAD, SEQ_PAD), lambda i: (0, 0)),
                  pl.BlockSpec(w_pack.shape, lambda i: (0, 0)),
                  pl.BlockSpec(w2.shape, lambda i: (0, 0)),
                  pl.BlockSpec(vecs.shape, lambda i: (0, 0))],
        out_specs=pl.BlockSpec((n, HEAD_W), lambda i: (0, 0)),
        compiler_params=pltpu.CompilerParams(dimension_semantics=("arbitrary",)),
    )(patches, wc3, fw3, fb, pe_t, mask_p, w_pack, w2, vecs)


# --------------------------- model glue ---------------------------

def _im2col(frames_nhwc):
    """(N, H, W, C) -> (N_SPATIAL, N, K_PAD) patches for the 3x3/s2 conv.
    K padded 27 -> 32; column K_RAW is a constant 1 (the conv bias is folded into the weight)."""
    n = frames_nhwc.shape[0]
    cols = []
    for i in range(KSIZE):
        for j in range(KSIZE):
            cols.append(frames_nhwc[:, i:i + STRIDE * H_OUT:STRIDE,
                                    j:j + STRIDE * H_OUT:STRIDE, :])
    p = jnp.stack(cols, axis=3)                                    # (N, HO, WO, 9, C)
    p = p.reshape(n, N_SPATIAL, K_RAW)
    p = jnp.concatenate(
        [p, jnp.ones((n, N_SPATIAL, 1), jnp.float32),
         jnp.zeros((n, N_SPATIAL, K_PAD - K_RAW - 1), jnp.float32)], axis=-1)
    return jnp.transpose(p, (1, 0, 2))                             # (49, N, 32)


def policy6_forward(packed, x_nchw, obs_back_nchw, obs_mask):
    """Returns (probs, value): probs = softmax(policy(features)) (the tensor the PyTorch
    code builds Categorical from) and value = value(features).squeeze(1)."""
    B = x_nchw.shape[0]
    pad = SEQ_PAD - SEQ

    # all_obs = [enc(x), enc(obs_back[:,0]) ... enc(obs_back[:,4])]; seq padded 6 -> 8
    frames = jnp.concatenate([x_nchw[:, None], obs_back_nchw], axis=1)        # (B, SEQ, C, H, W)
    frames = jnp.pad(frames, ((0, 0), (0, pad), (0, 0), (0, 0), (0, 0)))
    frames = frames.reshape(B * SEQ_PAD, ENC_IN_CH, IMG, IMG)
    frames = jnp.transpose(frames, (0, 2, 3, 1))                              # NCHW -> NHWC
    patches = _im2col(frames)                                                 # (49, B*8, 32)

    pe_t = jnp.tile(packed['pe'], (B, 1))                                     # (B*8, D)
    # pad the (6,6) mask to (8,8): real queries never attend to padded keys; padded
    # rows attend to themselves only (their outputs are discarded by the wrapper).
    mask_p = jnp.pad(obs_mask, ((0, pad), (0, pad)))
    mask_p = mask_p + jnp.diag(jnp.pad(jnp.ones((pad,), jnp.float32), (SEQ, 0)))

    out = policy6_fused(patches, packed['wc3'], packed['fw3'], packed['fb'],
                        pe_t, mask_p, packed['w_pack'], packed['w2'],
                        packed['vecs'], B)                                    # (B*8, 128)
    out = out.reshape(B, SEQ_PAD, HEAD_W)[:, 0, :]                            # x[:, 0, :] -> heads
    probs = out[:, :NUM_ACTIONS]
    value = out[:, NUM_ACTIONS]
    # TODO(synk): Categorical sampling / log_prob (dist object) is not a tensor op; we return
    #             the softmax probabilities and value the module would build it from.
    return probs, value


def init_params(key):
    """Natural (module-shaped) parameters."""
    ks = jax.random.split(key, 10)
    D, F = ENC_OUT_DIM, FFN_DIM

    def dense(k, fan_in, shape):
        return jax.random.normal(k, shape, jnp.float32) / math.sqrt(fan_in)

    flat = N_SPATIAL * CONV_CH
    enc = dict(
        conv_w=dense(ks[0], K_RAW, (KSIZE, KSIZE, ENC_IN_CH, CONV_CH)),
        conv_b=jnp.zeros((1, CONV_CH), jnp.float32),
        fc_w=dense(ks[1], flat, (flat, D)),
        fc_b=jnp.zeros((1, D), jnp.float32),
    )
    tf = dict(
        wq=dense(ks[2], D, (D, D)), bq=jnp.zeros((1, D), jnp.float32),
        wk=dense(ks[3], D, (D, D)), bk=jnp.zeros((1, D), jnp.float32),
        wv=dense(ks[4], D, (D, D)), bv=jnp.zeros((1, D), jnp.float32),
        wo=dense(ks[5], D, (D, D)), bo=jnp.zeros((1, D), jnp.float32),
        ln1_g=jnp.ones((1, D), jnp.float32), ln1_b=jnp.zeros((1, D), jnp.float32),
        w1=dense(ks[6], D, (D, F)), b1=jnp.zeros((1, F), jnp.float32),
        w2=dense(ks[7], F, (F, D)), b2=jnp.zeros((1, D), jnp.float32),
        ln2_g=jnp.ones((1, D), jnp.float32), ln2_b=jnp.zeros((1, D), jnp.float32),
    )
    head = dict(  # orthogonal_init with gain 0.01 / 1.0, as in the module
        policy_w=jax.nn.initializers.orthogonal(0.01)(ks[8], (D, NUM_ACTIONS), jnp.float32),
        policy_b=jnp.zeros((1, NUM_ACTIONS), jnp.float32),
        value_w=jax.nn.initializers.orthogonal(1.0)(ks[9], (D, 1), jnp.float32),
        value_b=jnp.zeros((1, 1), jnp.float32),
    )
    # sinusoidal positional encoding over the padded sequence (rows 0..SEQ-1 match the module)
    # TODO(synk): pos-encoder dropout omitted (forward is used under no_grad / eval).
    pos = jnp.arange(SEQ_PAD, dtype=jnp.float32)[:, None]
    div = jnp.exp(jnp.arange(0, D, 2, dtype=jnp.float32) * (-math.log(10000.0) / D))
    pe = jnp.zeros((SEQ_PAD, D), jnp.float32)
    pe = pe.at[:, 0::2].set(jnp.sin(pos * div))
    pe = pe.at[:, 1::2].set(jnp.cos(pos * div))
    return dict(enc=enc, tf=tf, head=head, pe=pe)


def pack_params(params):
    """One-time packing into kernel-ready, tile-aligned arrays (done outside the hot path)."""
    D, F = ENC_OUT_DIM, FFN_DIM
    enc, tf, head = params['enc'], params['tf'], params['head']

    # encoder: conv weight with bias folded in row K_RAW, broadcast over spatial positions;
    # FC weight reshaped to (spatial, conv_ch, D) to match the fused kernel contraction.
    wc = enc['conv_w'].reshape(K_RAW, CONV_CH)
    wc = jnp.concatenate(
        [wc, enc['conv_b'], jnp.zeros((K_PAD - K_RAW - 1, CONV_CH), jnp.float32)], axis=0)
    wc3 = jnp.tile(wc[None], (N_SPATIAL, 1, 1))                    # (49, 32, 32)
    fw3 = enc['fc_w'].reshape(N_SPATIAL, CONV_CH, D)               # (49, 32, D)

    # transformer: packed weights [wq|wk|wv|wo|w1|w_heads] and packed bias/LN vectors
    wh = jnp.concatenate(
        [head['policy_w'], head['value_w'],
         jnp.zeros((D, HEAD_W - NUM_ACTIONS - 1), jnp.float32)], axis=1)      # (D, 128)
    w_pack = jnp.concatenate([tf['wq'], tf['wk'], tf['wv'], tf['wo'], tf['w1'], wh],
                             axis=1)                                          # (D, 896)

    def vrow(v):
        return jnp.pad(v, ((0, 0), (0, 3 * D - v.shape[1])))
    bh = jnp.concatenate(
        [head['policy_b'], head['value_b'],
         jnp.zeros((1, HEAD_W - NUM_ACTIONS - 1), jnp.float32)], axis=1)      # (1, 128)
    vecs = jnp.concatenate([
        jnp.concatenate([tf['bq'], tf['bk'], tf['bv']], axis=1),              # row 0: fused qkv bias
        vrow(tf['b1']), vrow(tf['bo']),
        vrow(tf['ln1_g']), vrow(tf['ln1_b']),
        vrow(tf['b2']), vrow(tf['ln2_g']), vrow(tf['ln2_b']),
        vrow(bh),
    ], axis=0)                                                                # (9, 3D)

    return dict(wc3=wc3, fw3=fw3, fb=enc['fc_b'],
                w_pack=w_pack, w2=tf['w2'], vecs=vecs, pe=params['pe'])


if __name__ == "__main__":
    key = jax.random.PRNGKey(0)
    pkey, xkey, okey = jax.random.split(key, 3)
    params = init_params(pkey)
    packed = pack_params(params)

    B = 2
    x = jax.random.normal(xkey, (B, ENC_IN_CH, IMG, IMG), jnp.float32)                 # NCHW
    obs_back = jax.random.normal(okey, (B, N_OBS_BACK, ENC_IN_CH, IMG, IMG), jnp.float32)
    obs_mask = jnp.triu(jnp.ones((SEQ, SEQ), jnp.float32))                             # as in module

    fwd = jax.jit(policy6_forward)
    probs, value = fwd(packed, x, obs_back, obs_mask)
    jax.block_until_ready((probs, value))

    assert probs.shape == (B, NUM_ACTIONS) and value.shape == (B,)
    assert bool(jnp.all(jnp.isfinite(probs))) and bool(jnp.all(jnp.isfinite(value)))
    assert bool(jnp.allclose(jnp.sum(probs, axis=-1), 1.0, atol=1e-5))
    print("KERNEL_OK")
</pallas_src>

<mosaic_0001>
module attributes {stable_mosaic.version = 11 : i64} {
  func.func @_policy6_kernel(%arg0: i32, %arg1: memref<49x16x32xf32, #tpu.memory_space<vmem>>, %arg2: memref<49x32x32xf32, #tpu.memory_space<vmem>>, %arg3: memref<49x32x128xf32, #tpu.memory_space<vmem>>, %arg4: memref<1x128xf32, #tpu.memory_space<vmem>>, %arg5: memref<16x128xf32, #tpu.memory_space<vmem>>, %arg6: memref<8x8xf32, #tpu.memory_space<vmem>>, %arg7: memref<128x896xf32, #tpu.memory_space<vmem>>, %arg8: memref<256x128xf32, #tpu.memory_space<vmem>>, %arg9: memref<9x384xf32, #tpu.memory_space<vmem>>, %arg10: memref<16x128xf32, #tpu.memory_space<vmem>>) attributes {dimension_semantics = [#tpu.dimension_semantics<arbitrary>], iteration_bounds = array<i64: 1>, scalar_prefetch = 0 : i64, scratch_operands = 0 : i64, tpu.core_type = #tpu.core_type<tc>, window_params = [{pipeline_mode = #tpu.pipeline_mode<synchronous>, transform_indices = @transform_0, window_bounds = array<i64: 49, 16, 32>}, {pipeline_mode = #tpu.pipeline_mode<synchronous>, transform_indices = @transform_1, window_bounds = array<i64: 49, 32, 32>}, {pipeline_mode = #tpu.pipeline_mode<synchronous>, transform_indices = @transform_2, window_bounds = array<i64: 49, 32, 128>}, {pipeline_mode = #tpu.pipeline_mode<synchronous>, transform_indices = @transform_3, window_bounds = array<i64: 1, 128>}, {pipeline_mode = #tpu.pipeline_mode<synchronous>, transform_indices = @transform_4, window_bounds = array<i64: 16, 128>}, {pipeline_mode = #tpu.pipeline_mode<synchronous>, transform_indices = @transform_5, window_bounds = array<i64: 8, 8>}, {pipeline_mode = #tpu.pipeline_mode<synchronous>, transform_indices = @transform_6, window_bounds = array<i64: 128, 896>}, {pipeline_mode = #tpu.pipeline_mode<synchronous>, transform_indices = @transform_7, window_bounds = array<i64: 256, 128>}, {pipeline_mode = #tpu.pipeline_mode<synchronous>, transform_indices = @transform_8, window_bounds = array<i64: 9, 384>}, {pipeline_mode = #tpu.pipeline_mode<synchronous>, transform_indices = @transform_9, window_bounds = array<i64: 16, 128>}]} {
    %c0 = arith.constant 0 : index
    %c0_0 = arith.constant 0 : index
    %c0_1 = arith.constant 0 : index
    %0 = vector.load %arg1[%c0, %c0_0, %c0_1] : memref<49x16x32xf32, #tpu.memory_space<vmem>>, vector<49x16x32xf32>
    %c0_2 = arith.constant 0 : index
    %c0_3 = arith.constant 0 : index
    %c0_4 = arith.constant 0 : index
    %1 = vector.load %arg2[%c0_2, %c0_3, %c0_4] : memref<49x32x32xf32, #tpu.memory_space<vmem>>, vector<49x32x32xf32>
    "tpu.trace_start"() <{level = 10 : i32, message = "snk,skc->snc"}> : () -> ()
    %cst = arith.constant dense<0.000000e+00> : vector<49x16x32xf32>
    %2 = tpu.matmul %0, %1, %cst {dimension_numbers = #tpu.dot_dimension_numbers<[2], [1], [1], [2], [0, 0, 0, 1, 1, 2], [0], [0]>} : vector<49x16x32xf32>, vector<49x32x32xf32>, vector<49x16x32xf32> -> vector<49x16x32xf32>
    "tpu.trace_stop"() : () -> ()
    %cst_5 = arith.constant 0.000000e+00 : f32
    %3 = vector.broadcast %cst_5 : f32 to vector<49x16x32xf32>
    %4 = arith.maximumf %2, %3 : vector<49x16x32xf32>
    %c0_6 = arith.constant 0 : index
    %c0_7 = arith.constant 0 : index
    %c0_8 = arith.constant 0 : index
    %5 = vector.load %arg3[%c0_6, %c0_7, %c0_8] : memref<49x32x128xf32, #tpu.memory_space<vmem>>, vector<49x32x128xf32>
    "tpu.trace_start"() <{level = 10 : i32, message = "snc,scd->snd"}> : () -> ()
    %cst_9 = arith.constant dense<0.000000e+00> : vector<49x16x128xf32>
    %6 = tpu.matmul %4, %5, %cst_9 {dimension_numbers = #tpu.dot_dimension_numbers<[2], [1], [1], [2], [0, 0, 0, 1, 1, 2], [0], [0]>} : vector<49x16x32xf32>, vector<49x32x128xf32>, vector<49x16x128xf32> -> vector<49x16x128xf32>
    "tpu.trace_stop"() : () -> ()
    %cst_10 = arith.constant dense<0.000000e+00> : vector<16x128xf32>
    %7 = vector.multi_reduction <add>, %6, %cst_10 [0] : vector<49x16x128xf32> to vector<16x128xf32>
    %c0_11 = arith.constant 0 : index
    %c0_12 = arith.constant 0 : index
    %8 = vector.load %arg4[%c0_11, %c0_12] : memref<1x128xf32, #tpu.memory_space<vmem>>, vector<1x128xf32>
    %9 = vector.broadcast %8 : vector<1x128xf32> to vector<16x128xf32>
    %10 = arith.addf %7, %9 : vector<16x128xf32>
    %cst_13 = arith.constant 0.000000e+00 : f32
    %11 = vector.broadcast %cst_13 : f32 to vector<16x128xf32>
    %12 = arith.maximumf %10, %11 : vector<16x128xf32>
    %c0_14 = arith.constant 0 : index
    %c0_15 = arith.constant 0 : index
    %13 = vector.load %arg5[%c0_14, %c0_15] : memref<16x128xf32, #tpu.memory_space<vmem>>, vector<16x128xf32>
    %14 = arith.addf %12, %13 : vector<16x128xf32>
    %c0_16 = arith.constant 0 : index
    %c0_17 = arith.constant 0 : index
    %15 = vector.load %arg7[%c0_16, %c0_17] : memref<128x896xf32, #tpu.memory_space<vmem>>, vector<128x384xf32>
    %c0_18 = arith.constant 0 : index
    %c384 = arith.constant 384 : index
    %16 = vector.load %arg7[%c0_18, %c384] : memref<128x896xf32, #tpu.memory_space<vmem>>, vector<128x128xf32>
    %c0_19 = arith.constant 0 : index
    %c512 = arith.constant 512 : index
    %17 = vector.load %arg7[%c0_19, %c512] : memref<128x896xf32, #tpu.memory_space<vmem>>, vector<128x256xf32>
    %c0_20 = arith.constant 0 : index
    %c768 = arith.constant 768 : index
    %18 = vector.load %arg7[%c0_20, %c768] : memref<128x896xf32, #tpu.memory_space<vmem>>, vector<128x128xf32>
    %c0_21 = arith.constant 0 : index
    %c0_22 = arith.constant 0 : index
    %19 = vector.load %arg9[%c0_21, %c0_22] : memref<9x384xf32, #tpu.memory_space<vmem>>, vector<1x384xf32>
    %c1 = arith.constant 1 : index
    %c0_23 = arith.constant 0 : index
    %20 = vector.load %arg9[%c1, %c0_23] : memref<9x384xf32, #tpu.memory_space<vmem>>, vector<1x256xf32>
    %c2 = arith.constant 2 : index
    %c0_24 = arith.constant 0 : index
    %21 = vector.load %arg9[%c2, %c0_24] : memref<9x384xf32, #tpu.memory_space<vmem>>, vector<1x128xf32>
    %c3 = arith.constant 3 : index
    %c0_25 = arith.constant 0 : index
    %22 = vector.load %arg9[%c3, %c0_25] : memref<9x384xf32, #tpu.memory_space<vmem>>, vector<1x128xf32>
    %c4 = arith.constant 4 : index
    %c0_26 = arith.constant 0 : index
    %23 = vector.load %arg9[%c4, %c0_26] : memref<9x384xf32, #tpu.memory_space<vmem>>, vector<1x128xf32>
    %c5 = arith.constant 5 : index
    %c0_27 = arith.constant 0 : index
    %24 = vector.load %arg9[%c5, %c0_27] : memref<9x384xf32, #tpu.memory_space<vmem>>, vector<1x128xf32>
    %c6 = arith.constant 6 : index
    %c0_28 = arith.constant 0 : index
    %25 = vector.load %arg9[%c6, %c0_28] : memref<9x384xf32, #tpu.memory_space<vmem>>, vector<1x128xf32>
    %c7 = arith.constant 7 : index
    %c0_29 = arith.constant 0 : index
    %26 = vector.load %arg9[%c7, %c0_29] : memref<9x384xf32, #tpu.memory_space<vmem>>, vector<1x128xf32>
    %c8 = arith.constant 8 : index
    %c0_30 = arith.constant 0 : index
    %27 = vector.load %arg9[%c8, %c0_30] : memref<9x384xf32, #tpu.memory_space<vmem>>, vector<1x128xf32>
    %cst_31 = arith.constant dense<0.000000e+00> : vector<16x384xf32>
    %28 = tpu.matmul %14, %15, %cst_31 {dimension_numbers = #tpu.dot_dimension_numbers<[1], [0], [0], [1], [0, 0, 1, 1], [], []>} : vector<16x128xf32>, vector<128x384xf32>, vector<16x384xf32> -> vector<16x384xf32>
    %29 = vector.broadcast %19 : vector<1x384xf32> to vector<16x384xf32>
    %30 = arith.addf %28, %29 : vector<16x384xf32>
    %31 = vector.shape_cast %30 : vector<16x384xf32> to vector<2x8x384xf32>
    %32 = vector.extract_strided_slice %31 {offsets = [0, 0, 0], sizes = [2, 8, 128], strides = [1, 1, 1]} : vector<2x8x384xf32> to vector<2x8x128xf32>
    %33 = vector.extract_strided_slice %31 {offsets = [0, 0, 128], sizes = [2, 8, 128], strides = [1, 1, 1]} : vector<2x8x384xf32> to vector<2x8x128xf32>
    %34 = vector.extract_strided_slice %31 {offsets = [0, 0, 256], sizes = [2, 8, 128], strides = [1, 1, 1]} : vector<2x8x384xf32> to vector<2x8x128xf32>
    "tpu.trace_start"() <{level = 10 : i32, message = "bqd,bkd->bqk"}> : () -> ()
    %cst_32 = arith.constant dense<0.000000e+00> : vector<2x8x8xf32>
    %35 = tpu.matmul %32, %33, %cst_32 {dimension_numbers = #tpu.dot_dimension_numbers<[2], [2], [1], [1], [0, 0, 0, 1, 1, 1], [0], [0]>} : vector<2x8x128xf32>, vector<2x8x128xf32>, vector<2x8x8xf32> -> vector<2x8x8xf32>
    "tpu.trace_stop"() : () -> ()
    %cst_33 = arith.constant 0.0883883461 : f32
    %36 = vector.broadcast %cst_33 : f32 to vector<2x8x8xf32>
    %37 = arith.mulf %35, %36 : vector<2x8x8xf32>
    %c0_34 = arith.constant 0 : index
    %c0_35 = arith.constant 0 : index
    %38 = vector.load %arg6[%c0_34, %c0_35] : memref<8x8xf32, #tpu.memory_space<vmem>>, vector<8x8xf32>
    %cst_36 = arith.constant 0.000000e+00 : f32
    %39 = vector.broadcast %cst_36 : f32 to vector<8x8xf32>
    %40 = arith.cmpf ogt, %38, %39 : vector<8x8xf32>
    %cst_37 = arith.constant -1.000000e+09 : f32
    %41 = vector.shape_cast %40 : vector<8x8xi1> to vector<1x8x8xi1>
    %42 = vector.broadcast %41 : vector<1x8x8xi1> to vector<2x8x8xi1>
    %43 = vector.broadcast %cst_37 : f32 to vector<2x8x8xf32>
    %44 = arith.select %42, %37, %43 : vector<2x8x8xi1>, vector<2x8x8xf32>
    %cst_38 = arith.constant dense<0xFF800000> : vector<2x8xf32>
    %45 = vector.multi_reduction <maximumf>, %44, %cst_38 [2] : vector<2x8x8xf32> to vector<2x8xf32>
    %46 = vector.shape_cast %45 : vector<2x8xf32> to vector<2x8x1xf32>
    %47 = vector.broadcast %46 : vector<2x8x1xf32> to vector<2x8x8xf32>
    %48 = arith.subf %44, %47 : vector<2x8x8xf32>
    %49 = math.exp %48 : vector<2x8x8xf32>
    %cst_39 = arith.constant dense<0.000000e+00> : vector<2x8xf32>
    %50 = vector.multi_reduction <add>, %49, %cst_39 [2] : vector<2x8x8xf32> to vector<2x8xf32>
    %51 = vector.shape_cast %50 : vector<2x8xf32> to vector<2x8x1xf32>
    %52 = tpu.reciprocal %51 {approx = true} : vector<2x8x1xf32> -> vector<2x8x1xf32>
    %53 = vector.broadcast %52 : vector<2x8x1xf32> to vector<2x8x8xf32>
    %54 = arith.mulf %49, %53 : vector<2x8x8xf32>
    "tpu.trace_start"() <{level = 10 : i32, message = "bqk,bkd->bqd"}> : () -> ()
    %cst_40 = arith.constant dense<0.000000e+00> : vector<2x8x128xf32>
    %55 = tpu.matmul %54, %34, %cst_40 {dimension_numbers = #tpu.dot_dimension_numbers<[2], [1], [1], [2], [0, 0, 0, 1, 1, 2], [0], [0]>} : vector<2x8x8xf32>, vector<2x8x128xf32>, vector<2x8x128xf32> -> vector<2x8x128xf32>
    "tpu.trace_stop"() : () -> ()
    %56 = vector.shape_cast %55 : vector<2x8x128xf32> to vector<16x128xf32>
    %cst_41 = arith.constant dense<0.000000e+00> : vector<16x128xf32>
    %57 = tpu.matmul %56, %16, %cst_41 {dimension_numbers = #tpu.dot_dimension_numbers<[1], [0], [0], [1], [0, 0, 1, 1], [], []>} : vector<16x128xf32>, vector<128x128xf32>, vector<16x128xf32> -> vector<16x128xf32>
    %58 = vector.broadcast %21 : vector<1x128xf32> to vector<16x128xf32>
    %59 = arith.addf %57, %58 : vector<16x128xf32>
    %60 = arith.addf %14, %59 : vector<16x128xf32>
    %cst_42 = arith.constant dense<0.000000e+00> : vector<16xf32>
    %61 = vector.multi_reduction <add>, %60, %cst_42 [1] : vector<16x128xf32> to vector<16xf32>
    %62 = vector.shape_cast %61 : vector<16xf32> to vector<16x1xf32>
    %cst_43 = arith.constant 1.280000e+02 : f32
    %63 = vector.broadcast %cst_43 : f32 to vector<16x1xf32>
    %64 = arith.divf %62, %63 : vector<16x1xf32>
    %65 = vector.broadcast %64 : vector<16x1xf32> to vector<16x128xf32>
    %66 = arith.subf %60, %65 : vector<16x128xf32>
    %67 = arith.mulf %66, %66 : vector<16x128xf32>
    %cst_44 = arith.constant dense<0.000000e+00> : vector<16xf32>
    %68 = vector.multi_reduction <add>, %67, %cst_44 [1] : vector<16x128xf32> to vector<16xf32>
    %69 = vector.shape_cast %68 : vector<16xf32> to vector<16x1xf32>
    %cst_45 = arith.constant 1.280000e+02 : f32
    %70 = vector.broadcast %cst_45 : f32 to vector<16x1xf32>
    %71 = arith.divf %69, %70 : vector<16x1xf32>
    %72 = vector.broadcast %64 : vector<16x1xf32> to vector<16x128xf32>
    %73 = arith.subf %60, %72 : vector<16x128xf32>
    %cst_46 = arith.constant 9.99999974E-6 : f32
    %74 = vector.broadcast %cst_46 : f32 to vector<16x1xf32>
    %75 = arith.addf %71, %74 : vector<16x1xf32>
    %76 = math.rsqrt %75 : vector<16x1xf32>
    %77 = vector.broadcast %76 : vector<16x1xf32> to vector<16x128xf32>
    %78 = arith.mulf %73, %77 : vector<16x128xf32>
    %79 = vector.broadcast %22 : vector<1x128xf32> to vector<16x128xf32>
    %80 = arith.mulf %78, %79 : vector<16x128xf32>
    %81 = vector.broadcast %23 : vector<1x128xf32> to vector<16x128xf32>
    %82 = arith.addf %80, %81 : vector<16x128xf32>
    %cst_47 = arith.constant dense<0.000000e+00> : vector<16x256xf32>
    %83 = tpu.matmul %82, %17, %cst_47 {dimension_numbers = #tpu.dot_dimension_numbers<[1], [0], [0], [1], [0, 0, 1, 1], [], []>} : vector<16x128xf32>, vector<128x256xf32>, vector<16x256xf32> -> vector<16x256xf32>
    %84 = vector.broadcast %20 : vector<1x256xf32> to vector<16x256xf32>
    %85 = arith.addf %83, %84 : vector<16x256xf32>
    %cst_48 = arith.constant 0.000000e+00 : f32
    %86 = vector.broadcast %cst_48 : f32 to vector<16x256xf32>
    %87 = arith.maximumf %85, %86 : vector<16x256xf32>
    %c0_49 = arith.constant 0 : index
    %c0_50 = arith.constant 0 : index
    %88 = vector.load %arg8[%c0_49, %c0_50] : memref<256x128xf32, #tpu.memory_space<vmem>>, vector<256x128xf32>
    %cst_51 = arith.constant dense<0.000000e+00> : vector<16x128xf32>
    %89 = tpu.matmul %87, %88, %cst_51 {dimension_numbers = #tpu.dot_dimension_numbers<[1], [0], [0], [1], [0, 0, 1, 1], [], []>} : vector<16x256xf32>, vector<256x128xf32>, vector<16x128xf32> -> vector<16x128xf32>
    %90 = vector.broadcast %24 : vector<1x128xf32> to vector<16x128xf32>
    %91 = arith.addf %89, %90 : vector<16x128xf32>
    %92 = arith.addf %82, %91 : vector<16x128xf32>
    %cst_52 = arith.constant dense<0.000000e+00> : vector<16xf32>
    %93 = vector.multi_reduction <add>, %92, %cst_52 [1] : vector<16x128xf32> to vector<16xf32>
    %94 = vector.shape_cast %93 : vector<16xf32> to vector<16x1xf32>
    %cst_53 = arith.constant 1.280000e+02 : f32
    %95 = vector.broadcast %cst_53 : f32 to vector<16x1xf32>
    %96 = arith.divf %94, %95 : vector<16x1xf32>
    %97 = vector.broadcast %96 : vector<16x1xf32> to vector<16x128xf32>
    %98 = arith.subf %92, %97 : vector<16x128xf32>
    %99 = arith.mulf %98, %98 : vector<16x128xf32>
    %cst_54 = arith.constant dense<0.000000e+00> : vector<16xf32>
    %100 = vector.multi_reduction <add>, %99, %cst_54 [1] : vector<16x128xf32> to vector<16xf32>
    %101 = vector.shape_cast %100 : vector<16xf32> to vector<16x1xf32>
    %cst_55 = arith.constant 1.280000e+02 : f32
    %102 = vector.broadcast %cst_55 : f32 to vector<16x1xf32>
    %103 = arith.divf %101, %102 : vector<16x1xf32>
    %104 = vector.broadcast %96 : vector<16x1xf32> to vector<16x128xf32>
    %105 = arith.subf %92, %104 : vector<16x128xf32>
    %cst_56 = arith.constant 9.99999974E-6 : f32
    %106 = vector.broadcast %cst_56 : f32 to vector<16x1xf32>
    %107 = arith.addf %103, %106 : vector<16x1xf32>
    %108 = math.rsqrt %107 : vector<16x1xf32>
    %109 = vector.broadcast %108 : vector<16x1xf32> to vector<16x128xf32>
    %110 = arith.mulf %105, %109 : vector<16x128xf32>
    %111 = vector.broadcast %25 : vector<1x128xf32> to vector<16x128xf32>
    %112 = arith.mulf %110, %111 : vector<16x128xf32>
    %113 = vector.broadcast %26 : vector<1x128xf32> to vector<16x128xf32>
    %114 = arith.addf %112, %113 : vector<16x128xf32>
    %cst_57 = arith.constant dense<0.000000e+00> : vector<16x128xf32>
    %115 = tpu.matmul %114, %18, %cst_57 {dimension_numbers = #tpu.dot_dimension_numbers<[1], [0], [0], [1], [0, 0, 1, 1], [], []>} : vector<16x128xf32>, vector<128x128xf32>, vector<16x128xf32> -> vector<16x128xf32>
    %116 = vector.broadcast %27 : vector<1x128xf32> to vector<16x128xf32>
    %117 = arith.addf %115, %116 : vector<16x128xf32>
    %118 = tpu.iota {dimensions = array<i32: 1>} : vector<16x128xi32>
    %c16_i32 = arith.constant 16 : i32
    %119 = vector.broadcast %c16_i32 : i32 to vector<16x128xi32>
    %120 = arith.cmpi slt, %118, %119 : vector<16x128xi32>
    %cst_58 = arith.constant -1.000000e+30 : f32
    %121 = vector.broadcast %cst_58 : f32 to vector<16x128xf32>
    %122 = arith.select %120, %117, %121 : vector<16x128xi1>, vector<16x128xf32>
    %cst_59 = arith.constant dense<0xFF800000> : vector<16xf32>
    %123 = vector.multi_reduction <maximumf>, %122, %cst_59 [1] : vector<16x128xf32> to vector<16xf32>
    %124 = vector.shape_cast %123 : vector<16xf32> to vector<16x1xf32>
    %125 = vector.broadcast %124 : vector<16x1xf32> to vector<16x128xf32>
    %126 = arith.subf %122, %125 : vector<16x128xf32>
    %127 = math.exp %126 : vector<16x128xf32>
    %cst_60 = arith.constant dense<0.000000e+00> : vector<16xf32>
    %128 = vector.multi_reduction <add>, %127, %cst_60 [1] : vector<16x128xf32> to vector<16xf32>
    %129 = vector.shape_cast %128 : vector<16xf32> to vector<16x1xf32>
    %130 = vector.broadcast %129 : vector<16x1xf32> to vector<16x128xf32>
    %131 = arith.divf %127, %130 : vector<16x128xf32>
    %132 = arith.select %120, %131, %117 : vector<16x128xi1>, vector<16x128xf32>
    %c0_61 = arith.constant 0 : index
    %c0_62 = arith.constant 0 : index
    %133 = vector.load %arg10[%c0_61, %c0_62] : memref<16x128xf32, #tpu.memory_space<vmem>>, vector<16x128xf32>
    tpu.vector_store %arg10[%c0_61, %c0_62], %132 {strides = array<i32>} : memref<16x128xf32, #tpu.memory_space<vmem>>, vector<16x128xf32>,
    return
  }
  func.func @transform_0(%arg0: i32) -> (i32, i32, i32) {
    %c0_i32 = arith.constant 0 : i32
    %c0_i32_0 = arith.constant 0 : i32
    %c0_i32_1 = arith.constant 0 : i32
    %c0_i32_2 = arith.constant 0 : i32
    return %c0_i32, %c0_i32_0, %c0_i32_1 : i32, i32, i32
  }
  func.func @transform_1(%arg0: i32) -> (i32, i32, i32) {
    %c0_i32 = arith.constant 0 : i32
    %c0_i32_0 = arith.constant 0 : i32
    %c0_i32_1 = arith.constant 0 : i32
    %c0_i32_2 = arith.constant 0 : i32
    return %c0_i32, %c0_i32_0, %c0_i32_1 : i32, i32, i32
  }
  func.func @transform_2(%arg0: i32) -> (i32, i32, i32) {
    %c0_i32 = arith.constant 0 : i32
    %c0_i32_0 = arith.constant 0 : i32
    %c0_i32_1 = arith.constant 0 : i32
    %c0_i32_2 = arith.constant 0 : i32
    return %c0_i32, %c0_i32_0, %c0_i32_1 : i32, i32, i32
  }
  func.func @transform_3(%arg0: i32) -> (i32, i32) {
    %c0_i32 = arith.constant 0 : i32
    %c0_i32_0 = arith.constant 0 : i32
    %c0_i32_1 = arith.constant 0 : i32
    return %c0_i32, %c0_i32_0 : i32, i32
  }
  func.func @transform_4(%arg0: i32) -> (i32, i32) {
    %c0_i32 = arith.constant 0 : i32
    %c0_i32_0 = arith.constant 0 : i32
    %c0_i32_1 = arith.constant 0 : i32
    return %c0_i32, %c0_i32_0 : i32, i32
  }
  func.func @transform_5(%arg0: i32) -> (i32, i32) {
    %c0_i32 = arith.constant 0 : i32
    %c0_i32_0 = arith.constant 0 : i32
    %c0_i32_1 = arith.constant 0 : i32
    return %c0_i32, %c0_i32_0 : i32, i32
  }
  func.func @transform_6(%arg0: i32) -> (i32, i32) {
    %c0_i32 = arith.constant 0 : i32
    %c0_i32_0 = arith.constant 0 : i32
    %c0_i32_1 = arith.constant 0 : i32
    return %c0_i32, %c0_i32_0 : i32, i32
  }
  func.func @transform_7(%arg0: i32) -> (i32, i32) {
    %c0_i32 = arith.constant 0 : i32
    %c0_i32_0 = arith.constant 0 : i32
    %c0_i32_1 = arith.constant 0 : i32
    return %c0_i32, %c0_i32_0 : i32, i32
  }
  func.func @transform_8(%arg0: i32) -> (i32, i32) {
    %c0_i32 = arith.constant 0 : i32
    %c0_i32_0 = arith.constant 0 : i32
    %c0_i32_1 = arith.constant 0 : i32
    return %c0_i32, %c0_i32_0 : i32, i32
  }
  func.func @transform_9(%arg0: i32) -> (i32, i32) {
    %c0_i32 = arith.constant 0 : i32
    %c0_i32_0 = arith.constant 0 : i32
    %c0_i32_1 = arith.constant 0 : i32
    return %c0_i32, %c0_i32_0 : i32, i32
  }
}

</mosaic_0001>

<llo_original>
// kernel: policy6_forward.1
$region0: #{policy6_forward.1}
  #allocation0 [shape = 'u32[]', space=smem, size = 0x4, offset = 0x4, fixed_abs, tag = 'smem constant byte address 0x4 - core index']
  #allocation1 [shape = 'u32[144,128]{1,0:T(1,128)}', space=vmem, size = 0x12000, scoped, tag = 'internal scratch']
  %s0 = inlined_call_operand.vmem [shape: f32[49,16,32], index: 0, kind: input, shape index: {}]
  %s1 = inlined_call_operand.vmem [shape: f32[49,32,32], index: 1, kind: input, shape index: {}]
  %s2 = inlined_call_operand.vmem [shape: f32[49,32,128], index: 2, kind: input, shape index: {}]
  %s3 = inlined_call_operand.vmem [shape: f32[1,128], index: 3, kind: input, shape index: {}]
  %s4 = inlined_call_operand.vmem [shape: f32[16,128], index: 4, kind: input, shape index: {}]
  %s5 = inlined_call_operand.vmem [shape: f32[8,8], index: 5, kind: input, shape index: {}]
  %s6 = inlined_call_operand.vmem [shape: f32[128,896], index: 6, kind: input, shape index: {}]
  %s7 = inlined_call_operand.vmem [shape: f32[256,128], index: 7, kind: input, shape index: {}]
  %s8 = inlined_call_operand.vmem [shape: f32[9,384], index: 8, kind: input, shape index: {}]
  %s9 = inlined_call_operand.vmem [shape: f32[16,128], index: 9, kind: output, shape index: {}]
  %s10 = sld [smem:[#allocation0]]
  $region46: #{policy6_forward.1} parent=0
    _
  %s12 = ssub.s32 1, %s10
  %s13 = scalar_select 0, %s12, %s10
  // Predicated region
  $region2: #{policy6_forward.1} parent=0 // pred_check
    _
  $region3: #{policy6_forward.1} parent=0 // pred_check_branch
    %15 = sbr.rel (0) target = $region5
  $region4: #{policy6_forward.1} parent=0 // pred_region
    _
  $region5: #{policy6_forward.1} parent=0 // pred_fallthru
    _
  // Predicated region
  $region6: #{policy6_forward.1} parent=0 // pred_check
    _
  $region7: #{policy6_forward.1} parent=0 // pred_check_branch
    %17 = sbr.rel (0) target = $region9
  $region8: #{policy6_forward.1} parent=0 // pred_region
    _
  $region9: #{policy6_forward.1} parent=0 // pred_fallthru
    _
  // Predicated region
  $region10: #{policy6_forward.1} parent=0 // pred_check
    _
  $region11: #{policy6_forward.1} parent=0 // pred_check_branch
    %19 = sbr.rel (0) target = $region13
  $region12: #{policy6_forward.1} parent=0 // pred_region
    _
  $region13: #{policy6_forward.1} parent=0 // pred_fallthru
    _
  // Predicated region
  $region14: #{policy6_forward.1} parent=0 // pred_check
    _
  $region15: #{policy6_forward.1} parent=0 // pred_check_branch
    %21 = sbr.rel (0) target = $region17
  $region16: #{policy6_forward.1} parent=0 // pred_region
    _
  $region17: #{policy6_forward.1} parent=0 // pred_fallthru
    _
  // Predicated region
  $region18: #{policy6_forward.1} parent=0 // pred_check
    _
  $region19: #{policy6_forward.1} parent=0 // pred_check_branch
    %23 = sbr.rel (0) target = $region21
  $region20: #{policy6_forward.1} parent=0 // pred_region
    _
  $region21: #{policy6_forward.1} parent=0 // pred_fallthru
    _
  // Predicated region
  $region22: #{policy6_forward.1} parent=0 // pred_check
    _
  $region23: #{policy6_forward.1} parent=0 // pred_check_branch
    %25 = sbr.rel (0) target = $region25
  $region24: #{policy6_forward.1} parent=0 // pred_region
    _
  $region25: #{policy6_forward.1} parent=0 // pred_fallthru
    _
  // Predicated region
  $region26: #{policy6_forward.1} parent=0 // pred_check
    _
  $region27: #{policy6_forward.1} parent=0 // pred_check_branch
    %27 = sbr.rel (0) target = $region29
  $region28: #{policy6_forward.1} parent=0 // pred_region
    _
  $region29: #{policy6_forward.1} parent=0 // pred_fallthru
    _
  // Predicated region
  $region30: #{policy6_forward.1} parent=0 // pred_check
    _
  $region31: #{policy6_forward.1} parent=0 // pred_check_branch
    %29 = sbr.rel (0) target = $region33
  $region32: #{policy6_forward.1} parent=0 // pred_region
    _
  $region33: #{policy6_forward.1} parent=0 // pred_fallthru
    _
  // Predicated region
  $region34: #{policy6_forward.1} parent=0 // pred_check
    _
  $region35: #{policy6_forward.1} parent=0 // pred_check_branch
    %31 = sbr.rel (0) target = $region37
  $region36: #{policy6_forward.1} parent=0 // pred_region
    _
  $region37: #{policy6_forward.1} parent=0 // pred_fallthru
    _
  %v32 = vld [vmem:[%s0] sm:$0xff]
  %v33 = vld [vmem:[%s0 + $0x8] sm:$0xff]
  %v34 = vld [vmem:[%s0 + $0x10] sm:$0xff]
  %v35 = vld [vmem:[%s0 + $0x18] sm:$0xff]
  %v36 = vld [vmem:[%s0 + $0x20] sm:$0xff]
  %v37 = vld [vmem:[%s0 + $0x28] sm:$0xff]
  %v38 = vld [vmem:[%s0 + $0x30] sm:$0xff]
  %v39 = vld [vmem:[%s0 + $0x38] sm:$0xff]
  %v40 = vld [vmem:[%s0 + $0x40] sm:$0xff]
  %v41 = vld [vmem:[%s0 + $0x48] sm:$0xff]
  %v42 = vld [vmem:[%s0 + $0x50] sm:$0xff]
  %v43 = vld [vmem:[%s0 + $0x58] sm:$0xff]
  %v44 = vld [vmem:[%s0 + $0x60] sm:$0xff]
  %v45 = vld [vmem:[%s0 + $0x68] sm:$0xff]
  %v46 = vld [vmem:[%s0 + $0x70] sm:$0xff]
  %v47 = vld [vmem:[%s0 + $0x78] sm:$0xff]
  %v48 = vld [vmem:[%s0 + $0x80] sm:$0xff]
  %v49 = vld [vmem:[%s0 + $0x88] sm:$0xff]
  %v50 = vld [vmem:[%s0 + $0x90] sm:$0xff]
  %v51 = vld [vmem:[%s0 + $0x98] sm:$0xff]
  %v52 = vld [vmem:[%s0 + $0xa0] sm:$0xff]
  %v53 = vld [vmem:[%s0 + $0xa8] sm:$0xff]
  %v54 = vld [vmem:[%s0 + $0xb0] sm:$0xff]
  %v55 = vld [vmem:[%s0 + $0xb8] sm:$0xff]
  %v56 = vld [vmem:[%s0 + $0xc0] sm:$0xff]
  %v57 = vld [vmem:[%s0 + $0xc8] sm:$0xff]
  %v58 = vld [vmem:[%s0 + $0xd0] sm:$0xff]
  %v59 = vld [vmem:[%s0 + $0xd8] sm:$0xff]
  %v60 = vld [vmem:[%s0 + $0xe0] sm:$0xff]
  %v61 = vld [vmem:[%s0 + $0xe8] sm:$0xff]
  %v62 = vld [vmem:[%s0 + $0xf0] sm:$0xff]
  %v63 = vld [vmem:[%s0 + $0xf8] sm:$0xff]
  %v64 = vld [vmem:[%s0 + $0x100] sm:$0xff]
  %v65 = vld [vmem:[%s0 + $0x108] sm:$0xff]
  %v66 = vld [vmem:[%s0 + $0x110] sm:$0xff]
  %v67 = vld [vmem:[%s0 + $0x118] sm:$0xff]
  %v68 = vld [vmem:[%s0 + $0x120] sm:$0xff]
  %v69 = vld [vmem:[%s0 + $0x128] sm:$0xff]
  %v70 = vld [vmem:[%s0 + $0x130] sm:$0xff]
  %v71 = vld [vmem:[%s0 + $0x138] sm:$0xff]
  %v72 = vld [vmem:[%s0 + $0x140] sm:$0xff]
  %v73 = vld [vmem:[%s0 + $0x148] sm:$0xff]
  %v74 = vld [vmem:[%s0 + $0x150] sm:$0xff]
  %v75 = vld [vmem:[%s0 + $0x158] sm:$0xff]
  %v76 = vld [vmem:[%s0 + $0x160] sm:$0xff]
  %v77 = vld [vmem:[%s0 + $0x168] sm:$0xff]
  %v78 = vld [vmem:[%s0 + $0x170] sm:$0xff]
  %v79 = vld [vmem:[%s0 + $0x178] sm:$0xff]
  %v80 = vld [vmem:[%s0 + $0x180] sm:$0xff]
  %v81 = vld [vmem:[%s0 + $0x188] sm:$0xff]
  %v82 = vld [vmem:[%s0 + $0x190] sm:$0xff]
  %v83 = vld [vmem:[%s0 + $0x198] sm:$0xff]
  %v84 = vld [vmem:[%s0 + $0x1a0] sm:$0xff]
  %v85 = vld [vmem:[%s0 + $0x1a8] sm:$0xff]
  %v86 = vld [vmem:[%s0 + $0x1b0] sm:$0xff]
  %v87 = vld [vmem:[%s0 + $0x1b8] sm:$0xff]
  %v88 = vld [vmem:[%s0 + $0x1c0] sm:$0xff]
  %v89 = vld [vmem:[%s0 + $0x1c8] sm:$0xff]
  %v90 = vld [vmem:[%s0 + $0x1d0] sm:$0xff]
  %v91 = vld [vmem:[%s0 + $0x1d8] sm:$0xff]
  %v92 = vld [vmem:[%s0 + $0x1e0] sm:$0xff]
  %v93 = vld [vmem:[%s0 + $0x1e8] sm:$0xff]
  %v94 = vld [vmem:[%s0 + $0x1f0] sm:$0xff]
  %v95 = vld [vmem:[%s0 + $0x1f8] sm:$0xff]
  %v96 = vld [vmem:[%s0 + $0x200] sm:$0xff]
  %v97 = vld [vmem:[%s0 + $0x208] sm:$0xff]
  %v98 = vld [vmem:[%s0 + $0x210] sm:$0xff]
  %v99 = vld [vmem:[%s0 + $0x218] sm:$0xff]
  %v100 = vld [vmem:[%s0 + $0x220] sm:$0xff]
  %v101 = vld [vmem:[%s0 + $0x228] sm:$0xff]
  %v102 = vld [vmem:[%s0 + $0x230] sm:$0xff]
  %v103 = vld [vmem:[%s0 + $0x238] sm:$0xff]
  %v104 = vld [vmem:[%s0 + $0x240] sm:$0xff]
  %v105 = vld [vmem:[%s0 + $0x248] sm:$0xff]
  %v106 = vld [vmem:[%s0 + $0x250] sm:$0xff]
  %v107 = vld [vmem:[%s0 + $0x258] sm:$0xff]
  %v108 = vld [vmem:[%s0 + $0x260] sm:$0xff]
  %v109 = vld [vmem:[%s0 + $0x268] sm:$0xff]
  %v110 = vld [vmem:[%s0 + $0x270] sm:$0xff]
  %v111 = vld [vmem:[%s0 + $0x278] sm:$0xff]
  %v112 = vld [vmem:[%s0 + $0x280] sm:$0xff]
  %v113 = vld [vmem:[%s0 + $0x288] sm:$0xff]
  %v114 = vld [vmem:[%s0 + $0x290] sm:$0xff]
  %v115 = vld [vmem:[%s0 + $0x298] sm:$0xff]
  %v116 = vld [vmem:[%s0 + $0x2a0] sm:$0xff]
  %v117 = vld [vmem:[%s0 + $0x2a8] sm:$0xff]
  %v118 = vld [vmem:[%s0 + $0x2b0] sm:$0xff]
  %v119 = vld [vmem:[%s0 + $0x2b8] sm:$0xff]
  %v120 = vld [vmem:[%s0 + $0x2c0] sm:$0xff]
  %v121 = vld [vmem:[%s0 + $0x2c8] sm:$0xff]
  %v122 = vld [vmem:[%s0 + $0x2d0] sm:$0xff]
  %v123 = vld [vmem:[%s0 + $0x2d8] sm:$0xff]
  %v124 = vld [vmem:[%s0 + $0x2e0] sm:$0xff]
  %v125 = vld [vmem:[%s0 + $0x2e8] sm:$0xff]
  %v126 = vld [vmem:[%s0 + $0x2f0] sm:$0xff]
  %v127 = vld [vmem:[%s0 + $0x2f8] sm:$0xff]
  %v128 = vld [vmem:[%s0 + $0x300] sm:$0xff]
  %v129 = vld [vmem:[%s0 + $0x308] sm:$0xff]
  %v130 = vld [vmem:[%s1] sm:$0xff]
  %v131 = vld [vmem:[%s1 + $0x8] sm:$0xff]
  %v132 = vld [vmem:[%s1 + $0x10] sm:$0xff]
  %v133 = vld [vmem:[%s1 + $0x18] sm:$0xff]
  %v134 = vld [vmem:[%s1 + $0x20] sm:$0xff]
  %v135 = vld [vmem:[%s1 + $0x28] sm:$0xff]
  %v136 = vld [vmem:[%s1 + $0x30] sm:$0xff]
  %v137 = vld [vmem:[%s1 + $0x38] sm:$0xff]
  %v138 = vld [vmem:[%s1 + $0x40] sm:$0xff]
  %v139 = vld [vmem:[%s1 + $0x48] sm:$0xff]
  %v140 = vld [vmem:[%s1 + $0x50] sm:$0xff]
  %v141 = vld [vmem:[%s1 + $0x58] sm:$0xff]
  %v142 = vld [vmem:[%s1 + $0x60] sm:$0xff]
  %v143 = vld [vmem:[%s1 + $0x68] sm:$0xff]
  %v144 = vld [vmem:[%s1 + $0x70] sm:$0xff]
  %v145 = vld [vmem:[%s1 + $0x78] sm:$0xff]
  %v146 = vld [vmem:[%s1 + $0x80] sm:$0xff]
  %v147 = vld [vmem:[%s1 + $0x88] sm:$0xff]
  %v148 = vld [vmem:[%s1 + $0x90] sm:$0xff]
  %v149 = vld [vmem:[%s1 + $0x98] sm:$0xff]
  %v150 = vld [vmem:[%s1 + $0xa0] sm:$0xff]
  %v151 = vld [vmem:[%s1 + $0xa8] sm:$0xff]
  %v152 = vld [vmem:[%s1 + $0xb0] sm:$0xff]
  %v153 = vld [vmem:[%s1 + $0xb8] sm:$0xff]
  %v154 = vld [vmem:[%s1 + $0xc0] sm:$0xff]
  %v155 = vld [vmem:[%s1 + $0xc8] sm:$0xff]
  %v156 = vld [vmem:[%s1 + $0xd0] sm:$0xff]
  %v157 = vld [vmem:[%s1 + $0xd8] sm:$0xff]
  %v158 = vld [vmem:[%s1 + $0xe0] sm:$0xff]
  %v159 = vld [vmem:[%s1 + $0xe8] sm:$0xff]
  %v160 = vld [vmem:[%s1 + $0xf0] sm:$0xff]
  %v161 = vld [vmem:[%s1 + $0xf8] sm:$0xff]
  %v162 = vld [vmem:[%s1 + $0x100] sm:$0xff]
  %v163 = vld [vmem:[%s1 + $0x108] sm:$0xff]
  %v164 = vld [vmem:[%s1 + $0x110] sm:$0xff]
  %v165 = vld [vmem:[%s1 + $0x118] sm:$0xff]
  %v166 = vld [vmem:[%s1 + $0x120] sm:$0xff]
  %v167 = vld [vmem:[%s1 + $0x128] sm:$0xff]
  %v168 = vld [vmem:[%s1 + $0x130] sm:$0xff]
  %v169 = vld [vmem:[%s1 + $0x138] sm:$0xff]
  %v170 = vld [vmem:[%s1 + $0x140] sm:$0xff]
  %v171 = vld [vmem:[%s1 + $0x148] sm:$0xff]
  %v172 = vld [vmem:[%s1 + $0x150] sm:$0xff]
  %v173 = vld [vmem:[%s1 + $0x158] sm:$0xff]
  %v174 = vld [vmem:[%s1 + $0x160] sm:$0xff]
  %v175 = vld [vmem:[%s1 + $0x168] sm:$0xff]
  %v176 = vld [vmem:[%s1 + $0x170] sm:$0xff]
  %v177 = vld [vmem:[%s1 + $0x178] sm:$0xff]
  %v178 = vld [vmem:[%s1 + $0x180] sm:$0xff]
  %v179 = vld [vmem:[%s1 + $0x188] sm:$0xff]
  %v180 = vld [vmem:[%s1 + $0x190] sm:$0xff]
  %v181 = vld [vmem:[%s1 + $0x198] sm:$0xff]
  %v182 = vld [vmem:[%s1 + $0x1a0] sm:$0xff]
  %v183 = vld [vmem:[%s1 + $0x1a8] sm:$0xff]
  %v184 = vld [vmem:[%s1 + $0x1b0] sm:$0xff]
  %v185 = vld [vmem:[%s1 + $0x1b8] sm:$0xff]
  %v186 = vld [vmem:[%s1 + $0x1c0] sm:$0xff]
  %v187 = vld [vmem:[%s1 + $0x1c8] sm:$0xff]
  %v188 = vld [vmem:[%s1 + $0x1d0] sm:$0xff]
  %v189 = vld [vmem:[%s1 + $0x1d8] sm:$0xff]
  %v190 = vld [vmem:[%s1 + $0x1e0] sm:$0xff]
  %v191 = vld [vmem:[%s1 + $0x1e8] sm:$0xff]
  %v192 = vld [vmem:[%s1 + $0x1f0] sm:$0xff]
  %v193 = vld [vmem:[%s1 + $0x1f8] sm:$0xff]
  %v194 = vld [vmem:[%s1 + $0x200] sm:$0xff]
  %v195 = vld [vmem:[%s1 + $0x208] sm:$0xff]
  %v196 = vld [vmem:[%s1 + $0x210] sm:$0xff]
  %v197 = vld [vmem:[%s1 + $0x218] sm:$0xff]
  %v198 = vld [vmem:[%s1 + $0x220] sm:$0xff]
  %v199 = vld [vmem:[%s1 + $0x228] sm:$0xff]
  %v200 = vld [vmem:[%s1 + $0x230] sm:$0xff]
  %v201 = vld [vmem:[%s1 + $0x238] sm:$0xff]
  %v202 = vld [vmem:[%s1 + $0x240] sm:$0xff]
  %v203 = vld [vmem:[%s1 + $0x248] sm:$0xff]
  %v204 = vld [vmem:[%s1 + $0x250] sm:$0xff]
  %v205 = vld [vmem:[%s1 + $0x258] sm:$0xff]
  %v206 = vld [vmem:[%s1 + $0x260] sm:$0xff]
  %v207 = vld [vmem:[%s1 + $0x268] sm:$0xff]
  %v208 = vld [vmem:[%s1 + $0x270] sm:$0xff]
  %v209 = vld [vmem:[%s1 + $0x278] sm:$0xff]
  %v210 = vld [vmem:[%s1 + $0x280] sm:$0xff]
  %v211 = vld [vmem:[%s1 + $0x288] sm:$0xff]
  %v212 = vld [vmem:[%s1 + $0x290] sm:$0xff]
  %v213 = vld [vmem:[%s1 + $0x298] sm:$0xff]
  %v214 = vld [vmem:[%s1 + $0x2a0] sm:$0xff]
  %v215 = vld [vmem:[%s1 + $0x2a8] sm:$0xff]
  %v216 = vld [vmem:[%s1 + $0x2b0] sm:$0xff]
  %v217 = vld [vmem:[%s1 + $0x2b8] sm:$0xff]
  %v218 = vld [vmem:[%s1 + $0x2c0] sm:$0xff]
  %v219 = vld [vmem:[%s1 + $0x2c8] sm:$0xff]
  %v220 = vld [vmem:[%s1 + $0x2d0] sm:$0xff]
  %v221 = vld [vmem:[%s1 + $0x2d8] sm:$0xff]
  %v222 = vld [vmem:[%s1 + $0x2e0] sm:$0xff]
  %v223 = vld [vmem:[%s1 + $0x2e8] sm:$0xff]
  %v224 = vld [vmem:[%s1 + $0x2f0] sm:$0xff]
  %v225 = vld [vmem:[%s1 + $0x2f8] sm:$0xff]
  %v226 = vld [vmem:[%s1 + $0x300] sm:$0xff]
  %v227 = vld [vmem:[%s1 + $0x308] sm:$0xff]
  %v228 = vld [vmem:[%s1 + $0x310] sm:$0xff]
  %v229 = vld [vmem:[%s1 + $0x318] sm:$0xff]
  %v230 = vld [vmem:[%s1 + $0x320] sm:$0xff]
  %v231 = vld [vmem:[%s1 + $0x328] sm:$0xff]
  %v232 = vld [vmem:[%s1 + $0x330] sm:$0xff]
  %v233 = vld [vmem:[%s1 + $0x338] sm:$0xff]
  %v234 = vld [vmem:[%s1 + $0x340] sm:$0xff]
  %v235 = vld [vmem:[%s1 + $0x348] sm:$0xff]
  %v236 = vld [vmem:[%s1 + $0x350] sm:$0xff]
  %v237 = vld [vmem:[%s1 + $0x358] sm:$0xff]
  %v238 = vld [vmem:[%s1 + $0x360] sm:$0xff]
  %v239 = vld [vmem:[%s1 + $0x368] sm:$0xff]
  %v240 = vld [vmem:[%s1 + $0x370] sm:$0xff]
  %v241 = vld [vmem:[%s1 + $0x378] sm:$0xff]
  %v242 = vld [vmem:[%s1 + $0x380] sm:$0xff]
  %v243 = vld [vmem:[%s1 + $0x388] sm:$0xff]
  %v244 = vld [vmem:[%s1 + $0x390] sm:$0xff]
  %v245 = vld [vmem:[%s1 + $0x398] sm:$0xff]
  %v246 = vld [vmem:[%s1 + $0x3a0] sm:$0xff]
  %v247 = vld [vmem:[%s1 + $0x3a8] sm:$0xff]
  %v248 = vld [vmem:[%s1 + $0x3b0] sm:$0xff]
  %v249 = vld [vmem:[%s1 + $0x3b8] sm:$0xff]
  %v250 = vld [vmem:[%s1 + $0x3c0] sm:$0xff]
  %v251 = vld [vmem:[%s1 + $0x3c8] sm:$0xff]
  %v252 = vld [vmem:[%s1 + $0x3d0] sm:$0xff]
  %v253 = vld [vmem:[%s1 + $0x3d8] sm:$0xff]
  %v254 = vld [vmem:[%s1 + $0x3e0] sm:$0xff]
  %v255 = vld [vmem:[%s1 + $0x3e8] sm:$0xff]
  %v256 = vld [vmem:[%s1 + $0x3f0] sm:$0xff]
  %v257 = vld [vmem:[%s1 + $0x3f8] sm:$0xff]
  %v258 = vld [vmem:[%s1 + $0x400] sm:$0xff]
  %v259 = vld [vmem:[%s1 + $0x408] sm:$0xff]
  %v260 = vld [vmem:[%s1 + $0x410] sm:$0xff]
  %v261 = vld [vmem:[%s1 + $0x418] sm:$0xff]
  %v262 = vld [vmem:[%s1 + $0x420] sm:$0xff]
  %v263 = vld [vmem:[%s1 + $0x428] sm:$0xff]
  %v264 = vld [vmem:[%s1 + $0x430] sm:$0xff]
  %v265 = vld [vmem:[%s1 + $0x438] sm:$0xff]
  %v266 = vld [vmem:[%s1 + $0x440] sm:$0xff]
  %v267 = vld [vmem:[%s1 + $0x448] sm:$0xff]
  %v268 = vld [vmem:[%s1 + $0x450] sm:$0xff]
  %v269 = vld [vmem:[%s1 + $0x458] sm:$0xff]
  %v270 = vld [vmem:[%s1 + $0x460] sm:$0xff]
  %v271 = vld [vmem:[%s1 + $0x468] sm:$0xff]
  %v272 = vld [vmem:[%s1 + $0x470] sm:$0xff]
  %v273 = vld [vmem:[%s1 + $0x478] sm:$0xff]
  %v274 = vld [vmem:[%s1 + $0x480] sm:$0xff]
  %v275 = vld [vmem:[%s1 + $0x488] sm:$0xff]
  %v276 = vld [vmem:[%s1 + $0x490] sm:$0xff]
  %v277 = vld [vmem:[%s1 + $0x498] sm:$0xff]
  %v278 = vld [vmem:[%s1 + $0x4a0] sm:$0xff]
  %v279 = vld [vmem:[%s1 + $0x4a8] sm:$0xff]
  %v280 = vld [vmem:[%s1 + $0x4b0] sm:$0xff]
  %v281 = vld [vmem:[%s1 + $0x4b8] sm:$0xff]
  %v282 = vld [vmem:[%s1 + $0x4c0] sm:$0xff]
  %v283 = vld [vmem:[%s1 + $0x4c8] sm:$0xff]
  %v284 = vld [vmem:[%s1 + $0x4d0] sm:$0xff]
  %v285 = vld [vmem:[%s1 + $0x4d8] sm:$0xff]
  %v286 = vld [vmem:[%s1 + $0x4e0] sm:$0xff]
  %v287 = vld [vmem:[%s1 + $0x4e8] sm:$0xff]
  %v288 = vld [vmem:[%s1 + $0x4f0] sm:$0xff]
  %v289 = vld [vmem:[%s1 + $0x4f8] sm:$0xff]
  %v290 = vld [vmem:[%s1 + $0x500] sm:$0xff]
  %v291 = vld [vmem:[%s1 + $0x508] sm:$0xff]
  %v292 = vld [vmem:[%s1 + $0x510] sm:$0xff]
  %v293 = vld [vmem:[%s1 + $0x518] sm:$0xff]
  %v294 = vld [vmem:[%s1 + $0x520] sm:$0xff]
  %v295 = vld [vmem:[%s1 + $0x528] sm:$0xff]
  %v296 = vld [vmem:[%s1 + $0x530] sm:$0xff]
  %v297 = vld [vmem:[%s1 + $0x538] sm:$0xff]
  %v298 = vld [vmem:[%s1 + $0x540] sm:$0xff]
  %v299 = vld [vmem:[%s1 + $0x548] sm:$0xff]
  %v300 = vld [vmem:[%s1 + $0x550] sm:$0xff]
  %v301 = vld [vmem:[%s1 + $0x558] sm:$0xff]
  %v302 = vld [vmem:[%s1 + $0x560] sm:$0xff]
  %v303 = vld [vmem:[%s1 + $0x568] sm:$0xff]
  %v304 = vld [vmem:[%s1 + $0x570] sm:$0xff]
  %v305 = vld [vmem:[%s1 + $0x578] sm:$0xff]
  %v306 = vld [vmem:[%s1 + $0x580] sm:$0xff]
  %v307 = vld [vmem:[%s1 + $0x588] sm:$0xff]
  %v308 = vld [vmem:[%s1 + $0x590] sm:$0xff]
  %v309 = vld [vmem:[%s1 + $0x598] sm:$0xff]
  %v310 = vld [vmem:[%s1 + $0x5a0] sm:$0xff]
  %v311 = vld [vmem:[%s1 + $0x5a8] sm:$0xff]
  %v312 = vld [vmem:[%s1 + $0x5b0] sm:$0xff]
  %v313 = vld [vmem:[%s1 + $0x5b8] sm:$0xff]
  %v314 = vld [vmem:[%s1 + $0x5c0] sm:$0xff]
  %v315 = vld [vmem:[%s1 + $0x5c8] sm:$0xff]
  %v316 = vld [vmem:[%s1 + $0x5d0] sm:$0xff]
  %v317 = vld [vmem:[%s1 + $0x5d8] sm:$0xff]
  %v318 = vld [vmem:[%s1 + $0x5e0] sm:$0xff]
  %v319 = vld [vmem:[%s1 + $0x5e8] sm:$0xff]
  %v320 = vld [vmem:[%s1 + $0x5f0] sm:$0xff]
  %v321 = vld [vmem:[%s1 + $0x5f8] sm:$0xff]
  %v322 = vld [vmem:[%s1 + $0x600] sm:$0xff]
  %v323 = vld [vmem:[%s1 + $0x608] sm:$0xff]
  %v324 = vld [vmem:[%s1 + $0x610] sm:$0xff]
  %v325 = vld [vmem:[%s1 + $0x618] sm:$0xff]
  %vm326 = vcmask 261120
  %v328 = vsel %vm326, %v32, 0
  %v331 = vsel %vm326, %v33, 0
  %333 = vmatprep.subr.mxu0 0.0
  %334 = vmatpush1.msra.mxu0 0.0
  %335 = vmatprep.subr.mxu0 0.0
  %336 = vmatpush1.msra.mxu0 0.0
  %337 = vmatprep.subr.mxu0 0.0
  %338 = vmatpush1.msra.mxu0 0.0
  %339 = vmatprep.subr.mxu0 0.0
  %340 = vmatpush1.msra.mxu0 0.0
  %341 = vmatprep.subr.mxu0 0.0
  %342 = vmatpush1.msra.mxu0 0.0
  %343 = vmatprep.subr.mxu0 0.0
  %344 = vmatpush1.msra.mxu0 0.0
  %345 = vmatprep.subr.mxu0 0.0
  %346 = vmatpush1.msra.mxu0 0.0
  %347 = vmatprep.subr.mxu0 0.0
  %348 = vmatpush1.msra.mxu0 0.0
  %349 = vmatprep.subr.mxu0 0.0
  %350 = vmatpush1.msra.mxu0 0.0
  %351 = vmatprep.subr.mxu0 0.0
  %352 = vmatpush1.msra.mxu0 0.0
  %353 = vmatprep.subr.mxu0 0.0
  %354 = vmatpush1.msra.mxu0 0.0
  %355 = vmatprep.subr.mxu0 0.0
  %356 = vmatpush1.msra.mxu0 0.0
  %357 = vmatprep.subr.mxu0 0.0
  %358 = vmatpush1.msra.mxu0 %v133
  %359 = vmatprep.subr.mxu0 0.0
  %360 = vmatpush1.msra.mxu0 %v132
  %361 = vmatprep.subr.mxu0 0.0
  %362 = vmatpush1.msra.mxu0 %v131
  %363 = vmatprep.subr.mxu0 0.0
  %364 = vmatpush1.msra.mxu0 %v130
  %365 = vmatprep.subr.mxu0 0.0
  %366 = vmatpush2.msra.mxu0 0.0
  %367 = vmatprep.subr.mxu0 0.0
  %368 = vmatpush2.msra.mxu0 0.0
  %369 = vmatprep.subr.mxu0 0.0
  %370 = vmatpush2.msra.mxu0 0.0
  %371 = vmatprep.subr.mxu0 0.0
  %372 = vmatpush2.msra.mxu0 0.0
  %373 = vmatprep.subr.mxu0 0.0
  %374 = vmatpush2.msra.mxu0 0.0
  %375 = vmatprep.subr.mxu0 0.0
  %376 = vmatpush2.msra.mxu0 0.0
  %377 = vmatprep.subr.mxu0 0.0
  %378 = vmatpush2.msra.mxu0 0.0
  %379 = vmatprep.subr.mxu0 0.0
  %380 = vmatpush2.msra.mxu0 0.0
  %381 = vmatprep.subr.mxu0 0.0
  %382 = vmatpush2.msra.mxu0 0.0
  %383 = vmatprep.subr.mxu0 0.0
  %384 = vmatpush2.msra.mxu0 0.0
  %385 = vmatprep.subr.mxu0 0.0
  %386 = vmatpush2.msra.mxu0 0.0
  %387 = vmatprep.subr.mxu0 0.0
  %388 = vmatpush2.msra.mxu0 0.0
  %389 = vmatprep.subr.mxu0 0.0
  %390 = vmatpush2.msra.mxu0 0.0
  %391 = vmatprep.subr.mxu0 0.0
  %392 = vmatpush2.msra.mxu0 0.0
  %393 = vmatprep.subr.mxu0 0.0
  %394 = vmatpush2.msra.mxu0 0.0
  %395 = vmatprep.subr.mxu0 0.0
  %396 = vmatpush2.msra.mxu0 0.0
  %397 = vmatprep.mubr.f32.mxu0 0.0
  %398 = vmatmul.mubr.f32.gmra.mxu0 %v328
  %v399 = vpop.f32.mrf.mxu0
  %v400 = vadd.f32 0.0, %v399
  %v401 = vpop.f32.mrf.mxu0
  %402 = vmatprep.mubr.f32.mxu0 0.0
  %403 = vmatmul.mubr.f32.gmra.mxu0 %v331
  %v404 = vpop.f32.mrf.mxu0
  %v405 = vadd.f32 0.0, %v404
  %v406 = vpop.f32.mrf.mxu0
  %407 = vdwg.mxu0
  %v409 = vsel %vm326, %v34, 0
  %v412 = vsel %vm326, %v35, 0
  %414 = vmatprep.subr.mxu0 0.0
  %415 = vmatpush1.msra.mxu0 0.0
  %416 = vmatprep.subr.mxu0 0.0
  %417 = vmatpush1.msra.mxu0 0.0
  %418 = vmatprep.subr.mxu0 0.0
  %419 = vmatpush1.msra.mxu0 0.0
  %420 = vmatprep.subr.mxu0 0.0
  %421 = vmatpush1.msra.mxu0 0.0
  %422 = vmatprep.subr.mxu0 0.0
  %423 = vmatpush1.msra.mxu0 0.0
  %424 = vmatprep.subr.mxu0 0.0
  %425 = vmatpush1.msra.mxu0 0.0
  %426 = vmatprep.subr.mxu0 0.0
  %427 = vmatpush1.msra.mxu0 0.0
  %428 = vmatprep.subr.mxu0 0.0
  %429 = vmatpush1.msra.mxu0 0.0
  %430 = vmatprep.subr.mxu0 0.0
  %431 = vmatpush1.msra.mxu0 0.0
  %432 = vmatprep.subr.mxu0 0.0
  %433 = vmatpush1.msra.mxu0 0.0
  %434 = vmatprep.subr.mxu0 0.0
  %435 = vmatpush1.msra.mxu0 0.0
  %436 = vmatprep.subr.mxu0 0.0
  %437 = vmatpush1.msra.mxu0 0.0
  %438 = vmatprep.subr.mxu0 0.0
  %439 = vmatpush1.msra.mxu0 %v137
  %440 = vmatprep.subr.mxu0 0.0
  %441 = vmatpush1.msra.mxu0 %v136
  %442 = vmatprep.subr.mxu0 0.0
  %443 = vmatpush1.msra.mxu0 %v135
  %444 = vmatprep.subr.mxu0 0.0
  %445 = vmatpush1.msra.mxu0 %v134
  %446 = vmatprep.subr.mxu0 0.0
  %447 = vmatpush2.msra.mxu0 0.0
  %448 = vmatprep.subr.mxu0 0.0
  %449 = vmatpush2.msra.mxu0 0.0
  %450 = vmatprep.subr.mxu0 0.0
  %451 = vmatpush2.msra.mxu0 0.0
  %452 = vmatprep.subr.mxu0 0.0
  %453 = vmatpush2.msra.mxu0 0.0
  %454 = vmatprep.subr.mxu0 0.0
  %455 = vmatpush2.msra.mxu0 0.0
  %456 = vmatprep.subr.mxu0 0.0
  %457 = vmatpush2.msra.mxu0 0.0
  %458 = vmatprep.subr.mxu0 0.0
  %459 = vmatpush2.msra.mxu0 0.0
  %460 = vmatprep.subr.mxu0 0.0
  %461 = vmatpush2.msra.mxu0 0.0
  %462 = vmatprep.subr.mxu0 0.0
  %463 = vmatpush2.msra.mxu0 0.0
  %464 = vmatprep.subr.mxu0 0.0
  %465 = vmatpush2.msra.mxu0 0.0
  %466 = vmatprep.subr.mxu0 0.0
  %467 = vmatpush2.msra.mxu0 0.0
  %468 = vmatprep.subr.mxu0 0.0
  %469 = vmatpush2.msra.mxu0 0.0
  %470 = vmatprep.subr.mxu0 0.0
  %471 = vmatpush2.msra.mxu0 0.0
  %472 = vmatprep.subr.mxu0 0.0
  %473 = vmatpush2.msra.mxu0 0.0
  %474 = vmatprep.subr.mxu0 0.0
  %475 = vmatpush2.msra.mxu0 0.0
  %476 = vmatprep.subr.mxu0 0.0
  %477 = vmatpush2.msra.mxu0 0.0
  %478 = vmatprep.mubr.f32.mxu0 0.0
  %479 = vmatmul.mubr.f32.gmra.mxu0 %v409
  %v480 = vpop.f32.mrf.mxu0
  %v481 = vadd.f32 0.0, %v480
  %v482 = vpop.f32.mrf.mxu0
  %483 = vmatprep.mubr.f32.mxu0 0.0
  %484 = vmatmul.mubr.f32.gmra.mxu0 %v412
  %v485 = vpop.f32.mrf.mxu0
  %v486 = vadd.f32 0.0, %v485
  %v487 = vpop.f32.mrf.mxu0
  %488 = vdwg.mxu0
  %v490 = vsel %vm326, %v36, 0
  %v493 = vsel %vm326, %v37, 0
  %495 = vmatprep.subr.mxu0 0.0
  %496 = vmatpush1.msra.mxu0 0.0
  %497 = vmatprep.subr.mxu0 0.0
  %498 = vmatpush1.msra.mxu0 0.0
  %499 = vmatprep.subr.mxu0 0.0
  %500 = vmatpush1.msra.mxu0 0.0
  %501 = vmatprep.subr.mxu0 0.0
  %502 = vmatpush1.msra.mxu0 0.0
  %503 = vmatprep.subr.mxu0 0.0
  %504 = vmatpush1.msra.mxu0 0.0
  %505 = vmatprep.subr.mxu0 0.0
  %506 = vmatpush1.msra.mxu0 0.0
  %507 = vmatprep.subr.mxu0 0.0
  %508 = vmatpush1.msra.mxu0 0.0
  %509 = vmatprep.subr.mxu0 0.0
  %510 = vmatpush1.msra.mxu0 0.0
  %511 = vmatprep.subr.mxu0 0.0
  %512 = vmatpush1.msra.mxu0 0.0
  %513 = vmatprep.subr.mxu0 0.0
  %514 = vmatpush1.msra.mxu0 0.0
  %515 = vmatprep.subr.mxu0 0.0
  %516 = vmatpush1.msra.mxu0 0.0
  %517 = vmatprep.subr.mxu0 0.0
  %518 = vmatpush1.msra.mxu0 0.0
  %519 = vmatprep.subr.mxu0 0.0
  %520 = vmatpush1.msra.mxu0 %v141
  %521 = vmatprep.subr.mxu0 0.0
  %522 = vmatpush1.msra.mxu0 %v140
  %523 = vmatprep.subr.mxu0 0.0
  %524 = vmatpush1.msra.mxu0 %v139
  %525 = vmatprep.subr.mxu0 0.0
  %526 = vmatpush1.msra.mxu0 %v138
  %527 = vmatprep.subr.mxu0 0.0
  %528 = vmatpush2.msra.mxu0 0.0
  %529 = vmatprep.subr.mxu0 0.0
  %530 = vmatpush2.msra.mxu0 0.0
  %531 = vmatprep.subr.mxu0 0.0
  %532 = vmatpush2.msra.mxu0 0.0
  %533 = vmatprep.subr.mxu0 0.0
  %534 = vmatpush2.msra.mxu0 0.0
  %535 = vmatprep.subr.mxu0 0.0
  %536 = vmatpush2.msra.mxu0 0.0
  %537 = vmatprep.subr.mxu0 0.0
  %538 = vmatpush2.msra.mxu0 0.0
  %539 = vmatprep.subr.mxu0 0.0
  %540 = vmatpush2.msra.mxu0 0.0
  %541 = vmatprep.subr.mxu0 0.0
  %542 = vmatpush2.msra.mxu0 0.0
  %543 = vmatprep.subr.mxu0 0.0
  %544 = vmatpush2.msra.mxu0 0.0
  %545 = vmatprep.subr.mxu0 0.0
  %546 = vmatpush2.msra.mxu0 0.0
  %547 = vmatprep.subr.mxu0 0.0
  %548 = vmatpush2.msra.mxu0 0.0
  %549 = vmatprep.subr.mxu0 0.0
  %550 = vmatpush2.msra.mxu0 0.0
  %551 = vmatprep.subr.mxu0 0.0
  %552 = vmatpush2.msra.mxu0 0.0
  %553 = vmatprep.subr.mxu0 0.0
  %554 = vmatpush2.msra.mxu0 0.0
  %555 = vmatprep.subr.mxu0 0.0
  %556 = vmatpush2.msra.mxu0 0.0
  %557 = vmatprep.subr.mxu0 0.0
  %558 = vmatpush2.msra.mxu0 0.0
  %559 = vmatprep.mubr.f32.mxu0 0.0
  %560 = vmatmul.mubr.f32.gmra.mxu0 %v490
  %v561 = vpop.f32.mrf.mxu0
  %v562 = vadd.f32 0.0, %v561
  %v563 = vpop.f32.mrf.mxu0
  %564 = vmatprep.mubr.f32.mxu0 0.0
  %565 = vmatmul.mubr.f32.gmra.mxu0 %v493
  %v566 = vpop.f32.mrf.mxu0
  %v567 = vadd.f32 0.0, %v566
  %v568 = vpop.f32.mrf.mxu0
  %569 = vdwg.mxu0
  %v571 = vsel %vm326, %v38, 0
  %v574 = vsel %vm326, %v39, 0
  %576 = vmatprep.subr.mxu0 0.0
  %577 = vmatpush1.msra.mxu0 0.0
  %578 = vmatprep.subr.mxu0 0.0
  %579 = vmatpush1.msra.mxu0 0.0
  %580 = vmatprep.subr.mxu0 0.0
  %581 = vmatpush1.msra.mxu0 0.0
  %582 = vmatprep.subr.mxu0 0.0
  %583 = vmatpush1.msra.mxu0 0.0
  %584 = vmatprep.subr.mxu0 0.0
  %585 = vmatpush1.msra.mxu0 0.0
  %586 = vmatprep.subr.mxu0 0.0
  %587 = vmatpush1.msra.mxu0 0.0
  %588 = vmatprep.subr.mxu0 0.0
  %589 = vmatpush1.msra.mxu0 0.0
  %590 = vmatprep.subr.mxu0 0.0
  %591 = vmatpush1.msra.mxu0 0.0
  %592 = vmatprep.subr.mxu0 0.0
  %593 = vmatpush1.msra.mxu0 0.0
  %594 = vmatprep.subr.mxu0 0.0
  %595 = vmatpush1.msra.mxu0 0.0
  %596 = vmatprep.subr.mxu0 0.0
  %597 = vmatpush1.msra.mxu0 0.0
  %598 = vmatprep.subr.mxu0 0.0
  %599 = vmatpush1.msra.mxu0 0.0
  %600 = vmatprep.subr.mxu0 0.0
  %601 = vmatpush1.msra.mxu0 %v145
  %602 = vmatprep.subr.mxu0 0.0
  %603 = vmatpush1.msra.mxu0 %v144
  %604 = vmatprep.subr.mxu0 0.0
  %605 = vmatpush1.msra.mxu0 %v143
  %606 = vmatprep.subr.mxu0 0.0
  %607 = vmatpush1.msra.mxu0 %v142
  %608 = vmatprep.subr.mxu0 0.0
  %609 = vmatpush2.msra.mxu0 0.0
  %610 = vmatprep.subr.mxu0 0.0
  %611 = vmatpush2.msra.mxu0 0.0
  %612 = vmatprep.subr.mxu0 0.0
  %613 = vmatpush2.msra.mxu0 0.0
  %614 = vmatprep.subr.mxu0 0.0
  %615 = vmatpush2.msra.mxu0 0.0
  %616 = vmatprep.subr.mxu0 0.0
  %617 = vmatpush2.msra.mxu0 0.0
  %618 = vmatprep.subr.mxu0 0.0
  %619 = vmatpush2.msra.mxu0 0.0
  %620 = vmatprep.subr.mxu0 0.0
  %621 = vmatpush2.msra.mxu0 0.0
  %622 = vmatprep.subr.mxu0 0.0
  %623 = vmatpush2.msra.mxu0 0.0
  %624 = vmatprep.subr.mxu0 0.0
  %625 = vmatpush2.msra.mxu0 0.0
  %626 = vmatprep.subr.mxu0 0.0
  %627 = vmatpush2.msra.mxu0 0.0
  %628 = vmatprep.subr.mxu0 0.0
  %629 = vmatpush2.msra.mxu0 0.0
  %630 = vmatprep.subr.mxu0 0.0
  %631 = vmatpush2.msra.mxu0 0.0
  %632 = vmatprep.subr.mxu0 0.0
  %633 = vmatpush2.msra.mxu0 0.0
  %634 = vmatprep.subr.mxu0 0.0
  %635 = vmatpush2.msra.mxu0 0.0
  %636 = vmatprep.subr.mxu0 0.0
  %637 = vmatpush2.msra.mxu0 0.0
  %638 = vmatprep.subr.mxu0 0.0
  %639 = vmatpush2.msra.mxu0 0.0
  %640 = vmatprep.mubr.f32.mxu0 0.0
  %641 = vmatmul.mubr.f32.gmra.mxu0 %v571
  %v642 = vpop.f32.mrf.mxu0
  %v643 = vadd.f32 0.0, %v642
  %v644 = vpop.f32.mrf.mxu0
  %645 = vmatprep.mubr.f32.mxu0 0.0
  %646 = vmatmul.mubr.f32.gmra.mxu0 %v574
  %v647 = vpop.f32.mrf.mxu0
  %v648 = vadd.f32 0.0, %v647
  %v649 = vpop.f32.mrf.mxu0
  %650 = vdwg.mxu0
  %v652 = vsel %vm326, %v40, 0
  %v655 = vsel %vm326, %v41, 0
  %657 = vmatprep.subr.mxu0 0.0
  %658 = vmatpush1.msra.mxu0 0.0
  %659 = vmatprep.subr.mxu0 0.0
  %660 = vmatpush1.msra.mxu0 0.0
  %661 = vmatprep.subr.mxu0 0.0
  %662 = vmatpush1.msra.mxu0 0.0
  %663 = vmatprep.subr.mxu0 0.0
  %664 = vmatpush1.msra.mxu0 0.0
  %665 = vmatprep.subr.mxu0 0.0
  %666 = vmatpush1.msra.mxu0 0.0
  %667 = vmatprep.subr.mxu0 0.0
  %668 = vmatpush1.msra.mxu0 0.0
  %669 = vmatprep.subr.mxu0 0.0
  %670 = vmatpush1.msra.mxu0 0.0
  %671 = vmatprep.subr.mxu0 0.0
  %672 = vmatpush1.msra.mxu0 0.0
  %673 = vmatprep.subr.mxu0 0.0
  %674 = vmatpush1.msra.mxu0 0.0
  %675 = vmatprep.subr.mxu0 0.0
  %676 = vmatpush1.msra.mxu0 0.0
  %677 = vmatprep.subr.mxu0 0.0
  %678 = vmatpush1.msra.mxu0 0.0
  %679 = vmatprep.subr.mxu0 0.0
  %680 = vmatpush1.msra.mxu0 0.0
  %681 = vmatprep.subr.mxu0 0.0
  %682 = vmatpush1.msra.mxu0 %v149
  %683 = vmatprep.subr.mxu0 0.0
  %684 = vmatpush1.msra.mxu0 %v148
  %685 = vmatprep.subr.mxu0 0.0
  %686 = vmatpush1.msra.mxu0 %v147
  %687 = vmatprep.subr.mxu0 0.0
  %688 = vmatpush1.msra.mxu0 %v146
  %689 = vmatprep.subr.mxu0 0.0
  %690 = vmatpush2.msra.mxu0 0.0
  %691 = vmatprep.subr.mxu0 0.0
  %692 = vmatpush2.msra.mxu0 0.0
  %693 = vmatprep.subr.mxu0 0.0
  %694 = vmatpush2.msra.mxu0 0.0
  %695 = vmatprep.subr.mxu0 0.0
  %696 = vmatpush2.msra.mxu0 0.0
  %697 = vmatprep.subr.mxu0 0.0
  %698 = vmatpush2.msra.mxu0 0.0
  %699 = vmatprep.subr.mxu0 0.0
  %700 = vmatpush2.msra.mxu0 0.0
  %701 = vmatprep.subr.mxu0 0.0
  %702 = vmatpush2.msra.mxu0 0.0
  %703 = vmatprep.subr.mxu0 0.0
  %704 = vmatpush2.msra.mxu0 0.0
  %705 = vmatprep.subr.mxu0 0.0
  %706 = vmatpush2.msra.mxu0 0.0
  %707 = vmatprep.subr.mxu0 0.0
  %708 = vmatpush2.msra.mxu0 0.0
  %709 = vmatprep.subr.mxu0 0.0
  %710 = vmatpush2.msra.mxu0 0.0
  %711 = vmatprep.subr.mxu0 0.0
  %712 = vmatpush2.msra.mxu0 0.0
  %713 = vmatprep.subr.mxu0 0.0
  %714 = vmatpush2.msra.mxu0 0.0
  %715 = vmatprep.subr.mxu0 0.0
  %716 = vmatpush2.msra.mxu0 0.0
  %717 = vmatprep.subr.mxu0 0.0
  %718 = vmatpush2.msra.mxu0 0.0
  %719 = vmatprep.subr.mxu0 0.0
  %720 = vmatpush2.msra.mxu0 0.0
  %721 = vmatprep.mubr.f32.mxu0 0.0
  %722 = vmatmul.mubr.f32.gmra.mxu0 %v652
  %v723 = vpop.f32.mrf.mxu0
  %v724 = vadd.f32 0.0, %v723
  %v725 = vpop.f32.mrf.mxu0
  %726 = vmatprep.mubr.f32.mxu0 0.0
  %727 = vmatmul.mubr.f32.gmra.mxu0 %v655
  %v728 = vpop.f32.mrf.mxu0
  %v729 = vadd.f32 0.0, %v728
  %v730 = vpop.f32.mrf.mxu0
  %731 = vdwg.mxu0
  %v733 = vsel %vm326, %v42, 0
  %v736 = vsel %vm326, %v43, 0
  %738 = vmatprep.subr.mxu0 0.0
  %739 = vmatpush1.msra.mxu0 0.0
  %740 = vmatprep.subr.mxu0 0.0
  %741 = vmatpush1.msra.mxu0 0.0
  %742 = vmatprep.subr.mxu0 0.0
  %743 = vmatpush1.msra.mxu0 0.0
  %744 = vmatprep.subr.mxu0 0.0
  %745 = vmatpush1.msra.mxu0 0.0
  %746 = vmatprep.subr.mxu0 0.0
  %747 = vmatpush1.msra.mxu0 0.0
  %748 = vmatprep.subr.mxu0 0.0
  %749 = vmatpush1.msra.mxu0 0.0
  %750 = vmatprep.subr.mxu0 0.0
  %751 = vmatpush1.msra.mxu0 0.0
  %752 = vmatprep.subr.mxu0 0.0
  %753 = vmatpush1.msra.mxu0 0.0
  %754 = vmatprep.subr.mxu0 0.0
  %755 = vmatpush1.msra.mxu0 0.0
  %756 = vmatprep.subr.mxu0 0.0
  %757 = vmatpush1.msra.mxu0 0.0
  %758 = vmatprep.subr.mxu0 0.0
  %759 = vmatpush1.msra.mxu0 0.0
  %760 = vmatprep.subr.mxu0 0.0
  %761 = vmatpush1.msra.mxu0 0.0
  %762 = vmatprep.subr.mxu0 0.0
  %763 = vmatpush1.msra.mxu0 %v153
  %764 = vmatprep.subr.mxu0 0.0
  %765 = vmatpush1.msra.mxu0 %v152
  %766 = vmatprep.subr.mxu0 0.0
  %767 = vmatpush1.msra.mxu0 %v151
  %768 = vmatprep.subr.mxu0 0.0
  %769 = vmatpush1.msra.mxu0 %v150
  %770 = vmatprep.subr.mxu0 0.0
  %771 = vmatpush2.msra.mxu0 0.0
  %772 = vmatprep.subr.mxu0 0.0
  %773 = vmatpush2.msra.mxu0 0.0
  %774 = vmatprep.subr.mxu0 0.0
  %775 = vmatpush2.msra.mxu0 0.0
  %776 = vmatprep.subr.mxu0 0.0
  %777 = vmatpush2.msra.mxu0 0.0
  %778 = vmatprep.subr.mxu0 0.0
  %779 = vmatpush2.msra.mxu0 0.0
  %780 = vmatprep.subr.mxu0 0.0
  %781 = vmatpush2.msra.mxu0 0.0
  %782 = vmatprep.subr.mxu0 0.0
  %783 = vmatpush2.msra.mxu0 0.0
  %784 = vmatprep.subr.mxu0 0.0
  %785 = vmatpush2.msra.mxu0 0.0
  %786 = vmatprep.subr.mxu0 0.0
  %787 = vmatpush2.msra.mxu0 0.0
  %788 = vmatprep.subr.mxu0 0.0
  %789 = vmatpush2.msra.mxu0 0.0
  %790 = vmatprep.subr.mxu0 0.0
  %791 = vmatpush2.msra.mxu0 0.0
  %792 = vmatprep.subr.mxu0 0.0
  %793 = vmatpush2.msra.mxu0 0.0
  %794 = vmatprep.subr.mxu0 0.0
  %795 = vmatpush2.msra.mxu0 0.0
  %796 = vmatprep.subr.mxu0 0.0
  %797 = vmatpush2.msra.mxu0 0.0
  %798 = vmatprep.subr.mxu0 0.0
  %799 = vmatpush2.msra.mxu0 0.0
  %800 = vmatprep.subr.mxu0 0.0
  %801 = vmatpush2.msra.mxu0 0.0
  %802 = vmatprep.mubr.f32.mxu0 0.0
  %803 = vmatmul.mubr.f32.gmra.mxu0 %v733
  %v804 = vpop.f32.mrf.mxu0
  %v805 = vadd.f32 0.0, %v804
  %v806 = vpop.f32.mrf.mxu0
  %807 = vmatprep.mubr.f32.mxu0 0.0
  %808 = vmatmul.mubr.f32.gmra.mxu0 %v736
  %v809 = vpop.f32.mrf.mxu0
  %v810 = vadd.f32 0.0, %v809
  %v811 = vpop.f32.mrf.mxu0
  %812 = vdwg.mxu0
  %v814 = vsel %vm326, %v44, 0
  %v817 = vsel %vm326, %v45, 0
  %819 = vmatprep.subr.mxu0 0.0
  %820 = vmatpush1.msra.mxu0 0.0
  %821 = vmatprep.subr.mxu0 0.0
  %822 = vmatpush1.msra.mxu0 0.0
  %823 = vmatprep.subr.mxu0 0.0
  %824 = vmatpush1.msra.mxu0 0.0
  %825 = vmatprep.subr.mxu0 0.0
  %826 = vmatpush1.msra.mxu0 0.0
  %827 = vmatprep.subr.mxu0 0.0
  %828 = vmatpush1.msra.mxu0 0.0
  %829 = vmatprep.subr.mxu0 0.0
  %830 = vmatpush1.msra.mxu0 0.0
  %831 = vmatprep.subr.mxu0 0.0
  %832 = vmatpush1.msra.mxu0 0.0
  %833 = vmatprep.subr.mxu0 0.0
  %834 = vmatpush1.msra.mxu0 0.0
  %835 = vmatprep.subr.mxu0 0.0
  %836 = vmatpush1.msra.mxu0 0.0
  %837 = vmatprep.subr.mxu0 0.0
  %838 = vmatpush1.msra.mxu0 0.0
  %839 = vmatprep.subr.mxu0 0.0
  %840 = vmatpush1.msra.mxu0 0.0
  %841 = vmatprep.subr.mxu0 0.0
  %842 = vmatpush1.msra.mxu0 0.0
  %843 = vmatprep.subr.mxu0 0.0
  %844 = vmatpush1.msra.mxu0 %v157
  %845 = vmatprep.subr.mxu0 0.0
  %846 = vmatpush1.msra.mxu0 %v156
  %847 = vmatprep.subr.mxu0 0.0
  %848 = vmatpush1.msra.mxu0 %v155
  %849 = vmatprep.subr.mxu0 0.0
  %850 = vmatpush1.msra.mxu0 %v154
  %851 = vmatprep.subr.mxu0 0.0
  %852 = vmatpush2.msra.mxu0 0.0
  %853 = vmatprep.subr.mxu0 0.0
  %854 = vmatpush2.msra.mxu0 0.0
  %855 = vmatprep.subr.mxu0 0.0
  %856 = vmatpush2.msra.mxu0 0.0
  %857 = vmatprep.subr.mxu0 0.0
  %858 = vmatpush2.msra.mxu0 0.0
  %859 = vmatprep.subr.mxu0 0.0
  %860 = vmatpush2.msra.mxu0 0.0
  %861 = vmatprep.subr.mxu0 0.0
  %862 = vmatpush2.msra.mxu0 0.0
  %863 = vmatprep.subr.mxu0 0.0
  %864 = vmatpush2.msra.mxu0 0.0
  %865 = vmatprep.subr.mxu0 0.0
  %866 = vmatpush2.msra.mxu0 0.0
  %867 = vmatprep.subr.mxu0 0.0
  %868 = vmatpush2.msra.mxu0 0.0
  %869 = vmatprep.subr.mxu0 0.0
  %870 = vmatpush2.msra.mxu0 0.0
  %871 = vmatprep.subr.mxu0 0.0
  %872 = vmatpush2.msra.mxu0 0.0
  %873 = vmatprep.subr.mxu0 0.0
  %874 = vmatpush2.msra.mxu0 0.0
  %875 = vmatprep.subr.mxu0 0.0
  %876 = vmatpush2.msra.mxu0 0.0
  %877 = vmatprep.subr.mxu0 0.0
  %878 = vmatpush2.msra.mxu0 0.0
  %879 = vmatprep.subr.mxu0 0.0
  %880 = vmatpush2.msra.mxu0 0.0
  %881 = vmatprep.subr.mxu0 0.0
  %882 = vmatpush2.msra.mxu0 0.0
  %883 = vmatprep.mubr.f32.mxu0 0.0
  %884 = vmatmul.mubr.f32.gmra.mxu0 %v814
  %v885 = vpop.f32.mrf.mxu0
  %v886 = vadd.f32 0.0, %v885
  %v887 = vpop.f32.mrf.mxu0
  %888 = vmatprep.mubr.f32.mxu0 0.0
  %889 = vmatmul.mubr.f32.gmra.mxu0 %v817
  %v890 = vpop.f32.mrf.mxu0
  %v891 = vadd.f32 0.0, %v890
  %v892 = vpop.f32.mrf.mxu0
  %893 = vdwg.mxu0
  %v895 = vsel %vm326, %v46, 0
  %v898 = vsel %vm326, %v47, 0
  %900 = vmatprep.subr.mxu0 0.0
  %901 = vmatpush1.msra.mxu0 0.0
  %902 = vmatprep.subr.mxu0 0.0
  %903 = vmatpush1.msra.mxu0 0.0
  %904 = vmatprep.subr.mxu0 0.0
  %905 = vmatpush1.msra.mxu0 0.0
  %906 = vmatprep.subr.mxu0 0.0
  %907 = vmatpush1.msra.mxu0 0.0
  %908 = vmatprep.subr.mxu0 0.0
  %909 = vmatpush1.msra.mxu0 0.0
  %910 = vmatprep.subr.mxu0 0.0
  %911 = vmatpush1.msra.mxu0 0.0
  %912 = vmatprep.subr.mxu0 0.0
  %913 = vmatpush1.msra.mxu0 0.0
  %914 = vmatprep.subr.mxu0 0.0
  %915 = vmatpush1.msra.mxu0 0.0
  %916 = vmatprep.subr.mxu0 0.0
  %917 = vmatpush1.msra.mxu0 0.0
  %918 = vmatprep.subr.mxu0 0.0
  %919 = vmatpush1.msra.mxu0 0.0
  %920 = vmatprep.subr.mxu0 0.0
  %921 = vmatpush1.msra.mxu0 0.0
  %922 = vmatprep.subr.mxu0 0.0
  %923 = vmatpush1.msra.mxu0 0.0
  %924 = vmatprep.subr.mxu0 0.0
  %925 = vmatpush1.msra.mxu0 %v161
  %926 = vmatprep.subr.mxu0 0.0
  %927 = vmatpush1.msra.mxu0 %v160
  %928 = vmatprep.subr.mxu0 0.0
  %929 = vmatpush1.msra.mxu0 %v159
  %930 = vmatprep.subr.mxu0 0.0
  %931 = vmatpush1.msra.mxu0 %v158
  %932 = vmatprep.subr.mxu0 0.0
  %933 = vmatpush2.msra.mxu0 0.0
  %934 = vmatprep.subr.mxu0 0.0
  %935 = vmatpush2.msra.mxu0 0.0
  %936 = vmatprep.subr.mxu0 0.0
  %937 = vmatpush2.msra.mxu0 0.0
  %938 = vmatprep.subr.mxu0 0.0
  %939 = vmatpush2.msra.mxu0 0.0
  %940 = vmatprep.subr.mxu0 0.0
  %941 = vmatpush2.msra.mxu0 0.0
  %942 = vmatprep.subr.mxu0 0.0
  %943 = vmatpush2.msra.mxu0 0.0
  %944 = vmatprep.subr.mxu0 0.0
  %945 = vmatpush2.msra.mxu0 0.0
  %946 = vmatprep.subr.mxu0 0.0
  %947 = vmatpush2.msra.mxu0 0.0
  %948 = vmatprep.subr.mxu0 0.0
  %949 = vmatpush2.msra.mxu0 0.0
  %950 = vmatprep.subr.mxu0 0.0
  %951 = vmatpush2.msra.mxu0 0.0
  %952 = vmatprep.subr.mxu0 0.0
  %953 = vmatpush2.msra.mxu0 0.0
  %954 = vmatprep.subr.mxu0 0.0
  %955 = vmatpush2.msra.mxu0 0.0
  %956 = vmatprep.subr.mxu0 0.0
  %957 = vmatpush2.msra.mxu0 0.0
  %958 = vmatprep.subr.mxu0 0.0
  %959 = vmatpush2.msra.mxu0 0.0
  %960 = vmatprep.subr.mxu0 0.0
  %961 = vmatpush2.msra.mxu0 0.0
  %962 = vmatprep.subr.mxu0 0.0
  %963 = vmatpush2.msra.mxu0 0.0
  %964 = vmatprep.mubr.f32.mxu0 0.0
  %965 = vmatmul.mubr.f32.gmra.mxu0 %v895
  %v966 = vpop.f32.mrf.mxu0
  %v967 = vadd.f32 0.0, %v966
  %v968 = vpop.f32.mrf.mxu0
  %969 = vmatprep.mubr.f32.mxu0 0.0
  %970 = vmatmul.mubr.f32.gmra.mxu0 %v898
  %v971 = vpop.f32.mrf.mxu0
  %v972 = vadd.f32 0.0, %v971
  %v973 = vpop.f32.mrf.mxu0
  %974 = vdwg.mxu0
  %v976 = vsel %vm326, %v48, 0
  %v979 = vsel %vm326, %v49, 0
  %981 = vmatprep.subr.mxu0 0.0
  %982 = vmatpush1.msra.mxu0 0.0
  %983 = vmatprep.subr.mxu0 0.0
  %984 = vmatpush1.msra.mxu0 0.0
  %985 = vmatprep.subr.mxu0 0.0
  %986 = vmatpush1.msra.mxu0 0.0
  %987 = vmatprep.subr.mxu0 0.0
  %988 = vmatpush1.msra.mxu0 0.0
  %989 = vmatprep.subr.mxu0 0.0
  %990 = vmatpush1.msra.mxu0 0.0
  %991 = vmatprep.subr.mxu0 0.0
  %992 = vmatpush1.msra.mxu0 0.0
  %993 = vmatprep.subr.mxu0 0.0
  %994 = vmatpush1.msra.mxu0 0.0
  %995 = vmatprep.subr.mxu0 0.0
  %996 = vmatpush1.msra.mxu0 0.0
  %997 = vmatprep.subr.mxu0 0.0
  %998 = vmatpush1.msra.mxu0 0.0
  %999 = vmatprep.subr.mxu0 0.0
  %1000 = vmatpush1.msra.mxu0 0.0
  %1001 = vmatprep.subr.mxu0 0.0
  %1002 = vmatpush1.msra.mxu0 0.0
  %1003 = vmatprep.subr.mxu0 0.0
  %1004 = vmatpush1.msra.mxu0 0.0
  %1005 = vmatprep.subr.mxu0 0.0
  %1006 = vmatpush1.msra.mxu0 %v165
  %1007 = vmatprep.subr.mxu0 0.0
  %1008 = vmatpush1.msra.mxu0 %v164
  %1009 = vmatprep.subr.mxu0 0.0
  %1010 = vmatpush1.msra.mxu0 %v163
  %1011 = vmatprep.subr.mxu0 0.0
  %1012 = vmatpush1.msra.mxu0 %v162
  %1013 = vmatprep.subr.mxu0 0.0
  %1014 = vmatpush2.msra.mxu0 0.0
  %1015 = vmatprep.subr.mxu0 0.0
  %1016 = vmatpush2.msra.mxu0 0.0
  %1017 = vmatprep.subr.mxu0 0.0
  %1018 = vmatpush2.msra.mxu0 0.0
  %1019 = vmatprep.subr.mxu0 0.0
  %1020 = vmatpush2.msra.mxu0 0.0
  %1021 = vmatprep.subr.mxu0 0.0
  %1022 = vmatpush2.msra.mxu0 0.0
  %1023 = vmatprep.subr.mxu0 0.0
  %1024 = vmatpush2.msra.mxu0 0.0
  %1025 = vmatprep.subr.mxu0 0.0
  %1026 = vmatpush2.msra.mxu0 0.0
  %1027 = vmatprep.subr.mxu0 0.0
  %1028 = vmatpush2.msra.mxu0 0.0
  %1029 = vmatprep.subr.mxu0 0.0
  %1030 = vmatpush2.msra.mxu0 0.0
  %1031 = vmatprep.subr.mxu0 0.0
  %1032 = vmatpush2.msra.mxu0 0.0
  %1033 = vmatprep.subr.mxu0 0.0
  %1034 = vmatpush2.msra.mxu0 0.0
  %1035 = vmatprep.subr.mxu0 0.0
  %1036 = vmatpush2.msra.mxu0 0.0
  %1037 = vmatprep.subr.mxu0 0.0
  %1038 = vmatpush2.msra.mxu0 0.0
  %1039 = vmatprep.subr.mxu0 0.0
  %1040 = vmatpush2.msra.mxu0 0.0
  %1041 = vmatprep.subr.mxu0 0.0
  %1042 = vmatpush2.msra.mxu0 0.0
  %1043 = vmatprep.subr.mxu0 0.0
  %1044 = vmatpush2.msra.mxu0 0.0
  %1045 = vmatprep.mubr.f32.mxu0 0.0
  %1046 = vmatmul.mubr.f32.gmra.mxu0 %v976
  %v1047 = vpop.f32.mrf.mxu0
  %v1048 = vadd.f32 0.0, %v1047
  %v1049 = vpop.f32.mrf.mxu0
  %1050 = vmatprep.mubr.f32.mxu0 0.0
  %1051 = vmatmul.mubr.f32.gmra.mxu0 %v979
  %v1052 = vpop.f32.mrf.mxu0
  %v1053 = vadd.f32 0.0, %v1052
  %v1054 = vpop.f32.mrf.mxu0
  %1055 = vdwg.mxu0
  %v1057 = vsel %vm326, %v50, 0
  %v1060 = vsel %vm326, %v51, 0
  %1062 = vmatprep.subr.mxu0 0.0
  %1063 = vmatpush1.msra.mxu0 0.0
  %1064 = vmatprep.subr.mxu0 0.0
  %1065 = vmatpush1.msra.mxu0 0.0
  %1066 = vmatprep.subr.mxu0 0.0
  %1067 = vmatpush1.msra.mxu0 0.0
  %1068 = vmatprep.subr.mxu0 0.0
  %1069 = vmatpush1.msra.mxu0 0.0
  %1070 = vmatprep.subr.mxu0 0.0
  %1071 = vmatpush1.msra.mxu0 0.0
  %1072 = vmatprep.subr.mxu0 0.0
  %1073 = vmatpush1.msra.mxu0 0.0
  %1074 = vmatprep.subr.mxu0 0.0
  %1075 = vmatpush1.msra.mxu0 0.0
  %1076 = vmatprep.subr.mxu0 0.0
  %1077 = vmatpush1.msra.mxu0 0.0
  %1078 = vmatprep.subr.mxu0 0.0
  %1079 = vmatpush1.msra.mxu0 0.0
  %1080 = vmatprep.subr.mxu0 0.0
  %1081 = vmatpush1.msra.mxu0 0.0
  %1082 = vmatprep.subr.mxu0 0.0
  %1083 = vmatpush1.msra.mxu0 0.0
  %1084 = vmatprep.subr.mxu0 0.0
  %1085 = vmatpush1.msra.mxu0 0.0
  %1086 = vmatprep.subr.mxu0 0.0
  %1087 = vmatpush1.msra.mxu0 %v169
  %1088 = vmatprep.subr.mxu0 0.0
  %1089 = vmatpush1.msra.mxu0 %v168
  %1090 = vmatprep.subr.mxu0 0.0
  %1091 = vmatpush1.msra.mxu0 %v167
  %1092 = vmatprep.subr.mxu0 0.0
  %1093 = vmatpush1.msra.mxu0 %v166
  %1094 = vmatprep.subr.mxu0 0.0
  %1095 = vmatpush2.msra.mxu0 0.0
  %1096 = vmatprep.subr.mxu0 0.0
  %1097 = vmatpush2.msra.mxu0 0.0
  %1098 = vmatprep.subr.mxu0 0.0
  %1099 = vmatpush2.msra.mxu0 0.0
  %1100 = vmatprep.subr.mxu0 0.0
  %1101 = vmatpush2.msra.mxu0 0.0
  %1102 = vmatprep.subr.mxu0 0.0
  %1103 = vmatpush2.msra.mxu0 0.0
  %1104 = vmatprep.subr.mxu0 0.0
  %1105 = vmatpush2.msra.mxu0 0.0
  %1106 = vmatprep.subr.mxu0 0.0
  %1107 = vmatpush2.msra.mxu0 0.0
  %1108 = vmatprep.subr.mxu0 0.0
  %1109 = vmatpush2.msra.mxu0 0.0
  %1110 = vmatprep.subr.mxu0 0.0
  %1111 = vmatpush2.msra.mxu0 0.0
  %1112 = vmatprep.subr.mxu0 0.0
  %1113 = vmatpush2.msra.mxu0 0.0
  %1114 = vmatprep.subr.mxu0 0.0
  %1115 = vmatpush2.msra.mxu0 0.0
  %1116 = vmatprep.subr.mxu0 0.0
  %1117 = vmatpush2.msra.mxu0 0.0
  %1118 = vmatprep.subr.mxu0 0.0
  %1119 = vmatpush2.msra.mxu0 0.0
  %1120 = vmatprep.subr.mxu0 0.0
  %1121 = vmatpush2.msra.mxu0 0.0
  %1122 = vmatprep.subr.mxu0 0.0
  %1123 = vmatpush2.msra.mxu0 0.0
  %1124 = vmatprep.subr.mxu0 0.0
  %1125 = vmatpush2.msra.mxu0 0.0
  %1126 = vmatprep.mubr.f32.mxu0 0.0
  %1127 = vmatmul.mubr.f32.gmra.mxu0 %v1057
  %v1128 = vpop.f32.mrf.mxu0
  %v1129 = vadd.f32 0.0, %v1128
  %v1130 = vpop.f32.mrf.mxu0
  %1131 = vmatprep.mubr.f32.mxu0 0.0
  %1132 = vmatmul.mubr.f32.gmra.mxu0 %v1060
  %v1133 = vpop.f32.mrf.mxu0
  %v1134 = vadd.f32 0.0, %v1133
  %v1135 = vpop.f32.mrf.mxu0
  %1136 = vdwg.mxu0
  %v1138 = vsel %vm326, %v52, 0
  %v1141 = vsel %vm326, %v53, 0
  %1143 = vmatprep.subr.mxu0 0.0
  %1144 = vmatpush1.msra.mxu0 0.0
  %1145 = vmatprep.subr.mxu0 0.0
  %1146 = vmatpush1.msra.mxu0 0.0
  %1147 = vmatprep.subr.mxu0 0.0
  %1148 = vmatpush1.msra.mxu0 0.0
  %1149 = vmatprep.subr.mxu0 0.0
  %1150 = vmatpush1.msra.mxu0 0.0
  %1151 = vmatprep.subr.mxu0 0.0
  %1152 = vmatpush1.msra.mxu0 0.0
  %1153 = vmatprep.subr.mxu0 0.0
  %1154 = vmatpush1.msra.mxu0 0.0
  %1155 = vmatprep.subr.mxu0 0.0
  %1156 = vmatpush1.msra.mxu0 0.0
  %1157 = vmatprep.subr.mxu0 0.0
  %1158 = vmatpush1.msra.mxu0 0.0
  %1159 = vmatprep.subr.mxu0 0.0
  %1160 = vmatpush1.msra.mxu0 0.0
  %1161 = vmatprep.subr.mxu0 0.0
  %1162 = vmatpush1.msra.mxu0 0.0
  %1163 = vmatprep.subr.mxu0 0.0
  %1164 = vmatpush1.msra.mxu0 0.0
  %1165 = vmatprep.subr.mxu0 0.0
  %1166 = vmatpush1.msra.mxu0 0.0
  %1167 = vmatprep.subr.mxu0 0.0
  %1168 = vmatpush1.msra.mxu0 %v173
  %1169 = vmatprep.subr.mxu0 0.0
  %1170 = vmatpush1.msra.mxu0 %v172
  %1171 = vmatprep.subr.mxu0 0.0
  %1172 = vmatpush1.msra.mxu0 %v171
  %1173 = vmatprep.subr.mxu0 0.0
  %1174 = vmatpush1.msra.mxu0 %v170
  %1175 = vmatprep.subr.mxu0 0.0
  %1176 = vmatpush2.msra.mxu0 0.0
  %1177 = vmatprep.subr.mxu0 0.0
  %1178 = vmatpush2.msra.mxu0 0.0
  %1179 = vmatprep.subr.mxu0 0.0
  %1180 = vmatpush2.msra.mxu0 0.0
  %1181 = vmatprep.subr.mxu0 0.0
  %1182 = vmatpush2.msra.mxu0 0.0
  %1183 = vmatprep.subr.mxu0 0.0
  %1184 = vmatpush2.msra.mxu0 0.0
  %1185 = vmatprep.subr.mxu0 0.0
  %1186 = vmatpush2.msra.mxu0 0.0
  %1187 = vmatprep.subr.mxu0 0.0
  %1188 = vmatpush2.msra.mxu0 0.0
  %1189 = vmatprep.subr.mxu0 0.0
  %1190 = vmatpush2.msra.mxu0 0.0
  %1191 = vmatprep.subr.mxu0 0.0
  %1192 = vmatpush2.msra.mxu0 0.0
  %1193 = vmatprep.subr.mxu0 0.0
  %1194 = vmatpush2.msra.mxu0 0.0
  %1195 = vmatprep.subr.mxu0 0.0
  %1196 = vmatpush2.msra.mxu0 0.0
  %1197 = vmatprep.subr.mxu0 0.0
  %1198 = vmatpush2.msra.mxu0 0.0
  %1199 = vmatprep.subr.mxu0 0.0
  %1200 = vmatpush2.msra.mxu0 0.0
  %1201 = vmatprep.subr.mxu0 0.0
  %1202 = vmatpush2.msra.mxu0 0.0
  %1203 = vmatprep.subr.mxu0 0.0
  %1204 = vmatpush2.msra.mxu0 0.0
  %1205 = vmatprep.subr.mxu0 0.0
  %1206 = vmatpush2.msra.mxu0 0.0
  %1207 = vmatprep.mubr.f32.mxu0 0.0
  %1208 = vmatmul.mubr.f32.gmra.mxu0 %v1138
  %v1209 = vpop.f32.mrf.mxu0
  %v1210 = vadd.f32 0.0, %v1209
  %v1211 = vpop.f32.mrf.mxu0
  %1212 = vmatprep.mubr.f32.mxu0 0.0
  %1213 = vmatmul.mubr.f32.gmra.mxu0 %v1141
  %v1214 = vpop.f32.mrf.mxu0
  %v1215 = vadd.f32 0.0, %v1214
  %v1216 = vpop.f32.mrf.mxu0
  %1217 = vdwg.mxu0
  %v1219 = vsel %vm326, %v54, 0
  %v1222 = vsel %vm326, %v55, 0
  %1224 = vmatprep.subr.mxu0 0.0
  %1225 = vmatpush1.msra.mxu0 0.0
  %1226 = vmatprep.subr.mxu0 0.0
  %1227 = vmatpush1.msra.mxu0 0.0
  %1228 = vmatprep.subr.mxu0 0.0
  %1229 = vmatpush1.msra.mxu0 0.0
  %1230 = vmatprep.subr.mxu0 0.0
  %1231 = vmatpush1.msra.mxu0 0.0
  %1232 = vmatprep.subr.mxu0 0.0
  %1233 = vmatpush1.msra.mxu0 0.0
  %1234 = vmatprep.subr.mxu0 0.0
  %1235 = vmatpush1.msra.mxu0 0.0
  %1236 = vmatprep.subr.mxu0 0.0
  %1237 = vmatpush1.msra.mxu0 0.0
  %1238 = vmatprep.subr.mxu0 0.0
  %1239 = vmatpush1.msra.mxu0 0.0
  %1240 = vmatprep.subr.mxu0 0.0
  %1241 = vmatpush1.msra.mxu0 0.0
  %1242 = vmatprep.subr.mxu0 0.0
  %1243 = vmatpush1.msra.mxu0 0.0
  %1244 = vmatprep.subr.mxu0 0.0
  %1245 = vmatpush1.msra.mxu0 0.0
  %1246 = vmatprep.subr.mxu0 0.0
  %1247 = vmatpush1.msra.mxu0 0.0
  %1248 = vmatprep.subr.mxu0 0.0
  %1249 = vmatpush1.msra.mxu0 %v177
  %1250 = vmatprep.subr.mxu0 0.0
  %1251 = vmatpush1.msra.mxu0 %v176
  %1252 = vmatprep.subr.mxu0 0.0
  %1253 = vmatpush1.msra.mxu0 %v175
  %1254 = vmatprep.subr.mxu0 0.0
  %1255 = vmatpush1.msra.mxu0 %v174
  %1256 = vmatprep.subr.mxu0 0.0
  %1257 = vmatpush2.msra.mxu0 0.0
  %1258 = vmatprep.subr.mxu0 0.0
  %1259 = vmatpush2.msra.mxu0 0.0
  %1260 = vmatprep.subr.mxu0 0.0
  %1261 = vmatpush2.msra.mxu0 0.0
  %1262 = vmatprep.subr.mxu0 0.0
  %1263 = vmatpush2.msra.mxu0 0.0
  %1264 = vmatprep.subr.mxu0 0.0
  %1265 = vmatpush2.msra.mxu0 0.0
  %1266 = vmatprep.subr.mxu0 0.0
  %1267 = vmatpush2.msra.mxu0 0.0
  %1268 = vmatprep.subr.mxu0 0.0
  %1269 = vmatpush2.msra.mxu0 0.0
  %1270 = vmatprep.subr.mxu0 0.0
  %1271 = vmatpush2.msra.mxu0 0.0
  %1272 = vmatprep.subr.mxu0 0.0
  %1273 = vmatpush2.msra.mxu0 0.0
  %1274 = vmatprep.subr.mxu0 0.0
  %1275 = vmatpush2.msra.mxu0 0.0
  %1276 = vmatprep.subr.mxu0 0.0
  %1277 = vmatpush2.msra.mxu0 0.0
  %1278 = vmatprep.subr.mxu0 0.0
  %1279 = vmatpush2.msra.mxu0 0.0
  %1280 = vmatprep.subr.mxu0 0.0
  %1281 = vmatpush2.msra.mxu0 0.0
  %1282 = vmatprep.subr.mxu0 0.0
  %1283 = vmatpush2.msra.mxu0 0.0
  %1284 = vmatprep.subr.mxu0 0.0
  %1285 = vmatpush2.msra.mxu0 0.0
  %1286 = vmatprep.subr.mxu0 0.0
  %1287 = vmatpush2.msra.mxu0 0.0
  %1288 = vmatprep.mubr.f32.mxu0 0.0
  %1289 = vmatmul.mubr.f32.gmra.mxu0 %v1219
  %v1290 = vpop.f32.mrf.mxu0
  %v1291 = vadd.f32 0.0, %v1290
  %v1292 = vpop.f32.mrf.mxu0
  %1293 = vmatprep.mubr.f32.mxu0 0.0
  %1294 = vmatmul.mubr.f32.gmra.mxu0 %v1222
  %v1295 = vpop.f32.mrf.mxu0
  %v1296 = vadd.f32 0.0, %v1295
  %v1297 = vpop.f32.mrf.mxu0
  %1298 = vdwg.mxu0
  %v1300 = vsel %vm326, %v56, 0
  %v1303 = vsel %vm326, %v57, 0
  %1305 = vmatprep.subr.mxu0 0.0
  %1306 = vmatpush1.msra.mxu0 0.0
  %1307 = vmatprep.subr.mxu0 0.0
  %1308 = vmatpush1.msra.mxu0 0.0
  %1309 = vmatprep.subr.mxu0 0.0
  %1310 = vmatpush1.msra.mxu0 0.0
  %1311 = vmatprep.subr.mxu0 0.0
  %1312 = vmatpush1.msra.mxu0 0.0
  %1313 = vmatprep.subr.mxu0 0.0
  %1314 = vmatpush1.msra.mxu0 0.0
  %1315 = vmatprep.subr.mxu0 0.0
  %1316 = vmatpush1.msra.mxu0 0.0
  %1317 = vmatprep.subr.mxu0 0.0
  %1318 = vmatpush1.msra.mxu0 0.0
  %1319 = vmatprep.subr.mxu0 0.0
  %1320 = vmatpush1.msra.mxu0 0.0
  %1321 = vmatprep.subr.mxu0 0.0
  %1322 = vmatpush1.msra.mxu0 0.0
  %1323 = vmatprep.subr.mxu0 0.0
  %1324 = vmatpush1.msra.mxu0 0.0
  %1325 = vmatprep.subr.mxu0 0.0
  %1326 = vmatpush1.msra.mxu0 0.0
  %1327 = vmatprep.subr.mxu0 0.0
  %1328 = vmatpush1.msra.mxu0 0.0
  %1329 = vmatprep.subr.mxu0 0.0
  %1330 = vmatpush1.msra.mxu0 %v181
  %1331 = vmatprep.subr.mxu0 0.0
  %1332 = vmatpush1.msra.mxu0 %v180
  %1333 = vmatprep.subr.mxu0 0.0
  %1334 = vmatpush1.msra.mxu0 %v179
  %1335 = vmatprep.subr.mxu0 0.0
  %1336 = vmatpush1.msra.mxu0 %v178
  %1337 = vmatprep.subr.mxu0 0.0
  %1338 = vmatpush2.msra.mxu0 0.0
  %1339 = vmatprep.subr.mxu0 0.0
  %1340 = vmatpush2.msra.mxu0 0.0
  %1341 = vmatprep.subr.mxu0 0.0
  %1342 = vmatpush2.msra.mxu0 0.0
  %1343 = vmatprep.subr.mxu0 0.0
  %1344 = vmatpush2.msra.mxu0 0.0
  %1345 = vmatprep.subr.mxu0 0.0
  %1346 = vmatpush2.msra.mxu0 0.0
  %1347 = vmatprep.subr.mxu0 0.0
  %1348 = vmatpush2.msra.mxu0 0.0
  %1349 = vmatprep.subr.mxu0 0.0
  %1350 = vmatpush2.msra.mxu0 0.0
  %1351 = vmatprep.subr.mxu0 0.0
  %1352 = vmatpush2.msra.mxu0 0.0
  %1353 = vmatprep.subr.mxu0 0.0
  %1354 = vmatpush2.msra.mxu0 0.0
  %1355 = vmatprep.subr.mxu0 0.0
  %1356 = vmatpush2.msra.mxu0 0.0
  %1357 = vmatprep.subr.mxu0 0.0
  %1358 = vmatpush2.msra.mxu0 0.0
  %1359 = vmatprep.subr.mxu0 0.0
  %1360 = vmatpush2.msra.mxu0 0.0
  %1361 = vmatprep.subr.mxu0 0.0
  %1362 = vmatpush2.msra.mxu0 0.0
  %1363 = vmatprep.subr.mxu0 0.0
  %1364 = vmatpush2.msra.mxu0 0.0
  %1365 = vmatprep.subr.mxu0 0.0
  %1366 = vmatpush2.msra.mxu0 0.0
  %1367 = vmatprep.subr.mxu0 0.0
  %1368 = vmatpush2.msra.mxu0 0.0
  %1369 = vmatprep.mubr.f32.mxu0 0.0
  %1370 = vmatmul.mubr.f32.gmra.mxu0 %v1300
  %v1371 = vpop.f32.mrf.mxu0
  %v1372 = vadd.f32 0.0, %v1371
  %v1373 = vpop.f32.mrf.mxu0
  %1374 = vmatprep.mubr.f32.mxu0 0.0
  %1375 = vmatmul.mubr.f32.gmra.mxu0 %v1303
  %v1376 = vpop.f32.mrf.mxu0
  %v1377 = vadd.f32 0.0, %v1376
  %v1378 = vpop.f32.mrf.mxu0
  %1379 = vdwg.mxu0
  %v1381 = vsel %vm326, %v58, 0
  %v1384 = vsel %vm326, %v59, 0
  %1386 = vmatprep.subr.mxu0 0.0
  %1387 = vmatpush1.msra.mxu0 0.0
  %1388 = vmatprep.subr.mxu0 0.0
  %1389 = vmatpush1.msra.mxu0 0.0
  %1390 = vmatprep.subr.mxu0 0.0
  %1391 = vmatpush1.msra.mxu0 0.0
  %1392 = vmatprep.subr.mxu0 0.0
  %1393 = vmatpush1.msra.mxu0 0.0
  %1394 = vmatprep.subr.mxu0 0.0
  %1395 = vmatpush1.msra.mxu0 0.0
  %1396 = vmatprep.subr.mxu0 0.0
  %1397 = vmatpush1.msra.mxu0 0.0
  %1398 = vmatprep.subr.mxu0 0.0
  %1399 = vmatpush1.msra.mxu0 0.0
  %1400 = vmatprep.subr.mxu0 0.0
  %1401 = vmatpush1.msra.mxu0 0.0
  %1402 = vmatprep.subr.mxu0 0.0
  %1403 = vmatpush1.msra.mxu0 0.0
  %1404 = vmatprep.subr.mxu0 0.0
  %1405 = vmatpush1.msra.mxu0 0.0
  %1406 = vmatprep.subr.mxu0 0.0
  %1407 = vmatpush1.msra.mxu0 0.0
  %1408 = vmatprep.subr.mxu0 0.0
  %1409 = vmatpush1.msra.mxu0 0.0
  %1410 = vmatprep.subr.mxu0 0.0
  %1411 = vmatpush1.msra.mxu0 %v185
  %1412 = vmatprep.subr.mxu0 0.0
  %1413 = vmatpush1.msra.mxu0 %v184
  %1414 = vmatprep.subr.mxu0 0.0
  %1415 = vmatpush1.msra.mxu0 %v183
  %1416 = vmatprep.subr.mxu0 0.0
  %1417 = vmatpush1.msra.mxu0 %v182
  %1418 = vmatprep.subr.mxu0 0.0
  %1419 = vmatpush2.msra.mxu0 0.0
  %1420 = vmatprep.subr.mxu0 0.0
  %1421 = vmatpush2.msra.mxu0 0.0
  %1422 = vmatprep.subr.mxu0 0.0
  %1423 = vmatpush2.msra.mxu0 0.0
  %1424 = vmatprep.subr.mxu0 0.0
  %1425 = vmatpush2.msra.mxu0 0.0
  %1426 = vmatprep.subr.mxu0 0.0
  %1427 = vmatpush2.msra.mxu0 0.0
  %1428 = vmatprep.subr.mxu0 0.0
  %1429 = vmatpush2.msra.mxu0 0.0
  %1430 = vmatprep.subr.mxu0 0.0
  %1431 = vmatpush2.msra.mxu0 0.0
  %1432 = vmatprep.subr.mxu0 0.0
  %1433 = vmatpush2.msra.mxu0 0.0
  %1434 = vmatprep.subr.mxu0 0.0
  %1435 = vmatpush2.msra.mxu0 0.0
  %1436 = vmatprep.subr.mxu0 0.0
  %1437 = vmatpush2.msra.mxu0 0.0
  %1438 = vmatprep.subr.mxu0 0.0
  %1439 = vmatpush2.msra.mxu0 0.0
  %1440 = vmatprep.subr.mxu0 0.0
  %1441 = vmatpush2.msra.mxu0 0.0
  %1442 = vmatprep.subr.mxu0 0.0
  %1443 = vmatpush2.msra.mxu0 0.0
  %1444 = vmatprep.subr.mxu0 0.0
  %1445 = vmatpush2.msra.mxu0 0.0
  %1446 = vmatprep.subr.mxu0 0.0
  %1447 = vmatpush2.msra.mxu0 0.0
  %1448 = vmatprep.subr.mxu0 0.0
  %1449 = vmatpush2.msra.mxu0 0.0
  %1450 = vmatprep.mubr.f32.mxu0 0.0
  %1451 = vmatmul.mubr.f32.gmra.mxu0 %v1381
  %v1452 = vpop.f32.mrf.mxu0
  %v1453 = vadd.f32 0.0, %v1452
  %v1454 = vpop.f32.mrf.mxu0
  %1455 = vmatprep.mubr.f32.mxu0 0.0
  %1456 = vmatmul.mubr.f32.gmra.mxu0 %v1384
  %v1457 = vpop.f32.mrf.mxu0
  %v1458 = vadd.f32 0.0, %v1457
  %v1459 = vpop.f32.mrf.mxu0
  %1460 = vdwg.mxu0
  %v1462 = vsel %vm326, %v60, 0
  %v1465 = vsel %vm326, %v61, 0
  %1467 = vmatprep.subr.mxu0 0.0
  %1468 = vmatpush1.msra.mxu0 0.0
  %1469 = vmatprep.subr.mxu0 0.0
  %1470 = vmatpush1.msra.mxu0 0.0
  %1471 = vmatprep.subr.mxu0 0.0
  %1472 = vmatpush1.msra.mxu0 0.0
  %1473 = vmatprep.subr.mxu0 0.0
  %1474 = vmatpush1.msra.mxu0 0.0
  %1475 = vmatprep.subr.mxu0 0.0
  %1476 = vmatpush1.msra.mxu0 0.0
  %1477 = vmatprep.subr.mxu0 0.0
  %1478 = vmatpush1.msra.mxu0 0.0
  %1479 = vmatprep.subr.mxu0 0.0
  %1480 = vmatpush1.msra.mxu0 0.0
  %1481 = vmatprep.subr.mxu0 0.0
  %1482 = vmatpush1.msra.mxu0 0.0
  %1483 = vmatprep.subr.mxu0 0.0
  %1484 = vmatpush1.msra.mxu0 0.0
  %1485 = vmatprep.subr.mxu0 0.0
  %1486 = vmatpush1.msra.mxu0 0.0
  %1487 = vmatprep.subr.mxu0 0.0
  %1488 = vmatpush1.msra.mxu0 0.0
  %1489 = vmatprep.subr.mxu0 0.0
  %1490 = vmatpush1.msra.mxu0 0.0
  %1491 = vmatprep.subr.mxu0 0.0
  %1492 = vmatpush1.msra.mxu0 %v189
  %1493 = vmatprep.subr.mxu0 0.0
  %1494 = vmatpush1.msra.mxu0 %v188
  %1495 = vmatprep.subr.mxu0 0.0
  %1496 = vmatpush1.msra.mxu0 %v187
  %1497 = vmatprep.subr.mxu0 0.0
  %1498 = vmatpush1.msra.mxu0 %v186
  %1499 = vmatprep.subr.mxu0 0.0
  %1500 = vmatpush2.msra.mxu0 0.0
  %1501 = vmatprep.subr.mxu0 0.0
  %1502 = vmatpush2.msra.mxu0 0.0
  %1503 = vmatprep.subr.mxu0 0.0
  %1504 = vmatpush2.msra.mxu0 0.0
  %1505 = vmatprep.subr.mxu0 0.0
  %1506 = vmatpush2.msra.mxu0 0.0
  %1507 = vmatprep.subr.mxu0 0.0
  %1508 = vmatpush2.msra.mxu0 0.0
  %1509 = vmatprep.subr.mxu0 0.0
  %1510 = vmatpush2.msra.mxu0 0.0
  %1511 = vmatprep.subr.mxu0 0.0
  %1512 = vmatpush2.msra.mxu0 0.0
  %1513 = vmatprep.subr.mxu0 0.0
  %1514 = vmatpush2.msra.mxu0 0.0
  %1515 = vmatprep.subr.mxu0 0.0
  %1516 = vmatpush2.msra.mxu0 0.0
  %1517 = vmatprep.subr.mxu0 0.0
  %1518 = vmatpush2.msra.mxu0 0.0
  %1519 = vmatprep.subr.mxu0 0.0
  %1520 = vmatpush2.msra.mxu0 0.0
  %1521 = vmatprep.subr.mxu0 0.0
  %1522 = vmatpush2.msra.mxu0 0.0
  %1523 = vmatprep.subr.mxu0 0.0
  %1524 = vmatpush2.msra.mxu0 0.0
  %1525 = vmatprep.subr.mxu0 0.0
  %1526 = vmatpush2.msra.mxu0 0.0
  %1527 = vmatprep.subr.mxu0 0.0
  %1528 = vmatpush2.msra.mxu0 0.0
  %1529 = vmatprep.subr.mxu0 0.0
  %1530 = vmatpush2.msra.mxu0 0.0
  %1531 = vmatprep.mubr.f32.mxu0 0.0
  %1532 = vmatmul.mubr.f32.gmra.mxu0 %v1462
  %v1533 = vpop.f32.mrf.mxu0
  %v1534 = vadd.f32 0.0, %v1533
  %v1535 = vpop.f32.mrf.mxu0
  %1536 = vmatprep.mubr.f32.mxu0 0.0
  %1537 = vmatmul.mubr.f32.gmra.mxu0 %v1465
  %v1538 = vpop.f32.mrf.mxu0
  %v1539 = vadd.f32 0.0, %v1538
  %v1540 = vpop.f32.mrf.mxu0
  %1541 = vdwg.mxu0
  %v1543 = vsel %vm326, %v62, 0
  %v1546 = vsel %vm326, %v63, 0
  %1548 = vmatprep.subr.mxu0 0.0
  %1549 = vmatpush1.msra.mxu0 0.0
  %1550 = vmatprep.subr.mxu0 0.0
  %1551 = vmatpush1.msra.mxu0 0.0
  %1552 = vmatprep.subr.mxu0 0.0
  %1553 = vmatpush1.msra.mxu0 0.0
  %1554 = vmatprep.subr.mxu0 0.0
  %1555 = vmatpush1.msra.mxu0 0.0
  %1556 = vmatprep.subr.mxu0 0.0
  %1557 = vmatpush1.msra.mxu0 0.0
  %1558 = vmatprep.subr.mxu0 0.0
  %1559 = vmatpush1.msra.mxu0 0.0
  %1560 = vmatprep.subr.mxu0 0.0
  %1561 = vmatpush1.msra.mxu0 0.0
  %1562 = vmatprep.subr.mxu0 0.0
  %1563 = vmatpush1.msra.mxu0 0.0
  %1564 = vmatprep.subr.mxu0 0.0
  %1565 = vmatpush1.msra.mxu0 0.0
  %1566 = vmatprep.subr.mxu0 0.0
  %1567 = vmatpush1.msra.mxu0 0.0
  %1568 = vmatprep.subr.mxu0 0.0
  %1569 = vmatpush1.msra.mxu0 0.0
  %1570 = vmatprep.subr.mxu0 0.0
  %1571 = vmatpush1.msra.mxu0 0.0
  %1572 = vmatprep.subr.mxu0 0.0
  %1573 = vmatpush1.msra.mxu0 %v193
  %1574 = vmatprep.subr.mxu0 0.0
  %1575 = vmatpush1.msra.mxu0 %v192
  %1576 = vmatprep.subr.mxu0 0.0
  %1577 = vmatpush1.msra.mxu0 %v191
  %1578 = vmatprep.subr.mxu0 0.0
  %1579 = vmatpush1.msra.mxu0 %v190
  %1580 = vmatprep.subr.mxu0 0.0
  %1581 = vmatpush2.msra.mxu0 0.0
  %1582 = vmatprep.subr.mxu0 0.0
  %1583 = vmatpush2.msra.mxu0 0.0
  %1584 = vmatprep.subr.mxu0 0.0
  %1585 = vmatpush2.msra.mxu0 0.0
  %1586 = vmatprep.subr.mxu0 0.0
  %1587 = vmatpush2.msra.mxu0 0.0
  %1588 = vmatprep.subr.mxu0 0.0
  %1589 = vmatpush2.msra.mxu0 0.0
  %1590 = vmatprep.subr.mxu0 0.0
  %1591 = vmatpush2.msra.mxu0 0.0
  %1592 = vmatprep.subr.mxu0 0.0
  %1593 = vmatpush2.msra.mxu0 0.0
  %1594 = vmatprep.subr.mxu0 0.0
  %1595 = vmatpush2.msra.mxu0 0.0
  %1596 = vmatprep.subr.mxu0 0.0
  %1597 = vmatpush2.msra.mxu0 0.0
  %1598 = vmatprep.subr.mxu0 0.0
  %1599 = vmatpush2.msra.mxu0 0.0
  %1600 = vmatprep.subr.mxu0 0.0
  %1601 = vmatpush2.msra.mxu0 0.0
  %1602 = vmatprep.subr.mxu0 0.0
  %1603 = vmatpush2.msra.mxu0 0.0
  %1604 = vmatprep.subr.mxu0 0.0
  %1605 = vmatpush2.msra.mxu0 0.0
  %1606 = vmatprep.subr.mxu0 0.0
  %1607 = vmatpush2.msra.mxu0 0.0
  %1608 = vmatprep.subr.mxu0 0.0
  %1609 = vmatpush2.msra.mxu0 0.0
  %1610 = vmatprep.subr.mxu0 0.0
  %1611 = vmatpush2.msra.mxu0 0.0
  %1612 = vmatprep.mubr.f32.mxu0 0.0
  %1613 = vmatmul.mubr.f32.gmra.mxu0 %v1543
  %v1614 = vpop.f32.mrf.mxu0
  %v1615 = vadd.f32 0.0, %v1614
  %v1616 = vpop.f32.mrf.mxu0
  %1617 = vmatprep.mubr.f32.mxu0 0.0
  %1618 = vmatmul.mubr.f32.gmra.mxu0 %v1546
  %v1619 = vpop.f32.mrf.mxu0
  %v1620 = vadd.f32 0.0, %v1619
  %v1621 = vpop.f32.mrf.mxu0
  %1622 = vdwg.mxu0
  %v1624 = vsel %vm326, %v64, 0
  %v1627 = vsel %vm326, %v65, 0
  %1629 = vmatprep.subr.mxu0 0.0
  %1630 = vmatpush1.msra.mxu0 0.0
  %1631 = vmatprep.subr.mxu0 0.0
  %1632 = vmatpush1.msra.mxu0 0.0
  %1633 = vmatprep.subr.mxu0 0.0
  %1634 = vmatpush1.msra.mxu0 0.0
  %1635 = vmatprep.subr.mxu0 0.0
  %1636 = vmatpush1.msra.mxu0 0.0
  %1637 = vmatprep.subr.mxu0 0.0
  %1638 = vmatpush1.msra.mxu0 0.0
  %1639 = vmatprep.subr.mxu0 0.0
  %1640 = vmatpush1.msra.mxu0 0.0
  %1641 = vmatprep.subr.mxu0 0.0
  %1642 = vmatpush1.msra.mxu0 0.0
  %1643 = vmatprep.subr.mxu0 0.0
  %1644 = vmatpush1.msra.mxu0 0.0
  %1645 = vmatprep.subr.mxu0 0.0
  %1646 = vmatpush1.msra.mxu0 0.0
  %1647 = vmatprep.subr.mxu0 0.0
  %1648 = vmatpush1.msra.mxu0 0.0
  %1649 = vmatprep.subr.mxu0 0.0
  %1650 = vmatpush1.msra.mxu0 0.0
  %1651 = vmatprep.subr.mxu0 0.0
  %1652 = vmatpush1.msra.mxu0 0.0
  %1653 = vmatprep.subr.mxu0 0.0
  %1654 = vmatpush1.msra.mxu0 %v197
  %1655 = vmatprep.subr.mxu0 0.0
  %1656 = vmatpush1.msra.mxu0 %v196
  %1657 = vmatprep.subr.mxu0 0.0
  %1658 = vmatpush1.msra.mxu0 %v195
  %1659 = vmatprep.subr.mxu0 0.0
  %1660 = vmatpush1.msra.mxu0 %v194
  %1661 = vmatprep.subr.mxu0 0.0
  %1662 = vmatpush2.msra.mxu0 0.0
  %1663 = vmatprep.subr.mxu0 0.0
  %1664 = vmatpush2.msra.mxu0 0.0
  %1665 = vmatprep.subr.mxu0 0.0
  %1666 = vmatpush2.msra.mxu0 0.0
  %1667 = vmatprep.subr.mxu0 0.0
  %1668 = vmatpush2.msra.mxu0 0.0
  %1669 = vmatprep.subr.mxu0 0.0
  %1670 = vmatpush2.msra.mxu0 0.0
  %1671 = vmatprep.subr.mxu0 0.0
  %1672 = vmatpush2.msra.mxu0 0.0
  %1673 = vmatprep.subr.mxu0 0.0
  %1674 = vmatpush2.msra.mxu0 0.0
  %1675 = vmatprep.subr.mxu0 0.0
  %1676 = vmatpush2.msra.mxu0 0.0
  %1677 = vmatprep.subr.mxu0 0.0
  %1678 = vmatpush2.msra.mxu0 0.0
  %1679 = vmatprep.subr.mxu0 0.0
  %1680 = vmatpush2.msra.mxu0 0.0
  %1681 = vmatprep.subr.mxu0 0.0
  %1682 = vmatpush2.msra.mxu0 0.0
  %1683 = vmatprep.subr.mxu0 0.0
  %1684 = vmatpush2.msra.mxu0 0.0
  %1685 = vmatprep.subr.mxu0 0.0
  %1686 = vmatpush2.msra.mxu0 0.0
  %1687 = vmatprep.subr.mxu0 0.0
  %1688 = vmatpush2.msra.mxu0 0.0
  %1689 = vmatprep.subr.mxu0 0.0
  %1690 = vmatpush2.msra.mxu0 0.0
  %1691 = vmatprep.subr.mxu0 0.0
  %1692 = vmatpush2.msra.mxu0 0.0
  %1693 = vmatprep.mubr.f32.mxu0 0.0
  %1694 = vmatmul.mubr.f32.gmra.mxu0 %v1624
  %v1695 = vpop.f32.mrf.mxu0
  %v1696 = vadd.f32 0.0, %v1695
  %v1697 = vpop.f32.mrf.mxu0
  %1698 = vmatprep.mubr.f32.mxu0 0.0
  %1699 = vmatmul.mubr.f32.gmra.mxu0 %v1627
  %v1700 = vpop.f32.mrf.mxu0
  %v1701 = vadd.f32 0.0, %v1700
  %v1702 = vpop.f32.mrf.mxu0
  %1703 = vdwg.mxu0
  %v1705 = vsel %vm326, %v66, 0
  %v1708 = vsel %vm326, %v67, 0
  %1710 = vmatprep.subr.mxu0 0.0
  %1711 = vmatpush1.msra.mxu0 0.0
  %1712 = vmatprep.subr.mxu0 0.0
  %1713 = vmatpush1.msra.mxu0 0.0
  %1714 = vmatprep.subr.mxu0 0.0
  %1715 = vmatpush1.msra.mxu0 0.0
  %1716 = vmatprep.subr.mxu0 0.0
  %1717 = vmatpush1.msra.mxu0 0.0
  %1718 = vmatprep.subr.mxu0 0.0
  %1719 = vmatpush1.msra.mxu0 0.0
  %1720 = vmatprep.subr.mxu0 0.0
  %1721 = vmatpush1.msra.mxu0 0.0
  %1722 = vmatprep.subr.mxu0 0.0
  %1723 = vmatpush1.msra.mxu0 0.0
  %1724 = vmatprep.subr.mxu0 0.0
  %1725 = vmatpush1.msra.mxu0 0.0
  %1726 = vmatprep.subr.mxu0 0.0
  %1727 = vmatpush1.msra.mxu0 0.0
  %1728 = vmatprep.subr.mxu0 0.0
  %1729 = vmatpush1.msra.mxu0 0.0
  %1730 = vmatprep.subr.mxu0 0.0
  %1731 = vmatpush1.msra.mxu0 0.0
  %1732 = vmatprep.subr.mxu0 0.0
  %1733 = vmatpush1.msra.mxu0 0.0
  %1734 = vmatprep.subr.mxu0 0.0
  %1735 = vmatpush1.msra.mxu0 %v201
  %1736 = vmatprep.subr.mxu0 0.0
  %1737 = vmatpush1.msra.mxu0 %v200
  %1738 = vmatprep.subr.mxu0 0.0
  %1739 = vmatpush1.msra.mxu0 %v199
  %1740 = vmatprep.subr.mxu0 0.0
  %1741 = vmatpush1.msra.mxu0 %v198
  %1742 = vmatprep.subr.mxu0 0.0
  %1743 = vmatpush2.msra.mxu0 0.0
  %1744 = vmatprep.subr.mxu0 0.0
  %1745 = vmatpush2.msra.mxu0 0.0
  %1746 = vmatprep.subr.mxu0 0.0
  %1747 = vmatpush2.msra.mxu0 0.0
  %1748 = vmatprep.subr.mxu0 0.0
  %1749 = vmatpush2.msra.mxu0 0.0
  %1750 = vmatprep.subr.mxu0 0.0
  %1751 = vmatpush2.msra.mxu0 0.0
  %1752 = vmatprep.subr.mxu0 0.0
  %1753 = vmatpush2.msra.mxu0 0.0
  %1754 = vmatprep.subr.mxu0 0.0
  %1755 = vmatpush2.msra.mxu0 0.0
  %1756 = vmatprep.subr.mxu0 0.0
  %1757 = vmatpush2.msra.mxu0 0.0
  %1758 = vmatprep.subr.mxu0 0.0
  %1759 = vmatpush2.msra.mxu0 0.0
  %1760 = vmatprep.subr.mxu0 0.0
  %1761 = vmatpush2.msra.mxu0 0.0
  %1762 = vmatprep.subr.mxu0 0.0
  %1763 = vmatpush2.msra.mxu0 0.0
  %1764 = vmatprep.subr.mxu0 0.0
  %1765 = vmatpush2.msra.mxu0 0.0
  %1766 = vmatprep.subr.mxu0 0.0
  %1767 = vmatpush2.msra.mxu0 0.0
  %1768 = vmatprep.subr.mxu0 0.0
  %1769 = vmatpush2.msra.mxu0 0.0
  %1770 = vmatprep.subr.mxu0 0.0
  %1771 = vmatpush2.msra.mxu0 0.0
  %1772 = vmatprep.subr.mxu0 0.0
  %1773 = vmatpush2.msra.mxu0 0.0
  %1774 = vmatprep.mubr.f32.mxu0 0.0
  %1775 = vmatmul.mubr.f32.gmra.mxu0 %v1705
  %v1776 = vpop.f32.mrf.mxu0
  %v1777 = vadd.f32 0.0, %v1776
  %v1778 = vpop.f32.mrf.mxu0
  %1779 = vmatprep.mubr.f32.mxu0 0.0
  %1780 = vmatmul.mubr.f32.gmra.mxu0 %v1708
  %v1781 = vpop.f32.mrf.mxu0
  %v1782 = vadd.f32 0.0, %v1781
  %v1783 = vpop.f32.mrf.mxu0
  %1784 = vdwg.mxu0
  %v1786 = vsel %vm326, %v68, 0
  %v1789 = vsel %vm326, %v69, 0
  %1791 = vmatprep.subr.mxu0 0.0
  %1792 = vmatpush1.msra.mxu0 0.0
  %1793 = vmatprep.subr.mxu0 0.0
  %1794 = vmatpush1.msra.mxu0 0.0
  %1795 = vmatprep.subr.mxu0 0.0
  %1796 = vmatpush1.msra.mxu0 0.0
  %1797 = vmatprep.subr.mxu0 0.0
  %1798 = vmatpush1.msra.mxu0 0.0
  %1799 = vmatprep.subr.mxu0 0.0
  %1800 = vmatpush1.msra.mxu0 0.0
  %1801 = vmatprep.subr.mxu0 0.0
  %1802 = vmatpush1.msra.mxu0 0.0
  %1803 = vmatprep.subr.mxu0 0.0
  %1804 = vmatpush1.msra.mxu0 0.0
  %1805 = vmatprep.subr.mxu0 0.0
  %1806 = vmatpush1.msra.mxu0 0.0
  %1807 = vmatprep.subr.mxu0 0.0
  %1808 = vmatpush1.msra.mxu0 0.0
  %1809 = vmatprep.subr.mxu0 0.0
  %1810 = vmatpush1.msra.mxu0 0.0
  %1811 = vmatprep.subr.mxu0 0.0
  %1812 = vmatpush1.msra.mxu0 0.0
  %1813 = vmatprep.subr.mxu0 0.0
  %1814 = vmatpush1.msra.mxu0 0.0
  %1815 = vmatprep.subr.mxu0 0.0
  %1816 = vmatpush1.msra.mxu0 %v205
  %1817 = vmatprep.subr.mxu0 0.0
  %1818 = vmatpush1.msra.mxu0 %v204
  %1819 = vmatprep.subr.mxu0 0.0
  %1820 = vmatpush1.msra.mxu0 %v203
  %1821 = vmatprep.subr.mxu0 0.0
  %1822 = vmatpush1.msra.mxu0 %v202
  %1823 = vmatprep.subr.mxu0 0.0
  %1824 = vmatpush2.msra.mxu0 0.0
  %1825 = vmatprep.subr.mxu0 0.0
  %1826 = vmatpush2.msra.mxu0 0.0
  %1827 = vmatprep.subr.mxu0 0.0
  %1828 = vmatpush2.msra.mxu0 0.0
  %1829 = vmatprep.subr.mxu0 0.0
  %1830 = vmatpush2.msra.mxu0 0.0
  %1831 = vmatprep.subr.mxu0 0.0
  %1832 = vmatpush2.msra.mxu0 0.0
  %1833 = vmatprep.subr.mxu0 0.0
  %1834 = vmatpush2.msra.mxu0 0.0
  %1835 = vmatprep.subr.mxu0 0.0
  %1836 = vmatpush2.msra.mxu0 0.0
  %1837 = vmatprep.subr.mxu0 0.0
  %1838 = vmatpush2.msra.mxu0 0.0
  %1839 = vmatprep.subr.mxu0 0.0
  %1840 = vmatpush2.msra.mxu0 0.0
  %1841 = vmatprep.subr.mxu0 0.0
  %1842 = vmatpush2.msra.mxu0 0.0
  %1843 = vmatprep.subr.mxu0 0.0
  %1844 = vmatpush2.msra.mxu0 0.0
  %1845 = vmatprep.subr.mxu0 0.0
  %1846 = vmatpush2.msra.mxu0 0.0
  %1847 = vmatprep.subr.mxu0 0.0
  %1848 = vmatpush2.msra.mxu0 0.0
  %1849 = vmatprep.subr.mxu0 0.0
  %1850 = vmatpush2.msra.mxu0 0.0
  %1851 = vmatprep.subr.mxu0 0.0
  %1852 = vmatpush2.msra.mxu0 0.0
  %1853 = vmatprep.subr.mxu0 0.0
  %1854 = vmatpush2.msra.mxu0 0.0
  %1855 = vmatprep.mubr.f32.mxu0 0.0
  %1856 = vmatmul.mubr.f32.gmra.mxu0 %v1786
  %v1857 = vpop.f32.mrf.mxu0
  %v1858 = vadd.f32 0.0, %v1857
  %v1859 = vpop.f32.mrf.mxu0
  %1860 = vmatprep.mubr.f32.mxu0 0.0
  %1861 = vmatmul.mubr.f32.gmra.mxu0 %v1789
  %v1862 = vpop.f32.mrf.mxu0
  %v1863 = vadd.f32 0.0, %v1862
  %v1864 = vpop.f32.mrf.mxu0
  %1865 = vdwg.mxu0
  %v1867 = vsel %vm326, %v70, 0
  %v1870 = vsel %vm326, %v71, 0
  %1872 = vmatprep.subr.mxu0 0.0
  %1873 = vmatpush1.msra.mxu0 0.0
  %1874 = vmatprep.subr.mxu0 0.0
  %1875 = vmatpush1.msra.mxu0 0.0
  %1876 = vmatprep.subr.mxu0 0.0
  %1877 = vmatpush1.msra.mxu0 0.0
  %1878 = vmatprep.subr.mxu0 0.0
  %1879 = vmatpush1.msra.mxu0 0.0
  %1880 = vmatprep.subr.mxu0 0.0
  %1881 = vmatpush1.msra.mxu0 0.0
  %1882 = vmatprep.subr.mxu0 0.0
  %1883 = vmatpush1.msra.mxu0 0.0
  %1884 = vmatprep.subr.mxu0 0.0
  %1885 = vmatpush1.msra.mxu0 0.0
  %1886 = vmatprep.subr.mxu0 0.0
  %1887 = vmatpush1.msra.mxu0 0.0
  %1888 = vmatprep.subr.mxu0 0.0
  %1889 = vmatpush1.msra.mxu0 0.0
  %1890 = vmatprep.subr.mxu0 0.0
  %1891 = vmatpush1.msra.mxu0 0.0
  %1892 = vmatprep.subr.mxu0 0.0
  %1893 = vmatpush1.msra.mxu0 0.0
  %1894 = vmatprep.subr.mxu0 0.0
  %1895 = vmatpush1.msra.mxu0 0.0
  %1896 = vmatprep.subr.mxu0 0.0
  %1897 = vmatpush1.msra.mxu0 %v209
  %1898 = vmatprep.subr.mxu0 0.0
  %1899 = vmatpush1.msra.mxu0 %v208
  %1900 = vmatprep.subr.mxu0 0.0
  %1901 = vmatpush1.msra.mxu0 %v207
  %1902 = vmatprep.subr.mxu0 0.0
  %1903 = vmatpush1.msra.mxu0 %v206
  %1904 = vmatprep.subr.mxu0 0.0
  %1905 = vmatpush2.msra.mxu0 0.0
  %1906 = vmatprep.subr.mxu0 0.0
  %1907 = vmatpush2.msra.mxu0 0.0
  %1908 = vmatprep.subr.mxu0 0.0
  %1909 = vmatpush2.msra.mxu0 0.0
  %1910 = vmatprep.subr.mxu0 0.0
  %1911 = vmatpush2.msra.mxu0 0.0
  %1912 = vmatprep.subr.mxu0 0.0
  %1913 = vmatpush2.msra.mxu0 0.0
  %1914 = vmatprep.subr.mxu0 0.0
  %1915 = vmatpush2.msra.mxu0 0.0
  %1916 = vmatprep.subr.mxu0 0.0
  %1917 = vmatpush2.msra.mxu0 0.0
  %1918 = vmatprep.subr.mxu0 0.0
  %1919 = vmatpush2.msra.mxu0 0.0
  %1920 = vmatprep.subr.mxu0 0.0
  %1921 = vmatpush2.msra.mxu0 0.0
  %1922 = vmatprep.subr.mxu0 0.0
  %1923 = vmatpush2.msra.mxu0 0.0
  %1924 = vmatprep.subr.mxu0 0.0
  %1925 = vmatpush2.msra.mxu0 0.0
  %1926 = vmatprep.subr.mxu0 0.0
  %1927 = vmatpush2.msra.mxu0 0.0
  %1928 = vmatprep.subr.mxu0 0.0
  %1929 = vmatpush2.msra.mxu0 0.0
  %1930 = vmatprep.subr.mxu0 0.0
  %1931 = vmatpush2.msra.mxu0 0.0
  %1932 = vmatprep.subr.mxu0 0.0
  %1933 = vmatpush2.msra.mxu0 0.0
  %1934 = vmatprep.subr.mxu0 0.0
  %1935 = vmatpush2.msra.mxu0 0.0
  %1936 = vmatprep.mubr.f32.mxu0 0.0
  %1937 = vmatmul.mubr.f32.gmra.mxu0 %v1867
  %v1938 = vpop.f32.mrf.mxu0
  %v1939 = vadd.f32 0.0, %v1938
  %v1940 = vpop.f32.mrf.mxu0
  %1941 = vmatprep.mubr.f32.mxu0 0.0
  %1942 = vmatmul.mubr.f32.gmra.mxu0 %v1870
  %v1943 = vpop.f32.mrf.mxu0
  %v1944 = vadd.f32 0.0, %v1943
  %v1945 = vpop.f32.mrf.mxu0
  %1946 = vdwg.mxu0
  %v1948 = vsel %vm326, %v72, 0
  %v1951 = vsel %vm326, %v73, 0
  %1953 = vmatprep.subr.mxu0 0.0
  %1954 = vmatpush1.msra.mxu0 0.0
  %1955 = vmatprep.subr.mxu0 0.0
  %1956 = vmatpush1.msra.mxu0 0.0
  %1957 = vmatprep.subr.mxu0 0.0
  %1958 = vmatpush1.msra.mxu0 0.0
  %1959 = vmatprep.subr.mxu0 0.0
  %1960 = vmatpush1.msra.mxu0 0.0
  %1961 = vmatprep.subr.mxu0 0.0
  %1962 = vmatpush1.msra.mxu0 0.0
  %1963 = vmatprep.subr.mxu0 0.0
  %1964 = vmatpush1.msra.mxu0 0.0
  %1965 = vmatprep.subr.mxu0 0.0
  %1966 = vmatpush1.msra.mxu0 0.0
  %1967 = vmatprep.subr.mxu0 0.0
  %1968 = vmatpush1.msra.mxu0 0.0
  %1969 = vmatprep.subr.mxu0 0.0
  %1970 = vmatpush1.msra.mxu0 0.0
  %1971 = vmatprep.subr.mxu0 0.0
  %1972 = vmatpush1.msra.mxu0 0.0
  %1973 = vmatprep.subr.mxu0 0.0
  %1974 = vmatpush1.msra.mxu0 0.0
  %1975 = vmatprep.subr.mxu0 0.0
  %1976 = vmatpush1.msra.mxu0 0.0
  %1977 = vmatprep.subr.mxu0 0.0
  %1978 = vmatpush1.msra.mxu0 %v213
  %1979 = vmatprep.subr.mxu0 0.0
  %1980 = vmatpush1.msra.mxu0 %v212
  %1981 = vmatprep.subr.mxu0 0.0
  %1982 = vmatpush1.msra.mxu0 %v211
  %1983 = vmatprep.subr.mxu0 0.0
  %1984 = vmatpush1.msra.mxu0 %v210
  %1985 = vmatprep.subr.mxu0 0.0
  %1986 = vmatpush2.msra.mxu0 0.0
  %1987 = vmatprep.subr.mxu0 0.0
  %1988 = vmatpush2.msra.mxu0 0.0
  %1989 = vmatprep.subr.mxu0 0.0
  %1990 = vmatpush2.msra.mxu0 0.0
  %1991 = vmatprep.subr.mxu0 0.0
  %1992 = vmatpush2.msra.mxu0 0.0
  %1993 = vmatprep.subr.mxu0 0.0
  %1994 = vmatpush2.msra.mxu0 0.0
  %1995 = vmatprep.subr.mxu0 0.0
  %1996 = vmatpush2.msra.mxu0 0.0
  %1997 = vmatprep.subr.mxu0 0.0
  %1998 = vmatpush2.msra.mxu0 0.0
  %1999 = vmatprep.subr.mxu0 0.0
  %2000 = vmatpush2.msra.mxu0 0.0
  %2001 = vmatprep.subr.mxu0 0.0
  %2002 = vmatpush2.msra.mxu0 0.0
  %2003 = vmatprep.subr.mxu0 0.0
  %2004 = vmatpush2.msra.mxu0 0.0
  %2005 = vmatprep.subr.mxu0 0.0
  %2006 = vmatpush2.msra.mxu0 0.0
  %2007 = vmatprep.subr.mxu0 0.0
  %2008 = vmatpush2.msra.mxu0 0.0
  %2009 = vmatprep.subr.mxu0 0.0
  %2010 = vmatpush2.msra.mxu0 0.0
  %2011 = vmatprep.subr.mxu0 0.0
  %2012 = vmatpush2.msra.mxu0 0.0
  %2013 = vmatprep.subr.mxu0 0.0
  %2014 = vmatpush2.msra.mxu0 0.0
  %2015 = vmatprep.subr.mxu0 0.0
  %2016 = vmatpush2.msra.mxu0 0.0
  %2017 = vmatprep.mubr.f32.mxu0 0.0
  %2018 = vmatmul.mubr.f32.gmra.mxu0 %v1948
  %v2019 = vpop.f32.mrf.mxu0
  %v2020 = vadd.f32 0.0, %v2019
  %v2021 = vpop.f32.mrf.mxu0
  %2022 = vmatprep.mubr.f32.mxu0 0.0
  %2023 = vmatmul.mubr.f32.gmra.mxu0 %v1951
  %v2024 = vpop.f32.mrf.mxu0
  %v2025 = vadd.f32 0.0, %v2024
  %v2026 = vpop.f32.mrf.mxu0
  %2027 = vdwg.mxu0
  %v2029 = vsel %vm326, %v74, 0
  %v2032 = vsel %vm326, %v75, 0
  %2034 = vmatprep.subr.mxu0 0.0
  %2035 = vmatpush1.msra.mxu0 0.0
  %2036 = vmatprep.subr.mxu0 0.0
  %2037 = vmatpush1.msra.mxu0 0.0
  %2038 = vmatprep.subr.mxu0 0.0
  %2039 = vmatpush1.msra.mxu0 0.0
  %2040 = vmatprep.subr.mxu0 0.0
  %2041 = vmatpush1.msra.mxu0 0.0
  %2042 = vmatprep.subr.mxu0 0.0
  %2043 = vmatpush1.msra.mxu0 0.0
  %2044 = vmatprep.subr.mxu0 0.0
  %2045 = vmatpush1.msra.mxu0 0.0
  %2046 = vmatprep.subr.mxu0 0.0
  %2047 = vmatpush1.msra.mxu0 0.0
  %2048 = vmatprep.subr.mxu0 0.0
  %2049 = vmatpush1.msra.mxu0 0.0
  %2050 = vmatprep.subr.mxu0 0.0
  %2051 = vmatpush1.msra.mxu0 0.0
  %2052 = vmatprep.subr.mxu0 0.0
  %2053 = vmatpush1.msra.mxu0 0.0
  %2054 = vmatprep.subr.mxu0 0.0
  %2055 = vmatpush1.msra.mxu0 0.0
  %2056 = vmatprep.subr.mxu0 0.0
  %2057 = vmatpush1.msra.mxu0 0.0
  %2058 = vmatprep.subr.mxu0 0.0
  %2059 = vmatpush1.msra.mxu0 %v217
  %2060 = vmatprep.subr.mxu0 0.0
  %2061 = vmatpush1.msra.mxu0 %v216
  %2062 = vmatprep.subr.mxu0 0.0
  %2063 = vmatpush1.msra.mxu0 %v215
  %2064 = vmatprep.subr.mxu0 0.0
  %2065 = vmatpush1.msra.mxu0 %v214
  %2066 = vmatprep.subr.mxu0 0.0
  %2067 = vmatpush2.msra.mxu0 0.0
  %2068 = vmatprep.subr.mxu0 0.0
  %2069 = vmatpush2.msra.mxu0 0.0
  %2070 = vmatprep.subr.mxu0 0.0
  %2071 = vmatpush2.msra.mxu0 0.0
  %2072 = vmatprep.subr.mxu0 0.0
  %2073 = vmatpush2.msra.mxu0 0.0
  %2074 = vmatprep.subr.mxu0 0.0
  %2075 = vmatpush2.msra.mxu0 0.0
  %2076 = vmatprep.subr.mxu0 0.0
  %2077 = vmatpush2.msra.mxu0 0.0
  %2078 = vmatprep.subr.mxu0 0.0
  %2079 = vmatpush2.msra.mxu0 0.0
  %2080 = vmatprep.subr.mxu0 0.0
  %2081 = vmatpush2.msra.mxu0 0.0
  %2082 = vmatprep.subr.mxu0 0.0
  %2083 = vmatpush2.msra.mxu0 0.0
  %2084 = vmatprep.subr.mxu0 0.0
  %2085 = vmatpush2.msra.mxu0 0.0
  %2086 = vmatprep.subr.mxu0 0.0
  %2087 = vmatpush2.msra.mxu0 0.0
  %2088 = vmatprep.subr.mxu0 0.0
  %2089 = vmatpush2.msra.mxu0 0.0
  %2090 = vmatprep.subr.mxu0 0.0
  %2091 = vmatpush2.msra.mxu0 0.0
  %2092 = vmatprep.subr.mxu0 0.0
  %2093 = vmatpush2.msra.mxu0 0.0
  %2094 = vmatprep.subr.mxu0 0.0
  %2095 = vmatpush2.msra.mxu0 0.0
  %2096 = vmatprep.subr.mxu0 0.0
  %2097 = vmatpush2.msra.mxu0 0.0
  %2098 = vmatprep.mubr.f32.mxu0 0.0
  %2099 = vmatmul.mubr.f32.gmra.mxu0 %v2029
  %v2100 = vpop.f32.mrf.mxu0
  %v2101 = vadd.f32 0.0, %v2100
  %v2102 = vpop.f32.mrf.mxu0
  %2103 = vmatprep.mubr.f32.mxu0 0.0
  %2104 = vmatmul.mubr.f32.gmra.mxu0 %v2032
  %v2105 = vpop.f32.mrf.mxu0
  %v2106 = vadd.f32 0.0, %v2105
  %v2107 = vpop.f32.mrf.mxu0
  %2108 = vdwg.mxu0
  %v2110 = vsel %vm326, %v76, 0
  %v2113 = vsel %vm326, %v77, 0
  %2115 = vmatprep.subr.mxu0 0.0
  %2116 = vmatpush1.msra.mxu0 0.0
  %2117 = vmatprep.subr.mxu0 0.0
  %2118 = vmatpush1.msra.mxu0 0.0
  %2119 = vmatprep.subr.mxu0 0.0
  %2120 = vmatpush1.msra.mxu0 0.0
  %2121 = vmatprep.subr.mxu0 0.0
  %2122 = vmatpush1.msra.mxu0 0.0
  %2123 = vmatprep.subr.mxu0 0.0
  %2124 = vmatpush1.msra.mxu0 0.0
  %2125 = vmatprep.subr.mxu0 0.0
  %2126 = vmatpush1.msra.mxu0 0.0
  %2127 = vmatprep.subr.mxu0 0.0
  %2128 = vmatpush1.msra.mxu0 0.0
  %2129 = vmatprep.subr.mxu0 0.0
  %2130 = vmatpush1.msra.mxu0 0.0
  %2131 = vmatprep.subr.mxu0 0.0
  %2132 = vmatpush1.msra.mxu0 0.0
  %2133 = vmatprep.subr.mxu0 0.0
  %2134 = vmatpush1.msra.mxu0 0.0
  %2135 = vmatprep.subr.mxu0 0.0
  %2136 = vmatpush1.msra.mxu0 0.0
  %2137 = vmatprep.subr.mxu0 0.0
  %2138 = vmatpush1.msra.mxu0 0.0
  %2139 = vmatprep.subr.mxu0 0.0
  %2140 = vmatpush1.msra.mxu0 %v221
  %2141 = vmatprep.subr.mxu0 0.0
  %2142 = vmatpush1.msra.mxu0 %v220
  %2143 = vmatprep.subr.mxu0 0.0
  %2144 = vmatpush1.msra.mxu0 %v219
  %2145 = vmatprep.subr.mxu0 0.0
  %2146 = vmatpush1.msra.mxu0 %v218
  %2147 = vmatprep.subr.mxu0 0.0
  %2148 = vmatpush2.msra.mxu0 0.0
  %2149 = vmatprep.subr.mxu0 0.0
  %2150 = vmatpush2.msra.mxu0 0.0
  %2151 = vmatprep.subr.mxu0 0.0
  %2152 = vmatpush2.msra.mxu0 0.0
  %2153 = vmatprep.subr.mxu0 0.0
  %2154 = vmatpush2.msra.mxu0 0.0
  %2155 = vmatprep.subr.mxu0 0.0
  %2156 = vmatpush2.msra.mxu0 0.0
  %2157 = vmatprep.subr.mxu0 0.0
  %2158 = vmatpush2.msra.mxu0 0.0
  %2159 = vmatprep.subr.mxu0 0.0
  %2160 = vmatpush2.msra.mxu0 0.0
  %2161 = vmatprep.subr.mxu0 0.0
  %2162 = vmatpush2.msra.mxu0 0.0
  %2163 = vmatprep.subr.mxu0 0.0
  %2164 = vmatpush2.msra.mxu0 0.0
  %2165 = vmatprep.subr.mxu0 0.0
  %2166 = vmatpush2.msra.mxu0 0.0
  %2167 = vmatprep.subr.mxu0 0.0
  %2168 = vmatpush2.msra.mxu0 0.0
  %2169 = vmatprep.subr.mxu0 0.0
  %2170 = vmatpush2.msra.mxu0 0.0
  %2171 = vmatprep.subr.mxu0 0.0
  %2172 = vmatpush2.msra.mxu0 0.0
  %2173 = vmatprep.subr.mxu0 0.0
  %2174 = vmatpush2.msra.mxu0 0.0
  %2175 = vmatprep.subr.mxu0 0.0
  %2176 = vmatpush2.msra.mxu0 0.0
  %2177 = vmatprep.subr.mxu0 0.0
  %2178 = vmatpush2.msra.mxu0 0.0
  %2179 = vmatprep.mubr.f32.mxu0 0.0
  %2180 = vmatmul.mubr.f32.gmra.mxu0 %v2110
  %v2181 = vpop.f32.mrf.mxu0
  %v2182 = vadd.f32 0.0, %v2181
  %v2183 = vpop.f32.mrf.mxu0
  %2184 = vmatprep.mubr.f32.mxu0 0.0
  %2185 = vmatmul.mubr.f32.gmra.mxu0 %v2113
  %v2186 = vpop.f32.mrf.mxu0
  %v2187 = vadd.f32 0.0, %v2186
  %v2188 = vpop.f32.mrf.mxu0
  %2189 = vdwg.mxu0
  %v2191 = vsel %vm326, %v78, 0
  %v2194 = vsel %vm326, %v79, 0
  %2196 = vmatprep.subr.mxu0 0.0
  %2197 = vmatpush1.msra.mxu0 0.0
  %2198 = vmatprep.subr.mxu0 0.0
  %2199 = vmatpush1.msra.mxu0 0.0
  %2200 = vmatprep.subr.mxu0 0.0
  %2201 = vmatpush1.msra.mxu0 0.0
  %2202 = vmatprep.subr.mxu0 0.0
  %2203 = vmatpush1.msra.mxu0 0.0
  %2204 = vmatprep.subr.mxu0 0.0
  %2205 = vmatpush1.msra.mxu0 0.0
  %2206 = vmatprep.subr.mxu0 0.0
  %2207 = vmatpush1.msra.mxu0 0.0
  %2208 = vmatprep.subr.mxu0 0.0
  %2209 = vmatpush1.msra.mxu0 0.0
  %2210 = vmatprep.subr.mxu0 0.0
  %2211 = vmatpush1.msra.mxu0 0.0
  %2212 = vmatprep.subr.mxu0 0.0
  %2213 = vmatpush1.msra.mxu0 0.0
  %2214 = vmatprep.subr.mxu0 0.0
  %2215 = vmatpush1.msra.mxu0 0.0
  %2216 = vmatprep.subr.mxu0 0.0
  %2217 = vmatpush1.msra.mxu0 0.0
  %2218 = vmatprep.subr.mxu0 0.0
  %2219 = vmatpush1.msra.mxu0 0.0
  %2220 = vmatprep.subr.mxu0 0.0
  %2221 = vmatpush1.msra.mxu0 %v225
  %2222 = vmatprep.subr.mxu0 0.0
  %2223 = vmatpush1.msra.mxu0 %v224
  %2224 = vmatprep.subr.mxu0 0.0
  %2225 = vmatpush1.msra.mxu0 %v223
  %2226 = vmatprep.subr.mxu0 0.0
  %2227 = vmatpush1.msra.mxu0 %v222
  %2228 = vmatprep.subr.mxu0 0.0
  %2229 = vmatpush2.msra.mxu0 0.0
  %2230 = vmatprep.subr.mxu0 0.0
  %2231 = vmatpush2.msra.mxu0 0.0
  %2232 = vmatprep.subr.mxu0 0.0
  %2233 = vmatpush2.msra.mxu0 0.0
  %2234 = vmatprep.subr.mxu0 0.0
  %2235 = vmatpush2.msra.mxu0 0.0
  %2236 = vmatprep.subr.mxu0 0.0
  %2237 = vmatpush2.msra.mxu0 0.0
  %2238 = vmatprep.subr.mxu0 0.0
  %2239 = vmatpush2.msra.mxu0 0.0
  %2240 = vmatprep.subr.mxu0 0.0
  %2241 = vmatpush2.msra.mxu0 0.0
  %2242 = vmatprep.subr.mxu0 0.0
  %2243 = vmatpush2.msra.mxu0 0.0
  %2244 = vmatprep.subr.mxu0 0.0
  %2245 = vmatpush2.msra.mxu0 0.0
  %2246 = vmatprep.subr.mxu0 0.0
  %2247 = vmatpush2.msra.mxu0 0.0
  %2248 = vmatprep.subr.mxu0 0.0
  %2249 = vmatpush2.msra.mxu0 0.0
  %2250 = vmatprep.subr.mxu0 0.0
  %2251 = vmatpush2.msra.mxu0 0.0
  %2252 = vmatprep.subr.mxu0 0.0
  %2253 = vmatpush2.msra.mxu0 0.0
  %2254 = vmatprep.subr.mxu0 0.0
  %2255 = vmatpush2.msra.mxu0 0.0
  %2256 = vmatprep.subr.mxu0 0.0
  %2257 = vmatpush2.msra.mxu0 0.0
  %2258 = vmatprep.subr.mxu0 0.0
  %2259 = vmatpush2.msra.mxu0 0.0
  %2260 = vmatprep.mubr.f32.mxu0 0.0
  %2261 = vmatmul.mubr.f32.gmra.mxu0 %v2191
  %v2262 = vpop.f32.mrf.mxu0
  %v2263 = vadd.f32 0.0, %v2262
  %v2264 = vpop.f32.mrf.mxu0
  %2265 = vmatprep.mubr.f32.mxu0 0.0
  %2266 = vmatmul.mubr.f32.gmra.mxu0 %v2194
  %v2267 = vpop.f32.mrf.mxu0
  %v2268 = vadd.f32 0.0, %v2267
  %v2269 = vpop.f32.mrf.mxu0
  %2270 = vdwg.mxu0
  %v2272 = vsel %vm326, %v80, 0
  %v2275 = vsel %vm326, %v81, 0
  %2277 = vmatprep.subr.mxu0 0.0
  %2278 = vmatpush1.msra.mxu0 0.0
  %2279 = vmatprep.subr.mxu0 0.0
  %2280 = vmatpush1.msra.mxu0 0.0
  %2281 = vmatprep.subr.mxu0 0.0
  %2282 = vmatpush1.msra.mxu0 0.0
  %2283 = vmatprep.subr.mxu0 0.0
  %2284 = vmatpush1.msra.mxu0 0.0
  %2285 = vmatprep.subr.mxu0 0.0
  %2286 = vmatpush1.msra.mxu0 0.0
  %2287 = vmatprep.subr.mxu0 0.0
  %2288 = vmatpush1.msra.mxu0 0.0
  %2289 = vmatprep.subr.mxu0 0.0
  %2290 = vmatpush1.msra.mxu0 0.0
  %2291 = vmatprep.subr.mxu0 0.0
  %2292 = vmatpush1.msra.mxu0 0.0
  %2293 = vmatprep.subr.mxu0 0.0
  %2294 = vmatpush1.msra.mxu0 0.0
  %2295 = vmatprep.subr.mxu0 0.0
  %2296 = vmatpush1.msra.mxu0 0.0
  %2297 = vmatprep.subr.mxu0 0.0
  %2298 = vmatpush1.msra.mxu0 0.0
  %2299 = vmatprep.subr.mxu0 0.0
  %2300 = vmatpush1.msra.mxu0 0.0
  %2301 = vmatprep.subr.mxu0 0.0
  %2302 = vmatpush1.msra.mxu0 %v229
  %2303 = vmatprep.subr.mxu0 0.0
  %2304 = vmatpush1.msra.mxu0 %v228
  %2305 = vmatprep.subr.mxu0 0.0
  %2306 = vmatpush1.msra.mxu0 %v227
  %2307 = vmatprep.subr.mxu0 0.0
  %2308 = vmatpush1.msra.mxu0 %v226
  %2309 = vmatprep.subr.mxu0 0.0
  %2310 = vmatpush2.msra.mxu0 0.0
  %2311 = vmatprep.subr.mxu0 0.0
  %2312 = vmatpush2.msra.mxu0 0.0
  %2313 = vmatprep.subr.mxu0 0.0
  %2314 = vmatpush2.msra.mxu0 0.0
  %2315 = vmatprep.subr.mxu0 0.0
  %2316 = vmatpush2.msra.mxu0 0.0
  %2317 = vmatprep.subr.mxu0 0.0
  %2318 = vmatpush2.msra.mxu0 0.0
  %2319 = vmatprep.subr.mxu0 0.0
  %2320 = vmatpush2.msra.mxu0 0.0
  %2321 = vmatprep.subr.mxu0 0.0
  %2322 = vmatpush2.msra.mxu0 0.0
  %2323 = vmatprep.subr.mxu0 0.0
  %2324 = vmatpush2.msra.mxu0 0.0
  %2325 = vmatprep.subr.mxu0 0.0
  %2326 = vmatpush2.msra.mxu0 0.0
  %2327 = vmatprep.subr.mxu0 0.0
  %2328 = vmatpush2.msra.mxu0 0.0
  %2329 = vmatprep.subr.mxu0 0.0
  %2330 = vmatpush2.msra.mxu0 0.0
  %2331 = vmatprep.subr.mxu0 0.0
  %2332 = vmatpush2.msra.mxu0 0.0
  %2333 = vmatprep.subr.mxu0 0.0
  %2334 = vmatpush2.msra.mxu0 0.0
  %2335 = vmatprep.subr.mxu0 0.0
  %2336 = vmatpush2.msra.mxu0 0.0
  %2337 = vmatprep.subr.mxu0 0.0
  %2338 = vmatpush2.msra.mxu0 0.0
  %2339 = vmatprep.subr.mxu0 0.0
  %2340 = vmatpush2.msra.mxu0 0.0
  %2341 = vmatprep.mubr.f32.mxu0 0.0
  %2342 = vmatmul.mubr.f32.gmra.mxu0 %v2272
  %v2343 = vpop.f32.mrf.mxu0
  %v2344 = vadd.f32 0.0, %v2343
  %v2345 = vpop.f32.mrf.mxu0
  %2346 = vmatprep.mubr.f32.mxu0 0.0
  %2347 = vmatmul.mubr.f32.gmra.mxu0 %v2275
  %v2348 = vpop.f32.mrf.mxu0
  %v2349 = vadd.f32 0.0, %v2348
  %v2350 = vpop.f32.mrf.mxu0
  %2351 = vdwg.mxu0
  %v2353 = vsel %vm326, %v82, 0
  %v2356 = vsel %vm326, %v83, 0
  %2358 = vmatprep.subr.mxu0 0.0
  %2359 = vmatpush1.msra.mxu0 0.0
  %2360 = vmatprep.subr.mxu0 0.0
  %2361 = vmatpush1.msra.mxu0 0.0
  %2362 = vmatprep.subr.mxu0 0.0
  %2363 = vmatpush1.msra.mxu0 0.0
  %2364 = vmatprep.subr.mxu0 0.0
  %2365 = vmatpush1.msra.mxu0 0.0
  %2366 = vmatprep.subr.mxu0 0.0
  %2367 = vmatpush1.msra.mxu0 0.0
  %2368 = vmatprep.subr.mxu0 0.0
  %2369 = vmatpush1.msra.mxu0 0.0
  %2370 = vmatprep.subr.mxu0 0.0
  %2371 = vmatpush1.msra.mxu0 0.0
  %2372 = vmatprep.subr.mxu0 0.0
  %2373 = vmatpush1.msra.mxu0 0.0
  %2374 = vmatprep.subr.mxu0 0.0
  %2375 = vmatpush1.msra.mxu0 0.0
  %2376 = vmatprep.subr.mxu0 0.0
  %2377 = vmatpush1.msra.mxu0 0.0
  %2378 = vmatprep.subr.mxu0 0.0
  %2379 = vmatpush1.msra.mxu0 0.0
  %2380 = vmatprep.subr.mxu0 0.0
  %2381 = vmatpush1.msra.mxu0 0.0
  %2382 = vmatprep.subr.mxu0 0.0
  %2383 = vmatpush1.msra.mxu0 %v233
  %2384 = vmatprep.subr.mxu0 0.0
  %2385 = vmatpush1.msra.mxu0 %v232
  %2386 = vmatprep.subr.mxu0 0.0
  %2387 = vmatpush1.msra.mxu0 %v231
  %2388 = vmatprep.subr.mxu0 0.0
  %2389 = vmatpush1.msra.mxu0 %v230
  %2390 = vmatprep.subr.mxu0 0.0
  %2391 = vmatpush2.msra.mxu0 0.0
  %2392 = vmatprep.subr.mxu0 0.0
  %2393 = vmatpush2.msra.mxu0 0.0
  %2394 = vmatprep.subr.mxu0 0.0
  %2395 = vmatpush2.msra.mxu0 0.0
  %2396 = vmatprep.subr.mxu0 0.0
  %2397 = vmatpush2.msra.mxu0 0.0
  %2398 = vmatprep.subr.mxu0 0.0
  %2399 = vmatpush2.msra.mxu0 0.0
  %2400 = vmatprep.subr.mxu0 0.0
  %2401 = vmatpush2.msra.mxu0 0.0
  %2402 = vmatprep.subr.mxu0 0.0
  %2403 = vmatpush2.msra.mxu0 0.0
  %2404 = vmatprep.subr.mxu0 0.0
  %2405 = vmatpush2.msra.mxu0 0.0
  %2406 = vmatprep.subr.mxu0 0.0
  %2407 = vmatpush2.msra.mxu0 0.0
  %2408 = vmatprep.subr.mxu0 0.0
  %2409 = vmatpush2.msra.mxu0 0.0
  %2410 = vmatprep.subr.mxu0 0.0
  %2411 = vmatpush2.msra.mxu0 0.0
  %2412 = vmatprep.subr.mxu0 0.0
  %2413 = vmatpush2.msra.mxu0 0.0
  %2414 = vmatprep.subr.mxu0 0.0
  %2415 = vmatpush2.msra.mxu0 0.0
  %2416 = vmatprep.subr.mxu0 0.0
  %2417 = vmatpush2.msra.mxu0 0.0
  %2418 = vmatprep.subr.mxu0 0.0
  %2419 = vmatpush2.msra.mxu0 0.0
  %2420 = vmatprep.subr.mxu0 0.0
  %2421 = vmatpush2.msra.mxu0 0.0
  %2422 = vmatprep.mubr.f32.mxu0 0.0
  %2423 = vmatmul.mubr.f32.gmra.mxu0 %v2353
  %v2424 = vpop.f32.mrf.mxu0
  %v2425 = vadd.f32 0.0, %v2424
  %v2426 = vpop.f32.mrf.mxu0
  %2427 = vmatprep.mubr.f32.mxu0 0.0
  %2428 = vmatmul.mubr.f32.gmra.mxu0 %v2356
  %v2429 = vpop.f32.mrf.mxu0
  %v2430 = vadd.f32 0.0, %v2429
  %v2431 = vpop.f32.mrf.mxu0
  %2432 = vdwg.mxu0
  %v2434 = vsel %vm326, %v84, 0
  %v2437 = vsel %vm326, %v85, 0
  %2439 = vmatprep.subr.mxu0 0.0
  %2440 = vmatpush1.msra.mxu0 0.0
  %2441 = vmatprep.subr.mxu0 0.0
  %2442 = vmatpush1.msra.mxu0 0.0
  %2443 = vmatprep.subr.mxu0 0.0
  %2444 = vmatpush1.msra.mxu0 0.0
  %2445 = vmatprep.subr.mxu0 0.0
  %2446 = vmatpush1.msra.mxu0 0.0
  %2447 = vmatprep.subr.mxu0 0.0
  %2448 = vmatpush1.msra.mxu0 0.0
  %2449 = vmatprep.subr.mxu0 0.0
  %2450 = vmatpush1.msra.mxu0 0.0
  %2451 = vmatprep.subr.mxu0 0.0
  %2452 = vmatpush1.msra.mxu0 0.0
  %2453 = vmatprep.subr.mxu0 0.0
  %2454 = vmatpush1.msra.mxu0 0.0
  %2455 = vmatprep.subr.mxu0 0.0
  %2456 = vmatpush1.msra.mxu0 0.0
  %2457 = vmatprep.subr.mxu0 0.0
  %2458 = vmatpush1.msra.mxu0 0.0
  %2459 = vmatprep.subr.mxu0 0.0
  %2460 = vmatpush1.msra.mxu0 0.0
  %2461 = vmatprep.subr.mxu0 0.0
  %2462 = vmatpush1.msra.mxu0 0.0
  %2463 = vmatprep.subr.mxu0 0.0
  %2464 = vmatpush1.msra.mxu0 %v237
  %2465 = vmatprep.subr.mxu0 0.0
  %2466 = vmatpush1.msra.mxu0 %v236
  %2467 = vmatprep.subr.mxu0 0.0
  %2468 = vmatpush1.msra.mxu0 %v235
  %2469 = vmatprep.subr.mxu0 0.0
  %2470 = vmatpush1.msra.mxu0 %v234
  %2471 = vmatprep.subr.mxu0 0.0
  %2472 = vmatpush2.msra.mxu0 0.0
  %2473 = vmatprep.subr.mxu0 0.0
  %2474 = vmatpush2.msra.mxu0 0.0
  %2475 = vmatprep.subr.mxu0 0.0
  %2476 = vmatpush2.msra.mxu0 0.0
  %2477 = vmatprep.subr.mxu0 0.0
  %2478 = vmatpush2.msra.mxu0 0.0
  %2479 = vmatprep.subr.mxu0 0.0
  %2480 = vmatpush2.msra.mxu0 0.0
  %2481 = vmatprep.subr.mxu0 0.0
  %2482 = vmatpush2.msra.mxu0 0.0
  %2483 = vmatprep.subr.mxu0 0.0
  %2484 = vmatpush2.msra.mxu0 0.0
  %2485 = vmatprep.subr.mxu0 0.0
  %2486 = vmatpush2.msra.mxu0 0.0
  %2487 = vmatprep.subr.mxu0 0.0
  %2488 = vmatpush2.msra.mxu0 0.0
  %2489 = vmatprep.subr.mxu0 0.0
  %2490 = vmatpush2.msra.mxu0 0.0
  %2491 = vmatprep.subr.mxu0 0.0
  %2492 = vmatpush2.msra.mxu0 0.0
  %2493 = vmatprep.subr.mxu0 0.0
  %2494 = vmatpush2.msra.mxu0 0.0
  %2495 = vmatprep.subr.mxu0 0.0
  %2496 = vmatpush2.msra.mxu0 0.0
  %2497 = vmatprep.subr.mxu0 0.0
  %2498 = vmatpush2.msra.mxu0 0.0
  %2499 = vmatprep.subr.mxu0 0.0
  %2500 = vmatpush2.msra.mxu0 0.0
  %2501 = vmatprep.subr.mxu0 0.0
  %2502 = vmatpush2.msra.mxu0 0.0
  %2503 = vmatprep.mubr.f32.mxu0 0.0
  %2504 = vmatmul.mubr.f32.gmra.mxu0 %v2434
  %v2505 = vpop.f32.mrf.mxu0
  %v2506 = vadd.f32 0.0, %v2505
  %v2507 = vpop.f32.mrf.mxu0
  %2508 = vmatprep.mubr.f32.mxu0 0.0
  %2509 = vmatmul.mubr.f32.gmra.mxu0 %v2437
  %v2510 = vpop.f32.mrf.mxu0
  %v2511 = vadd.f32 0.0, %v2510
  %v2512 = vpop.f32.mrf.mxu0
  %2513 = vdwg.mxu0
  %v2515 = vsel %vm326, %v86, 0
  %v2518 = vsel %vm326, %v87, 0
  %2520 = vmatprep.subr.mxu0 0.0
  %2521 = vmatpush1.msra.mxu0 0.0
  %2522 = vmatprep.subr.mxu0 0.0
  %2523 = vmatpush1.msra.mxu0 0.0
  %2524 = vmatprep.subr.mxu0 0.0
  %2525 = vmatpush1.msra.mxu0 0.0
  %2526 = vmatprep.subr.mxu0 0.0
  %2527 = vmatpush1.msra.mxu0 0.0
  %2528 = vmatprep.subr.mxu0 0.0
  %2529 = vmatpush1.msra.mxu0 0.0
  %2530 = vmatprep.subr.mxu0 0.0
  %2531 = vmatpush1.msra.mxu0 0.0
  %2532 = vmatprep.subr.mxu0 0.0
  %2533 = vmatpush1.msra.mxu0 0.0
  %2534 = vmatprep.subr.mxu0 0.0
  %2535 = vmatpush1.msra.mxu0 0.0
  %2536 = vmatprep.subr.mxu0 0.0
  %2537 = vmatpush1.msra.mxu0 0.0
  %2538 = vmatprep.subr.mxu0 0.0
  %2539 = vmatpush1.msra.mxu0 0.0
  %2540 = vmatprep.subr.mxu0 0.0
  %2541 = vmatpush1.msra.mxu0 0.0
  %2542 = vmatprep.subr.mxu0 0.0
  %2543 = vmatpush1.msra.mxu0 0.0
  %2544 = vmatprep.subr.mxu0 0.0
  %2545 = vmatpush1.msra.mxu0 %v241
  %2546 = vmatprep.subr.mxu0 0.0
  %2547 = vmatpush1.msra.mxu0 %v240
  %2548 = vmatprep.subr.mxu0 0.0
  %2549 = vmatpush1.msra.mxu0 %v239
  %2550 = vmatprep.subr.mxu0 0.0
  %2551 = vmatpush1.msra.mxu0 %v238
  %2552 = vmatprep.subr.mxu0 0.0
  %2553 = vmatpush2.msra.mxu0 0.0
  %2554 = vmatprep.subr.mxu0 0.0
  %2555 = vmatpush2.msra.mxu0 0.0
  %2556 = vmatprep.subr.mxu0 0.0
  %2557 = vmatpush2.msra.mxu0 0.0
  %2558 = vmatprep.subr.mxu0 0.0
  %2559 = vmatpush2.msra.mxu0 0.0
  %2560 = vmatprep.subr.mxu0 0.0
  %2561 = vmatpush2.msra.mxu0 0.0
  %2562 = vmatprep.subr.mxu0 0.0
  %2563 = vmatpush2.msra.mxu0 0.0
  %2564 = vmatprep.subr.mxu0 0.0
  %2565 = vmatpush2.msra.mxu0 0.0
  %2566 = vmatprep.subr.mxu0 0.0
  %2567 = vmatpush2.msra.mxu0 0.0
  %2568 = vmatprep.subr.mxu0 0.0
  %2569 = vmatpush2.msra.mxu0 0.0
  %2570 = vmatprep.subr.mxu0 0.0
  %2571 = vmatpush2.msra.mxu0 0.0
  %2572 = vmatprep.subr.mxu0 0.0
  %2573 = vmatpush2.msra.mxu0 0.0
  %2574 = vmatprep.subr.mxu0 0.0
  %2575 = vmatpush2.msra.mxu0 0.0
  %2576 = vmatprep.subr.mxu0 0.0
  %2577 = vmatpush2.msra.mxu0 0.0
  %2578 = vmatprep.subr.mxu0 0.0
  %2579 = vmatpush2.msra.mxu0 0.0
  %2580 = vmatprep.subr.mxu0 0.0
  %2581 = vmatpush2.msra.mxu0 0.0
  %2582 = vmatprep.subr.mxu0 0.0
  %2583 = vmatpush2.msra.mxu0 0.0
  %2584 = vmatprep.mubr.f32.mxu0 0.0
  %2585 = vmatmul.mubr.f32.gmra.mxu0 %v2515
  %v2586 = vpop.f32.mrf.mxu0
  %v2587 = vadd.f32 0.0, %v2586
  %v2588 = vpop.f32.mrf.mxu0
  %2589 = vmatprep.mubr.f32.mxu0 0.0
  %2590 = vmatmul.mubr.f32.gmra.mxu0 %v2518
  %v2591 = vpop.f32.mrf.mxu0
  %v2592 = vadd.f32 0.0, %v2591
  %v2593 = vpop.f32.mrf.mxu0
  %2594 = vdwg.mxu0
  %v2596 = vsel %vm326, %v88, 0
  %v2599 = vsel %vm326, %v89, 0
  %2601 = vmatprep.subr.mxu0 0.0
  %2602 = vmatpush1.msra.mxu0 0.0
  %2603 = vmatprep.subr.mxu0 0.0
  %2604 = vmatpush1.msra.mxu0 0.0
  %2605 = vmatprep.subr.mxu0 0.0
  %2606 = vmatpush1.msra.mxu0 0.0
  %2607 = vmatprep.subr.mxu0 0.0
  %2608 = vmatpush1.msra.mxu0 0.0
  %2609 = vmatprep.subr.mxu0 0.0
  %2610 = vmatpush1.msra.mxu0 0.0
  %2611 = vmatprep.subr.mxu0 0.0
  %2612 = vmatpush1.msra.mxu0 0.0
  %2613 = vmatprep.subr.mxu0 0.0
  %2614 = vmatpush1.msra.mxu0 0.0
  %2615 = vmatprep.subr.mxu0 0.0
  %2616 = vmatpush1.msra.mxu0 0.0
  %2617 = vmatprep.subr.mxu0 0.0
  %2618 = vmatpush1.msra.mxu0 0.0
  %2619 = vmatprep.subr.mxu0 0.0
  %2620 = vmatpush1.msra.mxu0 0.0
  %2621 = vmatprep.subr.mxu0 0.0
  %2622 = vmatpush1.msra.mxu0 0.0
  %2623 = vmatprep.subr.mxu0 0.0
  %2624 = vmatpush1.msra.mxu0 0.0
  %2625 = vmatprep.subr.mxu0 0.0
  %2626 = vmatpush1.msra.mxu0 %v245
  %2627 = vmatprep.subr.mxu0 0.0
  %2628 = vmatpush1.msra.mxu0 %v244
  %2629 = vmatprep.subr.mxu0 0.0
  %2630 = vmatpush1.msra.mxu0 %v243
  %2631 = vmatprep.subr.mxu0 0.0
  %2632 = vmatpush1.msra.mxu0 %v242
  %2633 = vmatprep.subr.mxu0 0.0
  %2634 = vmatpush2.msra.mxu0 0.0
  %2635 = vmatprep.subr.mxu0 0.0
  %2636 = vmatpush2.msra.mxu0 0.0
  %2637 = vmatprep.subr.mxu0 0.0
  %2638 = vmatpush2.msra.mxu0 0.0
  %2639 = vmatprep.subr.mxu0 0.0
  %2640 = vmatpush2.msra.mxu0 0.0
  %2641 = vmatprep.subr.mxu0 0.0
  %2642 = vmatpush2.msra.mxu0 0.0
  %2643 = vmatprep.subr.mxu0 0.0
  %2644 = vmatpush2.msra.mxu0 0.0
  %2645 = vmatprep.subr.mxu0 0.0
  %2646 = vmatpush2.msra.mxu0 0.0
  %2647 = vmatprep.subr.mxu0 0.0
  %2648 = vmatpush2.msra.mxu0 0.0
  %2649 = vmatprep.subr.mxu0 0.0
  %2650 = vmatpush2.msra.mxu0 0.0
  %2651 = vmatprep.subr.mxu0 0.0
  %2652 = vmatpush2.msra.mxu0 0.0
  %2653 = vmatprep.subr.mxu0 0.0
  %2654 = vmatpush2.msra.mxu0 0.0
  %2655 = vmatprep.subr.mxu0 0.0
  %2656 = vmatpush2.msra.mxu0 0.0
  %2657 = vmatprep.subr.mxu0 0.0
  %2658 = vmatpush2.msra.mxu0 0.0
  %2659 = vmatprep.subr.mxu0 0.0
  %2660 = vmatpush2.msra.mxu0 0.0
  %2661 = vmatprep.subr.mxu0 0.0
  %2662 = vmatpush2.msra.mxu0 0.0
  %2663 = vmatprep.subr.mxu0 0.0
  %2664 = vmatpush2.msra.mxu0 0.0
  %2665 = vmatprep.mubr.f32.mxu0 0.0
  %2666 = vmatmul.mubr.f32.gmra.mxu0 %v2596
  %v2667 = vpop.f32.mrf.mxu0
  %v2668 = vadd.f32 0.0, %v2667
  %v2669 = vpop.f32.mrf.mxu0
  %2670 = vmatprep.mubr.f32.mxu0 0.0
  %2671 = vmatmul.mubr.f32.gmra.mxu0 %v2599
  %v2672 = vpop.f32.mrf.mxu0
  %v2673 = vadd.f32 0.0, %v2672
  %v2674 = vpop.f32.mrf.mxu0
  %2675 = vdwg.mxu0
  %v2677 = vsel %vm326, %v90, 0
  %v2680 = vsel %vm326, %v91, 0
  %2682 = vmatprep.subr.mxu0 0.0
  %2683 = vmatpush1.msra.mxu0 0.0
  %2684 = vmatprep.subr.mxu0 0.0
  %2685 = vmatpush1.msra.mxu0 0.0
  %2686 = vmatprep.subr.mxu0 0.0
  %2687 = vmatpush1.msra.mxu0 0.0
  %2688 = vmatprep.subr.mxu0 0.0
  %2689 = vmatpush1.msra.mxu0 0.0
  %2690 = vmatprep.subr.mxu0 0.0
  %2691 = vmatpush1.msra.mxu0 0.0
  %2692 = vmatprep.subr.mxu0 0.0
  %2693 = vmatpush1.msra.mxu0 0.0
  %2694 = vmatprep.subr.mxu0 0.0
  %2695 = vmatpush1.msra.mxu0 0.0
  %2696 = vmatprep.subr.mxu0 0.0
  %2697 = vmatpush1.msra.mxu0 0.0
  %2698 = vmatprep.subr.mxu0 0.0
  %2699 = vmatpush1.msra.mxu0 0.0
  %2700 = vmatprep.subr.mxu0 0.0
  %2701 = vmatpush1.msra.mxu0 0.0
  %2702 = vmatprep.subr.mxu0 0.0
  %2703 = vmatpush1.msra.mxu0 0.0
  %2704 = vmatprep.subr.mxu0 0.0
  %2705 = vmatpush1.msra.mxu0 0.0
  %2706 = vmatprep.subr.mxu0 0.0
  %2707 = vmatpush1.msra.mxu0 %v249
  %2708 = vmatprep.subr.mxu0 0.0
  %2709 = vmatpush1.msra.mxu0 %v248
  %2710 = vmatprep.subr.mxu0 0.0
  %2711 = vmatpush1.msra.mxu0 %v247
  %2712 = vmatprep.subr.mxu0 0.0
  %2713 = vmatpush1.msra.mxu0 %v246
  %2714 = vmatprep.subr.mxu0 0.0
  %2715 = vmatpush2.msra.mxu0 0.0
  %2716 = vmatprep.subr.mxu0 0.0
  %2717 = vmatpush2.msra.mxu0 0.0
  %2718 = vmatprep.subr.mxu0 0.0
  %2719 = vmatpush2.msra.mxu0 0.0
  %2720 = vmatprep.subr.mxu0 0.0
  %2721 = vmatpush2.msra.mxu0 0.0
  %2722 = vmatprep.subr.mxu0 0.0
  %2723 = vmatpush2.msra.mxu0 0.0
  %2724 = vmatprep.subr.mxu0 0.0
  %2725 = vmatpush2.msra.mxu0 0.0
  %2726 = vmatprep.subr.mxu0 0.0
  %2727 = vmatpush2.msra.mxu0 0.0
  %2728 = vmatprep.subr.mxu0 0.0
  %2729 = vmatpush2.msra.mxu0 0.0
  %2730 = vmatprep.subr.mxu0 0.0
  %2731 = vmatpush2.msra.mxu0 0.0
  %2732 = vmatprep.subr.mxu0 0.0
  %2733 = vmatpush2.msra.mxu0 0.0
  %2734 = vmatprep.subr.mxu0 0.0
  %2735 = vmatpush2.msra.mxu0 0.0
  %2736 = vmatprep.subr.mxu0 0.0
  %2737 = vmatpush2.msra.mxu0 0.0
  %2738 = vmatprep.subr.mxu0 0.0
  %2739 = vmatpush2.msra.mxu0 0.0
  %2740 = vmatprep.subr.mxu0 0.0
  %2741 = vmatpush2.msra.mxu0 0.0
  %2742 = vmatprep.subr.mxu0 0.0
  %2743 = vmatpush2.msra.mxu0 0.0
  %2744 = vmatprep.subr.mxu0 0.0
  %2745 = vmatpush2.msra.mxu0 0.0
  %2746 = vmatprep.mubr.f32.mxu0 0.0
  %2747 = vmatmul.mubr.f32.gmra.mxu0 %v2677
  %v2748 = vpop.f32.mrf.mxu0
  %v2749 = vadd.f32 0.0, %v2748
  %v2750 = vpop.f32.mrf.mxu0
  %2751 = vmatprep.mubr.f32.mxu0 0.0
  %2752 = vmatmul.mubr.f32.gmra.mxu0 %v2680
  %v2753 = vpop.f32.mrf.mxu0
  %v2754 = vadd.f32 0.0, %v2753
  %v2755 = vpop.f32.mrf.mxu0
  %2756 = vdwg.mxu0
  %v2758 = vsel %vm326, %v92, 0
  %v2761 = vsel %vm326, %v93, 0
  %2763 = vmatprep.subr.mxu0 0.0
  %2764 = vmatpush1.msra.mxu0 0.0
  %2765 = vmatprep.subr.mxu0 0.0
  %2766 = vmatpush1.msra.mxu0 0.0
  %2767 = vmatprep.subr.mxu0 0.0
  %2768 = vmatpush1.msra.mxu0 0.0
  %2769 = vmatprep.subr.mxu0 0.0
  %2770 = vmatpush1.msra.mxu0 0.0
  %2771 = vmatprep.subr.mxu0 0.0
  %2772 = vmatpush1.msra.mxu0 0.0
  %2773 = vmatprep.subr.mxu0 0.0
  %2774 = vmatpush1.msra.mxu0 0.0
  %2775 = vmatprep.subr.mxu0 0.0
  %2776 = vmatpush1.msra.mxu0 0.0
  %2777 = vmatprep.subr.mxu0 0.0
  %2778 = vmatpush1.msra.mxu0 0.0
  %2779 = vmatprep.subr.mxu0 0.0
  %2780 = vmatpush1.msra.mxu0 0.0
  %2781 = vmatprep.subr.mxu0 0.0
  %2782 = vmatpush1.msra.mxu0 0.0
  %2783 = vmatprep.subr.mxu0 0.0
  %2784 = vmatpush1.msra.mxu0 0.0
  %2785 = vmatprep.subr.mxu0 0.0
  %2786 = vmatpush1.msra.mxu0 0.0
  %2787 = vmatprep.subr.mxu0 0.0
  %2788 = vmatpush1.msra.mxu0 %v253
  %2789 = vmatprep.subr.mxu0 0.0
  %2790 = vmatpush1.msra.mxu0 %v252
  %2791 = vmatprep.subr.mxu0 0.0
  %2792 = vmatpush1.msra.mxu0 %v251
  %2793 = vmatprep.subr.mxu0 0.0
  %2794 = vmatpush1.msra.mxu0 %v250
  %2795 = vmatprep.subr.mxu0 0.0
  %2796 = vmatpush2.msra.mxu0 0.0
  %2797 = vmatprep.subr.mxu0 0.0
  %2798 = vmatpush2.msra.mxu0 0.0
  %2799 = vmatprep.subr.mxu0 0.0
  %2800 = vmatpush2.msra.mxu0 0.0
  %2801 = vmatprep.subr.mxu0 0.0
  %2802 = vmatpush2.msra.mxu0 0.0
  %2803 = vmatprep.subr.mxu0 0.0
  %2804 = vmatpush2.msra.mxu0 0.0
  %2805 = vmatprep.subr.mxu0 0.0
  %2806 = vmatpush2.msra.mxu0 0.0
  %2807 = vmatprep.subr.mxu0 0.0
  %2808 = vmatpush2.msra.mxu0 0.0
  %2809 = vmatprep.subr.mxu0 0.0
  %2810 = vmatpush2.msra.mxu0 0.0
  %2811 = vmatprep.subr.mxu0 0.0
  %2812 = vmatpush2.msra.mxu0 0.0
  %2813 = vmatprep.subr.mxu0 0.0
  %2814 = vmatpush2.msra.mxu0 0.0
  %2815 = vmatprep.subr.mxu0 0.0
  %2816 = vmatpush2.msra.mxu0 0.0
  %2817 = vmatprep.subr.mxu0 0.0
  %2818 = vmatpush2.msra.mxu0 0.0
  %2819 = vmatprep.subr.mxu0 0.0
  %2820 = vmatpush2.msra.mxu0 0.0
  %2821 = vmatprep.subr.mxu0 0.0
  %2822 = vmatpush2.msra.mxu0 0.0
  %2823 = vmatprep.subr.mxu0 0.0
  %2824 = vmatpush2.msra.mxu0 0.0
  %2825 = vmatprep.subr.mxu0 0.0
  %2826 = vmatpush2.msra.mxu0 0.0
  %2827 = vmatprep.mubr.f32.mxu0 0.0
  %2828 = vmatmul.mubr.f32.gmra.mxu0 %v2758
  %v2829 = vpop.f32.mrf.mxu0
  %v2830 = vadd.f32 0.0, %v2829
  %v2831 = vpop.f32.mrf.mxu0
  %2832 = vmatprep.mubr.f32.mxu0 0.0
  %2833 = vmatmul.mubr.f32.gmra.mxu0 %v2761
  %v2834 = vpop.f32.mrf.mxu0
  %v2835 = vadd.f32 0.0, %v2834
  %v2836 = vpop.f32.mrf.mxu0
  %2837 = vdwg.mxu0
  %v2839 = vsel %vm326, %v94, 0
  %v2842 = vsel %vm326, %v95, 0
  %2844 = vmatprep.subr.mxu0 0.0
  %2845 = vmatpush1.msra.mxu0 0.0
  %2846 = vmatprep.subr.mxu0 0.0
  %2847 = vmatpush1.msra.mxu0 0.0
  %2848 = vmatprep.subr.mxu0 0.0
  %2849 = vmatpush1.msra.mxu0 0.0
  %2850 = vmatprep.subr.mxu0 0.0
  %2851 = vmatpush1.msra.mxu0 0.0
  %2852 = vmatprep.subr.mxu0 0.0
  %2853 = vmatpush1.msra.mxu0 0.0
  %2854 = vmatprep.subr.mxu0 0.0
  %2855 = vmatpush1.msra.mxu0 0.0
  %2856 = vmatprep.subr.mxu0 0.0
  %2857 = vmatpush1.msra.mxu0 0.0
  %2858 = vmatprep.subr.mxu0 0.0
  %2859 = vmatpush1.msra.mxu0 0.0
  %2860 = vmatprep.subr.mxu0 0.0
  %2861 = vmatpush1.msra.mxu0 0.0
  %2862 = vmatprep.subr.mxu0 0.0
  %2863 = vmatpush1.msra.mxu0 0.0
  %2864 = vmatprep.subr.mxu0 0.0
  %2865 = vmatpush1.msra.mxu0 0.0
  %2866 = vmatprep.subr.mxu0 0.0
  %2867 = vmatpush1.msra.mxu0 0.0
  %2868 = vmatprep.subr.mxu0 0.0
  %2869 = vmatpush1.msra.mxu0 %v257
  %2870 = vmatprep.subr.mxu0 0.0
  %2871 = vmatpush1.msra.mxu0 %v256
  %2872 = vmatprep.subr.mxu0 0.0
  %2873 = vmatpush1.msra.mxu0 %v255
  %2874 = vmatprep.subr.mxu0 0.0
  %2875 = vmatpush1.msra.mxu0 %v254
  %2876 = vmatprep.subr.mxu0 0.0
  %2877 = vmatpush2.msra.mxu0 0.0
  %2878 = vmatprep.subr.mxu0 0.0
  %2879 = vmatpush2.msra.mxu0 0.0
  %2880 = vmatprep.subr.mxu0 0.0
  %2881 = vmatpush2.msra.mxu0 0.0
  %2882 = vmatprep.subr.mxu0 0.0
  %2883 = vmatpush2.msra.mxu0 0.0
  %2884 = vmatprep.subr.mxu0 0.0
  %2885 = vmatpush2.msra.mxu0 0.0
  %2886 = vmatprep.subr.mxu0 0.0
  %2887 = vmatpush2.msra.mxu0 0.0
  %2888 = vmatprep.subr.mxu0 0.0
  %2889 = vmatpush2.msra.mxu0 0.0
  %2890 = vmatprep.subr.mxu0 0.0
  %2891 = vmatpush2.msra.mxu0 0.0
  %2892 = vmatprep.subr.mxu0 0.0
  %2893 = vmatpush2.msra.mxu0 0.0
  %2894 = vmatprep.subr.mxu0 0.0
  %2895 = vmatpush2.msra.mxu0 0.0
  %2896 = vmatprep.subr.mxu0 0.0
  %2897 = vmatpush2.msra.mxu0 0.0
  %2898 = vmatprep.subr.mxu0 0.0
  %2899 = vmatpush2.msra.mxu0 0.0
  %2900 = vmatprep.subr.mxu0 0.0
  %2901 = vmatpush2.msra.mxu0 0.0
  %2902 = vmatprep.subr.mxu0 0.0
  %2903 = vmatpush2.msra.mxu0 0.0
  %2904 = vmatprep.subr.mxu0 0.0
  %2905 = vmatpush2.msra.mxu0 0.0
  %2906 = vmatprep.subr.mxu0 0.0
  %2907 = vmatpush2.msra.mxu0 0.0
  %2908 = vmatprep.mubr.f32.mxu0 0.0
  %2909 = vmatmul.mubr.f32.gmra.mxu0 %v2839
  %v2910 = vpop.f32.mrf.mxu0
  %v2911 = vadd.f32 0.0, %v2910
  %v2912 = vpop.f32.mrf.mxu0
  %2913 = vmatprep.mubr.f32.mxu0 0.0
  %2914 = vmatmul.mubr.f32.gmra.mxu0 %v2842
  %v2915 = vpop.f32.mrf.mxu0
  %v2916 = vadd.f32 0.0, %v2915
  %v2917 = vpop.f32.mrf.mxu0
  %2918 = vdwg.mxu0
  %v2920 = vsel %vm326, %v96, 0
  %v2923 = vsel %vm326, %v97, 0
  %2925 = vmatprep.subr.mxu0 0.0
  %2926 = vmatpush1.msra.mxu0 0.0
  %2927 = vmatprep.subr.mxu0 0.0
  %2928 = vmatpush1.msra.mxu0 0.0
  %2929 = vmatprep.subr.mxu0 0.0
  %2930 = vmatpush1.msra.mxu0 0.0
  %2931 = vmatprep.subr.mxu0 0.0
  %2932 = vmatpush1.msra.mxu0 0.0
  %2933 = vmatprep.subr.mxu0 0.0
  %2934 = vmatpush1.msra.mxu0 0.0
  %2935 = vmatprep.subr.mxu0 0.0
  %2936 = vmatpush1.msra.mxu0 0.0
  %2937 = vmatprep.subr.mxu0 0.0
  %2938 = vmatpush1.msra.mxu0 0.0
  %2939 = vmatprep.subr.mxu0 0.0
  %2940 = vmatpush1.msra.mxu0 0.0
  %2941 = vmatprep.subr.mxu0 0.0
  %2942 = vmatpush1.msra.mxu0 0.0
  %2943 = vmatprep.subr.mxu0 0.0
  %2944 = vmatpush1.msra.mxu0 0.0
  %2945 = vmatprep.subr.mxu0 0.0
  %2946 = vmatpush1.msra.mxu0 0.0
  %2947 = vmatprep.subr.mxu0 0.0
  %2948 = vmatpush1.msra.mxu0 0.0
  %2949 = vmatprep.subr.mxu0 0.0
  %2950 = vmatpush1.msra.mxu0 %v261
  %2951 = vmatprep.subr.mxu0 0.0
  %2952 = vmatpush1.msra.mxu0 %v260
  %2953 = vmatprep.subr.mxu0 0.0
  %2954 = vmatpush1.msra.mxu0 %v259
  %2955 = vmatprep.subr.mxu0 0.0
  %2956 = vmatpush1.msra.mxu0 %v258
  %2957 = vmatprep.subr.mxu0 0.0
  %2958 = vmatpush2.msra.mxu0 0.0
  %2959 = vmatprep.subr.mxu0 0.0
  %2960 = vmatpush2.msra.mxu0 0.0
  %2961 = vmatprep.subr.mxu0 0.0
  %2962 = vmatpush2.msra.mxu0 0.0
  %2963 = vmatprep.subr.mxu0 0.0
  %2964 = vmatpush2.msra.mxu0 0.0
  %2965 = vmatprep.subr.mxu0 0.0
  %2966 = vmatpush2.msra.mxu0 0.0
  %2967 = vmatprep.subr.mxu0 0.0
  %2968 = vmatpush2.msra.mxu0 0.0
  %2969 = vmatprep.subr.mxu0 0.0
  %2970 = vmatpush2.msra.mxu0 0.0
  %2971 = vmatprep.subr.mxu0 0.0
  %2972 = vmatpush2.msra.mxu0 0.0
  %2973 = vmatprep.subr.mxu0 0.0
  %2974 = vmatpush2.msra.mxu0 0.0
  %2975 = vmatprep.subr.mxu0 0.0
  %2976 = vmatpush2.msra.mxu0 0.0
  %2977 = vmatprep.subr.mxu0 0.0
  %2978 = vmatpush2.msra.mxu0 0.0
  %2979 = vmatprep.subr.mxu0 0.0
  %2980 = vmatpush2.msra.mxu0 0.0
  %2981 = vmatprep.subr.mxu0 0.0
  %2982 = vmatpush2.msra.mxu0 0.0
  %2983 = vmatprep.subr.mxu0 0.0
  %2984 = vmatpush2.msra.mxu0 0.0
  %2985 = vmatprep.subr.mxu0 0.0
  %2986 = vmatpush2.msra.mxu0 0.0
  %2987 = vmatprep.subr.mxu0 0.0
  %2988 = vmatpush2.msra.mxu0 0.0
  %2989 = vmatprep.mubr.f32.mxu0 0.0
  %2990 = vmatmul.mubr.f32.gmra.mxu0 %v2920
  %v2991 = vpop.f32.mrf.mxu0
  %v2992 = vadd.f32 0.0, %v2991
  %v2993 = vpop.f32.mrf.mxu0
  %2994 = vmatprep.mubr.f32.mxu0 0.0
  %2995 = vmatmul.mubr.f32.gmra.mxu0 %v2923
  %v2996 = vpop.f32.mrf.mxu0
  %v2997 = vadd.f32 0.0, %v2996
  %v2998 = vpop.f32.mrf.mxu0
  %2999 = vdwg.mxu0
  %v3001 = vsel %vm326, %v98, 0
  %v3004 = vsel %vm326, %v99, 0
  %3006 = vmatprep.subr.mxu0 0.0
  %3007 = vmatpush1.msra.mxu0 0.0
  %3008 = vmatprep.subr.mxu0 0.0
  %3009 = vmatpush1.msra.mxu0 0.0
  %3010 = vmatprep.subr.mxu0 0.0
  %3011 = vmatpush1.msra.mxu0 0.0
  %3012 = vmatprep.subr.mxu0 0.0
  %3013 = vmatpush1.msra.mxu0 0.0
  %3014 = vmatprep.subr.mxu0 0.0
  %3015 = vmatpush1.msra.mxu0 0.0
  %3016 = vmatprep.subr.mxu0 0.0
  %3017 = vmatpush1.msra.mxu0 0.0
  %3018 = vmatprep.subr.mxu0 0.0
  %3019 = vmatpush1.msra.mxu0 0.0
  %3020 = vmatprep.subr.mxu0 0.0
  %3021 = vmatpush1.msra.mxu0 0.0
  %3022 = vmatprep.subr.mxu0 0.0
  %3023 = vmatpush1.msra.mxu0 0.0
  %3024 = vmatprep.subr.mxu0 0.0
  %3025 = vmatpush1.msra.mxu0 0.0
  %3026 = vmatprep.subr.mxu0 0.0
  %3027 = vmatpush1.msra.mxu0 0.0
  %3028 = vmatprep.subr.mxu0 0.0
  %3029 = vmatpush1.msra.mxu0 0.0
  %3030 = vmatprep.subr.mxu0 0.0
  %3031 = vmatpush1.msra.mxu0 %v265
  %3032 = vmatprep.subr.mxu0 0.0
  %3033 = vmatpush1.msra.mxu0 %v264
  %3034 = vmatprep.subr.mxu0 0.0
  %3035 = vmatpush1.msra.mxu0 %v263
  %3036 = vmatprep.subr.mxu0 0.0
  %3037 = vmatpush1.msra.mxu0 %v262
  %3038 = vmatprep.subr.mxu0 0.0
  %3039 = vmatpush2.msra.mxu0 0.0
  %3040 = vmatprep.subr.mxu0 0.0
  %3041 = vmatpush2.msra.mxu0 0.0
  %3042 = vmatprep.subr.mxu0 0.0
  %3043 = vmatpush2.msra.mxu0 0.0
  %3044 = vmatprep.subr.mxu0 0.0
  %3045 = vmatpush2.msra.mxu0 0.0
  %3046 = vmatprep.subr.mxu0 0.0
  %3047 = vmatpush2.msra.mxu0 0.0
  %3048 = vmatprep.subr.mxu0 0.0
  %3049 = vmatpush2.msra.mxu0 0.0
  %3050 = vmatprep.subr.mxu0 0.0
  %3051 = vmatpush2.msra.mxu0 0.0
  %3052 = vmatprep.subr.mxu0 0.0
  %3053 = vmatpush2.msra.mxu0 0.0
  %3054 = vmatprep.subr.mxu0 0.0
  %3055 = vmatpush2.msra.mxu0 0.0
  %3056 = vmatprep.subr.mxu0 0.0
  %3057 = vmatpush2.msra.mxu0 0.0
  %3058 = vmatprep.subr.mxu0 0.0
  %3059 = vmatpush2.msra.mxu0 0.0
  %3060 = vmatprep.subr.mxu0 0.0
  %3061 = vmatpush2.msra.mxu0 0.0
  %3062 = vmatprep.subr.mxu0 0.0
  %3063 = vmatpush2.msra.mxu0 0.0
  %3064 = vmatprep.subr.mxu0 0.0
  %3065 = vmatpush2.msra.mxu0 0.0
  %3066 = vmatprep.subr.mxu0 0.0
  %3067 = vmatpush2.msra.mxu0 0.0
  %3068 = vmatprep.subr.mxu0 0.0
  %3069 = vmatpush2.msra.mxu0 0.0
  %3070 = vmatprep.mubr.f32.mxu0 0.0
  %3071 = vmatmul.mubr.f32.gmra.mxu0 %v3001
  %v3072 = vpop.f32.mrf.mxu0
  %v3073 = vadd.f32 0.0, %v3072
  %v3074 = vpop.f32.mrf.mxu0
  %3075 = vmatprep.mubr.f32.mxu0 0.0
  %3076 = vmatmul.mubr.f32.gmra.mxu0 %v3004
  %v3077 = vpop.f32.mrf.mxu0
  %v3078 = vadd.f32 0.0, %v3077
  %v3079 = vpop.f32.mrf.mxu0
  %3080 = vdwg.mxu0
  %v3082 = vsel %vm326, %v100, 0
  %v3085 = vsel %vm326, %v101, 0
  %3087 = vmatprep.subr.mxu0 0.0
  %3088 = vmatpush1.msra.mxu0 0.0
  %3089 = vmatprep.subr.mxu0 0.0
  %3090 = vmatpush1.msra.mxu0 0.0
  %3091 = vmatprep.subr.mxu0 0.0
  %3092 = vmatpush1.msra.mxu0 0.0
  %3093 = vmatprep.subr.mxu0 0.0
  %3094 = vmatpush1.msra.mxu0 0.0
  %3095 = vmatprep.subr.mxu0 0.0
  %3096 = vmatpush1.msra.mxu0 0.0
  %3097 = vmatprep.subr.mxu0 0.0
  %3098 = vmatpush1.msra.mxu0 0.0
  %3099 = vmatprep.subr.mxu0 0.0
  %3100 = vmatpush1.msra.mxu0 0.0
  %3101 = vmatprep.subr.mxu0 0.0
  %3102 = vmatpush1.msra.mxu0 0.0
  %3103 = vmatprep.subr.mxu0 0.0
  %3104 = vmatpush1.msra.mxu0 0.0
  %3105 = vmatprep.subr.mxu0 0.0
  %3106 = vmatpush1.msra.mxu0 0.0
  %3107 = vmatprep.subr.mxu0 0.0
  %3108 = vmatpush1.msra.mxu0 0.0
  %3109 = vmatprep.subr.mxu0 0.0
  %3110 = vmatpush1.msra.mxu0 0.0
  %3111 = vmatprep.subr.mxu0 0.0
  %3112 = vmatpush1.msra.mxu0 %v269
  %3113 = vmatprep.subr.mxu0 0.0
  %3114 = vmatpush1.msra.mxu0 %v268
  %3115 = vmatprep.subr.mxu0 0.0
  %3116 = vmatpush1.msra.mxu0 %v267
  %3117 = vmatprep.subr.mxu0 0.0
  %3118 = vmatpush1.msra.mxu0 %v266
  %3119 = vmatprep.subr.mxu0 0.0
  %3120 = vmatpush2.msra.mxu0 0.0
  %3121 = vmatprep.subr.mxu0 0.0
  %3122 = vmatpush2.msra.mxu0 0.0
  %3123 = vmatprep.subr.mxu0 0.0
  %3124 = vmatpush2.msra.mxu0 0.0
  %3125 = vmatprep.subr.mxu0 0.0
  %3126 = vmatpush2.msra.mxu0 0.0
  %3127 = vmatprep.subr.mxu0 0.0
  %3128 = vmatpush2.msra.mxu0 0.0
  %3129 = vmatprep.subr.mxu0 0.0
  %3130 = vmatpush2.msra.mxu0 0.0
  %3131 = vmatprep.subr.mxu0 0.0
  %3132 = vmatpush2.msra.mxu0 0.0
  %3133 = vmatprep.subr.mxu0 0.0
  %3134 = vmatpush2.msra.mxu0 0.0
  %3135 = vmatprep.subr.mxu0 0.0
  %3136 = vmatpush2.msra.mxu0 0.0
  %3137 = vmatprep.subr.mxu0 0.0
  %3138 = vmatpush2.msra.mxu0 0.0
  %3139 = vmatprep.subr.mxu0 0.0
  %3140 = vmatpush2.msra.mxu0 0.0
  %3141 = vmatprep.subr.mxu0 0.0
  %3142 = vmatpush2.msra.mxu0 0.0
  %3143 = vmatprep.subr.mxu0 0.0
  %3144 = vmatpush2.msra.mxu0 0.0
  %3145 = vmatprep.subr.mxu0 0.0
  %3146 = vmatpush2.msra.mxu0 0.0
  %3147 = vmatprep.subr.mxu0 0.0
  %3148 = vmatpush2.msra.mxu0 0.0
  %3149 = vmatprep.subr.mxu0 0.0
  %3150 = vmatpush2.msra.mxu0 0.0
  %3151 = vmatprep.mubr.f32.mxu0 0.0
  %3152 = vmatmul.mubr.f32.gmra.mxu0 %v3082
  %v3153 = vpop.f32.mrf.mxu0
  %v3154 = vadd.f32 0.0, %v3153
  %v3155 = vpop.f32.mrf.mxu0
  %3156 = vmatprep.mubr.f32.mxu0 0.0
  %3157 = vmatmul.mubr.f32.gmra.mxu0 %v3085
  %v3158 = vpop.f32.mrf.mxu0
  %v3159 = vadd.f32 0.0, %v3158
  %v3160 = vpop.f32.mrf.mxu0
  %3161 = vdwg.mxu0
  %v3163 = vsel %vm326, %v102, 0
  %v3166 = vsel %vm326, %v103, 0
  %3168 = vmatprep.subr.mxu0 0.0
  %3169 = vmatpush1.msra.mxu0 0.0
  %3170 = vmatprep.subr.mxu0 0.0
  %3171 = vmatpush1.msra.mxu0 0.0
  %3172 = vmatprep.subr.mxu0 0.0
  %3173 = vmatpush1.msra.mxu0 0.0
  %3174 = vmatprep.subr.mxu0 0.0
  %3175 = vmatpush1.msra.mxu0 0.0
  %3176 = vmatprep.subr.mxu0 0.0
  %3177 = vmatpush1.msra.mxu0 0.0
  %3178 = vmatprep.subr.mxu0 0.0
  %3179 = vmatpush1.msra.mxu0 0.0
  %3180 = vmatprep.subr.mxu0 0.0
  %3181 = vmatpush1.msra.mxu0 0.0
  %3182 = vmatprep.subr.mxu0 0.0
  %3183 = vmatpush1.msra.mxu0 0.0
  %3184 = vmatprep.subr.mxu0 0.0
  %3185 = vmatpush1.msra.mxu0 0.0
  %3186 = vmatprep.subr.mxu0 0.0
  %3187 = vmatpush1.msra.mxu0 0.0
  %3188 = vmatprep.subr.mxu0 0.0
  %3189 = vmatpush1.msra.mxu0 0.0
  %3190 = vmatprep.subr.mxu0 0.0
  %3191 = vmatpush1.msra.mxu0 0.0
  %3192 = vmatprep.subr.mxu0 0.0
  %3193 = vmatpush1.msra.mxu0 %v273
  %3194 = vmatprep.subr.mxu0 0.0
  %3195 = vmatpush1.msra.mxu0 %v272
  %3196 = vmatprep.subr.mxu0 0.0
  %3197 = vmatpush1.msra.mxu0 %v271
  %3198 = vmatprep.subr.mxu0 0.0
  %3199 = vmatpush1.msra.mxu0 %v270
  %3200 = vmatprep.subr.mxu0 0.0
  %3201 = vmatpush2.msra.mxu0 0.0
  %3202 = vmatprep.subr.mxu0 0.0
  %3203 = vmatpush2.msra.mxu0 0.0
  %3204 = vmatprep.subr.mxu0 0.0
  %3205 = vmatpush2.msra.mxu0 0.0
  %3206 = vmatprep.subr.mxu0 0.0
  %3207 = vmatpush2.msra.mxu0 0.0
  %3208 = vmatprep.subr.mxu0 0.0
  %3209 = vmatpush2.msra.mxu0 0.0
  %3210 = vmatprep.subr.mxu0 0.0
  %3211 = vmatpush2.msra.mxu0 0.0
  %3212 = vmatprep.subr.mxu0 0.0
  %3213 = vmatpush2.msra.mxu0 0.0
  %3214 = vmatprep.subr.mxu0 0.0
  %3215 = vmatpush2.msra.mxu0 0.0
  %3216 = vmatprep.subr.mxu0 0.0
  %3217 = vmatpush2.msra.mxu0 0.0
  %3218 = vmatprep.subr.mxu0 0.0
  %3219 = vmatpush2.msra.mxu0 0.0
  %3220 = vmatprep.subr.mxu0 0.0
  %3221 = vmatpush2.msra.mxu0 0.0
  %3222 = vmatprep.subr.mxu0 0.0
  %3223 = vmatpush2.msra.mxu0 0.0
  %3224 = vmatprep.subr.mxu0 0.0
  %3225 = vmatpush2.msra.mxu0 0.0
  %3226 = vmatprep.subr.mxu0 0.0
  %3227 = vmatpush2.msra.mxu0 0.0
  %3228 = vmatprep.subr.mxu0 0.0
  %3229 = vmatpush2.msra.mxu0 0.0
  %3230 = vmatprep.subr.mxu0 0.0
  %3231 = vmatpush2.msra.mxu0 0.0
  %3232 = vmatprep.mubr.f32.mxu0 0.0
  %3233 = vmatmul.mubr.f32.gmra.mxu0 %v3163
  %v3234 = vpop.f32.mrf.mxu0
  %v3235 = vadd.f32 0.0, %v3234
  %v3236 = vpop.f32.mrf.mxu0
  %3237 = vmatprep.mubr.f32.mxu0 0.0
  %3238 = vmatmul.mubr.f32.gmra.mxu0 %v3166
  %v3239 = vpop.f32.mrf.mxu0
  %v3240 = vadd.f32 0.0, %v3239
  %v3241 = vpop.f32.mrf.mxu0
  %3242 = vdwg.mxu0
  %v3244 = vsel %vm326, %v104, 0
  %v3247 = vsel %vm326, %v105, 0
  %3249 = vmatprep.subr.mxu0 0.0
  %3250 = vmatpush1.msra.mxu0 0.0
  %3251 = vmatprep.subr.mxu0 0.0
  %3252 = vmatpush1.msra.mxu0 0.0
  %3253 = vmatprep.subr.mxu0 0.0
  %3254 = vmatpush1.msra.mxu0 0.0
  %3255 = vmatprep.subr.mxu0 0.0
  %3256 = vmatpush1.msra.mxu0 0.0
  %3257 = vmatprep.subr.mxu0 0.0
  %3258 = vmatpush1.msra.mxu0 0.0
  %3259 = vmatprep.subr.mxu0 0.0
  %3260 = vmatpush1.msra.mxu0 0.0
  %3261 = vmatprep.subr.mxu0 0.0
  %3262 = vmatpush1.msra.mxu0 0.0
  %3263 = vmatprep.subr.mxu0 0.0
  %3264 = vmatpush1.msra.mxu0 0.0
  %3265 = vmatprep.subr.mxu0 0.0
  %3266 = vmatpush1.msra.mxu0 0.0
  %3267 = vmatprep.subr.mxu0 0.0
  %3268 = vmatpush1.msra.mxu0 0.0
  %3269 = vmatprep.subr.mxu0 0.0
  %3270 = vmatpush1.msra.mxu0 0.0
  %3271 = vmatprep.subr.mxu0 0.0
  %3272 = vmatpush1.msra.mxu0 0.0
  %3273 = vmatprep.subr.mxu0 0.0
  %3274 = vmatpush1.msra.mxu0 %v277
  %3275 = vmatprep.subr.mxu0 0.0
  %3276 = vmatpush1.msra.mxu0 %v276
  %3277 = vmatprep.subr.mxu0 0.0
  %3278 = vmatpush1.msra.mxu0 %v275
  %3279 = vmatprep.subr.mxu0 0.0
  %3280 = vmatpush1.msra.mxu0 %v274
  %3281 = vmatprep.subr.mxu0 0.0
  %3282 = vmatpush2.msra.mxu0 0.0
  %3283 = vmatprep.subr.mxu0 0.0
  %3284 = vmatpush2.msra.mxu0 0.0
  %3285 = vmatprep.subr.mxu0 0.0
  %3286 = vmatpush2.msra.mxu0 0.0
  %3287 = vmatprep.subr.mxu0 0.0
  %3288 = vmatpush2.msra.mxu0 0.0
  %3289 = vmatprep.subr.mxu0 0.0
  %3290 = vmatpush2.msra.mxu0 0.0
  %3291 = vmatprep.subr.mxu0 0.0
  %3292 = vmatpush2.msra.mxu0 0.0
  %3293 = vmatprep.subr.mxu0 0.0
  %3294 = vmatpush2.msra.mxu0 0.0
  %3295 = vmatprep.subr.mxu0 0.0
  %3296 = vmatpush2.msra.mxu0 0.0
  %3297 = vmatprep.subr.mxu0 0.0
  %3298 = vmatpush2.msra.mxu0 0.0
  %3299 = vmatprep.subr.mxu0 0.0
  %3300 = vmatpush2.msra.mxu0 0.0
  %3301 = vmatprep.subr.mxu0 0.0
  %3302 = vmatpush2.msra.mxu0 0.0
  %3303 = vmatprep.subr.mxu0 0.0
  %3304 = vmatpush2.msra.mxu0 0.0
  %3305 = vmatprep.subr.mxu0 0.0
  %3306 = vmatpush2.msra.mxu0 0.0
  %3307 = vmatprep.subr.mxu0 0.0
  %3308 = vmatpush2.msra.mxu0 0.0
  %3309 = vmatprep.subr.mxu0 0.0
  %3310 = vmatpush2.msra.mxu0 0.0
  %3311 = vmatprep.subr.mxu0 0.0
  %3312 = vmatpush2.msra.mxu0 0.0
  %3313 = vmatprep.mubr.f32.mxu0 0.0
  %3314 = vmatmul.mubr.f32.gmra.mxu0 %v3244
  %v3315 = vpop.f32.mrf.mxu0
  %v3316 = vadd.f32 0.0, %v3315
  %v3317 = vpop.f32.mrf.mxu0
  %3318 = vmatprep.mubr.f32.mxu0 0.0
  %3319 = vmatmul.mubr.f32.gmra.mxu0 %v3247
  %v3320 = vpop.f32.mrf.mxu0
  %v3321 = vadd.f32 0.0, %v3320
  %v3322 = vpop.f32.mrf.mxu0
  %3323 = vdwg.mxu0
  %v3325 = vsel %vm326, %v106, 0
  %v3328 = vsel %vm326, %v107, 0
  %3330 = vmatprep.subr.mxu0 0.0
  %3331 = vmatpush1.msra.mxu0 0.0
  %3332 = vmatprep.subr.mxu0 0.0
  %3333 = vmatpush1.msra.mxu0 0.0
  %3334 = vmatprep.subr.mxu0 0.0
  %3335 = vmatpush1.msra.mxu0 0.0
  %3336 = vmatprep.subr.mxu0 0.0
  %3337 = vmatpush1.msra.mxu0 0.0
  %3338 = vmatprep.subr.mxu0 0.0
  %3339 = vmatpush1.msra.mxu0 0.0
  %3340 = vmatprep.subr.mxu0 0.0
  %3341 = vmatpush1.msra.mxu0 0.0
  %3342 = vmatprep.subr.mxu0 0.0
  %3343 = vmatpush1.msra.mxu0 0.0
  %3344 = vmatprep.subr.mxu0 0.0
  %3345 = vmatpush1.msra.mxu0 0.0
  %3346 = vmatprep.subr.mxu0 0.0
  %3347 = vmatpush1.msra.mxu0 0.0
  %3348 = vmatprep.subr.mxu0 0.0
  %3349 = vmatpush1.msra.mxu0 0.0
  %3350 = vmatprep.subr.mxu0 0.0
  %3351 = vmatpush1.msra.mxu0 0.0
  %3352 = vmatprep.subr.mxu0 0.0
  %3353 = vmatpush1.msra.mxu0 0.0
  %3354 = vmatprep.subr.mxu0 0.0
  %3355 = vmatpush1.msra.mxu0 %v281
  %3356 = vmatprep.subr.mxu0 0.0
  %3357 = vmatpush1.msra.mxu0 %v280
  %3358 = vmatprep.subr.mxu0 0.0
  %3359 = vmatpush1.msra.mxu0 %v279
  %3360 = vmatprep.subr.mxu0 0.0
  %3361 = vmatpush1.msra.mxu0 %v278
  %3362 = vmatprep.subr.mxu0 0.0
  %3363 = vmatpush2.msra.mxu0 0.0
  %3364 = vmatprep.subr.mxu0 0.0
  %3365 = vmatpush2.msra.mxu0 0.0
  %3366 = vmatprep.subr.mxu0 0.0
  %3367 = vmatpush2.msra.mxu0 0.0
  %3368 = vmatprep.subr.mxu0 0.0
  %3369 = vmatpush2.msra.mxu0 0.0
  %3370 = vmatprep.subr.mxu0 0.0
  %3371 = vmatpush2.msra.mxu0 0.0
  %3372 = vmatprep.subr.mxu0 0.0
  %3373 = vmatpush2.msra.mxu0 0.0
  %3374 = vmatprep.subr.mxu0 0.0
  %3375 = vmatpush2.msra.mxu0 0.0
  %3376 = vmatprep.subr.mxu0 0.0
  %3377 = vmatpush2.msra.mxu0 0.0
  %3378 = vmatprep.subr.mxu0 0.0
  %3379 = vmatpush2.msra.mxu0 0.0
  %3380 = vmatprep.subr.mxu0 0.0
  %3381 = vmatpush2.msra.mxu0 0.0
  %3382 = vmatprep.subr.mxu0 0.0
  %3383 = vmatpush2.msra.mxu0 0.0
  %3384 = vmatprep.subr.mxu0 0.0
  %3385 = vmatpush2.msra.mxu0 0.0
  %3386 = vmatprep.subr.mxu0 0.0
  %3387 = vmatpush2.msra.mxu0 0.0
  %3388 = vmatprep.subr.mxu0 0.0
  %3389 = vmatpush2.msra.mxu0 0.0
  %3390 = vmatprep.subr.mxu0 0.0
  %3391 = vmatpush2.msra.mxu0 0.0
  %3392 = vmatprep.subr.mxu0 0.0
  %3393 = vmatpush2.msra.mxu0 0.0
  %3394 = vmatprep.mubr.f32.mxu0 0.0
  %3395 = vmatmul.mubr.f32.gmra.mxu0 %v3325
  %v3396 = vpop.f32.mrf.mxu0
  %v3397 = vadd.f32 0.0, %v3396
  %v3398 = vpop.f32.mrf.mxu0
  %3399 = vmatprep.mubr.f32.mxu0 0.0
  %3400 = vmatmul.mubr.f32.gmra.mxu0 %v3328
  %v3401 = vpop.f32.mrf.mxu0
  %v3402 = vadd.f32 0.0, %v3401
  %v3403 = vpop.f32.mrf.mxu0
  %3404 = vdwg.mxu0
  %v3406 = vsel %vm326, %v108, 0
  %v3409 = vsel %vm326, %v109, 0
  %3411 = vmatprep.subr.mxu0 0.0
  %3412 = vmatpush1.msra.mxu0 0.0
  %3413 = vmatprep.subr.mxu0 0.0
  %3414 = vmatpush1.msra.mxu0 0.0
  %3415 = vmatprep.subr.mxu0 0.0
  %3416 = vmatpush1.msra.mxu0 0.0
  %3417 = vmatprep.subr.mxu0 0.0
  %3418 = vmatpush1.msra.mxu0 0.0
  %3419 = vmatprep.subr.mxu0 0.0
  %3420 = vmatpush1.msra.mxu0 0.0
  %3421 = vmatprep.subr.mxu0 0.0
  %3422 = vmatpush1.msra.mxu0 0.0
  %3423 = vmatprep.subr.mxu0 0.0
  %3424 = vmatpush1.msra.mxu0 0.0
  %3425 = vmatprep.subr.mxu0 0.0
  %3426 = vmatpush1.msra.mxu0 0.0
  %3427 = vmatprep.subr.mxu0 0.0
  %3428 = vmatpush1.msra.mxu0 0.0
  %3429 = vmatprep.subr.mxu0 0.0
  %3430 = vmatpush1.msra.mxu0 0.0
  %3431 = vmatprep.subr.mxu0 0.0
  %3432 = vmatpush1.msra.mxu0 0.0
  %3433 = vmatprep.subr.mxu0 0.0
  %3434 = vmatpush1.msra.mxu0 0.0
  %3435 = vmatprep.subr.mxu0 0.0
  %3436 = vmatpush1.msra.mxu0 %v285
  %3437 = vmatprep.subr.mxu0 0.0
  %3438 = vmatpush1.msra.mxu0 %v284
  %3439 = vmatprep.subr.mxu0 0.0
  %3440 = vmatpush1.msra.mxu0 %v283
  %3441 = vmatprep.subr.mxu0 0.0
  %3442 = vmatpush1.msra.mxu0 %v282
  %3443 = vmatprep.subr.mxu0 0.0
  %3444 = vmatpush2.msra.mxu0 0.0
  %3445 = vmatprep.subr.mxu0 0.0
  %3446 = vmatpush2.msra.mxu0 0.0
  %3447 = vmatprep.subr.mxu0 0.0
  %3448 = vmatpush2.msra.mxu0 0.0
  %3449 = vmatprep.subr.mxu0 0.0
  %3450 = vmatpush2.msra.mxu0 0.0
  %3451 = vmatprep.subr.mxu0 0.0
  %3452 = vmatpush2.msra.mxu0 0.0
  %3453 = vmatprep.subr.mxu0 0.0
  %3454 = vmatpush2.msra.mxu0 0.0
  %3455 = vmatprep.subr.mxu0 0.0
  %3456 = vmatpush2.msra.mxu0 0.0
  %3457 = vmatprep.subr.mxu0 0.0
  %3458 = vmatpush2.msra.mxu0 0.0
  %3459 = vmatprep.subr.mxu0 0.0
  %3460 = vmatpush2.msra.mxu0 0.0
  %3461 = vmatprep.subr.mxu0 0.0
  %3462 = vmatpush2.msra.mxu0 0.0
  %3463 = vmatprep.subr.mxu0 0.0
  %3464 = vmatpush2.msra.mxu0 0.0
  %3465 = vmatprep.subr.mxu0 0.0
  %3466 = vmatpush2.msra.mxu0 0.0
  %3467 = vmatprep.subr.mxu0 0.0
  %3468 = vmatpush2.msra.mxu0 0.0
  %3469 = vmatprep.subr.mxu0 0.0
  %3470 = vmatpush2.msra.mxu0 0.0
  %3471 = vmatprep.subr.mxu0 0.0
  %3472 = vmatpush2.msra.mxu0 0.0
  %3473 = vmatprep.subr.mxu0 0.0
  %3474 = vmatpush2.msra.mxu0 0.0
  %3475 = vmatprep.mubr.f32.mxu0 0.0
  %3476 = vmatmul.mubr.f32.gmra.mxu0 %v3406
  %v3477 = vpop.f32.mrf.mxu0
  %v3478 = vadd.f32 0.0, %v3477
  %v3479 = vpop.f32.mrf.mxu0
  %3480 = vmatprep.mubr.f32.mxu0 0.0
  %3481 = vmatmul.mubr.f32.gmra.mxu0 %v3409
  %v3482 = vpop.f32.mrf.mxu0
  %v3483 = vadd.f32 0.0, %v3482
  %v3484 = vpop.f32.mrf.mxu0
  %3485 = vdwg.mxu0
  %v3487 = vsel %vm326, %v110, 0
  %v3490 = vsel %vm326, %v111, 0
  %3492 = vmatprep.subr.mxu0 0.0
  %3493 = vmatpush1.msra.mxu0 0.0
  %3494 = vmatprep.subr.mxu0 0.0
  %3495 = vmatpush1.msra.mxu0 0.0
  %3496 = vmatprep.subr.mxu0 0.0
  %3497 = vmatpush1.msra.mxu0 0.0
  %3498 = vmatprep.subr.mxu0 0.0
  %3499 = vmatpush1.msra.mxu0 0.0
  %3500 = vmatprep.subr.mxu0 0.0
  %3501 = vmatpush1.msra.mxu0 0.0
  %3502 = vmatprep.subr.mxu0 0.0
  %3503 = vmatpush1.msra.mxu0 0.0
  %3504 = vmatprep.subr.mxu0 0.0
  %3505 = vmatpush1.msra.mxu0 0.0
  %3506 = vmatprep.subr.mxu0 0.0
  %3507 = vmatpush1.msra.mxu0 0.0
  %3508 = vmatprep.subr.mxu0 0.0
  %3509 = vmatpush1.msra.mxu0 0.0
  %3510 = vmatprep.subr.mxu0 0.0
  %3511 = vmatpush1.msra.mxu0 0.0
  %3512 = vmatprep.subr.mxu0 0.0
  %3513 = vmatpush1.msra.mxu0 0.0
  %3514 = vmatprep.subr.mxu0 0.0
  %3515 = vmatpush1.msra.mxu0 0.0
  %3516 = vmatprep.subr.mxu0 0.0
  %3517 = vmatpush1.msra.mxu0 %v289
  %3518 = vmatprep.subr.mxu0 0.0
  %3519 = vmatpush1.msra.mxu0 %v288
  %3520 = vmatprep.subr.mxu0 0.0
  %3521 = vmatpush1.msra.mxu0 %v287
  %3522 = vmatprep.subr.mxu0 0.0
  %3523 = vmatpush1.msra.mxu0 %v286
  %3524 = vmatprep.subr.mxu0 0.0
  %3525 = vmatpush2.msra.mxu0 0.0
  %3526 = vmatprep.subr.mxu0 0.0
  %3527 = vmatpush2.msra.mxu0 0.0
  %3528 = vmatprep.subr.mxu0 0.0
  %3529 = vmatpush2.msra.mxu0 0.0
  %3530 = vmatprep.subr.mxu0 0.0
  %3531 = vmatpush2.msra.mxu0 0.0
  %3532 = vmatprep.subr.mxu0 0.0
  %3533 = vmatpush2.msra.mxu0 0.0
  %3534 = vmatprep.subr.mxu0 0.0
  %3535 = vmatpush2.msra.mxu0 0.0
  %3536 = vmatprep.subr.mxu0 0.0
  %3537 = vmatpush2.msra.mxu0 0.0
  %3538 = vmatprep.subr.mxu0 0.0
  %3539 = vmatpush2.msra.mxu0 0.0
  %3540 = vmatprep.subr.mxu0 0.0
  %3541 = vmatpush2.msra.mxu0 0.0
  %3542 = vmatprep.subr.mxu0 0.0
  %3543 = vmatpush2.msra.mxu0 0.0
  %3544 = vmatprep.subr.mxu0 0.0
  %3545 = vmatpush2.msra.mxu0 0.0
  %3546 = vmatprep.subr.mxu0 0.0
  %3547 = vmatpush2.msra.mxu0 0.0
  %3548 = vmatprep.subr.mxu0 0.0
  %3549 = vmatpush2.msra.mxu0 0.0
  %3550 = vmatprep.subr.mxu0 0.0
  %3551 = vmatpush2.msra.mxu0 0.0
  %3552 = vmatprep.subr.mxu0 0.0
  %3553 = vmatpush2.msra.mxu0 0.0
  %3554 = vmatprep.subr.mxu0 0.0
  %3555 = vmatpush2.msra.mxu0 0.0
  %3556 = vmatprep.mubr.f32.mxu0 0.0
  %3557 = vmatmul.mubr.f32.gmra.mxu0 %v3487
  %v3558 = vpop.f32.mrf.mxu0
  %v3559 = vadd.f32 0.0, %v3558
  %v3560 = vpop.f32.mrf.mxu0
  %3561 = vmatprep.mubr.f32.mxu0 0.0
  %3562 = vmatmul.mubr.f32.gmra.mxu0 %v3490
  %v3563 = vpop.f32.mrf.mxu0
  %v3564 = vadd.f32 0.0, %v3563
  %v3565 = vpop.f32.mrf.mxu0
  %3566 = vdwg.mxu0
  %v3568 = vsel %vm326, %v112, 0
  %v3571 = vsel %vm326, %v113, 0
  %3573 = vmatprep.subr.mxu0 0.0
  %3574 = vmatpush1.msra.mxu0 0.0
  %3575 = vmatprep.subr.mxu0 0.0
  %3576 = vmatpush1.msra.mxu0 0.0
  %3577 = vmatprep.subr.mxu0 0.0
  %3578 = vmatpush1.msra.mxu0 0.0
  %3579 = vmatprep.subr.mxu0 0.0
  %3580 = vmatpush1.msra.mxu0 0.0
  %3581 = vmatprep.subr.mxu0 0.0
  %3582 = vmatpush1.msra.mxu0 0.0
  %3583 = vmatprep.subr.mxu0 0.0
  %3584 = vmatpush1.msra.mxu0 0.0
  %3585 = vmatprep.subr.mxu0 0.0
  %3586 = vmatpush1.msra.mxu0 0.0
  %3587 = vmatprep.subr.mxu0 0.0
  %3588 = vmatpush1.msra.mxu0 0.0
  %3589 = vmatprep.subr.mxu0 0.0
  %3590 = vmatpush1.msra.mxu0 0.0
  %3591 = vmatprep.subr.mxu0 0.0
  %3592 = vmatpush1.msra.mxu0 0.0
  %3593 = vmatprep.subr.mxu0 0.0
  %3594 = vmatpush1.msra.mxu0 0.0
  %3595 = vmatprep.subr.mxu0 0.0
  %3596 = vmatpush1.msra.mxu0 0.0
  %3597 = vmatprep.subr.mxu0 0.0
  %3598 = vmatpush1.msra.mxu0 %v293
  %3599 = vmatprep.subr.mxu0 0.0
  %3600 = vmatpush1.msra.mxu0 %v292
  %3601 = vmatprep.subr.mxu0 0.0
  %3602 = vmatpush1.msra.mxu0 %v291
  %3603 = vmatprep.subr.mxu0 0.0
  %3604 = vmatpush1.msra.mxu0 %v290
  %3605 = vmatprep.subr.mxu0 0.0
  %3606 = vmatpush2.msra.mxu0 0.0
  %3607 = vmatprep.subr.mxu0 0.0
  %3608 = vmatpush2.msra.mxu0 0.0
  %3609 = vmatprep.subr.mxu0 0.0
  %3610 = vmatpush2.msra.mxu0 0.0
  %3611 = vmatprep.subr.mxu0 0.0
  %3612 = vmatpush2.msra.mxu0 0.0
  %3613 = vmatprep.subr.mxu0 0.0
  %3614 = vmatpush2.msra.mxu0 0.0
  %3615 = vmatprep.subr.mxu0 0.0
  %3616 = vmatpush2.msra.mxu0 0.0
  %3617 = vmatprep.subr.mxu0 0.0
  %3618 = vmatpush2.msra.mxu0 0.0
  %3619 = vmatprep.subr.mxu0 0.0
  %3620 = vmatpush2.msra.mxu0 0.0
  %3621 = vmatprep.subr.mxu0 0.0
  %3622 = vmatpush2.msra.mxu0 0.0
  %3623 = vmatprep.subr.mxu0 0.0
  %3624 = vmatpush2.msra.mxu0 0.0
  %3625 = vmatprep.subr.mxu0 0.0
  %3626 = vmatpush2.msra.mxu0 0.0
  %3627 = vmatprep.subr.mxu0 0.0
  %3628 = vmatpush2.msra.mxu0 0.0
  %3629 = vmatprep.subr.mxu0 0.0
  %3630 = vmatpush2.msra.mxu0 0.0
  %3631 = vmatprep.subr.mxu0 0.0
  %3632 = vmatpush2.msra.mxu0 0.0
  %3633 = vmatprep.subr.mxu0 0.0
  %3634 = vmatpush2.msra.mxu0 0.0
  %3635 = vmatprep.subr.mxu0 0.0
  %3636 = vmatpush2.msra.mxu0 0.0
  %3637 = vmatprep.mubr.f32.mxu0 0.0
  %3638 = vmatmul.mubr.f32.gmra.mxu0 %v3568
  %v3639 = vpop.f32.mrf.mxu0
  %v3640 = vadd.f32 0.0, %v3639
  %v3641 = vpop.f32.mrf.mxu0
  %3642 = vmatprep.mubr.f32.mxu0 0.0
  %3643 = vmatmul.mubr.f32.gmra.mxu0 %v3571
  %v3644 = vpop.f32.mrf.mxu0
  %v3645 = vadd.f32 0.0, %v3644
  %v3646 = vpop.f32.mrf.mxu0
  %3647 = vdwg.mxu0
  %v3649 = vsel %vm326, %v114, 0
  %v3652 = vsel %vm326, %v115, 0
  %3654 = vmatprep.subr.mxu0 0.0
  %3655 = vmatpush1.msra.mxu0 0.0
  %3656 = vmatprep.subr.mxu0 0.0
  %3657 = vmatpush1.msra.mxu0 0.0
  %3658 = vmatprep.subr.mxu0 0.0
  %3659 = vmatpush1.msra.mxu0 0.0
  %3660 = vmatprep.subr.mxu0 0.0
  %3661 = vmatpush1.msra.mxu0 0.0
  %3662 = vmatprep.subr.mxu0 0.0
  %3663 = vmatpush1.msra.mxu0 0.0
  %3664 = vmatprep.subr.mxu0 0.0
  %3665 = vmatpush1.msra.mxu0 0.0
  %3666 = vmatprep.subr.mxu0 0.0
  %3667 = vmatpush1.msra.mxu0 0.0
  %3668 = vmatprep.subr.mxu0 0.0
  %3669 = vmatpush1.msra.mxu0 0.0
  %3670 = vmatprep.subr.mxu0 0.0
  %3671 = vmatpush1.msra.mxu0 0.0
  %3672 = vmatprep.subr.mxu0 0.0
  %3673 = vmatpush1.msra.mxu0 0.0
  %3674 = vmatprep.subr.mxu0 0.0
  %3675 = vmatpush1.msra.mxu0 0.0
  %3676 = vmatprep.subr.mxu0 0.0
  %3677 = vmatpush1.msra.mxu0 0.0
  %3678 = vmatprep.subr.mxu0 0.0
  %3679 = vmatpush1.msra.mxu0 %v297
  %3680 = vmatprep.subr.mxu0 0.0
  %3681 = vmatpush1.msra.mxu0 %v296
  %3682 = vmatprep.subr.mxu0 0.0
  %3683 = vmatpush1.msra.mxu0 %v295
  %3684 = vmatprep.subr.mxu0 0.0
  %3685 = vmatpush1.msra.mxu0 %v294
  %3686 = vmatprep.subr.mxu0 0.0
  %3687 = vmatpush2.msra.mxu0 0.0
  %3688 = vmatprep.subr.mxu0 0.0
  %3689 = vmatpush2.msra.mxu0 0.0
  %3690 = vmatprep.subr.mxu0 0.0
  %3691 = vmatpush2.msra.mxu0 0.0
  %3692 = vmatprep.subr.mxu0 0.0
  %3693 = vmatpush2.msra.mxu0 0.0
  %3694 = vmatprep.subr.mxu0 0.0
  %3695 = vmatpush2.msra.mxu0 0.0
  %3696 = vmatprep.subr.mxu0 0.0
  %3697 = vmatpush2.msra.mxu0 0.0
  %3698 = vmatprep.subr.mxu0 0.0
  %3699 = vmatpush2.msra.mxu0 0.0
  %3700 = vmatprep.subr.mxu0 0.0
  %3701 = vmatpush2.msra.mxu0 0.0
  %3702 = vmatprep.subr.mxu0 0.0
  %3703 = vmatpush2.msra.mxu0 0.0
  %3704 = vmatprep.subr.mxu0 0.0
  %3705 = vmatpush2.msra.mxu0 0.0
  %3706 = vmatprep.subr.mxu0 0.0
  %3707 = vmatpush2.msra.mxu0 0.0
  %3708 = vmatprep.subr.mxu0 0.0
  %3709 = vmatpush2.msra.mxu0 0.0
  %3710 = vmatprep.subr.mxu0 0.0
  %3711 = vmatpush2.msra.mxu0 0.0
  %3712 = vmatprep.subr.mxu0 0.0
  %3713 = vmatpush2.msra.mxu0 0.0
  %3714 = vmatprep.subr.mxu0 0.0
  %3715 = vmatpush2.msra.mxu0 0.0
  %3716 = vmatprep.subr.mxu0 0.0
  %3717 = vmatpush2.msra.mxu0 0.0
  %3718 = vmatprep.mubr.f32.mxu0 0.0
  %3719 = vmatmul.mubr.f32.gmra.mxu0 %v3649
  %v3720 = vpop.f32.mrf.mxu0
  %v3721 = vadd.f32 0.0, %v3720
  %v3722 = vpop.f32.mrf.mxu0
  %3723 = vmatprep.mubr.f32.mxu0 0.0
  %3724 = vmatmul.mubr.f32.gmra.mxu0 %v3652
  %v3725 = vpop.f32.mrf.mxu0
  %v3726 = vadd.f32 0.0, %v3725
  %v3727 = vpop.f32.mrf.mxu0
  %3728 = vdwg.mxu0
  %v3730 = vsel %vm326, %v116, 0
  %v3733 = vsel %vm326, %v117, 0
  %3735 = vmatprep.subr.mxu0 0.0
  %3736 = vmatpush1.msra.mxu0 0.0
  %3737 = vmatprep.subr.mxu0 0.0
  %3738 = vmatpush1.msra.mxu0 0.0
  %3739 = vmatprep.subr.mxu0 0.0
  %3740 = vmatpush1.msra.mxu0 0.0
  %3741 = vmatprep.subr.mxu0 0.0
  %3742 = vmatpush1.msra.mxu0 0.0
  %3743 = vmatprep.subr.mxu0 0.0
  %3744 = vmatpush1.msra.mxu0 0.0
  %3745 = vmatprep.subr.mxu0 0.0
  %3746 = vmatpush1.msra.mxu0 0.0
  %3747 = vmatprep.subr.mxu0 0.0
  %3748 = vmatpush1.msra.mxu0 0.0
  %3749 = vmatprep.subr.mxu0 0.0
  %3750 = vmatpush1.msra.mxu0 0.0
  %3751 = vmatprep.subr.mxu0 0.0
  %3752 = vmatpush1.msra.mxu0 0.0
  %3753 = vmatprep.subr.mxu0 0.0
  %3754 = vmatpush1.msra.mxu0 0.0
  %3755 = vmatprep.subr.mxu0 0.0
  %3756 = vmatpush1.msra.mxu0 0.0
  %3757 = vmatprep.subr.mxu0 0.0
  %3758 = vmatpush1.msra.mxu0 0.0
  %3759 = vmatprep.subr.mxu0 0.0
  %3760 = vmatpush1.msra.mxu0 %v301
  %3761 = vmatprep.subr.mxu0 0.0
  %3762 = vmatpush1.msra.mxu0 %v300
  %3763 = vmatprep.subr.mxu0 0.0
  %3764 = vmatpush1.msra.mxu0 %v299
  %3765 = vmatprep.subr.mxu0 0.0
  %3766 = vmatpush1.msra.mxu0 %v298
  %3767 = vmatprep.subr.mxu0 0.0
  %3768 = vmatpush2.msra.mxu0 0.0
  %3769 = vmatprep.subr.mxu0 0.0
  %3770 = vmatpush2.msra.mxu0 0.0
  %3771 = vmatprep.subr.mxu0 0.0
  %3772 = vmatpush2.msra.mxu0 0.0
  %3773 = vmatprep.subr.mxu0 0.0
  %3774 = vmatpush2.msra.mxu0 0.0
  %3775 = vmatprep.subr.mxu0 0.0
  %3776 = vmatpush2.msra.mxu0 0.0
  %3777 = vmatprep.subr.mxu0 0.0
  %3778 = vmatpush2.msra.mxu0 0.0
  %3779 = vmatprep.subr.mxu0 0.0
  %3780 = vmatpush2.msra.mxu0 0.0
  %3781 = vmatprep.subr.mxu0 0.0
  %3782 = vmatpush2.msra.mxu0 0.0
  %3783 = vmatprep.subr.mxu0 0.0
  %3784 = vmatpush2.msra.mxu0 0.0
  %3785 = vmatprep.subr.mxu0 0.0
  %3786 = vmatpush2.msra.mxu0 0.0
  %3787 = vmatprep.subr.mxu0 0.0
  %3788 = vmatpush2.msra.mxu0 0.0
  %3789 = vmatprep.subr.mxu0 0.0
  %3790 = vmatpush2.msra.mxu0 0.0
  %3791 = vmatprep.subr.mxu0 0.0
  %3792 = vmatpush2.msra.mxu0 0.0
  %3793 = vmatprep.subr.mxu0 0.0
  %3794 = vmatpush2.msra.mxu0 0.0
  %3795 = vmatprep.subr.mxu0 0.0
  %3796 = vmatpush2.msra.mxu0 0.0
  %3797 = vmatprep.subr.mxu0 0.0
  %3798 = vmatpush2.msra.mxu0 0.0
  %3799 = vmatprep.mubr.f32.mxu0 0.0
  %3800 = vmatmul.mubr.f32.gmra.mxu0 %v3730
  %v3801 = vpop.f32.mrf.mxu0
  %v3802 = vadd.f32 0.0, %v3801
  %v3803 = vpop.f32.mrf.mxu0
  %3804 = vmatprep.mubr.f32.mxu0 0.0
  %3805 = vmatmul.mubr.f32.gmra.mxu0 %v3733
  %v3806 = vpop.f32.mrf.mxu0
  %v3807 = vadd.f32 0.0, %v3806
  %v3808 = vpop.f32.mrf.mxu0
  %3809 = vdwg.mxu0
  %v3811 = vsel %vm326, %v118, 0
  %v3814 = vsel %vm326, %v119, 0
  %3816 = vmatprep.subr.mxu0 0.0
  %3817 = vmatpush1.msra.mxu0 0.0
  %3818 = vmatprep.subr.mxu0 0.0
  %3819 = vmatpush1.msra.mxu0 0.0
  %3820 = vmatprep.subr.mxu0 0.0
  %3821 = vmatpush1.msra.mxu0 0.0
  %3822 = vmatprep.subr.mxu0 0.0
  %3823 = vmatpush1.msra.mxu0 0.0
  %3824 = vmatprep.subr.mxu0 0.0
  %3825 = vmatpush1.msra.mxu0 0.0
  %3826 = vmatprep.subr.mxu0 0.0
  %3827 = vmatpush1.msra.mxu0 0.0
  %3828 = vmatprep.subr.mxu0 0.0
  %3829 = vmatpush1.msra.mxu0 0.0
  %3830 = vmatprep.subr.mxu0 0.0
  %3831 = vmatpush1.msra.mxu0 0.0
  %3832 = vmatprep.subr.mxu0 0.0
  %3833 = vmatpush1.msra.mxu0 0.0
  %3834 = vmatprep.subr.mxu0 0.0
  %3835 = vmatpush1.msra.mxu0 0.0
  %3836 = vmatprep.subr.mxu0 0.0
  %3837 = vmatpush1.msra.mxu0 0.0
  %3838 = vmatprep.subr.mxu0 0.0
  %3839 = vmatpush1.msra.mxu0 0.0
  %3840 = vmatprep.subr.mxu0 0.0
  %3841 = vmatpush1.msra.mxu0 %v305
  %3842 = vmatprep.subr.mxu0 0.0
  %3843 = vmatpush1.msra.mxu0 %v304
  %3844 = vmatprep.subr.mxu0 0.0
  %3845 = vmatpush1.msra.mxu0 %v303
  %3846 = vmatprep.subr.mxu0 0.0
  %3847 = vmatpush1.msra.mxu0 %v302
  %3848 = vmatprep.subr.mxu0 0.0
  %3849 = vmatpush2.msra.mxu0 0.0
  %3850 = vmatprep.subr.mxu0 0.0
  %3851 = vmatpush2.msra.mxu0 0.0
  %3852 = vmatprep.subr.mxu0 0.0
  %3853 = vmatpush2.msra.mxu0 0.0
  %3854 = vmatprep.subr.mxu0 0.0
  %3855 = vmatpush2.msra.mxu0 0.0
  %3856 = vmatprep.subr.mxu0 0.0
  %3857 = vmatpush2.msra.mxu0 0.0
  %3858 = vmatprep.subr.mxu0 0.0
  %3859 = vmatpush2.msra.mxu0 0.0
  %3860 = vmatprep.subr.mxu0 0.0
  %3861 = vmatpush2.msra.mxu0 0.0
  %3862 = vmatprep.subr.mxu0 0.0
  %3863 = vmatpush2.msra.mxu0 0.0
  %3864 = vmatprep.subr.mxu0 0.0
  %3865 = vmatpush2.msra.mxu0 0.0
  %3866 = vmatprep.subr.mxu0 0.0
  %3867 = vmatpush2.msra.mxu0 0.0
  %3868 = vmatprep.subr.mxu0 0.0
  %3869 = vmatpush2.msra.mxu0 0.0
  %3870 = vmatprep.subr.mxu0 0.0
  %3871 = vmatpush2.msra.mxu0 0.0
  %3872 = vmatprep.subr.mxu0 0.0
  %3873 = vmatpush2.msra.mxu0 0.0
  %3874 = vmatprep.subr.mxu0 0.0
  %3875 = vmatpush2.msra.mxu0 0.0
  %3876 = vmatprep.subr.mxu0 0.0
  %3877 = vmatpush2.msra.mxu0 0.0
  %3878 = vmatprep.subr.mxu0 0.0
  %3879 = vmatpush2.msra.mxu0 0.0
  %3880 = vmatprep.mubr.f32.mxu0 0.0
  %3881 = vmatmul.mubr.f32.gmra.mxu0 %v3811
  %v3882 = vpop.f32.mrf.mxu0
  %v3883 = vadd.f32 0.0, %v3882
  %v3884 = vpop.f32.mrf.mxu0
  %3885 = vmatprep.mubr.f32.mxu0 0.0
  %3886 = vmatmul.mubr.f32.gmra.mxu0 %v3814
  %v3887 = vpop.f32.mrf.mxu0
  %v3888 = vadd.f32 0.0, %v3887
  %v3889 = vpop.f32.mrf.mxu0
  %3890 = vdwg.mxu0
  %v3892 = vsel %vm326, %v120, 0
  %v3895 = vsel %vm326, %v121, 0
  %3897 = vmatprep.subr.mxu0 0.0
  %3898 = vmatpush1.msra.mxu0 0.0
  %3899 = vmatprep.subr.mxu0 0.0
  %3900 = vmatpush1.msra.mxu0 0.0
  %3901 = vmatprep.subr.mxu0 0.0
  %3902 = vmatpush1.msra.mxu0 0.0
  %3903 = vmatprep.subr.mxu0 0.0
  %3904 = vmatpush1.msra.mxu0 0.0
  %3905 = vmatprep.subr.mxu0 0.0
  %3906 = vmatpush1.msra.mxu0 0.0
  %3907 = vmatprep.subr.mxu0 0.0
  %3908 = vmatpush1.msra.mxu0 0.0
  %3909 = vmatprep.subr.mxu0 0.0
  %3910 = vmatpush1.msra.mxu0 0.0
  %3911 = vmatprep.subr.mxu0 0.0
  %3912 = vmatpush1.msra.mxu0 0.0
  %3913 = vmatprep.subr.mxu0 0.0
  %3914 = vmatpush1.msra.mxu0 0.0
  %3915 = vmatprep.subr.mxu0 0.0
  %3916 = vmatpush1.msra.mxu0 0.0
  %3917 = vmatprep.subr.mxu0 0.0
  %3918 = vmatpush1.msra.mxu0 0.0
  %3919 = vmatprep.subr.mxu0 0.0
  %3920 = vmatpush1.msra.mxu0 0.0
  %3921 = vmatprep.subr.mxu0 0.0
  %3922 = vmatpush1.msra.mxu0 %v309
  %3923 = vmatprep.subr.mxu0 0.0
  %3924 = vmatpush1.msra.mxu0 %v308
  %3925 = vmatprep.subr.mxu0 0.0
  %3926 = vmatpush1.msra.mxu0 %v307
  %3927 = vmatprep.subr.mxu0 0.0
  %3928 = vmatpush1.msra.mxu0 %v306
  %3929 = vmatprep.subr.mxu0 0.0
  %3930 = vmatpush2.msra.mxu0 0.0
  %3931 = vmatprep.subr.mxu0 0.0
  %3932 = vmatpush2.msra.mxu0 0.0
  %3933 = vmatprep.subr.mxu0 0.0
  %3934 = vmatpush2.msra.mxu0 0.0
  %3935 = vmatprep.subr.mxu0 0.0
  %3936 = vmatpush2.msra.mxu0 0.0
  %3937 = vmatprep.subr.mxu0 0.0
  %3938 = vmatpush2.msra.mxu0 0.0
  %3939 = vmatprep.subr.mxu0 0.0
  %3940 = vmatpush2.msra.mxu0 0.0
  %3941 = vmatprep.subr.mxu0 0.0
  %3942 = vmatpush2.msra.mxu0 0.0
  %3943 = vmatprep.subr.mxu0 0.0
  %3944 = vmatpush2.msra.mxu0 0.0
  %3945 = vmatprep.subr.mxu0 0.0
  %3946 = vmatpush2.msra.mxu0 0.0
  %3947 = vmatprep.subr.mxu0 0.0
  %3948 = vmatpush2.msra.mxu0 0.0
  %3949 = vmatprep.subr.mxu0 0.0
  %3950 = vmatpush2.msra.mxu0 0.0
  %3951 = vmatprep.subr.mxu0 0.0
  %3952 = vmatpush2.msra.mxu0 0.0
  %3953 = vmatprep.subr.mxu0 0.0
  %3954 = vmatpush2.msra.mxu0 0.0
  %3955 = vmatprep.subr.mxu0 0.0
  %3956 = vmatpush2.msra.mxu0 0.0
  %3957 = vmatprep.subr.mxu0 0.0
  %3958 = vmatpush2.msra.mxu0 0.0
  %3959 = vmatprep.subr.mxu0 0.0
  %3960 = vmatpush2.msra.mxu0 0.0
  %3961 = vmatprep.mubr.f32.mxu0 0.0
  %3962 = vmatmul.mubr.f32.gmra.mxu0 %v3892
  %v3963 = vpop.f32.mrf.mxu0
  %v3964 = vadd.f32 0.0, %v3963
  %v3965 = vpop.f32.mrf.mxu0
  %3966 = vmatprep.mubr.f32.mxu0 0.0
  %3967 = vmatmul.mubr.f32.gmra.mxu0 %v3895
  %v3968 = vpop.f32.mrf.mxu0
  %v3969 = vadd.f32 0.0, %v3968
  %v3970 = vpop.f32.mrf.mxu0
  %3971 = vdwg.mxu0
  %v3973 = vsel %vm326, %v122, 0
  %v3976 = vsel %vm326, %v123, 0
  %3978 = vmatprep.subr.mxu0 0.0
  %3979 = vmatpush1.msra.mxu0 0.0
  %3980 = vmatprep.subr.mxu0 0.0
  %3981 = vmatpush1.msra.mxu0 0.0
  %3982 = vmatprep.subr.mxu0 0.0
  %3983 = vmatpush1.msra.mxu0 0.0
  %3984 = vmatprep.subr.mxu0 0.0
  %3985 = vmatpush1.msra.mxu0 0.0
  %3986 = vmatprep.subr.mxu0 0.0
  %3987 = vmatpush1.msra.mxu0 0.0
  %3988 = vmatprep.subr.mxu0 0.0
  %3989 = vmatpush1.msra.mxu0 0.0
  %3990 = vmatprep.subr.mxu0 0.0
  %3991 = vmatpush1.msra.mxu0 0.0
  %3992 = vmatprep.subr.mxu0 0.0
  %3993 = vmatpush1.msra.mxu0 0.0
  %3994 = vmatprep.subr.mxu0 0.0
  %3995 = vmatpush1.msra.mxu0 0.0
  %3996 = vmatprep.subr.mxu0 0.0
  %3997 = vmatpush1.msra.mxu0 0.0
  %3998 = vmatprep.subr.mxu0 0.0
  %3999 = vmatpush1.msra.mxu0 0.0
  %4000 = vmatprep.subr.mxu0 0.0
  %4001 = vmatpush1.msra.mxu0 0.0
  %4002 = vmatprep.subr.mxu0 0.0
  %4003 = vmatpush1.msra.mxu0 %v313
  %4004 = vmatprep.subr.mxu0 0.0
  %4005 = vmatpush1.msra.mxu0 %v312
  %4006 = vmatprep.subr.mxu0 0.0
  %4007 = vmatpush1.msra.mxu0 %v311
  %4008 = vmatprep.subr.mxu0 0.0
  %4009 = vmatpush1.msra.mxu0 %v310
  %4010 = vmatprep.subr.mxu0 0.0
  %4011 = vmatpush2.msra.mxu0 0.0
  %4012 = vmatprep.subr.mxu0 0.0
  %4013 = vmatpush2.msra.mxu0 0.0
  %4014 = vmatprep.subr.mxu0 0.0
  %4015 = vmatpush2.msra.mxu0 0.0
  %4016 = vmatprep.subr.mxu0 0.0
  %4017 = vmatpush2.msra.mxu0 0.0
  %4018 = vmatprep.subr.mxu0 0.0
  %4019 = vmatpush2.msra.mxu0 0.0
  %4020 = vmatprep.subr.mxu0 0.0
  %4021 = vmatpush2.msra.mxu0 0.0
  %4022 = vmatprep.subr.mxu0 0.0
  %4023 = vmatpush2.msra.mxu0 0.0
  %4024 = vmatprep.subr.mxu0 0.0
  %4025 = vmatpush2.msra.mxu0 0.0
  %4026 = vmatprep.subr.mxu0 0.0
  %4027 = vmatpush2.msra.mxu0 0.0
  %4028 = vmatprep.subr.mxu0 0.0
  %4029 = vmatpush2.msra.mxu0 0.0
  %4030 = vmatprep.subr.mxu0 0.0
  %4031 = vmatpush2.msra.mxu0 0.0
  %4032 = vmatprep.subr.mxu0 0.0
  %4033 = vmatpush2.msra.mxu0 0.0
  %4034 = vmatprep.subr.mxu0 0.0
  %4035 = vmatpush2.msra.mxu0 0.0
  %4036 = vmatprep.subr.mxu0 0.0
  %4037 = vmatpush2.msra.mxu0 0.0
  %4038 = vmatprep.subr.mxu0 0.0
  %4039 = vmatpush2.msra.mxu0 0.0
  %4040 = vmatprep.subr.mxu0 0.0
  %4041 = vmatpush2.msra.mxu0 0.0
  %4042 = vmatprep.mubr.f32.mxu0 0.0
  %4043 = vmatmul.mubr.f32.gmra.mxu0 %v3973
  %v4044 = vpop.f32.mrf.mxu0
  %v4045 = vadd.f32 0.0, %v4044
  %v4046 = vpop.f32.mrf.mxu0
  %4047 = vmatprep.mubr.f32.mxu0 0.0
  %4048 = vmatmul.mubr.f32.gmra.mxu0 %v3976
  %v4049 = vpop.f32.mrf.mxu0
  %v4050 = vadd.f32 0.0, %v4049
  %v4051 = vpop.f32.mrf.mxu0
  %4052 = vdwg.mxu0
  %v4054 = vsel %vm326, %v124, 0
  %v4057 = vsel %vm326, %v125, 0
  %4059 = vmatprep.subr.mxu0 0.0
  %4060 = vmatpush1.msra.mxu0 0.0
  %4061 = vmatprep.subr.mxu0 0.0
  %4062 = vmatpush1.msra.mxu0 0.0
  %4063 = vmatprep.subr.mxu0 0.0
  %4064 = vmatpush1.msra.mxu0 0.0
  %4065 = vmatprep.subr.mxu0 0.0
  %4066 = vmatpush1.msra.mxu0 0.0
  %4067 = vmatprep.subr.mxu0 0.0
  %4068 = vmatpush1.msra.mxu0 0.0
  %4069 = vmatprep.subr.mxu0 0.0
  %4070 = vmatpush1.msra.mxu0 0.0
  %4071 = vmatprep.subr.mxu0 0.0
  %4072 = vmatpush1.msra.mxu0 0.0
  %4073 = vmatprep.subr.mxu0 0.0
  %4074 = vmatpush1.msra.mxu0 0.0
  %4075 = vmatprep.subr.mxu0 0.0
  %4076 = vmatpush1.msra.mxu0 0.0
  %4077 = vmatprep.subr.mxu0 0.0
  %4078 = vmatpush1.msra.mxu0 0.0
  %4079 = vmatprep.subr.mxu0 0.0
  %4080 = vmatpush1.msra.mxu0 0.0
  %4081 = vmatprep.subr.mxu0 0.0
  %4082 = vmatpush1.msra.mxu0 0.0
  %4083 = vmatprep.subr.mxu0 0.0
  %4084 = vmatpush1.msra.mxu0 %v317
  %4085 = vmatprep.subr.mxu0 0.0
  %4086 = vmatpush1.msra.mxu0 %v316
  %4087 = vmatprep.subr.mxu0 0.0
  %4088 = vmatpush1.msra.mxu0 %v315
  %4089 = vmatprep.subr.mxu0 0.0
  %4090 = vmatpush1.msra.mxu0 %v314
  %4091 = vmatprep.subr.mxu0 0.0
  %4092 = vmatpush2.msra.mxu0 0.0
  %4093 = vmatprep.subr.mxu0 0.0
  %4094 = vmatpush2.msra.mxu0 0.0
  %4095 = vmatprep.subr.mxu0 0.0
  %4096 = vmatpush2.msra.mxu0 0.0
  %4097 = vmatprep.subr.mxu0 0.0
  %4098 = vmatpush2.msra.mxu0 0.0
  %4099 = vmatprep.subr.mxu0 0.0
  %4100 = vmatpush2.msra.mxu0 0.0
  %4101 = vmatprep.subr.mxu0 0.0
  %4102 = vmatpush2.msra.mxu0 0.0
  %4103 = vmatprep.subr.mxu0 0.0
  %4104 = vmatpush2.msra.mxu0 0.0
  %4105 = vmatprep.subr.mxu0 0.0
  %4106 = vmatpush2.msra.mxu0 0.0
  %4107 = vmatprep.subr.mxu0 0.0
  %4108 = vmatpush2.msra.mxu0 0.0
  %4109 = vmatprep.subr.mxu0 0.0
  %4110 = vmatpush2.msra.mxu0 0.0
  %4111 = vmatprep.subr.mxu0 0.0
  %4112 = vmatpush2.msra.mxu0 0.0
  %4113 = vmatprep.subr.mxu0 0.0
  %4114 = vmatpush2.msra.mxu0 0.0
  %4115 = vmatprep.subr.mxu0 0.0
  %4116 = vmatpush2.msra.mxu0 0.0
  %4117 = vmatprep.subr.mxu0 0.0
  %4118 = vmatpush2.msra.mxu0 0.0
  %4119 = vmatprep.subr.mxu0 0.0
  %4120 = vmatpush2.msra.mxu0 0.0
  %4121 = vmatprep.subr.mxu0 0.0
  %4122 = vmatpush2.msra.mxu0 0.0
  %4123 = vmatprep.mubr.f32.mxu0 0.0
  %4124 = vmatmul.mubr.f32.gmra.mxu0 %v4054
  %v4125 = vpop.f32.mrf.mxu0
  %v4126 = vadd.f32 0.0, %v4125
  %v4127 = vpop.f32.mrf.mxu0
  %4128 = vmatprep.mubr.f32.mxu0 0.0
  %4129 = vmatmul.mubr.f32.gmra.mxu0 %v4057
  %v4130 = vpop.f32.mrf.mxu0
  %v4131 = vadd.f32 0.0, %v4130
  %v4132 = vpop.f32.mrf.mxu0
  %4133 = vdwg.mxu0
  %v4135 = vsel %vm326, %v126, 0
  %v4138 = vsel %vm326, %v127, 0
  %4140 = vmatprep.subr.mxu0 0.0
  %4141 = vmatpush1.msra.mxu0 0.0
  %4142 = vmatprep.subr.mxu0 0.0
  %4143 = vmatpush1.msra.mxu0 0.0
  %4144 = vmatprep.subr.mxu0 0.0
  %4145 = vmatpush1.msra.mxu0 0.0
  %4146 = vmatprep.subr.mxu0 0.0
  %4147 = vmatpush1.msra.mxu0 0.0
  %4148 = vmatprep.subr.mxu0 0.0
  %4149 = vmatpush1.msra.mxu0 0.0
  %4150 = vmatprep.subr.mxu0 0.0
  %4151 = vmatpush1.msra.mxu0 0.0
  %4152 = vmatprep.subr.mxu0 0.0
  %4153 = vmatpush1.msra.mxu0 0.0
  %4154 = vmatprep.subr.mxu0 0.0
  %4155 = vmatpush1.msra.mxu0 0.0
  %4156 = vmatprep.subr.mxu0 0.0
  %4157 = vmatpush1.msra.mxu0 0.0
  %4158 = vmatprep.subr.mxu0 0.0
  %4159 = vmatpush1.msra.mxu0 0.0
  %4160 = vmatprep.subr.mxu0 0.0
  %4161 = vmatpush1.msra.mxu0 0.0
  %4162 = vmatprep.subr.mxu0 0.0
  %4163 = vmatpush1.msra.mxu0 0.0
  %4164 = vmatprep.subr.mxu0 0.0
  %4165 = vmatpush1.msra.mxu0 %v321
  %4166 = vmatprep.subr.mxu0 0.0
  %4167 = vmatpush1.msra.mxu0 %v320
  %4168 = vmatprep.subr.mxu0 0.0
  %4169 = vmatpush1.msra.mxu0 %v319
  %4170 = vmatprep.subr.mxu0 0.0
  %4171 = vmatpush1.msra.mxu0 %v318
  %4172 = vmatprep.subr.mxu0 0.0
  %4173 = vmatpush2.msra.mxu0 0.0
  %4174 = vmatprep.subr.mxu0 0.0
  %4175 = vmatpush2.msra.mxu0 0.0
  %4176 = vmatprep.subr.mxu0 0.0
  %4177 = vmatpush2.msra.mxu0 0.0
  %4178 = vmatprep.subr.mxu0 0.0
  %4179 = vmatpush2.msra.mxu0 0.0
  %4180 = vmatprep.subr.mxu0 0.0
  %4181 = vmatpush2.msra.mxu0 0.0
  %4182 = vmatprep.subr.mxu0 0.0
  %4183 = vmatpush2.msra.mxu0 0.0
  %4184 = vmatprep.subr.mxu0 0.0
  %4185 = vmatpush2.msra.mxu0 0.0
  %4186 = vmatprep.subr.mxu0 0.0
  %4187 = vmatpush2.msra.mxu0 0.0
  %4188 = vmatprep.subr.mxu0 0.0
  %4189 = vmatpush2.msra.mxu0 0.0
  %4190 = vmatprep.subr.mxu0 0.0
  %4191 = vmatpush2.msra.mxu0 0.0
  %4192 = vmatprep.subr.mxu0 0.0
  %4193 = vmatpush2.msra.mxu0 0.0
  %4194 = vmatprep.subr.mxu0 0.0
  %4195 = vmatpush2.msra.mxu0 0.0
  %4196 = vmatprep.subr.mxu0 0.0
  %4197 = vmatpush2.msra.mxu0 0.0
  %4198 = vmatprep.subr.mxu0 0.0
  %4199 = vmatpush2.msra.mxu0 0.0
  %4200 = vmatprep.subr.mxu0 0.0
  %4201 = vmatpush2.msra.mxu0 0.0
  %4202 = vmatprep.subr.mxu0 0.0
  %4203 = vmatpush2.msra.mxu0 0.0
  %4204 = vmatprep.mubr.f32.mxu0 0.0
  %4205 = vmatmul.mubr.f32.gmra.mxu0 %v4135
  %v4206 = vpop.f32.mrf.mxu0
  %v4207 = vadd.f32 0.0, %v4206
  %v4208 = vpop.f32.mrf.mxu0
  %4209 = vmatprep.mubr.f32.mxu0 0.0
  %4210 = vmatmul.mubr.f32.gmra.mxu0 %v4138
  %v4211 = vpop.f32.mrf.mxu0
  %v4212 = vadd.f32 0.0, %v4211
  %v4213 = vpop.f32.mrf.mxu0
  %4214 = vdwg.mxu0
  %v4216 = vsel %vm326, %v128, 0
  %v4219 = vsel %vm326, %v129, 0
  %4221 = vmatprep.subr.mxu0 0.0
  %4222 = vmatpush1.msra.mxu0 0.0
  %4223 = vmatprep.subr.mxu0 0.0
  %4224 = vmatpush1.msra.mxu0 0.0
  %4225 = vmatprep.subr.mxu0 0.0
  %4226 = vmatpush1.msra.mxu0 0.0
  %4227 = vmatprep.subr.mxu0 0.0
  %4228 = vmatpush1.msra.mxu0 0.0
  %4229 = vmatprep.subr.mxu0 0.0
  %4230 = vmatpush1.msra.mxu0 0.0
  %4231 = vmatprep.subr.mxu0 0.0
  %4232 = vmatpush1.msra.mxu0 0.0
  %4233 = vmatprep.subr.mxu0 0.0
  %4234 = vmatpush1.msra.mxu0 0.0
  %4235 = vmatprep.subr.mxu0 0.0
  %4236 = vmatpush1.msra.mxu0 0.0
  %4237 = vmatprep.subr.mxu0 0.0
  %4238 = vmatpush1.msra.mxu0 0.0
  %4239 = vmatprep.subr.mxu0 0.0
  %4240 = vmatpush1.msra.mxu0 0.0
  %4241 = vmatprep.subr.mxu0 0.0
  %4242 = vmatpush1.msra.mxu0 0.0
  %4243 = vmatprep.subr.mxu0 0.0
  %4244 = vmatpush1.msra.mxu0 0.0
  %4245 = vmatprep.subr.mxu0 0.0
  %4246 = vmatpush1.msra.mxu0 %v325
  %4247 = vmatprep.subr.mxu0 0.0
  %4248 = vmatpush1.msra.mxu0 %v324
  %4249 = vmatprep.subr.mxu0 0.0
  %4250 = vmatpush1.msra.mxu0 %v323
  %4251 = vmatprep.subr.mxu0 0.0
  %4252 = vmatpush1.msra.mxu0 %v322
  %4253 = vmatprep.subr.mxu0 0.0
  %4254 = vmatpush2.msra.mxu0 0.0
  %4255 = vmatprep.subr.mxu0 0.0
  %4256 = vmatpush2.msra.mxu0 0.0
  %4257 = vmatprep.subr.mxu0 0.0
  %4258 = vmatpush2.msra.mxu0 0.0
  %4259 = vmatprep.subr.mxu0 0.0
  %4260 = vmatpush2.msra.mxu0 0.0
  %4261 = vmatprep.subr.mxu0 0.0
  %4262 = vmatpush2.msra.mxu0 0.0
  %4263 = vmatprep.subr.mxu0 0.0
  %4264 = vmatpush2.msra.mxu0 0.0
  %4265 = vmatprep.subr.mxu0 0.0
  %4266 = vmatpush2.msra.mxu0 0.0
  %4267 = vmatprep.subr.mxu0 0.0
  %4268 = vmatpush2.msra.mxu0 0.0
  %4269 = vmatprep.subr.mxu0 0.0
  %4270 = vmatpush2.msra.mxu0 0.0
  %4271 = vmatprep.subr.mxu0 0.0
  %4272 = vmatpush2.msra.mxu0 0.0
  %4273 = vmatprep.subr.mxu0 0.0
  %4274 = vmatpush2.msra.mxu0 0.0
  %4275 = vmatprep.subr.mxu0 0.0
  %4276 = vmatpush2.msra.mxu0 0.0
  %4277 = vmatprep.subr.mxu0 0.0
  %4278 = vmatpush2.msra.mxu0 0.0
  %4279 = vmatprep.subr.mxu0 0.0
  %4280 = vmatpush2.msra.mxu0 0.0
  %4281 = vmatprep.subr.mxu0 0.0
  %4282 = vmatpush2.msra.mxu0 0.0
  %4283 = vmatprep.subr.mxu0 0.0
  %4284 = vmatpush2.msra.mxu0 0.0
  %4285 = vmatprep.mubr.f32.mxu0 0.0
  %4286 = vmatmul.mubr.f32.gmra.mxu0 %v4216
  %v4287 = vpop.f32.mrf.mxu0
  %v4288 = vadd.f32 0.0, %v4287
  %v4289 = vpop.f32.mrf.mxu0
  %4290 = vmatprep.mubr.f32.mxu0 0.0
  %4291 = vmatmul.mubr.f32.gmra.mxu0 %v4219
  %v4292 = vpop.f32.mrf.mxu0
  %v4293 = vadd.f32 0.0, %v4292
  %v4294 = vpop.f32.mrf.mxu0
  %4295 = vdwg.mxu0
  %v4296 = vmax.f32 %v400, 0.0
  %v4297 = vmax.f32 %v405, 0.0
  %v4298 = vmax.f32 %v481, 0.0
  %v4299 = vmax.f32 %v486, 0.0
  %v4300 = vmax.f32 %v562, 0.0
  %v4301 = vmax.f32 %v567, 0.0
  %v4302 = vmax.f32 %v643, 0.0
  %v4303 = vmax.f32 %v648, 0.0
  %v4304 = vmax.f32 %v724, 0.0
  %v4305 = vmax.f32 %v729, 0.0
  %v4306 = vmax.f32 %v805, 0.0
  %v4307 = vmax.f32 %v810, 0.0
  %v4308 = vmax.f32 %v886, 0.0
  %v4309 = vmax.f32 %v891, 0.0
  %v4310 = vmax.f32 %v967, 0.0
  %v4311 = vmax.f32 %v972, 0.0
  %v4312 = vmax.f32 %v1048, 0.0
  %v4313 = vmax.f32 %v1053, 0.0
  %v4314 = vmax.f32 %v1129, 0.0
  %v4315 = vmax.f32 %v1134, 0.0
  %v4316 = vmax.f32 %v1210, 0.0
  %v4317 = vmax.f32 %v1215, 0.0
  %v4318 = vmax.f32 %v1291, 0.0
  %v4319 = vmax.f32 %v1296, 0.0
  %v4320 = vmax.f32 %v1372, 0.0
  %v4321 = vmax.f32 %v1377, 0.0
  %v4322 = vmax.f32 %v1453, 0.0
  %v4323 = vmax.f32 %v1458, 0.0
  %v4324 = vmax.f32 %v1534, 0.0
  %v4325 = vmax.f32 %v1539, 0.0
  %v4326 = vmax.f32 %v1615, 0.0
  %v4327 = vmax.f32 %v1620, 0.0
  %v4328 = vmax.f32 %v1696, 0.0
  %v4329 = vmax.f32 %v1701, 0.0
  %v4330 = vmax.f32 %v1777, 0.0
  %v4331 = vmax.f32 %v1782, 0.0
  %v4332 = vmax.f32 %v1858, 0.0
  %v4333 = vmax.f32 %v1863, 0.0
  %v4334 = vmax.f32 %v1939, 0.0
  %v4335 = vmax.f32 %v1944, 0.0
  %v4336 = vmax.f32 %v2020, 0.0
  %v4337 = vmax.f32 %v2025, 0.0
  %v4338 = vmax.f32 %v2101, 0.0
  %v4339 = vmax.f32 %v2106, 0.0
  %v4340 = vmax.f32 %v2182, 0.0
  %v4341 = vmax.f32 %v2187, 0.0
  %v4342 = vmax.f32 %v2263, 0.0
  %v4343 = vmax.f32 %v2268, 0.0
  %v4344 = vmax.f32 %v2344, 0.0
  %v4345 = vmax.f32 %v2349, 0.0
  %v4346 = vmax.f32 %v2425, 0.0
  %v4347 = vmax.f32 %v2430, 0.0
  %v4348 = vmax.f32 %v2506, 0.0
  %v4349 = vmax.f32 %v2511, 0.0
  %v4350 = vmax.f32 %v2587, 0.0
  %v4351 = vmax.f32 %v2592, 0.0
  %v4352 = vmax.f32 %v2668, 0.0
  %v4353 = vmax.f32 %v2673, 0.0
  %v4354 = vmax.f32 %v2749, 0.0
  %v4355 = vmax.f32 %v2754, 0.0
  %v4356 = vmax.f32 %v2830, 0.0
  %v4357 = vmax.f32 %v2835, 0.0
  %v4358 = vmax.f32 %v2911, 0.0
  %v4359 = vmax.f32 %v2916, 0.0
  %v4360 = vmax.f32 %v2992, 0.0
  %v4361 = vmax.f32 %v2997, 0.0
  %v4362 = vmax.f32 %v3073, 0.0
  %v4363 = vmax.f32 %v3078, 0.0
  %v4364 = vmax.f32 %v3154, 0.0
  %v4365 = vmax.f32 %v3159, 0.0
  %v4366 = vmax.f32 %v3235, 0.0
  %v4367 = vmax.f32 %v3240, 0.0
  %v4368 = vmax.f32 %v3316, 0.0
  %v4369 = vmax.f32 %v3321, 0.0
  %v4370 = vmax.f32 %v3397, 0.0
  %v4371 = vmax.f32 %v3402, 0.0
  %v4372 = vmax.f32 %v3478, 0.0
  %v4373 = vmax.f32 %v3483, 0.0
  %v4374 = vmax.f32 %v3559, 0.0
  %v4375 = vmax.f32 %v3564, 0.0
  %v4376 = vmax.f32 %v3640, 0.0
  %v4377 = vmax.f32 %v3645, 0.0
  %v4378 = vmax.f32 %v3721, 0.0
  %v4379 = vmax.f32 %v3726, 0.0
  %v4380 = vmax.f32 %v3802, 0.0
  %v4381 = vmax.f32 %v3807, 0.0
  %v4382 = vmax.f32 %v3883, 0.0
  %v4383 = vmax.f32 %v3888, 0.0
  %v4384 = vmax.f32 %v3964, 0.0
  %v4385 = vmax.f32 %v3969, 0.0
  %v4386 = vmax.f32 %v4045, 0.0
  %v4387 = vmax.f32 %v4050, 0.0
  %v4388 = vmax.f32 %v4126, 0.0
  %v4389 = vmax.f32 %v4131, 0.0
  %v4390 = vmax.f32 %v4207, 0.0
  %v4391 = vmax.f32 %v4212, 0.0
  %v4392 = vmax.f32 %v4288, 0.0
  %v4393 = vmax.f32 %v4293, 0.0
  %v4394 = vld [vmem:[%s2] sm:$0xff]
  %v4395 = vld [vmem:[%s2 + $0x8] sm:$0xff]
  %v4396 = vld [vmem:[%s2 + $0x10] sm:$0xff]
  %v4397 = vld [vmem:[%s2 + $0x18] sm:$0xff]
  %v4398 = vld [vmem:[%s2 + $0x20] sm:$0xff]
  %v4399 = vld [vmem:[%s2 + $0x28] sm:$0xff]
  %v4400 = vld [vmem:[%s2 + $0x30] sm:$0xff]
  %v4401 = vld [vmem:[%s2 + $0x38] sm:$0xff]
  %v4402 = vld [vmem:[%s2 + $0x40] sm:$0xff]
  %v4403 = vld [vmem:[%s2 + $0x48] sm:$0xff]
  %v4404 = vld [vmem:[%s2 + $0x50] sm:$0xff]
  %v4405 = vld [vmem:[%s2 + $0x58] sm:$0xff]
  %v4406 = vld [vmem:[%s2 + $0x60] sm:$0xff]
  %v4407 = vld [vmem:[%s2 + $0x68] sm:$0xff]
  %v4408 = vld [vmem:[%s2 + $0x70] sm:$0xff]
  %v4409 = vld [vmem:[%s2 + $0x78] sm:$0xff]
  %v4410 = vld [vmem:[%s2 + $0x80] sm:$0xff]
  %v4411 = vld [vmem:[%s2 + $0x88] sm:$0xff]
  %v4412 = vld [vmem:[%s2 + $0x90] sm:$0xff]
  %v4413 = vld [vmem:[%s2 + $0x98] sm:$0xff]
  %v4414 = vld [vmem:[%s2 + $0xa0] sm:$0xff]
  %v4415 = vld [vmem:[%s2 + $0xa8] sm:$0xff]
  %v4416 = vld [vmem:[%s2 + $0xb0] sm:$0xff]
  %v4417 = vld [vmem:[%s2 + $0xb8] sm:$0xff]
  %v4418 = vld [vmem:[%s2 + $0xc0] sm:$0xff]
  %v4419 = vld [vmem:[%s2 + $0xc8] sm:$0xff]
  %v4420 = vld [vmem:[%s2 + $0xd0] sm:$0xff]
  %v4421 = vld [vmem:[%s2 + $0xd8] sm:$0xff]
  %v4422 = vld [vmem:[%s2 + $0xe0] sm:$0xff]
  %v4423 = vld [vmem:[%s2 + $0xe8] sm:$0xff]
  %v4424 = vld [vmem:[%s2 + $0xf0] sm:$0xff]
  %v4425 = vld [vmem:[%s2 + $0xf8] sm:$0xff]
  %v4426 = vld [vmem:[%s2 + $0x100] sm:$0xff]
  %v4427 = vld [vmem:[%s2 + $0x108] sm:$0xff]
  %v4428 = vld [vmem:[%s2 + $0x110] sm:$0xff]
  %v4429 = vld [vmem:[%s2 + $0x118] sm:$0xff]
  %v4430 = vld [vmem:[%s2 + $0x120] sm:$0xff]
  %v4431 = vld [vmem:[%s2 + $0x128] sm:$0xff]
  %v4432 = vld [vmem:[%s2 + $0x130] sm:$0xff]
  %v4433 = vld [vmem:[%s2 + $0x138] sm:$0xff]
  %v4434 = vld [vmem:[%s2 + $0x140] sm:$0xff]
  %v4435 = vld [vmem:[%s2 + $0x148] sm:$0xff]
  %v4436 = vld [vmem:[%s2 + $0x150] sm:$0xff]
  %v4437 = vld [vmem:[%s2 + $0x158] sm:$0xff]
  %v4438 = vld [vmem:[%s2 + $0x160] sm:$0xff]
  %v4439 = vld [vmem:[%s2 + $0x168] sm:$0xff]
  %v4440 = vld [vmem:[%s2 + $0x170] sm:$0xff]
  %v4441 = vld [vmem:[%s2 + $0x178] sm:$0xff]
  %v4442 = vld [vmem:[%s2 + $0x180] sm:$0xff]
  %v4443 = vld [vmem:[%s2 + $0x188] sm:$0xff]
  %v4444 = vld [vmem:[%s2 + $0x190] sm:$0xff]
  %v4445 = vld [vmem:[%s2 + $0x198] sm:$0xff]
  %v4446 = vld [vmem:[%s2 + $0x1a0] sm:$0xff]
  %v4447 = vld [vmem:[%s2 + $0x1a8] sm:$0xff]
  %v4448 = vld [vmem:[%s2 + $0x1b0] sm:$0xff]
  %v4449 = vld [vmem:[%s2 + $0x1b8] sm:$0xff]
  %v4450 = vld [vmem:[%s2 + $0x1c0] sm:$0xff]
  %v4451 = vld [vmem:[%s2 + $0x1c8] sm:$0xff]
  %v4452 = vld [vmem:[%s2 + $0x1d0] sm:$0xff]
  %v4453 = vld [vmem:[%s2 + $0x1d8] sm:$0xff]
  %v4454 = vld [vmem:[%s2 + $0x1e0] sm:$0xff]
  %v4455 = vld [vmem:[%s2 + $0x1e8] sm:$0xff]
  %v4456 = vld [vmem:[%s2 + $0x1f0] sm:$0xff]
  %v4457 = vld [vmem:[%s2 + $0x1f8] sm:$0xff]
  %v4458 = vld [vmem:[%s2 + $0x200] sm:$0xff]
  %v4459 = vld [vmem:[%s2 + $0x208] sm:$0xff]
  %v4460 = vld [vmem:[%s2 + $0x210] sm:$0xff]
  %v4461 = vld [vmem:[%s2 + $0x218] sm:$0xff]
  %v4462 = vld [vmem:[%s2 + $0x220] sm:$0xff]
  %v4463 = vld [vmem:[%s2 + $0x228] sm:$0xff]
  %v4464 = vld [vmem:[%s2 + $0x230] sm:$0xff]
  %v4465 = vld [vmem:[%s2 + $0x238] sm:$0xff]
  %v4466 = vld [vmem:[%s2 + $0x240] sm:$0xff]
  %v4467 = vld [vmem:[%s2 + $0x248] sm:$0xff]
  %v4468 = vld [vmem:[%s2 + $0x250] sm:$0xff]
  %v4469 = vld [vmem:[%s2 + $0x258] sm:$0xff]
  %v4470 = vld [vmem:[%s2 + $0x260] sm:$0xff]
  %v4471 = vld [vmem:[%s2 + $0x268] sm:$0xff]
  %v4472 = vld [vmem:[%s2 + $0x270] sm:$0xff]
  %v4473 = vld [vmem:[%s2 + $0x278] sm:$0xff]
  %v4474 = vld [vmem:[%s2 + $0x280] sm:$0xff]
  %v4475 = vld [vmem:[%s2 + $0x288] sm:$0xff]
  %v4476 = vld [vmem:[%s2 + $0x290] sm:$0xff]
  %v4477 = vld [vmem:[%s2 + $0x298] sm:$0xff]
  %v4478 = vld [vmem:[%s2 + $0x2a0] sm:$0xff]
  %v4479 = vld [vmem:[%s2 + $0x2a8] sm:$0xff]
  %v4480 = vld [vmem:[%s2 + $0x2b0] sm:$0xff]
  %v4481 = vld [vmem:[%s2 + $0x2b8] sm:$0xff]
  %v4482 = vld [vmem:[%s2 + $0x2c0] sm:$0xff]
  %v4483 = vld [vmem:[%s2 + $0x2c8] sm:$0xff]
  %v4484 = vld [vmem:[%s2 + $0x2d0] sm:$0xff]
  %v4485 = vld [vmem:[%s2 + $0x2d8] sm:$0xff]
  %v4486 = vld [vmem:[%s2 + $0x2e0] sm:$0xff]
  %v4487 = vld [vmem:[%s2 + $0x2e8] sm:$0xff]
  %v4488 = vld [vmem:[%s2 + $0x2f0] sm:$0xff]
  %v4489 = vld [vmem:[%s2 + $0x2f8] sm:$0xff]
  %v4490 = vld [vmem:[%s2 + $0x300] sm:$0xff]
  %v4491 = vld [vmem:[%s2 + $0x308] sm:$0xff]
  %v4492 = vld [vmem:[%s2 + $0x310] sm:$0xff]
  %v4493 = vld [vmem:[%s2 + $0x318] sm:$0xff]
  %v4494 = vld [vmem:[%s2 + $0x320] sm:$0xff]
  %v4495 = vld [vmem:[%s2 + $0x328] sm:$0xff]
  %v4496 = vld [vmem:[%s2 + $0x330] sm:$0xff]
  %v4497 = vld [vmem:[%s2 + $0x338] sm:$0xff]
  %v4498 = vld [vmem:[%s2 + $0x340] sm:$0xff]
  %v4499 = vld [vmem:[%s2 + $0x348] sm:$0xff]
  %v4500 = vld [vmem:[%s2 + $0x350] sm:$0xff]
  %v4501 = vld [vmem:[%s2 + $0x358] sm:$0xff]
  %v4502 = vld [vmem:[%s2 + $0x360] sm:$0xff]
  %v4503 = vld [vmem:[%s2 + $0x368] sm:$0xff]
  %v4504 = vld [vmem:[%s2 + $0x370] sm:$0xff]
  %v4505 = vld [vmem:[%s2 + $0x378] sm:$0xff]
  %v4506 = vld [vmem:[%s2 + $0x380] sm:$0xff]
  %v4507 = vld [vmem:[%s2 + $0x388] sm:$0xff]
  %v4508 = vld [vmem:[%s2 + $0x390] sm:$0xff]
  %v4509 = vld [vmem:[%s2 + $0x398] sm:$0xff]
  %v4510 = vld [vmem:[%s2 + $0x3a0] sm:$0xff]
  %v4511 = vld [vmem:[%s2 + $0x3a8] sm:$0xff]
  %v4512 = vld [vmem:[%s2 + $0x3b0] sm:$0xff]
  %v4513 = vld [vmem:[%s2 + $0x3b8] sm:$0xff]
  %v4514 = vld [vmem:[%s2 + $0x3c0] sm:$0xff]
  %v4515 = vld [vmem:[%s2 + $0x3c8] sm:$0xff]
  %v4516 = vld [vmem:[%s2 + $0x3d0] sm:$0xff]
  %v4517 = vld [vmem:[%s2 + $0x3d8] sm:$0xff]
  %v4518 = vld [vmem:[%s2 + $0x3e0] sm:$0xff]
  %v4519 = vld [vmem:[%s2 + $0x3e8] sm:$0xff]
  %v4520 = vld [vmem:[%s2 + $0x3f0] sm:$0xff]
  %v4521 = vld [vmem:[%s2 + $0x3f8] sm:$0xff]
  %v4522 = vld [vmem:[%s2 + $0x400] sm:$0xff]
  %v4523 = vld [vmem:[%s2 + $0x408] sm:$0xff]
  %v4524 = vld [vmem:[%s2 + $0x410] sm:$0xff]
  %v4525 = vld [vmem:[%s2 + $0x418] sm:$0xff]
  %v4526 = vld [vmem:[%s2 + $0x420] sm:$0xff]
  %v4527 = vld [vmem:[%s2 + $0x428] sm:$0xff]
  %v4528 = vld [vmem:[%s2 + $0x430] sm:$0xff]
  %v4529 = vld [vmem:[%s2 + $0x438] sm:$0xff]
  %v4530 = vld [vmem:[%s2 + $0x440] sm:$0xff]
  %v4531 = vld [vmem:[%s2 + $0x448] sm:$0xff]
  %v4532 = vld [vmem:[%s2 + $0x450] sm:$0xff]
  %v4533 = vld [vmem:[%s2 + $0x458] sm:$0xff]
  %v4534 = vld [vmem:[%s2 + $0x460] sm:$0xff]
  %v4535 = vld [vmem:[%s2 + $0x468] sm:$0xff]
  %v4536 = vld [vmem:[%s2 + $0x470] sm:$0xff]
  %v4537 = vld [vmem:[%s2 + $0x478] sm:$0xff]
  %v4538 = vld [vmem:[%s2 + $0x480] sm:$0xff]
  %v4539 = vld [vmem:[%s2 + $0x488] sm:$0xff]
  %v4540 = vld [vmem:[%s2 + $0x490] sm:$0xff]
  %v4541 = vld [vmem:[%s2 + $0x498] sm:$0xff]
  %v4542 = vld [vmem:[%s2 + $0x4a0] sm:$0xff]
  %v4543 = vld [vmem:[%s2 + $0x4a8] sm:$0xff]
  %v4544 = vld [vmem:[%s2 + $0x4b0] sm:$0xff]
  %v4545 = vld [vmem:[%s2 + $0x4b8] sm:$0xff]
  %v4546 = vld [vmem:[%s2 + $0x4c0] sm:$0xff]
  %v4547 = vld [vmem:[%s2 + $0x4c8] sm:$0xff]
  %v4548 = vld [vmem:[%s2 + $0x4d0] sm:$0xff]
  %v4549 = vld [vmem:[%s2 + $0x4d8] sm:$0xff]
  %v4550 = vld [vmem:[%s2 + $0x4e0] sm:$0xff]
  %v4551 = vld [vmem:[%s2 + $0x4e8] sm:$0xff]
  %v4552 = vld [vmem:[%s2 + $0x4f0] sm:$0xff]
  %v4553 = vld [vmem:[%s2 + $0x4f8] sm:$0xff]
  %v4554 = vld [vmem:[%s2 + $0x500] sm:$0xff]
  %v4555 = vld [vmem:[%s2 + $0x508] sm:$0xff]
  %v4556 = vld [vmem:[%s2 + $0x510] sm:$0xff]
  %v4557 = vld [vmem:[%s2 + $0x518] sm:$0xff]
  %v4558 = vld [vmem:[%s2 + $0x520] sm:$0xff]
  %v4559 = vld [vmem:[%s2 + $0x528] sm:$0xff]
  %v4560 = vld [vmem:[%s2 + $0x530] sm:$0xff]
  %v4561 = vld [vmem:[%s2 + $0x538] sm:$0xff]
  %v4562 = vld [vmem:[%s2 + $0x540] sm:$0xff]
  %v4563 = vld [vmem:[%s2 + $0x548] sm:$0xff]
  %v4564 = vld [vmem:[%s2 + $0x550] sm:$0xff]
  %v4565 = vld [vmem:[%s2 + $0x558] sm:$0xff]
  %v4566 = vld [vmem:[%s2 + $0x560] sm:$0xff]
  %v4567 = vld [vmem:[%s2 + $0x568] sm:$0xff]
  %v4568 = vld [vmem:[%s2 + $0x570] sm:$0xff]
  %v4569 = vld [vmem:[%s2 + $0x578] sm:$0xff]
  %v4570 = vld [vmem:[%s2 + $0x580] sm:$0xff]
  %v4571 = vld [vmem:[%s2 + $0x588] sm:$0xff]
  %v4572 = vld [vmem:[%s2 + $0x590] sm:$0xff]
  %v4573 = vld [vmem:[%s2 + $0x598] sm:$0xff]
  %v4574 = vld [vmem:[%s2 + $0x5a0] sm:$0xff]
  %v4575 = vld [vmem:[%s2 + $0x5a8] sm:$0xff]
  %v4576 = vld [vmem:[%s2 + $0x5b0] sm:$0xff]
  %v4577 = vld [vmem:[%s2 + $0x5b8] sm:$0xff]
  %v4578 = vld [vmem:[%s2 + $0x5c0] sm:$0xff]
  %v4579 = vld [vmem:[%s2 + $0x5c8] sm:$0xff]
  %v4580 = vld [vmem:[%s2 + $0x5d0] sm:$0xff]
  %v4581 = vld [vmem:[%s2 + $0x5d8] sm:$0xff]
  %v4582 = vld [vmem:[%s2 + $0x5e0] sm:$0xff]
  %v4583 = vld [vmem:[%s2 + $0x5e8] sm:$0xff]
  %v4584 = vld [vmem:[%s2 + $0x5f0] sm:$0xff]
  %v4585 = vld [vmem:[%s2 + $0x5f8] sm:$0xff]
  %v4586 = vld [vmem:[%s2 + $0x600] sm:$0xff]
  %v4587 = vld [vmem:[%s2 + $0x608] sm:$0xff]
  %v4588 = vld [vmem:[%s2 + $0x610] sm:$0xff]
  %v4589 = vld [vmem:[%s2 + $0x618] sm:$0xff]
  %v4591 = vsel %vm326, %v4296, 0
  %v4594 = vsel %vm326, %v4297, 0
  %4596 = vmatprep.subr.mxu0 0.0
  %4597 = vmatpush1.msra.mxu0 0.0
  %4598 = vmatprep.subr.mxu0 0.0
  %4599 = vmatpush1.msra.mxu0 0.0
  %4600 = vmatprep.subr.mxu0 0.0
  %4601 = vmatpush1.msra.mxu0 0.0
  %4602 = vmatprep.subr.mxu0 0.0
  %4603 = vmatpush1.msra.mxu0 0.0
  %4604 = vmatprep.subr.mxu0 0.0
  %4605 = vmatpush1.msra.mxu0 0.0
  %4606 = vmatprep.subr.mxu0 0.0
  %4607 = vmatpush1.msra.mxu0 0.0
  %4608 = vmatprep.subr.mxu0 0.0
  %4609 = vmatpush1.msra.mxu0 0.0
  %4610 = vmatprep.subr.mxu0 0.0
  %4611 = vmatpush1.msra.mxu0 0.0
  %4612 = vmatprep.subr.mxu0 0.0
  %4613 = vmatpush1.msra.mxu0 0.0
  %4614 = vmatprep.subr.mxu0 0.0
  %4615 = vmatpush1.msra.mxu0 0.0
  %4616 = vmatprep.subr.mxu0 0.0
  %4617 = vmatpush1.msra.mxu0 0.0
  %4618 = vmatprep.subr.mxu0 0.0
  %4619 = vmatpush1.msra.mxu0 0.0
  %4620 = vmatprep.subr.mxu0 0.0
  %4621 = vmatpush1.msra.mxu0 %v4397
  %4622 = vmatprep.subr.mxu0 0.0
  %4623 = vmatpush1.msra.mxu0 %v4396
  %4624 = vmatprep.subr.mxu0 0.0
  %4625 = vmatpush1.msra.mxu0 %v4395
  %4626 = vmatprep.subr.mxu0 0.0
  %4627 = vmatpush1.msra.mxu0 %v4394
  %4628 = vmatprep.subr.mxu0 0.0
  %4629 = vmatpush2.msra.mxu0 0.0
  %4630 = vmatprep.subr.mxu0 0.0
  %4631 = vmatpush2.msra.mxu0 0.0
  %4632 = vmatprep.subr.mxu0 0.0
  %4633 = vmatpush2.msra.mxu0 0.0
  %4634 = vmatprep.subr.mxu0 0.0
  %4635 = vmatpush2.msra.mxu0 0.0
  %4636 = vmatprep.subr.mxu0 0.0
  %4637 = vmatpush2.msra.mxu0 0.0
  %4638 = vmatprep.subr.mxu0 0.0
  %4639 = vmatpush2.msra.mxu0 0.0
  %4640 = vmatprep.subr.mxu0 0.0
  %4641 = vmatpush2.msra.mxu0 0.0
  %4642 = vmatprep.subr.mxu0 0.0
  %4643 = vmatpush2.msra.mxu0 0.0
  %4644 = vmatprep.subr.mxu0 0.0
  %4645 = vmatpush2.msra.mxu0 0.0
  %4646 = vmatprep.subr.mxu0 0.0
  %4647 = vmatpush2.msra.mxu0 0.0
  %4648 = vmatprep.subr.mxu0 0.0
  %4649 = vmatpush2.msra.mxu0 0.0
  %4650 = vmatprep.subr.mxu0 0.0
  %4651 = vmatpush2.msra.mxu0 0.0
  %4652 = vmatprep.subr.mxu0 0.0
  %4653 = vmatpush2.msra.mxu0 0.0
  %4654 = vmatprep.subr.mxu0 0.0
  %4655 = vmatpush2.msra.mxu0 0.0
  %4656 = vmatprep.subr.mxu0 0.0
  %4657 = vmatpush2.msra.mxu0 0.0
  %4658 = vmatprep.subr.mxu0 0.0
  %4659 = vmatpush2.msra.mxu0 0.0
  %4660 = vmatprep.mubr.f32.mxu0 0.0
  %4661 = vmatmul.mubr.f32.gmra.mxu0 %v4591
  %v4662 = vpop.f32.mrf.mxu0
  %v4663 = vadd.f32 0.0, %v4662
  %v4664 = vpop.f32.mrf.mxu0
  %4665 = vmatprep.mubr.f32.mxu0 0.0
  %4666 = vmatmul.mubr.f32.gmra.mxu0 %v4594
  %v4667 = vpop.f32.mrf.mxu0
  %v4668 = vadd.f32 0.0, %v4667
  %v4669 = vpop.f32.mrf.mxu0
  %4670 = vdwg.mxu0
  %v4672 = vsel %vm326, %v4298, 0
  %v4675 = vsel %vm326, %v4299, 0
  %4677 = vmatprep.subr.mxu0 0.0
  %4678 = vmatpush1.msra.mxu0 0.0
  %4679 = vmatprep.subr.mxu0 0.0
  %4680 = vmatpush1.msra.mxu0 0.0
  %4681 = vmatprep.subr.mxu0 0.0
  %4682 = vmatpush1.msra.mxu0 0.0
  %4683 = vmatprep.subr.mxu0 0.0
  %4684 = vmatpush1.msra.mxu0 0.0
  %4685 = vmatprep.subr.mxu0 0.0
  %4686 = vmatpush1.msra.mxu0 0.0
  %4687 = vmatprep.subr.mxu0 0.0
  %4688 = vmatpush1.msra.mxu0 0.0
  %4689 = vmatprep.subr.mxu0 0.0
  %4690 = vmatpush1.msra.mxu0 0.0
  %4691 = vmatprep.subr.mxu0 0.0
  %4692 = vmatpush1.msra.mxu0 0.0
  %4693 = vmatprep.subr.mxu0 0.0
  %4694 = vmatpush1.msra.mxu0 0.0
  %4695 = vmatprep.subr.mxu0 0.0
  %4696 = vmatpush1.msra.mxu0 0.0
  %4697 = vmatprep.subr.mxu0 0.0
  %4698 = vmatpush1.msra.mxu0 0.0
  %4699 = vmatprep.subr.mxu0 0.0
  %4700 = vmatpush1.msra.mxu0 0.0
  %4701 = vmatprep.subr.mxu0 0.0
  %4702 = vmatpush1.msra.mxu0 %v4401
  %4703 = vmatprep.subr.mxu0 0.0
  %4704 = vmatpush1.msra.mxu0 %v4400
  %4705 = vmatprep.subr.mxu0 0.0
  %4706 = vmatpush1.msra.mxu0 %v4399
  %4707 = vmatprep.subr.mxu0 0.0
  %4708 = vmatpush1.msra.mxu0 %v4398
  %4709 = vmatprep.subr.mxu0 0.0
  %4710 = vmatpush2.msra.mxu0 0.0
  %4711 = vmatprep.subr.mxu0 0.0
  %4712 = vmatpush2.msra.mxu0 0.0
  %4713 = vmatprep.subr.mxu0 0.0
  %4714 = vmatpush2.msra.mxu0 0.0
  %4715 = vmatprep.subr.mxu0 0.0
  %4716 = vmatpush2.msra.mxu0 0.0
  %4717 = vmatprep.subr.mxu0 0.0
  %4718 = vmatpush2.msra.mxu0 0.0
  %4719 = vmatprep.subr.mxu0 0.0
  %4720 = vmatpush2.msra.mxu0 0.0
  %4721 = vmatprep.subr.mxu0 0.0
  %4722 = vmatpush2.msra.mxu0 0.0
  %4723 = vmatprep.subr.mxu0 0.0
  %4724 = vmatpush2.msra.mxu0 0.0
  %4725 = vmatprep.subr.mxu0 0.0
  %4726 = vmatpush2.msra.mxu0 0.0
  %4727 = vmatprep.subr.mxu0 0.0
  %4728 = vmatpush2.msra.mxu0 0.0
  %4729 = vmatprep.subr.mxu0 0.0
  %4730 = vmatpush2.msra.mxu0 0.0
  %4731 = vmatprep.subr.mxu0 0.0
  %4732 = vmatpush2.msra.mxu0 0.0
  %4733 = vmatprep.subr.mxu0 0.0
  %4734 = vmatpush2.msra.mxu0 0.0
  %4735 = vmatprep.subr.mxu0 0.0
  %4736 = vmatpush2.msra.mxu0 0.0
  %4737 = vmatprep.subr.mxu0 0.0
  %4738 = vmatpush2.msra.mxu0 0.0
  %4739 = vmatprep.subr.mxu0 0.0
  %4740 = vmatpush2.msra.mxu0 0.0
  %4741 = vmatprep.mubr.f32.mxu0 0.0
  %4742 = vmatmul.mubr.f32.gmra.mxu0 %v4672
  %v4743 = vpop.f32.mrf.mxu0
  %v4744 = vadd.f32 0.0, %v4743
  %v4745 = vpop.f32.mrf.mxu0
  %4746 = vmatprep.mubr.f32.mxu0 0.0
  %4747 = vmatmul.mubr.f32.gmra.mxu0 %v4675
  %v4748 = vpop.f32.mrf.mxu0
  %v4749 = vadd.f32 0.0, %v4748
  %v4750 = vpop.f32.mrf.mxu0
  %4751 = vdwg.mxu0
  %v4753 = vsel %vm326, %v4300, 0
  %v4756 = vsel %vm326, %v4301, 0
  %4758 = vmatprep.subr.mxu0 0.0
  %4759 = vmatpush1.msra.mxu0 0.0
  %4760 = vmatprep.subr.mxu0 0.0
  %4761 = vmatpush1.msra.mxu0 0.0
  %4762 = vmatprep.subr.mxu0 0.0
  %4763 = vmatpush1.msra.mxu0 0.0
  %4764 = vmatprep.subr.mxu0 0.0
  %4765 = vmatpush1.msra.mxu0 0.0
  %4766 = vmatprep.subr.mxu0 0.0
  %4767 = vmatpush1.msra.mxu0 0.0
  %4768 = vmatprep.subr.mxu0 0.0
  %4769 = vmatpush1.msra.mxu0 0.0
  %4770 = vmatprep.subr.mxu0 0.0
  %4771 = vmatpush1.msra.mxu0 0.0
  %4772 = vmatprep.subr.mxu0 0.0
  %4773 = vmatpush1.msra.mxu0 0.0
  %4774 = vmatprep.subr.mxu0 0.0
  %4775 = vmatpush1.msra.mxu0 0.0
  %4776 = vmatprep.subr.mxu0 0.0
  %4777 = vmatpush1.msra.mxu0 0.0
  %4778 = vmatprep.subr.mxu0 0.0
  %4779 = vmatpush1.msra.mxu0 0.0
  %4780 = vmatprep.subr.mxu0 0.0
  %4781 = vmatpush1.msra.mxu0 0.0
  %4782 = vmatprep.subr.mxu0 0.0
  %4783 = vmatpush1.msra.mxu0 %v4405
  %4784 = vmatprep.subr.mxu0 0.0
  %4785 = vmatpush1.msra.mxu0 %v4404
  %4786 = vmatprep.subr.mxu0 0.0
  %4787 = vmatpush1.msra.mxu0 %v4403
  %4788 = vmatprep.subr.mxu0 0.0
  %4789 = vmatpush1.msra.mxu0 %v4402
  %4790 = vmatprep.subr.mxu0 0.0
  %4791 = vmatpush2.msra.mxu0 0.0
  %4792 = vmatprep.subr.mxu0 0.0
  %4793 = vmatpush2.msra.mxu0 0.0
  %4794 = vmatprep.subr.mxu0 0.0
  %4795 = vmatpush2.msra.mxu0 0.0
  %4796 = vmatprep.subr.mxu0 0.0
  %4797 = vmatpush2.msra.mxu0 0.0
  %4798 = vmatprep.subr.mxu0 0.0
  %4799 = vmatpush2.msra.mxu0 0.0
  %4800 = vmatprep.subr.mxu0 0.0
  %4801 = vmatpush2.msra.mxu0 0.0
  %4802 = vmatprep.subr.mxu0 0.0
  %4803 = vmatpush2.msra.mxu0 0.0
  %4804 = vmatprep.subr.mxu0 0.0
  %4805 = vmatpush2.msra.mxu0 0.0
  %4806 = vmatprep.subr.mxu0 0.0
  %4807 = vmatpush2.msra.mxu0 0.0
  %4808 = vmatprep.subr.mxu0 0.0
  %4809 = vmatpush2.msra.mxu0 0.0
  %4810 = vmatprep.subr.mxu0 0.0
  %4811 = vmatpush2.msra.mxu0 0.0
  %4812 = vmatprep.subr.mxu0 0.0
  %4813 = vmatpush2.msra.mxu0 0.0
  %4814 = vmatprep.subr.mxu0 0.0
  %4815 = vmatpush2.msra.mxu0 0.0
  %4816 = vmatprep.subr.mxu0 0.0
  %4817 = vmatpush2.msra.mxu0 0.0
  %4818 = vmatprep.subr.mxu0 0.0
  %4819 = vmatpush2.msra.mxu0 0.0
  %4820 = vmatprep.subr.mxu0 0.0
  %4821 = vmatpush2.msra.mxu0 0.0
  %4822 = vmatprep.mubr.f32.mxu0 0.0
  %4823 = vmatmul.mubr.f32.gmra.mxu0 %v4753
  %v4824 = vpop.f32.mrf.mxu0
  %v4825 = vadd.f32 0.0, %v4824
  %v4826 = vpop.f32.mrf.mxu0
  %4827 = vmatprep.mubr.f32.mxu0 0.0
  %4828 = vmatmul.mubr.f32.gmra.mxu0 %v4756
  %v4829 = vpop.f32.mrf.mxu0
  %v4830 = vadd.f32 0.0, %v4829
  %v4831 = vpop.f32.mrf.mxu0
  %4832 = vdwg.mxu0
  %v4834 = vsel %vm326, %v4302, 0
  %v4837 = vsel %vm326, %v4303, 0
  %4839 = vmatprep.subr.mxu0 0.0
  %4840 = vmatpush1.msra.mxu0 0.0
  %4841 = vmatprep.subr.mxu0 0.0
  %4842 = vmatpush1.msra.mxu0 0.0
  %4843 = vmatprep.subr.mxu0 0.0
  %4844 = vmatpush1.msra.mxu0 0.0
  %4845 = vmatprep.subr.mxu0 0.0
  %4846 = vmatpush1.msra.mxu0 0.0
  %4847 = vmatprep.subr.mxu0 0.0
  %4848 = vmatpush1.msra.mxu0 0.0
  %4849 = vmatprep.subr.mxu0 0.0
  %4850 = vmatpush1.msra.mxu0 0.0
  %4851 = vmatprep.subr.mxu0 0.0
  %4852 = vmatpush1.msra.mxu0 0.0
  %4853 = vmatprep.subr.mxu0 0.0
  %4854 = vmatpush1.msra.mxu0 0.0
  %4855 = vmatprep.subr.mxu0 0.0
  %4856 = vmatpush1.msra.mxu0 0.0
  %4857 = vmatprep.subr.mxu0 0.0
  %4858 = vmatpush1.msra.mxu0 0.0
  %4859 = vmatprep.subr.mxu0 0.0
  %4860 = vmatpush1.msra.mxu0 0.0
  %4861 = vmatprep.subr.mxu0 0.0
  %4862 = vmatpush1.msra.mxu0 0.0
  %4863 = vmatprep.subr.mxu0 0.0
  %4864 = vmatpush1.msra.mxu0 %v4409
  %4865 = vmatprep.subr.mxu0 0.0
  %4866 = vmatpush1.msra.mxu0 %v4408
  %4867 = vmatprep.subr.mxu0 0.0
  %4868 = vmatpush1.msra.mxu0 %v4407
  %4869 = vmatprep.subr.mxu0 0.0
  %4870 = vmatpush1.msra.mxu0 %v4406
  %4871 = vmatprep.subr.mxu0 0.0
  %4872 = vmatpush2.msra.mxu0 0.0
  %4873 = vmatprep.subr.mxu0 0.0
  %4874 = vmatpush2.msra.mxu0 0.0
  %4875 = vmatprep.subr.mxu0 0.0
  %4876 = vmatpush2.msra.mxu0 0.0
  %4877 = vmatprep.subr.mxu0 0.0
  %4878 = vmatpush2.msra.mxu0 0.0
  %4879 = vmatprep.subr.mxu0 0.0
  %4880 = vmatpush2.msra.mxu0 0.0
  %4881 = vmatprep.subr.mxu0 0.0
  %4882 = vmatpush2.msra.mxu0 0.0
  %4883 = vmatprep.subr.mxu0 0.0
  %4884 = vmatpush2.msra.mxu0 0.0
  %4885 = vmatprep.subr.mxu0 0.0
  %4886 = vmatpush2.msra.mxu0 0.0
  %4887 = vmatprep.subr.mxu0 0.0
  %4888 = vmatpush2.msra.mxu0 0.0
  %4889 = vmatprep.subr.mxu0 0.0
  %4890 = vmatpush2.msra.mxu0 0.0
  %4891 = vmatprep.subr.mxu0 0.0
  %4892 = vmatpush2.msra.mxu0 0.0
  %4893 = vmatprep.subr.mxu0 0.0
  %4894 = vmatpush2.msra.mxu0 0.0
  %4895 = vmatprep.subr.mxu0 0.0
  %4896 = vmatpush2.msra.mxu0 0.0
  %4897 = vmatprep.subr.mxu0 0.0
  %4898 = vmatpush2.msra.mxu0 0.0
  %4899 = vmatprep.subr.mxu0 0.0
  %4900 = vmatpush2.msra.mxu0 0.0
  %4901 = vmatprep.subr.mxu0 0.0
  %4902 = vmatpush2.msra.mxu0 0.0
  %4903 = vmatprep.mubr.f32.mxu0 0.0
  %4904 = vmatmul.mubr.f32.gmra.mxu0 %v4834
  %v4905 = vpop.f32.mrf.mxu0
  %v4906 = vadd.f32 0.0, %v4905
  %v4907 = vpop.f32.mrf.mxu0
  %4908 = vmatprep.mubr.f32.mxu0 0.0
  %4909 = vmatmul.mubr.f32.gmra.mxu0 %v4837
  %v4910 = vpop.f32.mrf.mxu0
  %v4911 = vadd.f32 0.0, %v4910
  %v4912 = vpop.f32.mrf.mxu0
  %4913 = vdwg.mxu0
  %v4915 = vsel %vm326, %v4304, 0
  %v4918 = vsel %vm326, %v4305, 0
  %4920 = vmatprep.subr.mxu0 0.0
  %4921 = vmatpush1.msra.mxu0 0.0
  %4922 = vmatprep.subr.mxu0 0.0
  %4923 = vmatpush1.msra.mxu0 0.0
  %4924 = vmatprep.subr.mxu0 0.0
  %4925 = vmatpush1.msra.mxu0 0.0
  %4926 = vmatprep.subr.mxu0 0.0
  %4927 = vmatpush1.msra.mxu0 0.0
  %4928 = vmatprep.subr.mxu0 0.0
  %4929 = vmatpush1.msra.mxu0 0.0
  %4930 = vmatprep.subr.mxu0 0.0
  %4931 = vmatpush1.msra.mxu0 0.0
  %4932 = vmatprep.subr.mxu0 0.0
  %4933 = vmatpush1.msra.mxu0 0.0
  %4934 = vmatprep.subr.mxu0 0.0
  %4935 = vmatpush1.msra.mxu0 0.0
  %4936 = vmatprep.subr.mxu0 0.0
  %4937 = vmatpush1.msra.mxu0 0.0
  %4938 = vmatprep.subr.mxu0 0.0
  %4939 = vmatpush1.msra.mxu0 0.0
  %4940 = vmatprep.subr.mxu0 0.0
  %4941 = vmatpush1.msra.mxu0 0.0
  %4942 = vmatprep.subr.mxu0 0.0
  %4943 = vmatpush1.msra.mxu0 0.0
  %4944 = vmatprep.subr.mxu0 0.0
  %4945 = vmatpush1.msra.mxu0 %v4413
  %4946 = vmatprep.subr.mxu0 0.0
  %4947 = vmatpush1.msra.mxu0 %v4412
  %4948 = vmatprep.subr.mxu0 0.0
  %4949 = vmatpush1.msra.mxu0 %v4411
  %4950 = vmatprep.subr.mxu0 0.0
  %4951 = vmatpush1.msra.mxu0 %v4410
  %4952 = vmatprep.subr.mxu0 0.0
  %4953 = vmatpush2.msra.mxu0 0.0
  %4954 = vmatprep.subr.mxu0 0.0
  %4955 = vmatpush2.msra.mxu0 0.0
  %4956 = vmatprep.subr.mxu0 0.0
  %4957 = vmatpush2.msra.mxu0 0.0
  %4958 = vmatprep.subr.mxu0 0.0
  %4959 = vmatpush2.msra.mxu0 0.0
  %4960 = vmatprep.subr.mxu0 0.0
  %4961 = vmatpush2.msra.mxu0 0.0
  %4962 = vmatprep.subr.mxu0 0.0
  %4963 = vmatpush2.msra.mxu0 0.0
  %4964 = vmatprep.subr.mxu0 0.0
  %4965 = vmatpush2.msra.mxu0 0.0
  %4966 = vmatprep.subr.mxu0 0.0
  %4967 = vmatpush2.msra.mxu0 0.0
  %4968 = vmatprep.subr.mxu0 0.0
  %4969 = vmatpush2.msra.mxu0 0.0
  %4970 = vmatprep.subr.mxu0 0.0
  %4971 = vmatpush2.msra.mxu0 0.0
  %4972 = vmatprep.subr.mxu0 0.0
  %4973 = vmatpush2.msra.mxu0 0.0
  %4974 = vmatprep.subr.mxu0 0.0
  %4975 = vmatpush2.msra.mxu0 0.0
  %4976 = vmatprep.subr.mxu0 0.0
  %4977 = vmatpush2.msra.mxu0 0.0
  %4978 = vmatprep.subr.mxu0 0.0
  %4979 = vmatpush2.msra.mxu0 0.0
  %4980 = vmatprep.subr.mxu0 0.0
  %4981 = vmatpush2.msra.mxu0 0.0
  %4982 = vmatprep.subr.mxu0 0.0
  %4983 = vmatpush2.msra.mxu0 0.0
  %4984 = vmatprep.mubr.f32.mxu0 0.0
  %4985 = vmatmul.mubr.f32.gmra.mxu0 %v4915
  %v4986 = vpop.f32.mrf.mxu0
  %v4987 = vadd.f32 0.0, %v4986
  %v4988 = vpop.f32.mrf.mxu0
  %4989 = vmatprep.mubr.f32.mxu0 0.0
  %4990 = vmatmul.mubr.f32.gmra.mxu0 %v4918
  %v4991 = vpop.f32.mrf.mxu0
  %v4992 = vadd.f32 0.0, %v4991
  %v4993 = vpop.f32.mrf.mxu0
  %4994 = vdwg.mxu0
  %v4996 = vsel %vm326, %v4306, 0
  %v4999 = vsel %vm326, %v4307, 0
  %5001 = vmatprep.subr.mxu0 0.0
  %5002 = vmatpush1.msra.mxu0 0.0
  %5003 = vmatprep.subr.mxu0 0.0
  %5004 = vmatpush1.msra.mxu0 0.0
  %5005 = vmatprep.subr.mxu0 0.0
  %5006 = vmatpush1.msra.mxu0 0.0
  %5007 = vmatprep.subr.mxu0 0.0
  %5008 = vmatpush1.msra.mxu0 0.0
  %5009 = vmatprep.subr.mxu0 0.0
  %5010 = vmatpush1.msra.mxu0 0.0
  %5011 = vmatprep.subr.mxu0 0.0
  %5012 = vmatpush1.msra.mxu0 0.0
  %5013 = vmatprep.subr.mxu0 0.0
  %5014 = vmatpush1.msra.mxu0 0.0
  %5015 = vmatprep.subr.mxu0 0.0
  %5016 = vmatpush1.msra.mxu0 0.0
  %5017 = vmatprep.subr.mxu0 0.0
  %5018 = vmatpush1.msra.mxu0 0.0
  %5019 = vmatprep.subr.mxu0 0.0
  %5020 = vmatpush1.msra.mxu0 0.0
  %5021 = vmatprep.subr.mxu0 0.0
  %5022 = vmatpush1.msra.mxu0 0.0
  %5023 = vmatprep.subr.mxu0 0.0
  %5024 = vmatpush1.msra.mxu0 0.0
  %5025 = vmatprep.subr.mxu0 0.0
  %5026 = vmatpush1.msra.mxu0 %v4417
  %5027 = vmatprep.subr.mxu0 0.0
  %5028 = vmatpush1.msra.mxu0 %v4416
  %5029 = vmatprep.subr.mxu0 0.0
  %5030 = vmatpush1.msra.mxu0 %v4415
  %5031 = vmatprep.subr.mxu0 0.0
  %5032 = vmatpush1.msra.mxu0 %v4414
  %5033 = vmatprep.subr.mxu0 0.0
  %5034 = vmatpush2.msra.mxu0 0.0
  %5035 = vmatprep.subr.mxu0 0.0
  %5036 = vmatpush2.msra.mxu0 0.0
  %5037 = vmatprep.subr.mxu0 0.0
  %5038 = vmatpush2.msra.mxu0 0.0
  %5039 = vmatprep.subr.mxu0 0.0
  %5040 = vmatpush2.msra.mxu0 0.0
  %5041 = vmatprep.subr.mxu0 0.0
  %5042 = vmatpush2.msra.mxu0 0.0
  %5043 = vmatprep.subr.mxu0 0.0
  %5044 = vmatpush2.msra.mxu0 0.0
  %5045 = vmatprep.subr.mxu0 0.0
  %5046 = vmatpush2.msra.mxu0 0.0
  %5047 = vmatprep.subr.mxu0 0.0
  %5048 = vmatpush2.msra.mxu0 0.0
  %5049 = vmatprep.subr.mxu0 0.0
  %5050 = vmatpush2.msra.mxu0 0.0
  %5051 = vmatprep.subr.mxu0 0.0
  %5052 = vmatpush2.msra.mxu0 0.0
  %5053 = vmatprep.subr.mxu0 0.0
  %5054 = vmatpush2.msra.mxu0 0.0
  %5055 = vmatprep.subr.mxu0 0.0
  %5056 = vmatpush2.msra.mxu0 0.0
  %5057 = vmatprep.subr.mxu0 0.0
  %5058 = vmatpush2.msra.mxu0 0.0
  %5059 = vmatprep.subr.mxu0 0.0
  %5060 = vmatpush2.msra.mxu0 0.0
  %5061 = vmatprep.subr.mxu0 0.0
  %5062 = vmatpush2.msra.mxu0 0.0
  %5063 = vmatprep.subr.mxu0 0.0
  %5064 = vmatpush2.msra.mxu0 0.0
  %5065 = vmatprep.mubr.f32.mxu0 0.0
  %5066 = vmatmul.mubr.f32.gmra.mxu0 %v4996
  %v5067 = vpop.f32.mrf.mxu0
  %v5068 = vadd.f32 0.0, %v5067
  %v5069 = vpop.f32.mrf.mxu0
  %5070 = vmatprep.mubr.f32.mxu0 0.0
  %5071 = vmatmul.mubr.f32.gmra.mxu0 %v4999
  %v5072 = vpop.f32.mrf.mxu0
  %v5073 = vadd.f32 0.0, %v5072
  %v5074 = vpop.f32.mrf.mxu0
  %5075 = vdwg.mxu0
  %v5077 = vsel %vm326, %v4308, 0
  %v5080 = vsel %vm326, %v4309, 0
  %5082 = vmatprep.subr.mxu0 0.0
  %5083 = vmatpush1.msra.mxu0 0.0
  %5084 = vmatprep.subr.mxu0 0.0
  %5085 = vmatpush1.msra.mxu0 0.0
  %5086 = vmatprep.subr.mxu0 0.0
  %5087 = vmatpush1.msra.mxu0 0.0
  %5088 = vmatprep.subr.mxu0 0.0
  %5089 = vmatpush1.msra.mxu0 0.0
  %5090 = vmatprep.subr.mxu0 0.0
  %5091 = vmatpush1.msra.mxu0 0.0
  %5092 = vmatprep.subr.mxu0 0.0
  %5093 = vmatpush1.msra.mxu0 0.0
  %5094 = vmatprep.subr.mxu0 0.0
  %5095 = vmatpush1.msra.mxu0 0.0
  %5096 = vmatprep.subr.mxu0 0.0
  %5097 = vmatpush1.msra.mxu0 0.0
  %5098 = vmatprep.subr.mxu0 0.0
  %5099 = vmatpush1.msra.mxu0 0.0
  %5100 = vmatprep.subr.mxu0 0.0
  %5101 = vmatpush1.msra.mxu0 0.0
  %5102 = vmatprep.subr.mxu0 0.0
  %5103 = vmatpush1.msra.mxu0 0.0
  %5104 = vmatprep.subr.mxu0 0.0
  %5105 = vmatpush1.msra.mxu0 0.0
  %5106 = vmatprep.subr.mxu0 0.0
  %5107 = vmatpush1.msra.mxu0 %v4421
  %5108 = vmatprep.subr.mxu0 0.0
  %5109 = vmatpush1.msra.mxu0 %v4420
  %5110 = vmatprep.subr.mxu0 0.0
  %5111 = vmatpush1.msra.mxu0 %v4419
  %5112 = vmatprep.subr.mxu0 0.0
  %5113 = vmatpush1.msra.mxu0 %v4418
  %5114 = vmatprep.subr.mxu0 0.0
  %5115 = vmatpush2.msra.mxu0 0.0
  %5116 = vmatprep.subr.mxu0 0.0
  %5117 = vmatpush2.msra.mxu0 0.0
  %5118 = vmatprep.subr.mxu0 0.0
  %5119 = vmatpush2.msra.mxu0 0.0
  %5120 = vmatprep.subr.mxu0 0.0
  %5121 = vmatpush2.msra.mxu0 0.0
  %5122 = vmatprep.subr.mxu0 0.0
  %5123 = vmatpush2.msra.mxu0 0.0
  %5124 = vmatprep.subr.mxu0 0.0
  %5125 = vmatpush2.msra.mxu0 0.0
  %5126 = vmatprep.subr.mxu0 0.0
  %5127 = vmatpush2.msra.mxu0 0.0
  %5128 = vmatprep.subr.mxu0 0.0
  %5129 = vmatpush2.msra.mxu0 0.0
  %5130 = vmatprep.subr.mxu0 0.0
  %5131 = vmatpush2.msra.mxu0 0.0
  %5132 = vmatprep.subr.mxu0 0.0
  %5133 = vmatpush2.msra.mxu0 0.0
  %5134 = vmatprep.subr.mxu0 0.0
  %5135 = vmatpush2.msra.mxu0 0.0
  %5136 = vmatprep.subr.mxu0 0.0
  %5137 = vmatpush2.msra.mxu0 0.0
  %5138 = vmatprep.subr.mxu0 0.0
  %5139 = vmatpush2.msra.mxu0 0.0
  %5140 = vmatprep.subr.mxu0 0.0
  %5141 = vmatpush2.msra.mxu0 0.0
  %5142 = vmatprep.subr.mxu0 0.0
  %5143 = vmatpush2.msra.mxu0 0.0
  %5144 = vmatprep.subr.mxu0 0.0
  %5145 = vmatpush2.msra.mxu0 0.0
  %5146 = vmatprep.mubr.f32.mxu0 0.0
  %5147 = vmatmul.mubr.f32.gmra.mxu0 %v5077
  %v5148 = vpop.f32.mrf.mxu0
  %v5149 = vadd.f32 0.0, %v5148
  %v5150 = vpop.f32.mrf.mxu0
  %5151 = vmatprep.mubr.f32.mxu0 0.0
  %5152 = vmatmul.mubr.f32.gmra.mxu0 %v5080
  %v5153 = vpop.f32.mrf.mxu0
  %v5154 = vadd.f32 0.0, %v5153
  %v5155 = vpop.f32.mrf.mxu0
  %5156 = vdwg.mxu0
  %v5158 = vsel %vm326, %v4310, 0
  %v5161 = vsel %vm326, %v4311, 0
  %5163 = vmatprep.subr.mxu0 0.0
  %5164 = vmatpush1.msra.mxu0 0.0
  %5165 = vmatprep.subr.mxu0 0.0
  %5166 = vmatpush1.msra.mxu0 0.0
  %5167 = vmatprep.subr.mxu0 0.0
  %5168 = vmatpush1.msra.mxu0 0.0
  %5169 = vmatprep.subr.mxu0 0.0
  %5170 = vmatpush1.msra.mxu0 0.0
  %5171 = vmatprep.subr.mxu0 0.0
  %5172 = vmatpush1.msra.mxu0 0.0
  %5173 = vmatprep.subr.mxu0 0.0
  %5174 = vmatpush1.msra.mxu0 0.0
  %5175 = vmatprep.subr.mxu0 0.0
  %5176 = vmatpush1.msra.mxu0 0.0
  %5177 = vmatprep.subr.mxu0 0.0
  %5178 = vmatpush1.msra.mxu0 0.0
  %5179 = vmatprep.subr.mxu0 0.0
  %5180 = vmatpush1.msra.mxu0 0.0
  %5181 = vmatprep.subr.mxu0 0.0
  %5182 = vmatpush1.msra.mxu0 0.0
  %5183 = vmatprep.subr.mxu0 0.0
  %5184 = vmatpush1.msra.mxu0 0.0
  %5185 = vmatprep.subr.mxu0 0.0
  %5186 = vmatpush1.msra.mxu0 0.0
  %5187 = vmatprep.subr.mxu0 0.0
  %5188 = vmatpush1.msra.mxu0 %v4425
  %5189 = vmatprep.subr.mxu0 0.0
  %5190 = vmatpush1.msra.mxu0 %v4424
  %5191 = vmatprep.subr.mxu0 0.0
  %5192 = vmatpush1.msra.mxu0 %v4423
  %5193 = vmatprep.subr.mxu0 0.0
  %5194 = vmatpush1.msra.mxu0 %v4422
  %5195 = vmatprep.subr.mxu0 0.0
  %5196 = vmatpush2.msra.mxu0 0.0
  %5197 = vmatprep.subr.mxu0 0.0
  %5198 = vmatpush2.msra.mxu0 0.0
  %5199 = vmatprep.subr.mxu0 0.0
  %5200 = vmatpush2.msra.mxu0 0.0
  %5201 = vmatprep.subr.mxu0 0.0
  %5202 = vmatpush2.msra.mxu0 0.0
  %5203 = vmatprep.subr.mxu0 0.0
  %5204 = vmatpush2.msra.mxu0 0.0
  %5205 = vmatprep.subr.mxu0 0.0
  %5206 = vmatpush2.msra.mxu0 0.0
  %5207 = vmatprep.subr.mxu0 0.0
  %5208 = vmatpush2.msra.mxu0 0.0
  %5209 = vmatprep.subr.mxu0 0.0
  %5210 = vmatpush2.msra.mxu0 0.0
  %5211 = vmatprep.subr.mxu0 0.0
  %5212 = vmatpush2.msra.mxu0 0.0
  %5213 = vmatprep.subr.mxu0 0.0
  %5214 = vmatpush2.msra.mxu0 0.0
  %5215 = vmatprep.subr.mxu0 0.0
  %5216 = vmatpush2.msra.mxu0 0.0
  %5217 = vmatprep.subr.mxu0 0.0
  %5218 = vmatpush2.msra.mxu0 0.0
  %5219 = vmatprep.subr.mxu0 0.0
  %5220 = vmatpush2.msra.mxu0 0.0
  %5221 = vmatprep.subr.mxu0 0.0
  %5222 = vmatpush2.msra.mxu0 0.0
  %5223 = vmatprep.subr.mxu0 0.0
  %5224 = vmatpush2.msra.mxu0 0.0
  %5225 = vmatprep.subr.mxu0 0.0
  %5226 = vmatpush2.msra.mxu0 0.0
  %5227 = vmatprep.mubr.f32.mxu0 0.0
  %5228 = vmatmul.mubr.f32.gmra.mxu0 %v5158
  %v5229 = vpop.f32.mrf.mxu0
  %v5230 = vadd.f32 0.0, %v5229
  %v5231 = vpop.f32.mrf.mxu0
  %5232 = vmatprep.mubr.f32.mxu0 0.0
  %5233 = vmatmul.mubr.f32.gmra.mxu0 %v5161
  %v5234 = vpop.f32.mrf.mxu0
  %v5235 = vadd.f32 0.0, %v5234
  %v5236 = vpop.f32.mrf.mxu0
  %5237 = vdwg.mxu0
  %v5239 = vsel %vm326, %v4312, 0
  %v5242 = vsel %vm326, %v4313, 0
  %5244 = vmatprep.subr.mxu0 0.0
  %5245 = vmatpush1.msra.mxu0 0.0
  %5246 = vmatprep.subr.mxu0 0.0
  %5247 = vmatpush1.msra.mxu0 0.0
  %5248 = vmatprep.subr.mxu0 0.0
  %5249 = vmatpush1.msra.mxu0 0.0
  %5250 = vmatprep.subr.mxu0 0.0
  %5251 = vmatpush1.msra.mxu0 0.0
  %5252 = vmatprep.subr.mxu0 0.0
  %5253 = vmatpush1.msra.mxu0 0.0
  %5254 = vmatprep.subr.mxu0 0.0
  %5255 = vmatpush1.msra.mxu0 0.0
  %5256 = vmatprep.subr.mxu0 0.0
  %5257 = vmatpush1.msra.mxu0 0.0
  %5258 = vmatprep.subr.mxu0 0.0
  %5259 = vmatpush1.msra.mxu0 0.0
  %5260 = vmatprep.subr.mxu0 0.0
  %5261 = vmatpush1.msra.mxu0 0.0
  %5262 = vmatprep.subr.mxu0 0.0
  %5263 = vmatpush1.msra.mxu0 0.0
  %5264 = vmatprep.subr.mxu0 0.0
  %5265 = vmatpush1.msra.mxu0 0.0
  %5266 = vmatprep.subr.mxu0 0.0
  %5267 = vmatpush1.msra.mxu0 0.0
  %5268 = vmatprep.subr.mxu0 0.0
  %5269 = vmatpush1.msra.mxu0 %v4429
  %5270 = vmatprep.subr.mxu0 0.0
  %5271 = vmatpush1.msra.mxu0 %v4428
  %5272 = vmatprep.subr.mxu0 0.0
  %5273 = vmatpush1.msra.mxu0 %v4427
  %5274 = vmatprep.subr.mxu0 0.0
  %5275 = vmatpush1.msra.mxu0 %v4426
  %5276 = vmatprep.subr.mxu0 0.0
  %5277 = vmatpush2.msra.mxu0 0.0
  %5278 = vmatprep.subr.mxu0 0.0
  %5279 = vmatpush2.msra.mxu0 0.0
  %5280 = vmatprep.subr.mxu0 0.0
  %5281 = vmatpush2.msra.mxu0 0.0
  %5282 = vmatprep.subr.mxu0 0.0
  %5283 = vmatpush2.msra.mxu0 0.0
  %5284 = vmatprep.subr.mxu0 0.0
  %5285 = vmatpush2.msra.mxu0 0.0
  %5286 = vmatprep.subr.mxu0 0.0
  %5287 = vmatpush2.msra.mxu0 0.0
  %5288 = vmatprep.subr.mxu0 0.0
  %5289 = vmatpush2.msra.mxu0 0.0
  %5290 = vmatprep.subr.mxu0 0.0
  %5291 = vmatpush2.msra.mxu0 0.0
  %5292 = vmatprep.subr.mxu0 0.0
  %5293 = vmatpush2.msra.mxu0 0.0
  %5294 = vmatprep.subr.mxu0 0.0
  %5295 = vmatpush2.msra.mxu0 0.0
  %5296 = vmatprep.subr.mxu0 0.0
  %5297 = vmatpush2.msra.mxu0 0.0
  %5298 = vmatprep.subr.mxu0 0.0
  %5299 = vmatpush2.msra.mxu0 0.0
  %5300 = vmatprep.subr.mxu0 0.0
  %5301 = vmatpush2.msra.mxu0 0.0
  %5302 = vmatprep.subr.mxu0 0.0
  %5303 = vmatpush2.msra.mxu0 0.0
  %5304 = vmatprep.subr.mxu0 0.0
  %5305 = vmatpush2.msra.mxu0 0.0
  %5306 = vmatprep.subr.mxu0 0.0
  %5307 = vmatpush2.msra.mxu0 0.0
  %5308 = vmatprep.mubr.f32.mxu0 0.0
  %5309 = vmatmul.mubr.f32.gmra.mxu0 %v5239
  %v5310 = vpop.f32.mrf.mxu0
  %v5311 = vadd.f32 0.0, %v5310
  %v5312 = vpop.f32.mrf.mxu0
  %5313 = vmatprep.mubr.f32.mxu0 0.0
  %5314 = vmatmul.mubr.f32.gmra.mxu0 %v5242
  %v5315 = vpop.f32.mrf.mxu0
  %v5316 = vadd.f32 0.0, %v5315
  %v5317 = vpop.f32.mrf.mxu0
  %5318 = vdwg.mxu0
  %v5320 = vsel %vm326, %v4314, 0
  %v5323 = vsel %vm326, %v4315, 0
  %5325 = vmatprep.subr.mxu0 0.0
  %5326 = vmatpush1.msra.mxu0 0.0
  %5327 = vmatprep.subr.mxu0 0.0
  %5328 = vmatpush1.msra.mxu0 0.0
  %5329 = vmatprep.subr.mxu0 0.0
  %5330 = vmatpush1.msra.mxu0 0.0
  %5331 = vmatprep.subr.mxu0 0.0
  %5332 = vmatpush1.msra.mxu0 0.0
  %5333 = vmatprep.subr.mxu0 0.0
  %5334 = vmatpush1.msra.mxu0 0.0
  %5335 = vmatprep.subr.mxu0 0.0
  %5336 = vmatpush1.msra.mxu0 0.0
  %5337 = vmatprep.subr.mxu0 0.0
  %5338 = vmatpush1.msra.mxu0 0.0
  %5339 = vmatprep.subr.mxu0 0.0
  %5340 = vmatpush1.msra.mxu0 0.0
  %5341 = vmatprep.subr.mxu0 0.0
  %5342 = vmatpush1.msra.mxu0 0.0
  %5343 = vmatprep.subr.mxu0 0.0
  %5344 = vmatpush1.msra.mxu0 0.0
  %5345 = vmatprep.subr.mxu0 0.0
  %5346 = vmatpush1.msra.mxu0 0.0
  %5347 = vmatprep.subr.mxu0 0.0
  %5348 = vmatpush1.msra.mxu0 0.0
  %5349 = vmatprep.subr.mxu0 0.0
  %5350 = vmatpush1.msra.mxu0 %v4433
  %5351 = vmatprep.subr.mxu0 0.0
  %5352 = vmatpush1.msra.mxu0 %v4432
  %5353 = vmatprep.subr.mxu0 0.0
  %5354 = vmatpush1.msra.mxu0 %v4431
  %5355 = vmatprep.subr.mxu0 0.0
  %5356 = vmatpush1.msra.mxu0 %v4430
  %5357 = vmatprep.subr.mxu0 0.0
  %5358 = vmatpush2.msra.mxu0 0.0
  %5359 = vmatprep.subr.mxu0 0.0
  %5360 = vmatpush2.msra.mxu0 0.0
  %5361 = vmatprep.subr.mxu0 0.0
  %5362 = vmatpush2.msra.mxu0 0.0
  %5363 = vmatprep.subr.mxu0 0.0
  %5364 = vmatpush2.msra.mxu0 0.0
  %5365 = vmatprep.subr.mxu0 0.0
  %5366 = vmatpush2.msra.mxu0 0.0
  %5367 = vmatprep.subr.mxu0 0.0
  %5368 = vmatpush2.msra.mxu0 0.0
  %5369 = vmatprep.subr.mxu0 0.0
  %5370 = vmatpush2.msra.mxu0 0.0
  %5371 = vmatprep.subr.mxu0 0.0
  %5372 = vmatpush2.msra.mxu0 0.0
  %5373 = vmatprep.subr.mxu0 0.0
  %5374 = vmatpush2.msra.mxu0 0.0
  %5375 = vmatprep.subr.mxu0 0.0
  %5376 = vmatpush2.msra.mxu0 0.0
  %5377 = vmatprep.subr.mxu0 0.0
  %5378 = vmatpush2.msra.mxu0 0.0
  %5379 = vmatprep.subr.mxu0 0.0
  %5380 = vmatpush2.msra.mxu0 0.0
  %5381 = vmatprep.subr.mxu0 0.0
  %5382 = vmatpush2.msra.mxu0 0.0
  %5383 = vmatprep.subr.mxu0 0.0
  %5384 = vmatpush2.msra.mxu0 0.0
  %5385 = vmatprep.subr.mxu0 0.0
  %5386 = vmatpush2.msra.mxu0 0.0
  %5387 = vmatprep.subr.mxu0 0.0
  %5388 = vmatpush2.msra.mxu0 0.0
  %5389 = vmatprep.mubr.f32.mxu0 0.0
  %5390 = vmatmul.mubr.f32.gmra.mxu0 %v5320
  %v5391 = vpop.f32.mrf.mxu0
  %v5392 = vadd.f32 0.0, %v5391
  %v5393 = vpop.f32.mrf.mxu0
  %5394 = vmatprep.mubr.f32.mxu0 0.0
  %5395 = vmatmul.mubr.f32.gmra.mxu0 %v5323
  %v5396 = vpop.f32.mrf.mxu0
  %v5397 = vadd.f32 0.0, %v5396
  %v5398 = vpop.f32.mrf.mxu0
  %5399 = vdwg.mxu0
  %v5401 = vsel %vm326, %v4316, 0
  %v5404 = vsel %vm326, %v4317, 0
  %5406 = vmatprep.subr.mxu0 0.0
  %5407 = vmatpush1.msra.mxu0 0.0
  %5408 = vmatprep.subr.mxu0 0.0
  %5409 = vmatpush1.msra.mxu0 0.0
  %5410 = vmatprep.subr.mxu0 0.0
  %5411 = vmatpush1.msra.mxu0 0.0
  %5412 = vmatprep.subr.mxu0 0.0
  %5413 = vmatpush1.msra.mxu0 0.0
  %5414 = vmatprep.subr.mxu0 0.0
  %5415 = vmatpush1.msra.mxu0 0.0
  %5416 = vmatprep.subr.mxu0 0.0
  %5417 = vmatpush1.msra.mxu0 0.0
  %5418 = vmatprep.subr.mxu0 0.0
  %5419 = vmatpush1.msra.mxu0 0.0
  %5420 = vmatprep.subr.mxu0 0.0
  %5421 = vmatpush1.msra.mxu0 0.0
  %5422 = vmatprep.subr.mxu0 0.0
  %5423 = vmatpush1.msra.mxu0 0.0
  %5424 = vmatprep.subr.mxu0 0.0
  %5425 = vmatpush1.msra.mxu0 0.0
  %5426 = vmatprep.subr.mxu0 0.0
  %5427 = vmatpush1.msra.mxu0 0.0
  %5428 = vmatprep.subr.mxu0 0.0
  %5429 = vmatpush1.msra.mxu0 0.0
  %5430 = vmatprep.subr.mxu0 0.0
  %5431 = vmatpush1.msra.mxu0 %v4437
  %5432 = vmatprep.subr.mxu0 0.0
  %5433 = vmatpush1.msra.mxu0 %v4436
  %5434 = vmatprep.subr.mxu0 0.0
  %5435 = vmatpush1.msra.mxu0 %v4435
  %5436 = vmatprep.subr.mxu0 0.0
  %5437 = vmatpush1.msra.mxu0 %v4434
  %5438 = vmatprep.subr.mxu0 0.0
  %5439 = vmatpush2.msra.mxu0 0.0
  %5440 = vmatprep.subr.mxu0 0.0
  %5441 = vmatpush2.msra.mxu0 0.0
  %5442 = vmatprep.subr.mxu0 0.0
  %5443 = vmatpush2.msra.mxu0 0.0
  %5444 = vmatprep.subr.mxu0 0.0
  %5445 = vmatpush2.msra.mxu0 0.0
  %5446 = vmatprep.subr.mxu0 0.0
  %5447 = vmatpush2.msra.mxu0 0.0
  %5448 = vmatprep.subr.mxu0 0.0
  %5449 = vmatpush2.msra.mxu0 0.0
  %5450 = vmatprep.subr.mxu0 0.0
  %5451 = vmatpush2.msra.mxu0 0.0
  %5452 = vmatprep.subr.mxu0 0.0
  %5453 = vmatpush2.msra.mxu0 0.0
  %5454 = vmatprep.subr.mxu0 0.0
  %5455 = vmatpush2.msra.mxu0 0.0
  %5456 = vmatprep.subr.mxu0 0.0
  %5457 = vmatpush2.msra.mxu0 0.0
  %5458 = vmatprep.subr.mxu0 0.0
  %5459 = vmatpush2.msra.mxu0 0.0
  %5460 = vmatprep.subr.mxu0 0.0
  %5461 = vmatpush2.msra.mxu0 0.0
  %5462 = vmatprep.subr.mxu0 0.0
  %5463 = vmatpush2.msra.mxu0 0.0
  %5464 = vmatprep.subr.mxu0 0.0
  %5465 = vmatpush2.msra.mxu0 0.0
  %5466 = vmatprep.subr.mxu0 0.0
  %5467 = vmatpush2.msra.mxu0 0.0
  %5468 = vmatprep.subr.mxu0 0.0
  %5469 = vmatpush2.msra.mxu0 0.0
  %5470 = vmatprep.mubr.f32.mxu0 0.0
  %5471 = vmatmul.mubr.f32.gmra.mxu0 %v5401
  %v5472 = vpop.f32.mrf.mxu0
  %v5473 = vadd.f32 0.0, %v5472
  %v5474 = vpop.f32.mrf.mxu0
  %5475 = vmatprep.mubr.f32.mxu0 0.0
  %5476 = vmatmul.mubr.f32.gmra.mxu0 %v5404
  %v5477 = vpop.f32.mrf.mxu0
  %v5478 = vadd.f32 0.0, %v5477
  %v5479 = vpop.f32.mrf.mxu0
  %5480 = vdwg.mxu0
  %v5482 = vsel %vm326, %v4318, 0
  %v5485 = vsel %vm326, %v4319, 0
  %5487 = vmatprep.subr.mxu0 0.0
  %5488 = vmatpush1.msra.mxu0 0.0
  %5489 = vmatprep.subr.mxu0 0.0
  %5490 = vmatpush1.msra.mxu0 0.0
  %5491 = vmatprep.subr.mxu0 0.0
  %5492 = vmatpush1.msra.mxu0 0.0
  %5493 = vmatprep.subr.mxu0 0.0
  %5494 = vmatpush1.msra.mxu0 0.0
  %5495 = vmatprep.subr.mxu0 0.0
  %5496 = vmatpush1.msra.mxu0 0.0
  %5497 = vmatprep.subr.mxu0 0.0
  %5498 = vmatpush1.msra.mxu0 0.0
  %5499 = vmatprep.subr.mxu0 0.0
  %5500 = vmatpush1.msra.mxu0 0.0
  %5501 = vmatprep.subr.mxu0 0.0
  %5502 = vmatpush1.msra.mxu0 0.0
  %5503 = vmatprep.subr.mxu0 0.0
  %5504 = vmatpush1.msra.mxu0 0.0
  %5505 = vmatprep.subr.mxu0 0.0
  %5506 = vmatpush1.msra.mxu0 0.0
  %5507 = vmatprep.subr.mxu0 0.0
  %5508 = vmatpush1.msra.mxu0 0.0
  %5509 = vmatprep.subr.mxu0 0.0
  %5510 = vmatpush1.msra.mxu0 0.0
  %5511 = vmatprep.subr.mxu0 0.0
  %5512 = vmatpush1.msra.mxu0 %v4441
  %5513 = vmatprep.subr.mxu0 0.0
  %5514 = vmatpush1.msra.mxu0 %v4440
  %5515 = vmatprep.subr.mxu0 0.0
  %5516 = vmatpush1.msra.mxu0 %v4439
  %5517 = vmatprep.subr.mxu0 0.0
  %5518 = vmatpush1.msra.mxu0 %v4438
  %5519 = vmatprep.subr.mxu0 0.0
  %5520 = vmatpush2.msra.mxu0 0.0
  %5521 = vmatprep.subr.mxu0 0.0
  %5522 = vmatpush2.msra.mxu0 0.0
  %5523 = vmatprep.subr.mxu0 0.0
  %5524 = vmatpush2.msra.mxu0 0.0
  %5525 = vmatprep.subr.mxu0 0.0
  %5526 = vmatpush2.msra.mxu0 0.0
  %5527 = vmatprep.subr.mxu0 0.0
  %5528 = vmatpush2.msra.mxu0 0.0
  %5529 = vmatprep.subr.mxu0 0.0
  %5530 = vmatpush2.msra.mxu0 0.0
  %5531 = vmatprep.subr.mxu0 0.0
  %5532 = vmatpush2.msra.mxu0 0.0
  %5533 = vmatprep.subr.mxu0 0.0
  %5534 = vmatpush2.msra.mxu0 0.0
  %5535 = vmatprep.subr.mxu0 0.0
  %5536 = vmatpush2.msra.mxu0 0.0
  %5537 = vmatprep.subr.mxu0 0.0
  %5538 = vmatpush2.msra.mxu0 0.0
  %5539 = vmatprep.subr.mxu0 0.0
  %5540 = vmatpush2.msra.mxu0 0.0
  %5541 = vmatprep.subr.mxu0 0.0
  %5542 = vmatpush2.msra.mxu0 0.0
  %5543 = vmatprep.subr.mxu0 0.0
  %5544 = vmatpush2.msra.mxu0 0.0
  %5545 = vmatprep.subr.mxu0 0.0
  %5546 = vmatpush2.msra.mxu0 0.0
  %5547 = vmatprep.subr.mxu0 0.0
  %5548 = vmatpush2.msra.mxu0 0.0
  %5549 = vmatprep.subr.mxu0 0.0
  %5550 = vmatpush2.msra.mxu0 0.0
  %5551 = vmatprep.mubr.f32.mxu0 0.0
  %5552 = vmatmul.mubr.f32.gmra.mxu0 %v5482
  %v5553 = vpop.f32.mrf.mxu0
  %v5554 = vadd.f32 0.0, %v5553
  %v5555 = vpop.f32.mrf.mxu0
  %5556 = vmatprep.mubr.f32.mxu0 0.0
  %5557 = vmatmul.mubr.f32.gmra.mxu0 %v5485
  %v5558 = vpop.f32.mrf.mxu0
  %v5559 = vadd.f32 0.0, %v5558
  %v5560 = vpop.f32.mrf.mxu0
  %5561 = vdwg.mxu0
  %v5563 = vsel %vm326, %v4320, 0
  %v5566 = vsel %vm326, %v4321, 0
  %5568 = vmatprep.subr.mxu0 0.0
  %5569 = vmatpush1.msra.mxu0 0.0
  %5570 = vmatprep.subr.mxu0 0.0
  %5571 = vmatpush1.msra.mxu0 0.0
  %5572 = vmatprep.subr.mxu0 0.0
  %5573 = vmatpush1.msra.mxu0 0.0
  %5574 = vmatprep.subr.mxu0 0.0
  %5575 = vmatpush1.msra.mxu0 0.0
  %5576 = vmatprep.subr.mxu0 0.0
  %5577 = vmatpush1.msra.mxu0 0.0
  %5578 = vmatprep.subr.mxu0 0.0
  %5579 = vmatpush1.msra.mxu0 0.0
  %5580 = vmatprep.subr.mxu0 0.0
  %5581 = vmatpush1.msra.mxu0 0.0
  %5582 = vmatprep.subr.mxu0 0.0
  %5583 = vmatpush1.msra.mxu0 0.0
  %5584 = vmatprep.subr.mxu0 0.0
  %5585 = vmatpush1.msra.mxu0 0.0
  %5586 = vmatprep.subr.mxu0 0.0
  %5587 = vmatpush1.msra.mxu0 0.0
  %5588 = vmatprep.subr.mxu0 0.0
  %5589 = vmatpush1.msra.mxu0 0.0
  %5590 = vmatprep.subr.mxu0 0.0
  %5591 = vmatpush1.msra.mxu0 0.0
  %5592 = vmatprep.subr.mxu0 0.0
  %5593 = vmatpush1.msra.mxu0 %v4445
  %5594 = vmatprep.subr.mxu0 0.0
  %5595 = vmatpush1.msra.mxu0 %v4444
  %5596 = vmatprep.subr.mxu0 0.0
  %5597 = vmatpush1.msra.mxu0 %v4443
  %5598 = vmatprep.subr.mxu0 0.0
  %5599 = vmatpush1.msra.mxu0 %v4442
  %5600 = vmatprep.subr.mxu0 0.0
  %5601 = vmatpush2.msra.mxu0 0.0
  %5602 = vmatprep.subr.mxu0 0.0
  %5603 = vmatpush2.msra.mxu0 0.0
  %5604 = vmatprep.subr.mxu0 0.0
  %5605 = vmatpush2.msra.mxu0 0.0
  %5606 = vmatprep.subr.mxu0 0.0
  %5607 = vmatpush2.msra.mxu0 0.0
  %5608 = vmatprep.subr.mxu0 0.0
  %5609 = vmatpush2.msra.mxu0 0.0
  %5610 = vmatprep.subr.mxu0 0.0
  %5611 = vmatpush2.msra.mxu0 0.0
  %5612 = vmatprep.subr.mxu0 0.0
  %5613 = vmatpush2.msra.mxu0 0.0
  %5614 = vmatprep.subr.mxu0 0.0
  %5615 = vmatpush2.msra.mxu0 0.0
  %5616 = vmatprep.subr.mxu0 0.0
  %5617 = vmatpush2.msra.mxu0 0.0
  %5618 = vmatprep.subr.mxu0 0.0
  %5619 = vmatpush2.msra.mxu0 0.0
  %5620 = vmatprep.subr.mxu0 0.0
  %5621 = vmatpush2.msra.mxu0 0.0
  %5622 = vmatprep.subr.mxu0 0.0
  %5623 = vmatpush2.msra.mxu0 0.0
  %5624 = vmatprep.subr.mxu0 0.0
  %5625 = vmatpush2.msra.mxu0 0.0
  %5626 = vmatprep.subr.mxu0 0.0
  %5627 = vmatpush2.msra.mxu0 0.0
  %5628 = vmatprep.subr.mxu0 0.0
  %5629 = vmatpush2.msra.mxu0 0.0
  %5630 = vmatprep.subr.mxu0 0.0
  %5631 = vmatpush2.msra.mxu0 0.0
  %5632 = vmatprep.mubr.f32.mxu0 0.0
  %5633 = vmatmul.mubr.f32.gmra.mxu0 %v5563
  %v5634 = vpop.f32.mrf.mxu0
  %v5635 = vadd.f32 0.0, %v5634
  %v5636 = vpop.f32.mrf.mxu0
  %5637 = vmatprep.mubr.f32.mxu0 0.0
  %5638 = vmatmul.mubr.f32.gmra.mxu0 %v5566
  %v5639 = vpop.f32.mrf.mxu0
  %v5640 = vadd.f32 0.0, %v5639
  %v5641 = vpop.f32.mrf.mxu0
  %5642 = vdwg.mxu0
  %v5644 = vsel %vm326, %v4322, 0
  %v5647 = vsel %vm326, %v4323, 0
  %5649 = vmatprep.subr.mxu0 0.0
  %5650 = vmatpush1.msra.mxu0 0.0
  %5651 = vmatprep.subr.mxu0 0.0
  %5652 = vmatpush1.msra.mxu0 0.0
  %5653 = vmatprep.subr.mxu0 0.0
  %5654 = vmatpush1.msra.mxu0 0.0
  %5655 = vmatprep.subr.mxu0 0.0
  %5656 = vmatpush1.msra.mxu0 0.0
  %5657 = vmatprep.subr.mxu0 0.0
  %5658 = vmatpush1.msra.mxu0 0.0
  %5659 = vmatprep.subr.mxu0 0.0
  %5660 = vmatpush1.msra.mxu0 0.0
  %5661 = vmatprep.subr.mxu0 0.0
  %5662 = vmatpush1.msra.mxu0 0.0
  %5663 = vmatprep.subr.mxu0 0.0
  %5664 = vmatpush1.msra.mxu0 0.0
  %5665 = vmatprep.subr.mxu0 0.0
  %5666 = vmatpush1.msra.mxu0 0.0
  %5667 = vmatprep.subr.mxu0 0.0
  %5668 = vmatpush1.msra.mxu0 0.0
  %5669 = vmatprep.subr.mxu0 0.0
  %5670 = vmatpush1.msra.mxu0 0.0
  %5671 = vmatprep.subr.mxu0 0.0
  %5672 = vmatpush1.msra.mxu0 0.0
  %5673 = vmatprep.subr.mxu0 0.0
  %5674 = vmatpush1.msra.mxu0 %v4449
  %5675 = vmatprep.subr.mxu0 0.0
  %5676 = vmatpush1.msra.mxu0 %v4448
  %5677 = vmatprep.subr.mxu0 0.0
  %5678 = vmatpush1.msra.mxu0 %v4447
  %5679 = vmatprep.subr.mxu0 0.0
  %5680 = vmatpush1.msra.mxu0 %v4446
  %5681 = vmatprep.subr.mxu0 0.0
  %5682 = vmatpush2.msra.mxu0 0.0
  %5683 = vmatprep.subr.mxu0 0.0
  %5684 = vmatpush2.msra.mxu0 0.0
  %5685 = vmatprep.subr.mxu0 0.0
  %5686 = vmatpush2.msra.mxu0 0.0
  %5687 = vmatprep.subr.mxu0 0.0
  %5688 = vmatpush2.msra.mxu0 0.0
  %5689 = vmatprep.subr.mxu0 0.0
  %5690 = vmatpush2.msra.mxu0 0.0
  %5691 = vmatprep.subr.mxu0 0.0
  %5692 = vmatpush2.msra.mxu0 0.0
  %5693 = vmatprep.subr.mxu0 0.0
  %5694 = vmatpush2.msra.mxu0 0.0
  %5695 = vmatprep.subr.mxu0 0.0
  %5696 = vmatpush2.msra.mxu0 0.0
  %5697 = vmatprep.subr.mxu0 0.0
  %5698 = vmatpush2.msra.mxu0 0.0
  %5699 = vmatprep.subr.mxu0 0.0
  %5700 = vmatpush2.msra.mxu0 0.0
  %5701 = vmatprep.subr.mxu0 0.0
  %5702 = vmatpush2.msra.mxu0 0.0
  %5703 = vmatprep.subr.mxu0 0.0
  %5704 = vmatpush2.msra.mxu0 0.0
  %5705 = vmatprep.subr.mxu0 0.0
  %5706 = vmatpush2.msra.mxu0 0.0
  %5707 = vmatprep.subr.mxu0 0.0
  %5708 = vmatpush2.msra.mxu0 0.0
  %5709 = vmatprep.subr.mxu0 0.0
  %5710 = vmatpush2.msra.mxu0 0.0
  %5711 = vmatprep.subr.mxu0 0.0
  %5712 = vmatpush2.msra.mxu0 0.0
  %5713 = vmatprep.mubr.f32.mxu0 0.0
  %5714 = vmatmul.mubr.f32.gmra.mxu0 %v5644
  %v5715 = vpop.f32.mrf.mxu0
  %v5716 = vadd.f32 0.0, %v5715
  %v5717 = vpop.f32.mrf.mxu0
  %5718 = vmatprep.mubr.f32.mxu0 0.0
  %5719 = vmatmul.mubr.f32.gmra.mxu0 %v5647
  %v5720 = vpop.f32.mrf.mxu0
  %v5721 = vadd.f32 0.0, %v5720
  %v5722 = vpop.f32.mrf.mxu0
  %5723 = vdwg.mxu0
  %v5725 = vsel %vm326, %v4324, 0
  %v5728 = vsel %vm326, %v4325, 0
  %5730 = vmatprep.subr.mxu0 0.0
  %5731 = vmatpush1.msra.mxu0 0.0
  %5732 = vmatprep.subr.mxu0 0.0
  %5733 = vmatpush1.msra.mxu0 0.0
  %5734 = vmatprep.subr.mxu0 0.0
  %5735 = vmatpush1.msra.mxu0 0.0
  %5736 = vmatprep.subr.mxu0 0.0
  %5737 = vmatpush1.msra.mxu0 0.0
  %5738 = vmatprep.subr.mxu0 0.0
  %5739 = vmatpush1.msra.mxu0 0.0
  %5740 = vmatprep.subr.mxu0 0.0
  %5741 = vmatpush1.msra.mxu0 0.0
  %5742 = vmatprep.subr.mxu0 0.0
  %5743 = vmatpush1.msra.mxu0 0.0
  %5744 = vmatprep.subr.mxu0 0.0
  %5745 = vmatpush1.msra.mxu0 0.0
  %5746 = vmatprep.subr.mxu0 0.0
  %5747 = vmatpush1.msra.mxu0 0.0
  %5748 = vmatprep.subr.mxu0 0.0
  %5749 = vmatpush1.msra.mxu0 0.0
  %5750 = vmatprep.subr.mxu0 0.0
  %5751 = vmatpush1.msra.mxu0 0.0
  %5752 = vmatprep.subr.mxu0 0.0
  %5753 = vmatpush1.msra.mxu0 0.0
  %5754 = vmatprep.subr.mxu0 0.0
  %5755 = vmatpush1.msra.mxu0 %v4453
  %5756 = vmatprep.subr.mxu0 0.0
  %5757 = vmatpush1.msra.mxu0 %v4452
  %5758 = vmatprep.subr.mxu0 0.0
  %5759 = vmatpush1.msra.mxu0 %v4451
  %5760 = vmatprep.subr.mxu0 0.0
  %5761 = vmatpush1.msra.mxu0 %v4450
  %5762 = vmatprep.subr.mxu0 0.0
  %5763 = vmatpush2.msra.mxu0 0.0
  %5764 = vmatprep.subr.mxu0 0.0
  %5765 = vmatpush2.msra.mxu0 0.0
  %5766 = vmatprep.subr.mxu0 0.0
  %5767 = vmatpush2.msra.mxu0 0.0
  %5768 = vmatprep.subr.mxu0 0.0
  %5769 = vmatpush2.msra.mxu0 0.0
  %5770 = vmatprep.subr.mxu0 0.0
  %5771 = vmatpush2.msra.mxu0 0.0
  %5772 = vmatprep.subr.mxu0 0.0
  %5773 = vmatpush2.msra.mxu0 0.0
  %5774 = vmatprep.subr.mxu0 0.0
  %5775 = vmatpush2.msra.mxu0 0.0
  %5776 = vmatprep.subr.mxu0 0.0
  %5777 = vmatpush2.msra.mxu0 0.0
  %5778 = vmatprep.subr.mxu0 0.0
  %5779 = vmatpush2.msra.mxu0 0.0
  %5780 = vmatprep.subr.mxu0 0.0
  %5781 = vmatpush2.msra.mxu0 0.0
  %5782 = vmatprep.subr.mxu0 0.0
  %5783 = vmatpush2.msra.mxu0 0.0
  %5784 = vmatprep.subr.mxu0 0.0
  %5785 = vmatpush2.msra.mxu0 0.0
  %5786 = vmatprep.subr.mxu0 0.0
  %5787 = vmatpush2.msra.mxu0 0.0
  %5788 = vmatprep.subr.mxu0 0.0
  %5789 = vmatpush2.msra.mxu0 0.0
  %5790 = vmatprep.subr.mxu0 0.0
  %5791 = vmatpush2.msra.mxu0 0.0
  %5792 = vmatprep.subr.mxu0 0.0
  %5793 = vmatpush2.msra.mxu0 0.0
  %5794 = vmatprep.mubr.f32.mxu0 0.0
  %5795 = vmatmul.mubr.f32.gmra.mxu0 %v5725
  %v5796 = vpop.f32.mrf.mxu0
  %v5797 = vadd.f32 0.0, %v5796
  %v5798 = vpop.f32.mrf.mxu0
  %5799 = vmatprep.mubr.f32.mxu0 0.0
  %5800 = vmatmul.mubr.f32.gmra.mxu0 %v5728
  %v5801 = vpop.f32.mrf.mxu0
  %v5802 = vadd.f32 0.0, %v5801
  %v5803 = vpop.f32.mrf.mxu0
  %5804 = vdwg.mxu0
  %v5806 = vsel %vm326, %v4326, 0
  %v5809 = vsel %vm326, %v4327, 0
  %5811 = vmatprep.subr.mxu0 0.0
  %5812 = vmatpush1.msra.mxu0 0.0
  %5813 = vmatprep.subr.mxu0 0.0
  %5814 = vmatpush1.msra.mxu0 0.0
  %5815 = vmatprep.subr.mxu0 0.0
  %5816 = vmatpush1.msra.mxu0 0.0
  %5817 = vmatprep.subr.mxu0 0.0
  %5818 = vmatpush1.msra.mxu0 0.0
  %5819 = vmatprep.subr.mxu0 0.0
  %5820 = vmatpush1.msra.mxu0 0.0
  %5821 = vmatprep.subr.mxu0 0.0
  %5822 = vmatpush1.msra.mxu0 0.0
  %5823 = vmatprep.subr.mxu0 0.0
  %5824 = vmatpush1.msra.mxu0 0.0
  %5825 = vmatprep.subr.mxu0 0.0
  %5826 = vmatpush1.msra.mxu0 0.0
  %5827 = vmatprep.subr.mxu0 0.0
  %5828 = vmatpush1.msra.mxu0 0.0
  %5829 = vmatprep.subr.mxu0 0.0
  %5830 = vmatpush1.msra.mxu0 0.0
  %5831 = vmatprep.subr.mxu0 0.0
  %5832 = vmatpush1.msra.mxu0 0.0
  %5833 = vmatprep.subr.mxu0 0.0
  %5834 = vmatpush1.msra.mxu0 0.0
  %5835 = vmatprep.subr.mxu0 0.0
  %5836 = vmatpush1.msra.mxu0 %v4457
  %5837 = vmatprep.subr.mxu0 0.0
  %5838 = vmatpush1.msra.mxu0 %v4456
  %5839 = vmatprep.subr.mxu0 0.0
  %5840 = vmatpush1.msra.mxu0 %v4455
  %5841 = vmatprep.subr.mxu0 0.0
  %5842 = vmatpush1.msra.mxu0 %v4454
  %5843 = vmatprep.subr.mxu0 0.0
  %5844 = vmatpush2.msra.mxu0 0.0
  %5845 = vmatprep.subr.mxu0 0.0
  %5846 = vmatpush2.msra.mxu0 0.0
  %5847 = vmatprep.subr.mxu0 0.0
  %5848 = vmatpush2.msra.mxu0 0.0
  %5849 = vmatprep.subr.mxu0 0.0
  %5850 = vmatpush2.msra.mxu0 0.0
  %5851 = vmatprep.subr.mxu0 0.0
  %5852 = vmatpush2.msra.mxu0 0.0
  %5853 = vmatprep.subr.mxu0 0.0
  %5854 = vmatpush2.msra.mxu0 0.0
  %5855 = vmatprep.subr.mxu0 0.0
  %5856 = vmatpush2.msra.mxu0 0.0
  %5857 = vmatprep.subr.mxu0 0.0
  %5858 = vmatpush2.msra.mxu0 0.0
  %5859 = vmatprep.subr.mxu0 0.0
  %5860 = vmatpush2.msra.mxu0 0.0
  %5861 = vmatprep.subr.mxu0 0.0
  %5862 = vmatpush2.msra.mxu0 0.0
  %5863 = vmatprep.subr.mxu0 0.0
  %5864 = vmatpush2.msra.mxu0 0.0
  %5865 = vmatprep.subr.mxu0 0.0
  %5866 = vmatpush2.msra.mxu0 0.0
  %5867 = vmatprep.subr.mxu0 0.0
  %5868 = vmatpush2.msra.mxu0 0.0
  %5869 = vmatprep.subr.mxu0 0.0
  %5870 = vmatpush2.msra.mxu0 0.0
  %5871 = vmatprep.subr.mxu0 0.0
  %5872 = vmatpush2.msra.mxu0 0.0
  %5873 = vmatprep.subr.mxu0 0.0
  %5874 = vmatpush2.msra.mxu0 0.0
  %5875 = vmatprep.mubr.f32.mxu0 0.0
  %5876 = vmatmul.mubr.f32.gmra.mxu0 %v5806
  %v5877 = vpop.f32.mrf.mxu0
  %v5878 = vadd.f32 0.0, %v5877
  %v5879 = vpop.f32.mrf.mxu0
  %5880 = vmatprep.mubr.f32.mxu0 0.0
  %5881 = vmatmul.mubr.f32.gmra.mxu0 %v5809
  %v5882 = vpop.f32.mrf.mxu0
  %v5883 = vadd.f32 0.0, %v5882
  %v5884 = vpop.f32.mrf.mxu0
  %5885 = vdwg.mxu0
  %v5887 = vsel %vm326, %v4328, 0
  %v5890 = vsel %vm326, %v4329, 0
  %5892 = vmatprep.subr.mxu0 0.0
  %5893 = vmatpush1.msra.mxu0 0.0
  %5894 = vmatprep.subr.mxu0 0.0
  %5895 = vmatpush1.msra.mxu0 0.0
  %5896 = vmatprep.subr.mxu0 0.0
  %5897 = vmatpush1.msra.mxu0 0.0
  %5898 = vmatprep.subr.mxu0 0.0
  %5899 = vmatpush1.msra.mxu0 0.0
  %5900 = vmatprep.subr.mxu0 0.0
  %5901 = vmatpush1.msra.mxu0 0.0
  %5902 = vmatprep.subr.mxu0 0.0
  %5903 = vmatpush1.msra.mxu0 0.0
  %5904 = vmatprep.subr.mxu0 0.0
  %5905 = vmatpush1.msra.mxu0 0.0
  %5906 = vmatprep.subr.mxu0 0.0
  %5907 = vmatpush1.msra.mxu0 0.0
  %5908 = vmatprep.subr.mxu0 0.0
  %5909 = vmatpush1.msra.mxu0 0.0
  %5910 = vmatprep.subr.mxu0 0.0
  %5911 = vmatpush1.msra.mxu0 0.0
  %5912 = vmatprep.subr.mxu0 0.0
  %5913 = vmatpush1.msra.mxu0 0.0
  %5914 = vmatprep.subr.mxu0 0.0
  %5915 = vmatpush1.msra.mxu0 0.0
  %5916 = vmatprep.subr.mxu0 0.0
  %5917 = vmatpush1.msra.mxu0 %v4461
  %5918 = vmatprep.subr.mxu0 0.0
  %5919 = vmatpush1.msra.mxu0 %v4460
  %5920 = vmatprep.subr.mxu0 0.0
  %5921 = vmatpush1.msra.mxu0 %v4459
  %5922 = vmatprep.subr.mxu0 0.0
  %5923 = vmatpush1.msra.mxu0 %v4458
  %5924 = vmatprep.subr.mxu0 0.0
  %5925 = vmatpush2.msra.mxu0 0.0
  %5926 = vmatprep.subr.mxu0 0.0
  %5927 = vmatpush2.msra.mxu0 0.0
  %5928 = vmatprep.subr.mxu0 0.0
  %5929 = vmatpush2.msra.mxu0 0.0
  %5930 = vmatprep.subr.mxu0 0.0
  %5931 = vmatpush2.msra.mxu0 0.0
  %5932 = vmatprep.subr.mxu0 0.0
  %5933 = vmatpush2.msra.mxu0 0.0
  %5934 = vmatprep.subr.mxu0 0.0
  %5935 = vmatpush2.msra.mxu0 0.0
  %5936 = vmatprep.subr.mxu0 0.0
  %5937 = vmatpush2.msra.mxu0 0.0
  %5938 = vmatprep.subr.mxu0 0.0
  %5939 = vmatpush2.msra.mxu0 0.0
  %5940 = vmatprep.subr.mxu0 0.0
  %5941 = vmatpush2.msra.mxu0 0.0
  %5942 = vmatprep.subr.mxu0 0.0
  %5943 = vmatpush2.msra.mxu0 0.0
  %5944 = vmatprep.subr.mxu0 0.0
  %5945 = vmatpush2.msra.mxu0 0.0
  %5946 = vmatprep.subr.mxu0 0.0
  %5947 = vmatpush2.msra.mxu0 0.0
  %5948 = vmatprep.subr.mxu0 0.0
  %5949 = vmatpush2.msra.mxu0 0.0
  %5950 = vmatprep.subr.mxu0 0.0
  %5951 = vmatpush2.msra.mxu0 0.0
  %5952 = vmatprep.subr.mxu0 0.0
  %5953 = vmatpush2.msra.mxu0 0.0
  %5954 = vmatprep.subr.mxu0 0.0
  %5955 = vmatpush2.msra.mxu0 0.0
  %5956 = vmatprep.mubr.f32.mxu0 0.0
  %5957 = vmatmul.mubr.f32.gmra.mxu0 %v5887
  %v5958 = vpop.f32.mrf.mxu0
  %v5959 = vadd.f32 0.0, %v5958
  %v5960 = vpop.f32.mrf.mxu0
  %5961 = vmatprep.mubr.f32.mxu0 0.0
  %5962 = vmatmul.mubr.f32.gmra.mxu0 %v5890
  %v5963 = vpop.f32.mrf.mxu0
  %v5964 = vadd.f32 0.0, %v5963
  %v5965 = vpop.f32.mrf.mxu0
  %5966 = vdwg.mxu0
  %v5968 = vsel %vm326, %v4330, 0
  %v5971 = vsel %vm326, %v4331, 0
  %5973 = vmatprep.subr.mxu0 0.0
  %5974 = vmatpush1.msra.mxu0 0.0
  %5975 = vmatprep.subr.mxu0 0.0
  %5976 = vmatpush1.msra.mxu0 0.0
  %5977 = vmatprep.subr.mxu0 0.0
  %5978 = vmatpush1.msra.mxu0 0.0
  %5979 = vmatprep.subr.mxu0 0.0
  %5980 = vmatpush1.msra.mxu0 0.0
  %5981 = vmatprep.subr.mxu0 0.0
  %5982 = vmatpush1.msra.mxu0 0.0
  %5983 = vmatprep.subr.mxu0 0.0
  %5984 = vmatpush1.msra.mxu0 0.0
  %5985 = vmatprep.subr.mxu0 0.0
  %5986 = vmatpush1.msra.mxu0 0.0
  %5987 = vmatprep.subr.mxu0 0.0
  %5988 = vmatpush1.msra.mxu0 0.0
  %5989 = vmatprep.subr.mxu0 0.0
  %5990 = vmatpush1.msra.mxu0 0.0
  %5991 = vmatprep.subr.mxu0 0.0
  %5992 = vmatpush1.msra.mxu0 0.0
  %5993 = vmatprep.subr.mxu0 0.0
  %5994 = vmatpush1.msra.mxu0 0.0
  %5995 = vmatprep.subr.mxu0 0.0
  %5996 = vmatpush1.msra.mxu0 0.0
  %5997 = vmatprep.subr.mxu0 0.0
  %5998 = vmatpush1.msra.mxu0 %v4465
  %5999 = vmatprep.subr.mxu0 0.0
  %6000 = vmatpush1.msra.mxu0 %v4464
  %6001 = vmatprep.subr.mxu0 0.0
  %6002 = vmatpush1.msra.mxu0 %v4463
  %6003 = vmatprep.subr.mxu0 0.0
  %6004 = vmatpush1.msra.mxu0 %v4462
  %6005 = vmatprep.subr.mxu0 0.0
  %6006 = vmatpush2.msra.mxu0 0.0
  %6007 = vmatprep.subr.mxu0 0.0
  %6008 = vmatpush2.msra.mxu0 0.0
  %6009 = vmatprep.subr.mxu0 0.0
  %6010 = vmatpush2.msra.mxu0 0.0
  %6011 = vmatprep.subr.mxu0 0.0
  %6012 = vmatpush2.msra.mxu0 0.0
  %6013 = vmatprep.subr.mxu0 0.0
  %6014 = vmatpush2.msra.mxu0 0.0
  %6015 = vmatprep.subr.mxu0 0.0
  %6016 = vmatpush2.msra.mxu0 0.0
  %6017 = vmatprep.subr.mxu0 0.0
  %6018 = vmatpush2.msra.mxu0 0.0
  %6019 = vmatprep.subr.mxu0 0.0
  %6020 = vmatpush2.msra.mxu0 0.0
  %6021 = vmatprep.subr.mxu0 0.0
  %6022 = vmatpush2.msra.mxu0 0.0
  %6023 = vmatprep.subr.mxu0 0.0
  %6024 = vmatpush2.msra.mxu0 0.0
  %6025 = vmatprep.subr.mxu0 0.0
  %6026 = vmatpush2.msra.mxu0 0.0
  %6027 = vmatprep.subr.mxu0 0.0
  %6028 = vmatpush2.msra.mxu0 0.0
  %6029 = vmatprep.subr.mxu0 0.0
  %6030 = vmatpush2.msra.mxu0 0.0
  %6031 = vmatprep.subr.mxu0 0.0
  %6032 = vmatpush2.msra.mxu0 0.0
  %6033 = vmatprep.subr.mxu0 0.0
  %6034 = vmatpush2.msra.mxu0 0.0
  %6035 = vmatprep.subr.mxu0 0.0
  %6036 = vmatpush2.msra.mxu0 0.0
  %6037 = vmatprep.mubr.f32.mxu0 0.0
  %6038 = vmatmul.mubr.f32.gmra.mxu0 %v5968
  %v6039 = vpop.f32.mrf.mxu0
  %v6040 = vadd.f32 0.0, %v6039
  %v6041 = vpop.f32.mrf.mxu0
  %6042 = vmatprep.mubr.f32.mxu0 0.0
  %6043 = vmatmul.mubr.f32.gmra.mxu0 %v5971
  %v6044 = vpop.f32.mrf.mxu0
  %v6045 = vadd.f32 0.0, %v6044
  %v6046 = vpop.f32.mrf.mxu0
  %6047 = vdwg.mxu0
  %v6049 = vsel %vm326, %v4332, 0
  %v6052 = vsel %vm326, %v4333, 0
  %6054 = vmatprep.subr.mxu0 0.0
  %6055 = vmatpush1.msra.mxu0 0.0
  %6056 = vmatprep.subr.mxu0 0.0
  %6057 = vmatpush1.msra.mxu0 0.0
  %6058 = vmatprep.subr.mxu0 0.0
  %6059 = vmatpush1.msra.mxu0 0.0
  %6060 = vmatprep.subr.mxu0 0.0
  %6061 = vmatpush1.msra.mxu0 0.0
  %6062 = vmatprep.subr.mxu0 0.0
  %6063 = vmatpush1.msra.mxu0 0.0
  %6064 = vmatprep.subr.mxu0 0.0
  %6065 = vmatpush1.msra.mxu0 0.0
  %6066 = vmatprep.subr.mxu0 0.0
  %6067 = vmatpush1.msra.mxu0 0.0
  %6068 = vmatprep.subr.mxu0 0.0
  %6069 = vmatpush1.msra.mxu0 0.0
  %6070 = vmatprep.subr.mxu0 0.0
  %6071 = vmatpush1.msra.mxu0 0.0
  %6072 = vmatprep.subr.mxu0 0.0
  %6073 = vmatpush1.msra.mxu0 0.0
  %6074 = vmatprep.subr.mxu0 0.0
  %6075 = vmatpush1.msra.mxu0 0.0
  %6076 = vmatprep.subr.mxu0 0.0
  %6077 = vmatpush1.msra.mxu0 0.0
  %6078 = vmatprep.subr.mxu0 0.0
  %6079 = vmatpush1.msra.mxu0 %v4469
  %6080 = vmatprep.subr.mxu0 0.0
  %6081 = vmatpush1.msra.mxu0 %v4468
  %6082 = vmatprep.subr.mxu0 0.0
  %6083 = vmatpush1.msra.mxu0 %v4467
  %6084 = vmatprep.subr.mxu0 0.0
  %6085 = vmatpush1.msra.mxu0 %v4466
  %6086 = vmatprep.subr.mxu0 0.0
  %6087 = vmatpush2.msra.mxu0 0.0
  %6088 = vmatprep.subr.mxu0 0.0
  %6089 = vmatpush2.msra.mxu0 0.0
  %6090 = vmatprep.subr.mxu0 0.0
  %6091 = vmatpush2.msra.mxu0 0.0
  %6092 = vmatprep.subr.mxu0 0.0
  %6093 = vmatpush2.msra.mxu0 0.0
  %6094 = vmatprep.subr.mxu0 0.0
  %6095 = vmatpush2.msra.mxu0 0.0
  %6096 = vmatprep.subr.mxu0 0.0
  %6097 = vmatpush2.msra.mxu0 0.0
  %6098 = vmatprep.subr.mxu0 0.0
  %6099 = vmatpush2.msra.mxu0 0.0
  %6100 = vmatprep.subr.mxu0 0.0
  %6101 = vmatpush2.msra.mxu0 0.0
  %6102 = vmatprep.subr.mxu0 0.0
  %6103 = vmatpush2.msra.mxu0 0.0
  %6104 = vmatprep.subr.mxu0 0.0
  %6105 = vmatpush2.msra.mxu0 0.0
  %6106 = vmatprep.subr.mxu0 0.0
  %6107 = vmatpush2.msra.mxu0 0.0
  %6108 = vmatprep.subr.mxu0 0.0
  %6109 = vmatpush2.msra.mxu0 0.0
  %6110 = vmatprep.subr.mxu0 0.0
  %6111 = vmatpush2.msra.mxu0 0.0
  %6112 = vmatprep.subr.mxu0 0.0
  %6113 = vmatpush2.msra.mxu0 0.0
  %6114 = vmatprep.subr.mxu0 0.0
  %6115 = vmatpush2.msra.mxu0 0.0
  %6116 = vmatprep.subr.mxu0 0.0
  %6117 = vmatpush2.msra.mxu0 0.0
  %6118 = vmatprep.mubr.f32.mxu0 0.0
  %6119 = vmatmul.mubr.f32.gmra.mxu0 %v6049
  %v6120 = vpop.f32.mrf.mxu0
  %v6121 = vadd.f32 0.0, %v6120
  %v6122 = vpop.f32.mrf.mxu0
  %6123 = vmatprep.mubr.f32.mxu0 0.0
  %6124 = vmatmul.mubr.f32.gmra.mxu0 %v6052
  %v6125 = vpop.f32.mrf.mxu0
  %v6126 = vadd.f32 0.0, %v6125
  %v6127 = vpop.f32.mrf.mxu0
  %6128 = vdwg.mxu0
  %v6130 = vsel %vm326, %v4334, 0
  %v6133 = vsel %vm326, %v4335, 0
  %6135 = vmatprep.subr.mxu0 0.0
  %6136 = vmatpush1.msra.mxu0 0.0
  %6137 = vmatprep.subr.mxu0 0.0
  %6138 = vmatpush1.msra.mxu0 0.0
  %6139 = vmatprep.subr.mxu0 0.0
  %6140 = vmatpush1.msra.mxu0 0.0
  %6141 = vmatprep.subr.mxu0 0.0
  %6142 = vmatpush1.msra.mxu0 0.0
  %6143 = vmatprep.subr.mxu0 0.0
  %6144 = vmatpush1.msra.mxu0 0.0
  %6145 = vmatprep.subr.mxu0 0.0
  %6146 = vmatpush1.msra.mxu0 0.0
  %6147 = vmatprep.subr.mxu0 0.0
  %6148 = vmatpush1.msra.mxu0 0.0
  %6149 = vmatprep.subr.mxu0 0.0
  %6150 = vmatpush1.msra.mxu0 0.0
  %6151 = vmatprep.subr.mxu0 0.0
  %6152 = vmatpush1.msra.mxu0 0.0
  %6153 = vmatprep.subr.mxu0 0.0
  %6154 = vmatpush1.msra.mxu0 0.0
  %6155 = vmatprep.subr.mxu0 0.0
  %6156 = vmatpush1.msra.mxu0 0.0
  %6157 = vmatprep.subr.mxu0 0.0
  %6158 = vmatpush1.msra.mxu0 0.0
  %6159 = vmatprep.subr.mxu0 0.0
  %6160 = vmatpush1.msra.mxu0 %v4473
  %6161 = vmatprep.subr.mxu0 0.0
  %6162 = vmatpush1.msra.mxu0 %v4472
  %6163 = vmatprep.subr.mxu0 0.0
  %6164 = vmatpush1.msra.mxu0 %v4471
  %6165 = vmatprep.subr.mxu0 0.0
  %6166 = vmatpush1.msra.mxu0 %v4470
  %6167 = vmatprep.subr.mxu0 0.0
  %6168 = vmatpush2.msra.mxu0 0.0
  %6169 = vmatprep.subr.mxu0 0.0
  %6170 = vmatpush2.msra.mxu0 0.0
  %6171 = vmatprep.subr.mxu0 0.0
  %6172 = vmatpush2.msra.mxu0 0.0
  %6173 = vmatprep.subr.mxu0 0.0
  %6174 = vmatpush2.msra.mxu0 0.0
  %6175 = vmatprep.subr.mxu0 0.0
  %6176 = vmatpush2.msra.mxu0 0.0
  %6177 = vmatprep.subr.mxu0 0.0
  %6178 = vmatpush2.msra.mxu0 0.0
  %6179 = vmatprep.subr.mxu0 0.0
  %6180 = vmatpush2.msra.mxu0 0.0
  %6181 = vmatprep.subr.mxu0 0.0
  %6182 = vmatpush2.msra.mxu0 0.0
  %6183 = vmatprep.subr.mxu0 0.0
  %6184 = vmatpush2.msra.mxu0 0.0
  %6185 = vmatprep.subr.mxu0 0.0
  %6186 = vmatpush2.msra.mxu0 0.0
  %6187 = vmatprep.subr.mxu0 0.0
  %6188 = vmatpush2.msra.mxu0 0.0
  %6189 = vmatprep.subr.mxu0 0.0
  %6190 = vmatpush2.msra.mxu0 0.0
  %6191 = vmatprep.subr.mxu0 0.0
  %6192 = vmatpush2.msra.mxu0 0.0
  %6193 = vmatprep.subr.mxu0 0.0
  %6194 = vmatpush2.msra.mxu0 0.0
  %6195 = vmatprep.subr.mxu0 0.0
  %6196 = vmatpush2.msra.mxu0 0.0
  %6197 = vmatprep.subr.mxu0 0.0
  %6198 = vmatpush2.msra.mxu0 0.0
  %6199 = vmatprep.mubr.f32.mxu0 0.0
  %6200 = vmatmul.mubr.f32.gmra.mxu0 %v6130
  %v6201 = vpop.f32.mrf.mxu0
  %v6202 = vadd.f32 0.0, %v6201
  %v6203 = vpop.f32.mrf.mxu0
  %6204 = vmatprep.mubr.f32.mxu0 0.0
  %6205 = vmatmul.mubr.f32.gmra.mxu0 %v6133
  %v6206 = vpop.f32.mrf.mxu0
  %v6207 = vadd.f32 0.0, %v6206
  %v6208 = vpop.f32.mrf.mxu0
  %6209 = vdwg.mxu0
  %v6211 = vsel %vm326, %v4336, 0
  %v6214 = vsel %vm326, %v4337, 0
  %6216 = vmatprep.subr.mxu0 0.0
  %6217 = vmatpush1.msra.mxu0 0.0
  %6218 = vmatprep.subr.mxu0 0.0
  %6219 = vmatpush1.msra.mxu0 0.0
  %6220 = vmatprep.subr.mxu0 0.0
  %6221 = vmatpush1.msra.mxu0 0.0
  %6222 = vmatprep.subr.mxu0 0.0
  %6223 = vmatpush1.msra.mxu0 0.0
  %6224 = vmatprep.subr.mxu0 0.0
  %6225 = vmatpush1.msra.mxu0 0.0
  %6226 = vmatprep.subr.mxu0 0.0
  %6227 = vmatpush1.msra.mxu0 0.0
  %6228 = vmatprep.subr.mxu0 0.0
  %6229 = vmatpush1.msra.mxu0 0.0
  %6230 = vmatprep.subr.mxu0 0.0
  %6231 = vmatpush1.msra.mxu0 0.0
  %6232 = vmatprep.subr.mxu0 0.0
  %6233 = vmatpush1.msra.mxu0 0.0
  %6234 = vmatprep.subr.mxu0 0.0
  %6235 = vmatpush1.msra.mxu0 0.0
  %6236 = vmatprep.subr.mxu0 0.0
  %6237 = vmatpush1.msra.mxu0 0.0
  %6238 = vmatprep.subr.mxu0 0.0
  %6239 = vmatpush1.msra.mxu0 0.0
  %6240 = vmatprep.subr.mxu0 0.0
  %6241 = vmatpush1.msra.mxu0 %v4477
  %6242 = vmatprep.subr.mxu0 0.0
  %6243 = vmatpush1.msra.mxu0 %v4476
  %6244 = vmatprep.subr.mxu0 0.0
  %6245 = vmatpush1.msra.mxu0 %v4475
  %6246 = vmatprep.subr.mxu0 0.0
  %6247 = vmatpush1.msra.mxu0 %v4474
  %6248 = vmatprep.subr.mxu0 0.0
  %6249 = vmatpush2.msra.mxu0 0.0
  %6250 = vmatprep.subr.mxu0 0.0
  %6251 = vmatpush2.msra.mxu0 0.0
  %6252 = vmatprep.subr.mxu0 0.0
  %6253 = vmatpush2.msra.mxu0 0.0
  %6254 = vmatprep.subr.mxu0 0.0
  %6255 = vmatpush2.msra.mxu0 0.0
  %6256 = vmatprep.subr.mxu0 0.0
  %6257 = vmatpush2.msra.mxu0 0.0
  %6258 = vmatprep.subr.mxu0 0.0
  %6259 = vmatpush2.msra.mxu0 0.0
  %6260 = vmatprep.subr.mxu0 0.0
  %6261 = vmatpush2.msra.mxu0 0.0
  %6262 = vmatprep.subr.mxu0 0.0
  %6263 = vmatpush2.msra.mxu0 0.0
  %6264 = vmatprep.subr.mxu0 0.0
  %6265 = vmatpush2.msra.mxu0 0.0
  %6266 = vmatprep.subr.mxu0 0.0
  %6267 = vmatpush2.msra.mxu0 0.0
  %6268 = vmatprep.subr.mxu0 0.0
  %6269 = vmatpush2.msra.mxu0 0.0
  %6270 = vmatprep.subr.mxu0 0.0
  %6271 = vmatpush2.msra.mxu0 0.0
  %6272 = vmatprep.subr.mxu0 0.0
  %6273 = vmatpush2.msra.mxu0 0.0
  %6274 = vmatprep.subr.mxu0 0.0
  %6275 = vmatpush2.msra.mxu0 0.0
  %6276 = vmatprep.subr.mxu0 0.0
  %6277 = vmatpush2.msra.mxu0 0.0
  %6278 = vmatprep.subr.mxu0 0.0
  %6279 = vmatpush2.msra.mxu0 0.0
  %6280 = vmatprep.mubr.f32.mxu0 0.0
  %6281 = vmatmul.mubr.f32.gmra.mxu0 %v6211
  %v6282 = vpop.f32.mrf.mxu0
  %v6283 = vadd.f32 0.0, %v6282
  %v6284 = vpop.f32.mrf.mxu0
  %6285 = vmatprep.mubr.f32.mxu0 0.0
  %6286 = vmatmul.mubr.f32.gmra.mxu0 %v6214
  %v6287 = vpop.f32.mrf.mxu0
  %v6288 = vadd.f32 0.0, %v6287
  %v6289 = vpop.f32.mrf.mxu0
  %6290 = vdwg.mxu0
  %v6292 = vsel %vm326, %v4338, 0
  %v6295 = vsel %vm326, %v4339, 0
  %6297 = vmatprep.subr.mxu0 0.0
  %6298 = vmatpush1.msra.mxu0 0.0
  %6299 = vmatprep.subr.mxu0 0.0
  %6300 = vmatpush1.msra.mxu0 0.0
  %6301 = vmatprep.subr.mxu0 0.0
  %6302 = vmatpush1.msra.mxu0 0.0
  %6303 = vmatprep.subr.mxu0 0.0
  %6304 = vmatpush1.msra.mxu0 0.0
  %6305 = vmatprep.subr.mxu0 0.0
  %6306 = vmatpush1.msra.mxu0 0.0
  %6307 = vmatprep.subr.mxu0 0.0
  %6308 = vmatpush1.msra.mxu0 0.0
  %6309 = vmatprep.subr.mxu0 0.0
  %6310 = vmatpush1.msra.mxu0 0.0
  %6311 = vmatprep.subr.mxu0 0.0
  %6312 = vmatpush1.msra.mxu0 0.0
  %6313 = vmatprep.subr.mxu0 0.0
  %6314 = vmatpush1.msra.mxu0 0.0
  %6315 = vmatprep.subr.mxu0 0.0
  %6316 = vmatpush1.msra.mxu0 0.0
  %6317 = vmatprep.subr.mxu0 0.0
  %6318 = vmatpush1.msra.mxu0 0.0
  %6319 = vmatprep.subr.mxu0 0.0
  %6320 = vmatpush1.msra.mxu0 0.0
  %6321 = vmatprep.subr.mxu0 0.0
  %6322 = vmatpush1.msra.mxu0 %v4481
  %6323 = vmatprep.subr.mxu0 0.0
  %6324 = vmatpush1.msra.mxu0 %v4480
  %6325 = vmatprep.subr.mxu0 0.0
  %6326 = vmatpush1.msra.mxu0 %v4479
  %6327 = vmatprep.subr.mxu0 0.0
  %6328 = vmatpush1.msra.mxu0 %v4478
  %6329 = vmatprep.subr.mxu0 0.0
  %6330 = vmatpush2.msra.mxu0 0.0
  %6331 = vmatprep.subr.mxu0 0.0
  %6332 = vmatpush2.msra.mxu0 0.0
  %6333 = vmatprep.subr.mxu0 0.0
  %6334 = vmatpush2.msra.mxu0 0.0
  %6335 = vmatprep.subr.mxu0 0.0
  %6336 = vmatpush2.msra.mxu0 0.0
  %6337 = vmatprep.subr.mxu0 0.0
  %6338 = vmatpush2.msra.mxu0 0.0
  %6339 = vmatprep.subr.mxu0 0.0
  %6340 = vmatpush2.msra.mxu0 0.0
  %6341 = vmatprep.subr.mxu0 0.0
  %6342 = vmatpush2.msra.mxu0 0.0
  %6343 = vmatprep.subr.mxu0 0.0
  %6344 = vmatpush2.msra.mxu0 0.0
  %6345 = vmatprep.subr.mxu0 0.0
  %6346 = vmatpush2.msra.mxu0 0.0
  %6347 = vmatprep.subr.mxu0 0.0
  %6348 = vmatpush2.msra.mxu0 0.0
  %6349 = vmatprep.subr.mxu0 0.0
  %6350 = vmatpush2.msra.mxu0 0.0
  %6351 = vmatprep.subr.mxu0 0.0
  %6352 = vmatpush2.msra.mxu0 0.0
  %6353 = vmatprep.subr.mxu0 0.0
  %6354 = vmatpush2.msra.mxu0 0.0
  %6355 = vmatprep.subr.mxu0 0.0
  %6356 = vmatpush2.msra.mxu0 0.0
  %6357 = vmatprep.subr.mxu0 0.0
  %6358 = vmatpush2.msra.mxu0 0.0
  %6359 = vmatprep.subr.mxu0 0.0
  %6360 = vmatpush2.msra.mxu0 0.0
  %6361 = vmatprep.mubr.f32.mxu0 0.0
  %6362 = vmatmul.mubr.f32.gmra.mxu0 %v6292
  %v6363 = vpop.f32.mrf.mxu0
  %v6364 = vadd.f32 0.0, %v6363
  %v6365 = vpop.f32.mrf.mxu0
  %6366 = vmatprep.mubr.f32.mxu0 0.0
  %6367 = vmatmul.mubr.f32.gmra.mxu0 %v6295
  %v6368 = vpop.f32.mrf.mxu0
  %v6369 = vadd.f32 0.0, %v6368
  %v6370 = vpop.f32.mrf.mxu0
  %6371 = vdwg.mxu0
  %v6373 = vsel %vm326, %v4340, 0
  %v6376 = vsel %vm326, %v4341, 0
  %6378 = vmatprep.subr.mxu0 0.0
  %6379 = vmatpush1.msra.mxu0 0.0
  %6380 = vmatprep.subr.mxu0 0.0
  %6381 = vmatpush1.msra.mxu0 0.0
  %6382 = vmatprep.subr.mxu0 0.0
  %6383 = vmatpush1.msra.mxu0 0.0
  %6384 = vmatprep.subr.mxu0 0.0
  %6385 = vmatpush1.msra.mxu0 0.0
  %6386 = vmatprep.subr.mxu0 0.0
  %6387 = vmatpush1.msra.mxu0 0.0
  %6388 = vmatprep.subr.mxu0 0.0
  %6389 = vmatpush1.msra.mxu0 0.0
  %6390 = vmatprep.subr.mxu0 0.0
  %6391 = vmatpush1.msra.mxu0 0.0
  %6392 = vmatprep.subr.mxu0 0.0
  %6393 = vmatpush1.msra.mxu0 0.0
  %6394 = vmatprep.subr.mxu0 0.0
  %6395 = vmatpush1.msra.mxu0 0.0
  %6396 = vmatprep.subr.mxu0 0.0
  %6397 = vmatpush1.msra.mxu0 0.0
  %6398 = vmatprep.subr.mxu0 0.0
  %6399 = vmatpush1.msra.mxu0 0.0
  %6400 = vmatprep.subr.mxu0 0.0
  %6401 = vmatpush1.msra.mxu0 0.0
  %6402 = vmatprep.subr.mxu0 0.0
  %6403 = vmatpush1.msra.mxu0 %v4485
  %6404 = vmatprep.subr.mxu0 0.0
  %6405 = vmatpush1.msra.mxu0 %v4484
  %6406 = vmatprep.subr.mxu0 0.0
  %6407 = vmatpush1.msra.mxu0 %v4483
  %6408 = vmatprep.subr.mxu0 0.0
  %6409 = vmatpush1.msra.mxu0 %v4482
  %6410 = vmatprep.subr.mxu0 0.0
  %6411 = vmatpush2.msra.mxu0 0.0
  %6412 = vmatprep.subr.mxu0 0.0
  %6413 = vmatpush2.msra.mxu0 0.0
  %6414 = vmatprep.subr.mxu0 0.0
  %6415 = vmatpush2.msra.mxu0 0.0
  %6416 = vmatprep.subr.mxu0 0.0
  %6417 = vmatpush2.msra.mxu0 0.0
  %6418 = vmatprep.subr.mxu0 0.0
  %6419 = vmatpush2.msra.mxu0 0.0
  %6420 = vmatprep.subr.mxu0 0.0
  %6421 = vmatpush2.msra.mxu0 0.0
  %6422 = vmatprep.subr.mxu0 0.0
  %6423 = vmatpush2.msra.mxu0 0.0
  %6424 = vmatprep.subr.mxu0 0.0
  %6425 = vmatpush2.msra.mxu0 0.0
  %6426 = vmatprep.subr.mxu0 0.0
  %6427 = vmatpush2.msra.mxu0 0.0
  %6428 = vmatprep.subr.mxu0 0.0
  %6429 = vmatpush2.msra.mxu0 0.0
  %6430 = vmatprep.subr.mxu0 0.0
  %6431 = vmatpush2.msra.mxu0 0.0
  %6432 = vmatprep.subr.mxu0 0.0
  %6433 = vmatpush2.msra.mxu0 0.0
  %6434 = vmatprep.subr.mxu0 0.0
  %6435 = vmatpush2.msra.mxu0 0.0
  %6436 = vmatprep.subr.mxu0 0.0
  %6437 = vmatpush2.msra.mxu0 0.0
  %6438 = vmatprep.subr.mxu0 0.0
  %6439 = vmatpush2.msra.mxu0 0.0
  %6440 = vmatprep.subr.mxu0 0.0
  %6441 = vmatpush2.msra.mxu0 0.0
  %6442 = vmatprep.mubr.f32.mxu0 0.0
  %6443 = vmatmul.mubr.f32.gmra.mxu0 %v6373
  %v6444 = vpop.f32.mrf.mxu0
  %v6445 = vadd.f32 0.0, %v6444
  %v6446 = vpop.f32.mrf.mxu0
  %6447 = vmatprep.mubr.f32.mxu0 0.0
  %6448 = vmatmul.mubr.f32.gmra.mxu0 %v6376
  %v6449 = vpop.f32.mrf.mxu0
  %v6450 = vadd.f32 0.0, %v6449
  %v6451 = vpop.f32.mrf.mxu0
  %6452 = vdwg.mxu0
  %v6454 = vsel %vm326, %v4342, 0
  %v6457 = vsel %vm326, %v4343, 0
  %6459 = vmatprep.subr.mxu0 0.0
  %6460 = vmatpush1.msra.mxu0 0.0
  %6461 = vmatprep.subr.mxu0 0.0
  %6462 = vmatpush1.msra.mxu0 0.0
  %6463 = vmatprep.subr.mxu0 0.0
  %6464 = vmatpush1.msra.mxu0 0.0
  %6465 = vmatprep.subr.mxu0 0.0
  %6466 = vmatpush1.msra.mxu0 0.0
  %6467 = vmatprep.subr.mxu0 0.0
  %6468 = vmatpush1.msra.mxu0 0.0
  %6469 = vmatprep.subr.mxu0 0.0
  %6470 = vmatpush1.msra.mxu0 0.0
  %6471 = vmatprep.subr.mxu0 0.0
  %6472 = vmatpush1.msra.mxu0 0.0
  %6473 = vmatprep.subr.mxu0 0.0
  %6474 = vmatpush1.msra.mxu0 0.0
  %6475 = vmatprep.subr.mxu0 0.0
  %6476 = vmatpush1.msra.mxu0 0.0
  %6477 = vmatprep.subr.mxu0 0.0
  %6478 = vmatpush1.msra.mxu0 0.0
  %6479 = vmatprep.subr.mxu0 0.0
  %6480 = vmatpush1.msra.mxu0 0.0
  %6481 = vmatprep.subr.mxu0 0.0
  %6482 = vmatpush1.msra.mxu0 0.0
  %6483 = vmatprep.subr.mxu0 0.0
  %6484 = vmatpush1.msra.mxu0 %v4489
  %6485 = vmatprep.subr.mxu0 0.0
  %6486 = vmatpush1.msra.mxu0 %v4488
  %6487 = vmatprep.subr.mxu0 0.0
  %6488 = vmatpush1.msra.mxu0 %v4487
  %6489 = vmatprep.subr.mxu0 0.0
  %6490 = vmatpush1.msra.mxu0 %v4486
  %6491 = vmatprep.subr.mxu0 0.0
  %6492 = vmatpush2.msra.mxu0 0.0
  %6493 = vmatprep.subr.mxu0 0.0
  %6494 = vmatpush2.msra.mxu0 0.0
  %6495 = vmatprep.subr.mxu0 0.0
  %6496 = vmatpush2.msra.mxu0 0.0
  %6497 = vmatprep.subr.mxu0 0.0
  %6498 = vmatpush2.msra.mxu0 0.0
  %6499 = vmatprep.subr.mxu0 0.0
  %6500 = vmatpush2.msra.mxu0 0.0
  %6501 = vmatprep.subr.mxu0 0.0
  %6502 = vmatpush2.msra.mxu0 0.0
  %6503 = vmatprep.subr.mxu0 0.0
  %6504 = vmatpush2.msra.mxu0 0.0
  %6505 = vmatprep.subr.mxu0 0.0
  %6506 = vmatpush2.msra.mxu0 0.0
  %6507 = vmatprep.subr.mxu0 0.0
  %6508 = vmatpush2.msra.mxu0 0.0
  %6509 = vmatprep.subr.mxu0 0.0
  %6510 = vmatpush2.msra.mxu0 0.0
  %6511 = vmatprep.subr.mxu0 0.0
  %6512 = vmatpush2.msra.mxu0 0.0
  %6513 = vmatprep.subr.mxu0 0.0
  %6514 = vmatpush2.msra.mxu0 0.0
  %6515 = vmatprep.subr.mxu0 0.0
  %6516 = vmatpush2.msra.mxu0 0.0
  %6517 = vmatprep.subr.mxu0 0.0
  %6518 = vmatpush2.msra.mxu0 0.0
  %6519 = vmatprep.subr.mxu0 0.0
  %6520 = vmatpush2.msra.mxu0 0.0
  %6521 = vmatprep.subr.mxu0 0.0
  %6522 = vmatpush2.msra.mxu0 0.0
  %6523 = vmatprep.mubr.f32.mxu0 0.0
  %6524 = vmatmul.mubr.f32.gmra.mxu0 %v6454
  %v6525 = vpop.f32.mrf.mxu0
  %v6526 = vadd.f32 0.0, %v6525
  %v6527 = vpop.f32.mrf.mxu0
  %6528 = vmatprep.mubr.f32.mxu0 0.0
  %6529 = vmatmul.mubr.f32.gmra.mxu0 %v6457
  %v6530 = vpop.f32.mrf.mxu0
  %v6531 = vadd.f32 0.0, %v6530
  %v6532 = vpop.f32.mrf.mxu0
  %6533 = vdwg.mxu0
  %v6535 = vsel %vm326, %v4344, 0
  %v6538 = vsel %vm326, %v4345, 0
  %6540 = vmatprep.subr.mxu0 0.0
  %6541 = vmatpush1.msra.mxu0 0.0
  %6542 = vmatprep.subr.mxu0 0.0
  %6543 = vmatpush1.msra.mxu0 0.0
  %6544 = vmatprep.subr.mxu0 0.0
  %6545 = vmatpush1.msra.mxu0 0.0
  %6546 = vmatprep.subr.mxu0 0.0
  %6547 = vmatpush1.msra.mxu0 0.0
  %6548 = vmatprep.subr.mxu0 0.0
  %6549 = vmatpush1.msra.mxu0 0.0
  %6550 = vmatprep.subr.mxu0 0.0
  %6551 = vmatpush1.msra.mxu0 0.0
  %6552 = vmatprep.subr.mxu0 0.0
  %6553 = vmatpush1.msra.mxu0 0.0
  %6554 = vmatprep.subr.mxu0 0.0
  %6555 = vmatpush1.msra.mxu0 0.0
  %6556 = vmatprep.subr.mxu0 0.0
  %6557 = vmatpush1.msra.mxu0 0.0
  %6558 = vmatprep.subr.mxu0 0.0
  %6559 = vmatpush1.msra.mxu0 0.0
  %6560 = vmatprep.subr.mxu0 0.0
  %6561 = vmatpush1.msra.mxu0 0.0
  %6562 = vmatprep.subr.mxu0 0.0
  %6563 = vmatpush1.msra.mxu0 0.0
  %6564 = vmatprep.subr.mxu0 0.0
  %6565 = vmatpush1.msra.mxu0 %v4493
  %6566 = vmatprep.subr.mxu0 0.0
  %6567 = vmatpush1.msra.mxu0 %v4492
  %6568 = vmatprep.subr.mxu0 0.0
  %6569 = vmatpush1.msra.mxu0 %v4491
  %6570 = vmatprep.subr.mxu0 0.0
  %6571 = vmatpush1.msra.mxu0 %v4490
  %6572 = vmatprep.subr.mxu0 0.0
  %6573 = vmatpush2.msra.mxu0 0.0
  %6574 = vmatprep.subr.mxu0 0.0
  %6575 = vmatpush2.msra.mxu0 0.0
  %6576 = vmatprep.subr.mxu0 0.0
  %6577 = vmatpush2.msra.mxu0 0.0
  %6578 = vmatprep.subr.mxu0 0.0
  %6579 = vmatpush2.msra.mxu0 0.0
  %6580 = vmatprep.subr.mxu0 0.0
  %6581 = vmatpush2.msra.mxu0 0.0
  %6582 = vmatprep.subr.mxu0 0.0
  %6583 = vmatpush2.msra.mxu0 0.0
  %6584 = vmatprep.subr.mxu0 0.0
  %6585 = vmatpush2.msra.mxu0 0.0
  %6586 = vmatprep.subr.mxu0 0.0
  %6587 = vmatpush2.msra.mxu0 0.0
  %6588 = vmatprep.subr.mxu0 0.0
  %6589 = vmatpush2.msra.mxu0 0.0
  %6590 = vmatprep.subr.mxu0 0.0
  %6591 = vmatpush2.msra.mxu0 0.0
  %6592 = vmatprep.subr.mxu0 0.0
  %6593 = vmatpush2.msra.mxu0 0.0
  %6594 = vmatprep.subr.mxu0 0.0
  %6595 = vmatpush2.msra.mxu0 0.0
  %6596 = vmatprep.subr.mxu0 0.0
  %6597 = vmatpush2.msra.mxu0 0.0
  %6598 = vmatprep.subr.mxu0 0.0
  %6599 = vmatpush2.msra.mxu0 0.0
  %6600 = vmatprep.subr.mxu0 0.0
  %6601 = vmatpush2.msra.mxu0 0.0
  %6602 = vmatprep.subr.mxu0 0.0
  %6603 = vmatpush2.msra.mxu0 0.0
  %6604 = vmatprep.mubr.f32.mxu0 0.0
  %6605 = vmatmul.mubr.f32.gmra.mxu0 %v6535
  %v6606 = vpop.f32.mrf.mxu0
  %v6607 = vadd.f32 0.0, %v6606
  %v6608 = vpop.f32.mrf.mxu0
  %6609 = vmatprep.mubr.f32.mxu0 0.0
  %6610 = vmatmul.mubr.f32.gmra.mxu0 %v6538
  %v6611 = vpop.f32.mrf.mxu0
  %v6612 = vadd.f32 0.0, %v6611
  %v6613 = vpop.f32.mrf.mxu0
  %6614 = vdwg.mxu0
  %v6616 = vsel %vm326, %v4346, 0
  %v6619 = vsel %vm326, %v4347, 0
  %6621 = vmatprep.subr.mxu0 0.0
  %6622 = vmatpush1.msra.mxu0 0.0
  %6623 = vmatprep.subr.mxu0 0.0
  %6624 = vmatpush1.msra.mxu0 0.0
  %6625 = vmatprep.subr.mxu0 0.0
  %6626 = vmatpush1.msra.mxu0 0.0
  %6627 = vmatprep.subr.mxu0 0.0
  %6628 = vmatpush1.msra.mxu0 0.0
  %6629 = vmatprep.subr.mxu0 0.0
  %6630 = vmatpush1.msra.mxu0 0.0
  %6631 = vmatprep.subr.mxu0 0.0
  %6632 = vmatpush1.msra.mxu0 0.0
  %6633 = vmatprep.subr.mxu0 0.0
  %6634 = vmatpush1.msra.mxu0 0.0
  %6635 = vmatprep.subr.mxu0 0.0
  %6636 = vmatpush1.msra.mxu0 0.0
  %6637 = vmatprep.subr.mxu0 0.0
  %6638 = vmatpush1.msra.mxu0 0.0
  %6639 = vmatprep.subr.mxu0 0.0
  %6640 = vmatpush1.msra.mxu0 0.0
  %6641 = vmatprep.subr.mxu0 0.0
  %6642 = vmatpush1.msra.mxu0 0.0
  %6643 = vmatprep.subr.mxu0 0.0
  %6644 = vmatpush1.msra.mxu0 0.0
  %6645 = vmatprep.subr.mxu0 0.0
  %6646 = vmatpush1.msra.mxu0 %v4497
  %6647 = vmatprep.subr.mxu0 0.0
  %6648 = vmatpush1.msra.mxu0 %v4496
  %6649 = vmatprep.subr.mxu0 0.0
  %6650 = vmatpush1.msra.mxu0 %v4495
  %6651 = vmatprep.subr.mxu0 0.0
  %6652 = vmatpush1.msra.mxu0 %v4494
  %6653 = vmatprep.subr.mxu0 0.0
  %6654 = vmatpush2.msra.mxu0 0.0
  %6655 = vmatprep.subr.mxu0 0.0
  %6656 = vmatpush2.msra.mxu0 0.0
  %6657 = vmatprep.subr.mxu0 0.0
  %6658 = vmatpush2.msra.mxu0 0.0
  %6659 = vmatprep.subr.mxu0 0.0
  %6660 = vmatpush2.msra.mxu0 0.0
  %6661 = vmatprep.subr.mxu0 0.0
  %6662 = vmatpush2.msra.mxu0 0.0
  %6663 = vmatprep.subr.mxu0 0.0
  %6664 = vmatpush2.msra.mxu0 0.0
  %6665 = vmatprep.subr.mxu0 0.0
  %6666 = vmatpush2.msra.mxu0 0.0
  %6667 = vmatprep.subr.mxu0 0.0
  %6668 = vmatpush2.msra.mxu0 0.0
  %6669 = vmatprep.subr.mxu0 0.0
  %6670 = vmatpush2.msra.mxu0 0.0
  %6671 = vmatprep.subr.mxu0 0.0
  %6672 = vmatpush2.msra.mxu0 0.0
  %6673 = vmatprep.subr.mxu0 0.0
  %6674 = vmatpush2.msra.mxu0 0.0
  %6675 = vmatprep.subr.mxu0 0.0
  %6676 = vmatpush2.msra.mxu0 0.0
  %6677 = vmatprep.subr.mxu0 0.0
  %6678 = vmatpush2.msra.mxu0 0.0
  %6679 = vmatprep.subr.mxu0 0.0
  %6680 = vmatpush2.msra.mxu0 0.0
  %6681 = vmatprep.subr.mxu0 0.0
  %6682 = vmatpush2.msra.mxu0 0.0
  %6683 = vmatprep.subr.mxu0 0.0
  %6684 = vmatpush2.msra.mxu0 0.0
  %6685 = vmatprep.mubr.f32.mxu0 0.0
  %6686 = vmatmul.mubr.f32.gmra.mxu0 %v6616
  %v6687 = vpop.f32.mrf.mxu0
  %v6688 = vadd.f32 0.0, %v6687
  %v6689 = vpop.f32.mrf.mxu0
  %6690 = vmatprep.mubr.f32.mxu0 0.0
  %6691 = vmatmul.mubr.f32.gmra.mxu0 %v6619
  %v6692 = vpop.f32.mrf.mxu0
  %v6693 = vadd.f32 0.0, %v6692
  %v6694 = vpop.f32.mrf.mxu0
  %6695 = vdwg.mxu0
  %v6697 = vsel %vm326, %v4348, 0
  %v6700 = vsel %vm326, %v4349, 0
  %6702 = vmatprep.subr.mxu0 0.0
  %6703 = vmatpush1.msra.mxu0 0.0
  %6704 = vmatprep.subr.mxu0 0.0
  %6705 = vmatpush1.msra.mxu0 0.0
  %6706 = vmatprep.subr.mxu0 0.0
  %6707 = vmatpush1.msra.mxu0 0.0
  %6708 = vmatprep.subr.mxu0 0.0
  %6709 = vmatpush1.msra.mxu0 0.0
  %6710 = vmatprep.subr.mxu0 0.0
  %6711 = vmatpush1.msra.mxu0 0.0
  %6712 = vmatprep.subr.mxu0 0.0
  %6713 = vmatpush1.msra.mxu0 0.0
  %6714 = vmatprep.subr.mxu0 0.0
  %6715 = vmatpush1.msra.mxu0 0.0
  %6716 = vmatprep.subr.mxu0 0.0
  %6717 = vmatpush1.msra.mxu0 0.0
  %6718 = vmatprep.subr.mxu0 0.0
  %6719 = vmatpush1.msra.mxu0 0.0
  %6720 = vmatprep.subr.mxu0 0.0
  %6721 = vmatpush1.msra.mxu0 0.0
  %6722 = vmatprep.subr.mxu0 0.0
  %6723 = vmatpush1.msra.mxu0 0.0
  %6724 = vmatprep.subr.mxu0 0.0
  %6725 = vmatpush1.msra.mxu0 0.0
  %6726 = vmatprep.subr.mxu0 0.0
  %6727 = vmatpush1.msra.mxu0 %v4501
  %6728 = vmatprep.subr.mxu0 0.0
  %6729 = vmatpush1.msra.mxu0 %v4500
  %6730 = vmatprep.subr.mxu0 0.0
  %6731 = vmatpush1.msra.mxu0 %v4499
  %6732 = vmatprep.subr.mxu0 0.0
  %6733 = vmatpush1.msra.mxu0 %v4498
  %6734 = vmatprep.subr.mxu0 0.0
  %6735 = vmatpush2.msra.mxu0 0.0
  %6736 = vmatprep.subr.mxu0 0.0
  %6737 = vmatpush2.msra.mxu0 0.0
  %6738 = vmatprep.subr.mxu0 0.0
  %6739 = vmatpush2.msra.mxu0 0.0
  %6740 = vmatprep.subr.mxu0 0.0
  %6741 = vmatpush2.msra.mxu0 0.0
  %6742 = vmatprep.subr.mxu0 0.0
  %6743 = vmatpush2.msra.mxu0 0.0
  %6744 = vmatprep.subr.mxu0 0.0
  %6745 = vmatpush2.msra.mxu0 0.0
  %6746 = vmatprep.subr.mxu0 0.0
  %6747 = vmatpush2.msra.mxu0 0.0
  %6748 = vmatprep.subr.mxu0 0.0
  %6749 = vmatpush2.msra.mxu0 0.0
  %6750 = vmatprep.subr.mxu0 0.0
  %6751 = vmatpush2.msra.mxu0 0.0
  %6752 = vmatprep.subr.mxu0 0.0
  %6753 = vmatpush2.msra.mxu0 0.0
  %6754 = vmatprep.subr.mxu0 0.0
  %6755 = vmatpush2.msra.mxu0 0.0
  %6756 = vmatprep.subr.mxu0 0.0
  %6757 = vmatpush2.msra.mxu0 0.0
  %6758 = vmatprep.subr.mxu0 0.0
  %6759 = vmatpush2.msra.mxu0 0.0
  %6760 = vmatprep.subr.mxu0 0.0
  %6761 = vmatpush2.msra.mxu0 0.0
  %6762 = vmatprep.subr.mxu0 0.0
  %6763 = vmatpush2.msra.mxu0 0.0
  %6764 = vmatprep.subr.mxu0 0.0
  %6765 = vmatpush2.msra.mxu0 0.0
  %6766 = vmatprep.mubr.f32.mxu0 0.0
  %6767 = vmatmul.mubr.f32.gmra.mxu0 %v6697
  %v6768 = vpop.f32.mrf.mxu0
  %v6769 = vadd.f32 0.0, %v6768
  %v6770 = vpop.f32.mrf.mxu0
  %6771 = vmatprep.mubr.f32.mxu0 0.0
  %6772 = vmatmul.mubr.f32.gmra.mxu0 %v6700
  %v6773 = vpop.f32.mrf.mxu0
  %v6774 = vadd.f32 0.0, %v6773
  %v6775 = vpop.f32.mrf.mxu0
  %6776 = vdwg.mxu0
  %v6778 = vsel %vm326, %v4350, 0
  %v6781 = vsel %vm326, %v4351, 0
  %6783 = vmatprep.subr.mxu0 0.0
  %6784 = vmatpush1.msra.mxu0 0.0
  %6785 = vmatprep.subr.mxu0 0.0
  %6786 = vmatpush1.msra.mxu0 0.0
  %6787 = vmatprep.subr.mxu0 0.0
  %6788 = vmatpush1.msra.mxu0 0.0
  %6789 = vmatprep.subr.mxu0 0.0
  %6790 = vmatpush1.msra.mxu0 0.0
  %6791 = vmatprep.subr.mxu0 0.0
  %6792 = vmatpush1.msra.mxu0 0.0
  %6793 = vmatprep.subr.mxu0 0.0
  %6794 = vmatpush1.msra.mxu0 0.0
  %6795 = vmatprep.subr.mxu0 0.0
  %6796 = vmatpush1.msra.mxu0 0.0
  %6797 = vmatprep.subr.mxu0 0.0
  %6798 = vmatpush1.msra.mxu0 0.0
  %6799 = vmatprep.subr.mxu0 0.0
  %6800 = vmatpush1.msra.mxu0 0.0
  %6801 = vmatprep.subr.mxu0 0.0
  %6802 = vmatpush1.msra.mxu0 0.0
  %6803 = vmatprep.subr.mxu0 0.0
  %6804 = vmatpush1.msra.mxu0 0.0
  %6805 = vmatprep.subr.mxu0 0.0
  %6806 = vmatpush1.msra.mxu0 0.0
  %6807 = vmatprep.subr.mxu0 0.0
  %6808 = vmatpush1.msra.mxu0 %v4505
  %6809 = vmatprep.subr.mxu0 0.0
  %6810 = vmatpush1.msra.mxu0 %v4504
  %6811 = vmatprep.subr.mxu0 0.0
  %6812 = vmatpush1.msra.mxu0 %v4503
  %6813 = vmatprep.subr.mxu0 0.0
  %6814 = vmatpush1.msra.mxu0 %v4502
  %6815 = vmatprep.subr.mxu0 0.0
  %6816 = vmatpush2.msra.mxu0 0.0
  %6817 = vmatprep.subr.mxu0 0.0
  %6818 = vmatpush2.msra.mxu0 0.0
  %6819 = vmatprep.subr.mxu0 0.0
  %6820 = vmatpush2.msra.mxu0 0.0
  %6821 = vmatprep.subr.mxu0 0.0
  %6822 = vmatpush2.msra.mxu0 0.0
  %6823 = vmatprep.subr.mxu0 0.0
  %6824 = vmatpush2.msra.mxu0 0.0
  %6825 = vmatprep.subr.mxu0 0.0
  %6826 = vmatpush2.msra.mxu0 0.0
  %6827 = vmatprep.subr.mxu0 0.0
  %6828 = vmatpush2.msra.mxu0 0.0
  %6829 = vmatprep.subr.mxu0 0.0
  %6830 = vmatpush2.msra.mxu0 0.0
  %6831 = vmatprep.subr.mxu0 0.0
  %6832 = vmatpush2.msra.mxu0 0.0
  %6833 = vmatprep.subr.mxu0 0.0
  %6834 = vmatpush2.msra.mxu0 0.0
  %6835 = vmatprep.subr.mxu0 0.0
  %6836 = vmatpush2.msra.mxu0 0.0
  %6837 = vmatprep.subr.mxu0 0.0
  %6838 = vmatpush2.msra.mxu0 0.0
  %6839 = vmatprep.subr.mxu0 0.0
  %6840 = vmatpush2.msra.mxu0 0.0
  %6841 = vmatprep.subr.mxu0 0.0
  %6842 = vmatpush2.msra.mxu0 0.0
  %6843 = vmatprep.subr.mxu0 0.0
  %6844 = vmatpush2.msra.mxu0 0.0
  %6845 = vmatprep.subr.mxu0 0.0
  %6846 = vmatpush2.msra.mxu0 0.0
  %6847 = vmatprep.mubr.f32.mxu0 0.0
  %6848 = vmatmul.mubr.f32.gmra.mxu0 %v6778
  %v6849 = vpop.f32.mrf.mxu0
  %v6850 = vadd.f32 0.0, %v6849
  %v6851 = vpop.f32.mrf.mxu0
  %6852 = vmatprep.mubr.f32.mxu0 0.0
  %6853 = vmatmul.mubr.f32.gmra.mxu0 %v6781
  %v6854 = vpop.f32.mrf.mxu0
  %v6855 = vadd.f32 0.0, %v6854
  %v6856 = vpop.f32.mrf.mxu0
  %6857 = vdwg.mxu0
  %v6859 = vsel %vm326, %v4352, 0
  %v6862 = vsel %vm326, %v4353, 0
  %6864 = vmatprep.subr.mxu0 0.0
  %6865 = vmatpush1.msra.mxu0 0.0
  %6866 = vmatprep.subr.mxu0 0.0
  %6867 = vmatpush1.msra.mxu0 0.0
  %6868 = vmatprep.subr.mxu0 0.0
  %6869 = vmatpush1.msra.mxu0 0.0
  %6870 = vmatprep.subr.mxu0 0.0
  %6871 = vmatpush1.msra.mxu0 0.0
  %6872 = vmatprep.subr.mxu0 0.0
  %6873 = vmatpush1.msra.mxu0 0.0
  %6874 = vmatprep.subr.mxu0 0.0
  %6875 = vmatpush1.msra.mxu0 0.0
  %6876 = vmatprep.subr.mxu0 0.0
  %6877 = vmatpush1.msra.mxu0 0.0
  %6878 = vmatprep.subr.mxu0 0.0
  %6879 = vmatpush1.msra.mxu0 0.0
  %6880 = vmatprep.subr.mxu0 0.0
  %6881 = vmatpush1.msra.mxu0 0.0
  %6882 = vmatprep.subr.mxu0 0.0
  %6883 = vmatpush1.msra.mxu0 0.0
  %6884 = vmatprep.subr.mxu0 0.0
  %6885 = vmatpush1.msra.mxu0 0.0
  %6886 = vmatprep.subr.mxu0 0.0
  %6887 = vmatpush1.msra.mxu0 0.0
  %6888 = vmatprep.subr.mxu0 0.0
  %6889 = vmatpush1.msra.mxu0 %v4509
  %6890 = vmatprep.subr.mxu0 0.0
  %6891 = vmatpush1.msra.mxu0 %v4508
  %6892 = vmatprep.subr.mxu0 0.0
  %6893 = vmatpush1.msra.mxu0 %v4507
  %6894 = vmatprep.subr.mxu0 0.0
  %6895 = vmatpush1.msra.mxu0 %v4506
  %6896 = vmatprep.subr.mxu0 0.0
  %6897 = vmatpush2.msra.mxu0 0.0
  %6898 = vmatprep.subr.mxu0 0.0
  %6899 = vmatpush2.msra.mxu0 0.0
  %6900 = vmatprep.subr.mxu0 0.0
  %6901 = vmatpush2.msra.mxu0 0.0
  %6902 = vmatprep.subr.mxu0 0.0
  %6903 = vmatpush2.msra.mxu0 0.0
  %6904 = vmatprep.subr.mxu0 0.0
  %6905 = vmatpush2.msra.mxu0 0.0
  %6906 = vmatprep.subr.mxu0 0.0
  %6907 = vmatpush2.msra.mxu0 0.0
  %6908 = vmatprep.subr.mxu0 0.0
  %6909 = vmatpush2.msra.mxu0 0.0
  %6910 = vmatprep.subr.mxu0 0.0
  %6911 = vmatpush2.msra.mxu0 0.0
  %6912 = vmatprep.subr.mxu0 0.0
  %6913 = vmatpush2.msra.mxu0 0.0
  %6914 = vmatprep.subr.mxu0 0.0
  %6915 = vmatpush2.msra.mxu0 0.0
  %6916 = vmatprep.subr.mxu0 0.0
  %6917 = vmatpush2.msra.mxu0 0.0
  %6918 = vmatprep.subr.mxu0 0.0
  %6919 = vmatpush2.msra.mxu0 0.0
  %6920 = vmatprep.subr.mxu0 0.0
  %6921 = vmatpush2.msra.mxu0 0.0
  %6922 = vmatprep.subr.mxu0 0.0
  %6923 = vmatpush2.msra.mxu0 0.0
  %6924 = vmatprep.subr.mxu0 0.0
  %6925 = vmatpush2.msra.mxu0 0.0
  %6926 = vmatprep.subr.mxu0 0.0
  %6927 = vmatpush2.msra.mxu0 0.0
  %6928 = vmatprep.mubr.f32.mxu0 0.0
  %6929 = vmatmul.mubr.f32.gmra.mxu0 %v6859
  %v6930 = vpop.f32.mrf.mxu0
  %v6931 = vadd.f32 0.0, %v6930
  %v6932 = vpop.f32.mrf.mxu0
  %6933 = vmatprep.mubr.f32.mxu0 0.0
  %6934 = vmatmul.mubr.f32.gmra.mxu0 %v6862
  %v6935 = vpop.f32.mrf.mxu0
  %v6936 = vadd.f32 0.0, %v6935
  %v6937 = vpop.f32.mrf.mxu0
  %6938 = vdwg.mxu0
  %v6940 = vsel %vm326, %v4354, 0
  %v6943 = vsel %vm326, %v4355, 0
  %6945 = vmatprep.subr.mxu0 0.0
  %6946 = vmatpush1.msra.mxu0 0.0
  %6947 = vmatprep.subr.mxu0 0.0
  %6948 = vmatpush1.msra.mxu0 0.0
  %6949 = vmatprep.subr.mxu0 0.0
  %6950 = vmatpush1.msra.mxu0 0.0
  %6951 = vmatprep.subr.mxu0 0.0
  %6952 = vmatpush1.msra.mxu0 0.0
  %6953 = vmatprep.subr.mxu0 0.0
  %6954 = vmatpush1.msra.mxu0 0.0
  %6955 = vmatprep.subr.mxu0 0.0
  %6956 = vmatpush1.msra.mxu0 0.0
  %6957 = vmatprep.subr.mxu0 0.0
  %6958 = vmatpush1.msra.mxu0 0.0
  %6959 = vmatprep.subr.mxu0 0.0
  %6960 = vmatpush1.msra.mxu0 0.0
  %6961 = vmatprep.subr.mxu0 0.0
  %6962 = vmatpush1.msra.mxu0 0.0
  %6963 = vmatprep.subr.mxu0 0.0
  %6964 = vmatpush1.msra.mxu0 0.0
  %6965 = vmatprep.subr.mxu0 0.0
  %6966 = vmatpush1.msra.mxu0 0.0
  %6967 = vmatprep.subr.mxu0 0.0
  %6968 = vmatpush1.msra.mxu0 0.0
  %6969 = vmatprep.subr.mxu0 0.0
  %6970 = vmatpush1.msra.mxu0 %v4513
  %6971 = vmatprep.subr.mxu0 0.0
  %6972 = vmatpush1.msra.mxu0 %v4512
  %6973 = vmatprep.subr.mxu0 0.0
  %6974 = vmatpush1.msra.mxu0 %v4511
  %6975 = vmatprep.subr.mxu0 0.0
  %6976 = vmatpush1.msra.mxu0 %v4510
  %6977 = vmatprep.subr.mxu0 0.0
  %6978 = vmatpush2.msra.mxu0 0.0
  %6979 = vmatprep.subr.mxu0 0.0
  %6980 = vmatpush2.msra.mxu0 0.0
  %6981 = vmatprep.subr.mxu0 0.0
  %6982 = vmatpush2.msra.mxu0 0.0
  %6983 = vmatprep.subr.mxu0 0.0
  %6984 = vmatpush2.msra.mxu0 0.0
  %6985 = vmatprep.subr.mxu0 0.0
  %6986 = vmatpush2.msra.mxu0 0.0
  %6987 = vmatprep.subr.mxu0 0.0
  %6988 = vmatpush2.msra.mxu0 0.0
  %6989 = vmatprep.subr.mxu0 0.0
  %6990 = vmatpush2.msra.mxu0 0.0
  %6991 = vmatprep.subr.mxu0 0.0
  %6992 = vmatpush2.msra.mxu0 0.0
  %6993 = vmatprep.subr.mxu0 0.0
  %6994 = vmatpush2.msra.mxu0 0.0
  %6995 = vmatprep.subr.mxu0 0.0
  %6996 = vmatpush2.msra.mxu0 0.0
  %6997 = vmatprep.subr.mxu0 0.0
  %6998 = vmatpush2.msra.mxu0 0.0
  %6999 = vmatprep.subr.mxu0 0.0
  %7000 = vmatpush2.msra.mxu0 0.0
  %7001 = vmatprep.subr.mxu0 0.0
  %7002 = vmatpush2.msra.mxu0 0.0
  %7003 = vmatprep.subr.mxu0 0.0
  %7004 = vmatpush2.msra.mxu0 0.0
  %7005 = vmatprep.subr.mxu0 0.0
  %7006 = vmatpush2.msra.mxu0 0.0
  %7007 = vmatprep.subr.mxu0 0.0
  %7008 = vmatpush2.msra.mxu0 0.0
  %7009 = vmatprep.mubr.f32.mxu0 0.0
  %7010 = vmatmul.mubr.f32.gmra.mxu0 %v6940
  %v7011 = vpop.f32.mrf.mxu0
  %v7012 = vadd.f32 0.0, %v7011
  %v7013 = vpop.f32.mrf.mxu0
  %7014 = vmatprep.mubr.f32.mxu0 0.0
  %7015 = vmatmul.mubr.f32.gmra.mxu0 %v6943
  %v7016 = vpop.f32.mrf.mxu0
  %v7017 = vadd.f32 0.0, %v7016
  %v7018 = vpop.f32.mrf.mxu0
  %7019 = vdwg.mxu0
  %v7021 = vsel %vm326, %v4356, 0
  %v7024 = vsel %vm326, %v4357, 0
  %7026 = vmatprep.subr.mxu0 0.0
  %7027 = vmatpush1.msra.mxu0 0.0
  %7028 = vmatprep.subr.mxu0 0.0
  %7029 = vmatpush1.msra.mxu0 0.0
  %7030 = vmatprep.subr.mxu0 0.0
  %7031 = vmatpush1.msra.mxu0 0.0
  %7032 = vmatprep.subr.mxu0 0.0
  %7033 = vmatpush1.msra.mxu0 0.0
  %7034 = vmatprep.subr.mxu0 0.0
  %7035 = vmatpush1.msra.mxu0 0.0
  %7036 = vmatprep.subr.mxu0 0.0
  %7037 = vmatpush1.msra.mxu0 0.0
  %7038 = vmatprep.subr.mxu0 0.0
  %7039 = vmatpush1.msra.mxu0 0.0
  %7040 = vmatprep.subr.mxu0 0.0
  %7041 = vmatpush1.msra.mxu0 0.0
  %7042 = vmatprep.subr.mxu0 0.0
  %7043 = vmatpush1.msra.mxu0 0.0
  %7044 = vmatprep.subr.mxu0 0.0
  %7045 = vmatpush1.msra.mxu0 0.0
  %7046 = vmatprep.subr.mxu0 0.0
  %7047 = vmatpush1.msra.mxu0 0.0
  %7048 = vmatprep.subr.mxu0 0.0
  %7049 = vmatpush1.msra.mxu0 0.0
  %7050 = vmatprep.subr.mxu0 0.0
  %7051 = vmatpush1.msra.mxu0 %v4517
  %7052 = vmatprep.subr.mxu0 0.0
  %7053 = vmatpush1.msra.mxu0 %v4516
  %7054 = vmatprep.subr.mxu0 0.0
  %7055 = vmatpush1.msra.mxu0 %v4515
  %7056 = vmatprep.subr.mxu0 0.0
  %7057 = vmatpush1.msra.mxu0 %v4514
  %7058 = vmatprep.subr.mxu0 0.0
  %7059 = vmatpush2.msra.mxu0 0.0
  %7060 = vmatprep.subr.mxu0 0.0
  %7061 = vmatpush2.msra.mxu0 0.0
  %7062 = vmatprep.subr.mxu0 0.0
  %7063 = vmatpush2.msra.mxu0 0.0
  %7064 = vmatprep.subr.mxu0 0.0
  %7065 = vmatpush2.msra.mxu0 0.0
  %7066 = vmatprep.subr.mxu0 0.0
  %7067 = vmatpush2.msra.mxu0 0.0
  %7068 = vmatprep.subr.mxu0 0.0
  %7069 = vmatpush2.msra.mxu0 0.0
  %7070 = vmatprep.subr.mxu0 0.0
  %7071 = vmatpush2.msra.mxu0 0.0
  %7072 = vmatprep.subr.mxu0 0.0
  %7073 = vmatpush2.msra.mxu0 0.0
  %7074 = vmatprep.subr.mxu0 0.0
  %7075 = vmatpush2.msra.mxu0 0.0
  %7076 = vmatprep.subr.mxu0 0.0
  %7077 = vmatpush2.msra.mxu0 0.0
  %7078 = vmatprep.subr.mxu0 0.0
  %7079 = vmatpush2.msra.mxu0 0.0
  %7080 = vmatprep.subr.mxu0 0.0
  %7081 = vmatpush2.msra.mxu0 0.0
  %7082 = vmatprep.subr.mxu0 0.0
  %7083 = vmatpush2.msra.mxu0 0.0
  %7084 = vmatprep.subr.mxu0 0.0
  %7085 = vmatpush2.msra.mxu0 0.0
  %7086 = vmatprep.subr.mxu0 0.0
  %7087 = vmatpush2.msra.mxu0 0.0
  %7088 = vmatprep.subr.mxu0 0.0
  %7089 = vmatpush2.msra.mxu0 0.0
  %7090 = vmatprep.mubr.f32.mxu0 0.0
  %7091 = vmatmul.mubr.f32.gmra.mxu0 %v7021
  %v7092 = vpop.f32.mrf.mxu0
  %v7093 = vadd.f32 0.0, %v7092
  %v7094 = vpop.f32.mrf.mxu0
  %7095 = vmatprep.mubr.f32.mxu0 0.0
  %7096 = vmatmul.mubr.f32.gmra.mxu0 %v7024
  %v7097 = vpop.f32.mrf.mxu0
  %v7098 = vadd.f32 0.0, %v7097
  %v7099 = vpop.f32.mrf.mxu0
  %7100 = vdwg.mxu0
  %v7102 = vsel %vm326, %v4358, 0
  %v7105 = vsel %vm326, %v4359, 0
  %7107 = vmatprep.subr.mxu0 0.0
  %7108 = vmatpush1.msra.mxu0 0.0
  %7109 = vmatprep.subr.mxu0 0.0
  %7110 = vmatpush1.msra.mxu0 0.0
  %7111 = vmatprep.subr.mxu0 0.0
  %7112 = vmatpush1.msra.mxu0 0.0
  %7113 = vmatprep.subr.mxu0 0.0
  %7114 = vmatpush1.msra.mxu0 0.0
  %7115 = vmatprep.subr.mxu0 0.0
  %7116 = vmatpush1.msra.mxu0 0.0
  %7117 = vmatprep.subr.mxu0 0.0
  %7118 = vmatpush1.msra.mxu0 0.0
  %7119 = vmatprep.subr.mxu0 0.0
  %7120 = vmatpush1.msra.mxu0 0.0
  %7121 = vmatprep.subr.mxu0 0.0
  %7122 = vmatpush1.msra.mxu0 0.0
  %7123 = vmatprep.subr.mxu0 0.0
  %7124 = vmatpush1.msra.mxu0 0.0
  %7125 = vmatprep.subr.mxu0 0.0
  %7126 = vmatpush1.msra.mxu0 0.0
  %7127 = vmatprep.subr.mxu0 0.0
  %7128 = vmatpush1.msra.mxu0 0.0
  %7129 = vmatprep.subr.mxu0 0.0
  %7130 = vmatpush1.msra.mxu0 0.0
  %7131 = vmatprep.subr.mxu0 0.0
  %7132 = vmatpush1.msra.mxu0 %v4521
  %7133 = vmatprep.subr.mxu0 0.0
  %7134 = vmatpush1.msra.mxu0 %v4520
  %7135 = vmatprep.subr.mxu0 0.0
  %7136 = vmatpush1.msra.mxu0 %v4519
  %7137 = vmatprep.subr.mxu0 0.0
  %7138 = vmatpush1.msra.mxu0 %v4518
  %7139 = vmatprep.subr.mxu0 0.0
  %7140 = vmatpush2.msra.mxu0 0.0
  %7141 = vmatprep.subr.mxu0 0.0
  %7142 = vmatpush2.msra.mxu0 0.0
  %7143 = vmatprep.subr.mxu0 0.0
  %7144 = vmatpush2.msra.mxu0 0.0
  %7145 = vmatprep.subr.mxu0 0.0
  %7146 = vmatpush2.msra.mxu0 0.0
  %7147 = vmatprep.subr.mxu0 0.0
  %7148 = vmatpush2.msra.mxu0 0.0
  %7149 = vmatprep.subr.mxu0 0.0
  %7150 = vmatpush2.msra.mxu0 0.0
  %7151 = vmatprep.subr.mxu0 0.0
  %7152 = vmatpush2.msra.mxu0 0.0
  %7153 = vmatprep.subr.mxu0 0.0
  %7154 = vmatpush2.msra.mxu0 0.0
  %7155 = vmatprep.subr.mxu0 0.0
  %7156 = vmatpush2.msra.mxu0 0.0
  %7157 = vmatprep.subr.mxu0 0.0
  %7158 = vmatpush2.msra.mxu0 0.0
  %7159 = vmatprep.subr.mxu0 0.0
  %7160 = vmatpush2.msra.mxu0 0.0
  %7161 = vmatprep.subr.mxu0 0.0
  %7162 = vmatpush2.msra.mxu0 0.0
  %7163 = vmatprep.subr.mxu0 0.0
  %7164 = vmatpush2.msra.mxu0 0.0
  %7165 = vmatprep.subr.mxu0 0.0
  %7166 = vmatpush2.msra.mxu0 0.0
  %7167 = vmatprep.subr.mxu0 0.0
  %7168 = vmatpush2.msra.mxu0 0.0
  %7169 = vmatprep.subr.mxu0 0.0
  %7170 = vmatpush2.msra.mxu0 0.0
  %7171 = vmatprep.mubr.f32.mxu0 0.0
  %7172 = vmatmul.mubr.f32.gmra.mxu0 %v7102
  %v7173 = vpop.f32.mrf.mxu0
  %v7174 = vadd.f32 0.0, %v7173
  %v7175 = vpop.f32.mrf.mxu0
  %7176 = vmatprep.mubr.f32.mxu0 0.0
  %7177 = vmatmul.mubr.f32.gmra.mxu0 %v7105
  %v7178 = vpop.f32.mrf.mxu0
  %v7179 = vadd.f32 0.0, %v7178
  %v7180 = vpop.f32.mrf.mxu0
  %7181 = vdwg.mxu0
  %v7183 = vsel %vm326, %v4360, 0
  %v7186 = vsel %vm326, %v4361, 0
  %7188 = vmatprep.subr.mxu0 0.0
  %7189 = vmatpush1.msra.mxu0 0.0
  %7190 = vmatprep.subr.mxu0 0.0
  %7191 = vmatpush1.msra.mxu0 0.0
  %7192 = vmatprep.subr.mxu0 0.0
  %7193 = vmatpush1.msra.mxu0 0.0
  %7194 = vmatprep.subr.mxu0 0.0
  %7195 = vmatpush1.msra.mxu0 0.0
  %7196 = vmatprep.subr.mxu0 0.0
  %7197 = vmatpush1.msra.mxu0 0.0
  %7198 = vmatprep.subr.mxu0 0.0
  %7199 = vmatpush1.msra.mxu0 0.0
  %7200 = vmatprep.subr.mxu0 0.0
  %7201 = vmatpush1.msra.mxu0 0.0
  %7202 = vmatprep.subr.mxu0 0.0
  %7203 = vmatpush1.msra.mxu0 0.0
  %7204 = vmatprep.subr.mxu0 0.0
  %7205 = vmatpush1.msra.mxu0 0.0
  %7206 = vmatprep.subr.mxu0 0.0
  %7207 = vmatpush1.msra.mxu0 0.0
  %7208 = vmatprep.subr.mxu0 0.0
  %7209 = vmatpush1.msra.mxu0 0.0
  %7210 = vmatprep.subr.mxu0 0.0
  %7211 = vmatpush1.msra.mxu0 0.0
  %7212 = vmatprep.subr.mxu0 0.0
  %7213 = vmatpush1.msra.mxu0 %v4525
  %7214 = vmatprep.subr.mxu0 0.0
  %7215 = vmatpush1.msra.mxu0 %v4524
  %7216 = vmatprep.subr.mxu0 0.0
  %7217 = vmatpush1.msra.mxu0 %v4523
  %7218 = vmatprep.subr.mxu0 0.0
  %7219 = vmatpush1.msra.mxu0 %v4522
  %7220 = vmatprep.subr.mxu0 0.0
  %7221 = vmatpush2.msra.mxu0 0.0
  %7222 = vmatprep.subr.mxu0 0.0
  %7223 = vmatpush2.msra.mxu0 0.0
  %7224 = vmatprep.subr.mxu0 0.0
  %7225 = vmatpush2.msra.mxu0 0.0
  %7226 = vmatprep.subr.mxu0 0.0
  %7227 = vmatpush2.msra.mxu0 0.0
  %7228 = vmatprep.subr.mxu0 0.0
  %7229 = vmatpush2.msra.mxu0 0.0
  %7230 = vmatprep.subr.mxu0 0.0
  %7231 = vmatpush2.msra.mxu0 0.0
  %7232 = vmatprep.subr.mxu0 0.0
  %7233 = vmatpush2.msra.mxu0 0.0
  %7234 = vmatprep.subr.mxu0 0.0
  %7235 = vmatpush2.msra.mxu0 0.0
  %7236 = vmatprep.subr.mxu0 0.0
  %7237 = vmatpush2.msra.mxu0 0.0
  %7238 = vmatprep.subr.mxu0 0.0
  %7239 = vmatpush2.msra.mxu0 0.0
  %7240 = vmatprep.subr.mxu0 0.0
  %7241 = vmatpush2.msra.mxu0 0.0
  %7242 = vmatprep.subr.mxu0 0.0
  %7243 = vmatpush2.msra.mxu0 0.0
  %7244 = vmatprep.subr.mxu0 0.0
  %7245 = vmatpush2.msra.mxu0 0.0
  %7246 = vmatprep.subr.mxu0 0.0
  %7247 = vmatpush2.msra.mxu0 0.0
  %7248 = vmatprep.subr.mxu0 0.0
  %7249 = vmatpush2.msra.mxu0 0.0
  %7250 = vmatprep.subr.mxu0 0.0
  %7251 = vmatpush2.msra.mxu0 0.0
  %7252 = vmatprep.mubr.f32.mxu0 0.0
  %7253 = vmatmul.mubr.f32.gmra.mxu0 %v7183
  %v7254 = vpop.f32.mrf.mxu0
  %v7255 = vadd.f32 0.0, %v7254
  %v7256 = vpop.f32.mrf.mxu0
  %7257 = vmatprep.mubr.f32.mxu0 0.0
  %7258 = vmatmul.mubr.f32.gmra.mxu0 %v7186
  %v7259 = vpop.f32.mrf.mxu0
  %v7260 = vadd.f32 0.0, %v7259
  %v7261 = vpop.f32.mrf.mxu0
  %7262 = vdwg.mxu0
  %v7264 = vsel %vm326, %v4362, 0
  %v7267 = vsel %vm326, %v4363, 0
  %7269 = vmatprep.subr.mxu0 0.0
  %7270 = vmatpush1.msra.mxu0 0.0
  %7271 = vmatprep.subr.mxu0 0.0
  %7272 = vmatpush1.msra.mxu0 0.0
  %7273 = vmatprep.subr.mxu0 0.0
  %7274 = vmatpush1.msra.mxu0 0.0
  %7275 = vmatprep.subr.mxu0 0.0
  %7276 = vmatpush1.msra.mxu0 0.0
  %7277 = vmatprep.subr.mxu0 0.0
  %7278 = vmatpush1.msra.mxu0 0.0
  %7279 = vmatprep.subr.mxu0 0.0
  %7280 = vmatpush1.msra.mxu0 0.0
  %7281 = vmatprep.subr.mxu0 0.0
  %7282 = vmatpush1.msra.mxu0 0.0
  %7283 = vmatprep.subr.mxu0 0.0
  %7284 = vmatpush1.msra.mxu0 0.0
  %7285 = vmatprep.subr.mxu0 0.0
  %7286 = vmatpush1.msra.mxu0 0.0
  %7287 = vmatprep.subr.mxu0 0.0
  %7288 = vmatpush1.msra.mxu0 0.0
  %7289 = vmatprep.subr.mxu0 0.0
  %7290 = vmatpush1.msra.mxu0 0.0
  %7291 = vmatprep.subr.mxu0 0.0
  %7292 = vmatpush1.msra.mxu0 0.0
  %7293 = vmatprep.subr.mxu0 0.0
  %7294 = vmatpush1.msra.mxu0 %v4529
  %7295 = vmatprep.subr.mxu0 0.0
  %7296 = vmatpush1.msra.mxu0 %v4528
  %7297 = vmatprep.subr.mxu0 0.0
  %7298 = vmatpush1.msra.mxu0 %v4527
  %7299 = vmatprep.subr.mxu0 0.0
  %7300 = vmatpush1.msra.mxu0 %v4526
  %7301 = vmatprep.subr.mxu0 0.0
  %7302 = vmatpush2.msra.mxu0 0.0
  %7303 = vmatprep.subr.mxu0 0.0
  %7304 = vmatpush2.msra.mxu0 0.0
  %7305 = vmatprep.subr.mxu0 0.0
  %7306 = vmatpush2.msra.mxu0 0.0
  %7307 = vmatprep.subr.mxu0 0.0
  %7308 = vmatpush2.msra.mxu0 0.0
  %7309 = vmatprep.subr.mxu0 0.0
  %7310 = vmatpush2.msra.mxu0 0.0
  %7311 = vmatprep.subr.mxu0 0.0
  %7312 = vmatpush2.msra.mxu0 0.0
  %7313 = vmatprep.subr.mxu0 0.0
  %7314 = vmatpush2.msra.mxu0 0.0
  %7315 = vmatprep.subr.mxu0 0.0
  %7316 = vmatpush2.msra.mxu0 0.0
  %7317 = vmatprep.subr.mxu0 0.0
  %7318 = vmatpush2.msra.mxu0 0.0
  %7319 = vmatprep.subr.mxu0 0.0
  %7320 = vmatpush2.msra.mxu0 0.0
  %7321 = vmatprep.subr.mxu0 0.0
  %7322 = vmatpush2.msra.mxu0 0.0
  %7323 = vmatprep.subr.mxu0 0.0
  %7324 = vmatpush2.msra.mxu0 0.0
  %7325 = vmatprep.subr.mxu0 0.0
  %7326 = vmatpush2.msra.mxu0 0.0
  %7327 = vmatprep.subr.mxu0 0.0
  %7328 = vmatpush2.msra.mxu0 0.0
  %7329 = vmatprep.subr.mxu0 0.0
  %7330 = vmatpush2.msra.mxu0 0.0
  %7331 = vmatprep.subr.mxu0 0.0
  %7332 = vmatpush2.msra.mxu0 0.0
  %7333 = vmatprep.mubr.f32.mxu0 0.0
  %7334 = vmatmul.mubr.f32.gmra.mxu0 %v7264
  %v7335 = vpop.f32.mrf.mxu0
  %v7336 = vadd.f32 0.0, %v7335
  %v7337 = vpop.f32.mrf.mxu0
  %7338 = vmatprep.mubr.f32.mxu0 0.0
  %7339 = vmatmul.mubr.f32.gmra.mxu0 %v7267
  %v7340 = vpop.f32.mrf.mxu0
  %v7341 = vadd.f32 0.0, %v7340
  %v7342 = vpop.f32.mrf.mxu0
  %7343 = vdwg.mxu0
  %v7345 = vsel %vm326, %v4364, 0
  %v7348 = vsel %vm326, %v4365, 0
  %7350 = vmatprep.subr.mxu0 0.0
  %7351 = vmatpush1.msra.mxu0 0.0
  %7352 = vmatprep.subr.mxu0 0.0
  %7353 = vmatpush1.msra.mxu0 0.0
  %7354 = vmatprep.subr.mxu0 0.0
  %7355 = vmatpush1.msra.mxu0 0.0
  %7356 = vmatprep.subr.mxu0 0.0
  %7357 = vmatpush1.msra.mxu0 0.0
  %7358 = vmatprep.subr.mxu0 0.0
  %7359 = vmatpush1.msra.mxu0 0.0
  %7360 = vmatprep.subr.mxu0 0.0
  %7361 = vmatpush1.msra.mxu0 0.0
  %7362 = vmatprep.subr.mxu0 0.0
  %7363 = vmatpush1.msra.mxu0 0.0
  %7364 = vmatprep.subr.mxu0 0.0
  %7365 = vmatpush1.msra.mxu0 0.0
  %7366 = vmatprep.subr.mxu0 0.0
  %7367 = vmatpush1.msra.mxu0 0.0
  %7368 = vmatprep.subr.mxu0 0.0
  %7369 = vmatpush1.msra.mxu0 0.0
  %7370 = vmatprep.subr.mxu0 0.0
  %7371 = vmatpush1.msra.mxu0 0.0
  %7372 = vmatprep.subr.mxu0 0.0
  %7373 = vmatpush1.msra.mxu0 0.0
  %7374 = vmatprep.subr.mxu0 0.0
  %7375 = vmatpush1.msra.mxu0 %v4533
  %7376 = vmatprep.subr.mxu0 0.0
  %7377 = vmatpush1.msra.mxu0 %v4532
  %7378 = vmatprep.subr.mxu0 0.0
  %7379 = vmatpush1.msra.mxu0 %v4531
  %7380 = vmatprep.subr.mxu0 0.0
  %7381 = vmatpush1.msra.mxu0 %v4530
  %7382 = vmatprep.subr.mxu0 0.0
  %7383 = vmatpush2.msra.mxu0 0.0
  %7384 = vmatprep.subr.mxu0 0.0
  %7385 = vmatpush2.msra.mxu0 0.0
  %7386 = vmatprep.subr.mxu0 0.0
  %7387 = vmatpush2.msra.mxu0 0.0
  %7388 = vmatprep.subr.mxu0 0.0
  %7389 = vmatpush2.msra.mxu0 0.0
  %7390 = vmatprep.subr.mxu0 0.0
  %7391 = vmatpush2.msra.mxu0 0.0
  %7392 = vmatprep.subr.mxu0 0.0
  %7393 = vmatpush2.msra.mxu0 0.0
  %7394 = vmatprep.subr.mxu0 0.0
  %7395 = vmatpush2.msra.mxu0 0.0
  %7396 = vmatprep.subr.mxu0 0.0
  %7397 = vmatpush2.msra.mxu0 0.0
  %7398 = vmatprep.subr.mxu0 0.0
  %7399 = vmatpush2.msra.mxu0 0.0
  %7400 = vmatprep.subr.mxu0 0.0
  %7401 = vmatpush2.msra.mxu0 0.0
  %7402 = vmatprep.subr.mxu0 0.0
  %7403 = vmatpush2.msra.mxu0 0.0
  %7404 = vmatprep.subr.mxu0 0.0
  %7405 = vmatpush2.msra.mxu0 0.0
  %7406 = vmatprep.subr.mxu0 0.0
  %7407 = vmatpush2.msra.mxu0 0.0
  %7408 = vmatprep.subr.mxu0 0.0
  %7409 = vmatpush2.msra.mxu0 0.0
  %7410 = vmatprep.subr.mxu0 0.0
  %7411 = vmatpush2.msra.mxu0 0.0
  %7412 = vmatprep.subr.mxu0 0.0
  %7413 = vmatpush2.msra.mxu0 0.0
  %7414 = vmatprep.mubr.f32.mxu0 0.0
  %7415 = vmatmul.mubr.f32.gmra.mxu0 %v7345
  %v7416 = vpop.f32.mrf.mxu0
  %v7417 = vadd.f32 0.0, %v7416
  %v7418 = vpop.f32.mrf.mxu0
  %7419 = vmatprep.mubr.f32.mxu0 0.0
  %7420 = vmatmul.mubr.f32.gmra.mxu0 %v7348
  %v7421 = vpop.f32.mrf.mxu0
  %v7422 = vadd.f32 0.0, %v7421
  %v7423 = vpop.f32.mrf.mxu0
  %7424 = vdwg.mxu0
  %v7426 = vsel %vm326, %v4366, 0
  %v7429 = vsel %vm326, %v4367, 0
  %7431 = vmatprep.subr.mxu0 0.0
  %7432 = vmatpush1.msra.mxu0 0.0
  %7433 = vmatprep.subr.mxu0 0.0
  %7434 = vmatpush1.msra.mxu0 0.0
  %7435 = vmatprep.subr.mxu0 0.0
  %7436 = vmatpush1.msra.mxu0 0.0
  %7437 = vmatprep.subr.mxu0 0.0
  %7438 = vmatpush1.msra.mxu0 0.0
  %7439 = vmatprep.subr.mxu0 0.0
  %7440 = vmatpush1.msra.mxu0 0.0
  %7441 = vmatprep.subr.mxu0 0.0
  %7442 = vmatpush1.msra.mxu0 0.0
  %7443 = vmatprep.subr.mxu0 0.0
  %7444 = vmatpush1.msra.mxu0 0.0
  %7445 = vmatprep.subr.mxu0 0.0
  %7446 = vmatpush1.msra.mxu0 0.0
  %7447 = vmatprep.subr.mxu0 0.0
  %7448 = vmatpush1.msra.mxu0 0.0
  %7449 = vmatprep.subr.mxu0 0.0
  %7450 = vmatpush1.msra.mxu0 0.0
  %7451 = vmatprep.subr.mxu0 0.0
  %7452 = vmatpush1.msra.mxu0 0.0
  %7453 = vmatprep.subr.mxu0 0.0
  %7454 = vmatpush1.msra.mxu0 0.0
  %7455 = vmatprep.subr.mxu0 0.0
  %7456 = vmatpush1.msra.mxu0 %v4537
  %7457 = vmatprep.subr.mxu0 0.0
  %7458 = vmatpush1.msra.mxu0 %v4536
  %7459 = vmatprep.subr.mxu0 0.0
  %7460 = vmatpush1.msra.mxu0 %v4535
  %7461 = vmatprep.subr.mxu0 0.0
  %7462 = vmatpush1.msra.mxu0 %v4534
  %7463 = vmatprep.subr.mxu0 0.0
  %7464 = vmatpush2.msra.mxu0 0.0
  %7465 = vmatprep.subr.mxu0 0.0
  %7466 = vmatpush2.msra.mxu0 0.0
  %7467 = vmatprep.subr.mxu0 0.0
  %7468 = vmatpush2.msra.mxu0 0.0
  %7469 = vmatprep.subr.mxu0 0.0
  %7470 = vmatpush2.msra.mxu0 0.0
  %7471 = vmatprep.subr.mxu0 0.0
  %7472 = vmatpush2.msra.mxu0 0.0
  %7473 = vmatprep.subr.mxu0 0.0
  %7474 = vmatpush2.msra.mxu0 0.0
  %7475 = vmatprep.subr.mxu0 0.0
  %7476 = vmatpush2.msra.mxu0 0.0
  %7477 = vmatprep.subr.mxu0 0.0
  %7478 = vmatpush2.msra.mxu0 0.0
  %7479 = vmatprep.subr.mxu0 0.0
  %7480 = vmatpush2.msra.mxu0 0.0
  %7481 = vmatprep.subr.mxu0 0.0
  %7482 = vmatpush2.msra.mxu0 0.0
  %7483 = vmatprep.subr.mxu0 0.0
  %7484 = vmatpush2.msra.mxu0 0.0
  %7485 = vmatprep.subr.mxu0 0.0
  %7486 = vmatpush2.msra.mxu0 0.0
  %7487 = vmatprep.subr.mxu0 0.0
  %7488 = vmatpush2.msra.mxu0 0.0
  %7489 = vmatprep.subr.mxu0 0.0
  %7490 = vmatpush2.msra.mxu0 0.0
  %7491 = vmatprep.subr.mxu0 0.0
  %7492 = vmatpush2.msra.mxu0 0.0
  %7493 = vmatprep.subr.mxu0 0.0
  %7494 = vmatpush2.msra.mxu0 0.0
  %7495 = vmatprep.mubr.f32.mxu0 0.0
  %7496 = vmatmul.mubr.f32.gmra.mxu0 %v7426
  %v7497 = vpop.f32.mrf.mxu0
  %v7498 = vadd.f32 0.0, %v7497
  %v7499 = vpop.f32.mrf.mxu0
  %7500 = vmatprep.mubr.f32.mxu0 0.0
  %7501 = vmatmul.mubr.f32.gmra.mxu0 %v7429
  %v7502 = vpop.f32.mrf.mxu0
  %v7503 = vadd.f32 0.0, %v7502
  %v7504 = vpop.f32.mrf.mxu0
  %7505 = vdwg.mxu0
  %v7507 = vsel %vm326, %v4368, 0
  %v7510 = vsel %vm326, %v4369, 0
  %7512 = vmatprep.subr.mxu0 0.0
  %7513 = vmatpush1.msra.mxu0 0.0
  %7514 = vmatprep.subr.mxu0 0.0
  %7515 = vmatpush1.msra.mxu0 0.0
  %7516 = vmatprep.subr.mxu0 0.0
  %7517 = vmatpush1.msra.mxu0 0.0
  %7518 = vmatprep.subr.mxu0 0.0
  %7519 = vmatpush1.msra.mxu0 0.0
  %7520 = vmatprep.subr.mxu0 0.0
  %7521 = vmatpush1.msra.mxu0 0.0
  %7522 = vmatprep.subr.mxu0 0.0
  %7523 = vmatpush1.msra.mxu0 0.0
  %7524 = vmatprep.subr.mxu0 0.0
  %7525 = vmatpush1.msra.mxu0 0.0
  %7526 = vmatprep.subr.mxu0 0.0
  %7527 = vmatpush1.msra.mxu0 0.0
  %7528 = vmatprep.subr.mxu0 0.0
  %7529 = vmatpush1.msra.mxu0 0.0
  %7530 = vmatprep.subr.mxu0 0.0
  %7531 = vmatpush1.msra.mxu0 0.0
  %7532 = vmatprep.subr.mxu0 0.0
  %7533 = vmatpush1.msra.mxu0 0.0
  %7534 = vmatprep.subr.mxu0 0.0
  %7535 = vmatpush1.msra.mxu0 0.0
  %7536 = vmatprep.subr.mxu0 0.0
  %7537 = vmatpush1.msra.mxu0 %v4541
  %7538 = vmatprep.subr.mxu0 0.0
  %7539 = vmatpush1.msra.mxu0 %v4540
  %7540 = vmatprep.subr.mxu0 0.0
  %7541 = vmatpush1.msra.mxu0 %v4539
  %7542 = vmatprep.subr.mxu0 0.0
  %7543 = vmatpush1.msra.mxu0 %v4538
  %7544 = vmatprep.subr.mxu0 0.0
  %7545 = vmatpush2.msra.mxu0 0.0
  %7546 = vmatprep.subr.mxu0 0.0
  %7547 = vmatpush2.msra.mxu0 0.0
  %7548 = vmatprep.subr.mxu0 0.0
  %7549 = vmatpush2.msra.mxu0 0.0
  %7550 = vmatprep.subr.mxu0 0.0
  %7551 = vmatpush2.msra.mxu0 0.0
  %7552 = vmatprep.subr.mxu0 0.0
  %7553 = vmatpush2.msra.mxu0 0.0
  %7554 = vmatprep.subr.mxu0 0.0
  %7555 = vmatpush2.msra.mxu0 0.0
  %7556 = vmatprep.subr.mxu0 0.0
  %7557 = vmatpush2.msra.mxu0 0.0
  %7558 = vmatprep.subr.mxu0 0.0
  %7559 = vmatpush2.msra.mxu0 0.0
  %7560 = vmatprep.subr.mxu0 0.0
  %7561 = vmatpush2.msra.mxu0 0.0
  %7562 = vmatprep.subr.mxu0 0.0
  %7563 = vmatpush2.msra.mxu0 0.0
  %7564 = vmatprep.subr.mxu0 0.0
  %7565 = vmatpush2.msra.mxu0 0.0
  %7566 = vmatprep.subr.mxu0 0.0
  %7567 = vmatpush2.msra.mxu0 0.0
  %7568 = vmatprep.subr.mxu0 0.0
  %7569 = vmatpush2.msra.mxu0 0.0
  %7570 = vmatprep.subr.mxu0 0.0
  %7571 = vmatpush2.msra.mxu0 0.0
  %7572 = vmatprep.subr.mxu0 0.0
  %7573 = vmatpush2.msra.mxu0 0.0
  %7574 = vmatprep.subr.mxu0 0.0
  %7575 = vmatpush2.msra.mxu0 0.0
  %7576 = vmatprep.mubr.f32.mxu0 0.0
  %7577 = vmatmul.mubr.f32.gmra.mxu0 %v7507
  %v7578 = vpop.f32.mrf.mxu0
  %v7579 = vadd.f32 0.0, %v7578
  %v7580 = vpop.f32.mrf.mxu0
  %7581 = vmatprep.mubr.f32.mxu0 0.0
  %7582 = vmatmul.mubr.f32.gmra.mxu0 %v7510
  %v7583 = vpop.f32.mrf.mxu0
  %v7584 = vadd.f32 0.0, %v7583
  %v7585 = vpop.f32.mrf.mxu0
  %7586 = vdwg.mxu0
  %v7588 = vsel %vm326, %v4370, 0
  %v7591 = vsel %vm326, %v4371, 0
  %7593 = vmatprep.subr.mxu0 0.0
  %7594 = vmatpush1.msra.mxu0 0.0
  %7595 = vmatprep.subr.mxu0 0.0
  %7596 = vmatpush1.msra.mxu0 0.0
  %7597 = vmatprep.subr.mxu0 0.0
  %7598 = vmatpush1.msra.mxu0 0.0
  %7599 = vmatprep.subr.mxu0 0.0
  %7600 = vmatpush1.msra.mxu0 0.0
  %7601 = vmatprep.subr.mxu0 0.0
  %7602 = vmatpush1.msra.mxu0 0.0
  %7603 = vmatprep.subr.mxu0 0.0
  %7604 = vmatpush1.msra.mxu0 0.0
  %7605 = vmatprep.subr.mxu0 0.0
  %7606 = vmatpush1.msra.mxu0 0.0
  %7607 = vmatprep.subr.mxu0 0.0
  %7608 = vmatpush1.msra.mxu0 0.0
  %7609 = vmatprep.subr.mxu0 0.0
  %7610 = vmatpush1.msra.mxu0 0.0
  %7611 = vmatprep.subr.mxu0 0.0
  %7612 = vmatpush1.msra.mxu0 0.0
  %7613 = vmatprep.subr.mxu0 0.0
  %7614 = vmatpush1.msra.mxu0 0.0
  %7615 = vmatprep.subr.mxu0 0.0
  %7616 = vmatpush1.msra.mxu0 0.0
  %7617 = vmatprep.subr.mxu0 0.0
  %7618 = vmatpush1.msra.mxu0 %v4545
  %7619 = vmatprep.subr.mxu0 0.0
  %7620 = vmatpush1.msra.mxu0 %v4544
  %7621 = vmatprep.subr.mxu0 0.0
  %7622 = vmatpush1.msra.mxu0 %v4543
  %7623 = vmatprep.subr.mxu0 0.0
  %7624 = vmatpush1.msra.mxu0 %v4542
  %7625 = vmatprep.subr.mxu0 0.0
  %7626 = vmatpush2.msra.mxu0 0.0
  %7627 = vmatprep.subr.mxu0 0.0
  %7628 = vmatpush2.msra.mxu0 0.0
  %7629 = vmatprep.subr.mxu0 0.0
  %7630 = vmatpush2.msra.mxu0 0.0
  %7631 = vmatprep.subr.mxu0 0.0
  %7632 = vmatpush2.msra.mxu0 0.0
  %7633 = vmatprep.subr.mxu0 0.0
  %7634 = vmatpush2.msra.mxu0 0.0
  %7635 = vmatprep.subr.mxu0 0.0
  %7636 = vmatpush2.msra.mxu0 0.0
  %7637 = vmatprep.subr.mxu0 0.0
  %7638 = vmatpush2.msra.mxu0 0.0
  %7639 = vmatprep.subr.mxu0 0.0
  %7640 = vmatpush2.msra.mxu0 0.0
  %7641 = vmatprep.subr.mxu0 0.0
  %7642 = vmatpush2.msra.mxu0 0.0
  %7643 = vmatprep.subr.mxu0 0.0
  %7644 = vmatpush2.msra.mxu0 0.0
  %7645 = vmatprep.subr.mxu0 0.0
  %7646 = vmatpush2.msra.mxu0 0.0
  %7647 = vmatprep.subr.mxu0 0.0
  %7648 = vmatpush2.msra.mxu0 0.0
  %7649 = vmatprep.subr.mxu0 0.0
  %7650 = vmatpush2.msra.mxu0 0.0
  %7651 = vmatprep.subr.mxu0 0.0
  %7652 = vmatpush2.msra.mxu0 0.0
  %7653 = vmatprep.subr.mxu0 0.0
  %7654 = vmatpush2.msra.mxu0 0.0
  %7655 = vmatprep.subr.mxu0 0.0
  %7656 = vmatpush2.msra.mxu0 0.0
  %7657 = vmatprep.mubr.f32.mxu0 0.0
  %7658 = vmatmul.mubr.f32.gmra.mxu0 %v7588
  %v7659 = vpop.f32.mrf.mxu0
  %v7660 = vadd.f32 0.0, %v7659
  %v7661 = vpop.f32.mrf.mxu0
  %7662 = vmatprep.mubr.f32.mxu0 0.0
  %7663 = vmatmul.mubr.f32.gmra.mxu0 %v7591
  %v7664 = vpop.f32.mrf.mxu0
  %v7665 = vadd.f32 0.0, %v7664
  %v7666 = vpop.f32.mrf.mxu0
  %7667 = vdwg.mxu0
  %v7669 = vsel %vm326, %v4372, 0
  %v7672 = vsel %vm326, %v4373, 0
  %7674 = vmatprep.subr.mxu0 0.0
  %7675 = vmatpush1.msra.mxu0 0.0
  %7676 = vmatprep.subr.mxu0 0.0
  %7677 = vmatpush1.msra.mxu0 0.0
  %7678 = vmatprep.subr.mxu0 0.0
  %7679 = vmatpush1.msra.mxu0 0.0
  %7680 = vmatprep.subr.mxu0 0.0
  %7681 = vmatpush1.msra.mxu0 0.0
  %7682 = vmatprep.subr.mxu0 0.0
  %7683 = vmatpush1.msra.mxu0 0.0
  %7684 = vmatprep.subr.mxu0 0.0
  %7685 = vmatpush1.msra.mxu0 0.0
  %7686 = vmatprep.subr.mxu0 0.0
  %7687 = vmatpush1.msra.mxu0 0.0
  %7688 = vmatprep.subr.mxu0 0.0
  %7689 = vmatpush1.msra.mxu0 0.0
  %7690 = vmatprep.subr.mxu0 0.0
  %7691 = vmatpush1.msra.mxu0 0.0
  %7692 = vmatprep.subr.mxu0 0.0
  %7693 = vmatpush1.msra.mxu0 0.0
  %7694 = vmatprep.subr.mxu0 0.0
  %7695 = vmatpush1.msra.mxu0 0.0
  %7696 = vmatprep.subr.mxu0 0.0
  %7697 = vmatpush1.msra.mxu0 0.0
  %7698 = vmatprep.subr.mxu0 0.0
  %7699 = vmatpush1.msra.mxu0 %v4549
  %7700 = vmatprep.subr.mxu0 0.0
  %7701 = vmatpush1.msra.mxu0 %v4548
  %7702 = vmatprep.subr.mxu0 0.0
  %7703 = vmatpush1.msra.mxu0 %v4547
  %7704 = vmatprep.subr.mxu0 0.0
  %7705 = vmatpush1.msra.mxu0 %v4546
  %7706 = vmatprep.subr.mxu0 0.0
  %7707 = vmatpush2.msra.mxu0 0.0
  %7708 = vmatprep.subr.mxu0 0.0
  %7709 = vmatpush2.msra.mxu0 0.0
  %7710 = vmatprep.subr.mxu0 0.0
  %7711 = vmatpush2.msra.mxu0 0.0
  %7712 = vmatprep.subr.mxu0 0.0
  %7713 = vmatpush2.msra.mxu0 0.0
  %7714 = vmatprep.subr.mxu0 0.0
  %7715 = vmatpush2.msra.mxu0 0.0
  %7716 = vmatprep.subr.mxu0 0.0
  %7717 = vmatpush2.msra.mxu0 0.0
  %7718 = vmatprep.subr.mxu0 0.0
  %7719 = vmatpush2.msra.mxu0 0.0
  %7720 = vmatprep.subr.mxu0 0.0
  %7721 = vmatpush2.msra.mxu0 0.0
  %7722 = vmatprep.subr.mxu0 0.0
  %7723 = vmatpush2.msra.mxu0 0.0
  %7724 = vmatprep.subr.mxu0 0.0
  %7725 = vmatpush2.msra.mxu0 0.0
  %7726 = vmatprep.subr.mxu0 0.0
  %7727 = vmatpush2.msra.mxu0 0.0
  %7728 = vmatprep.subr.mxu0 0.0
  %7729 = vmatpush2.msra.mxu0 0.0
  %7730 = vmatprep.subr.mxu0 0.0
  %7731 = vmatpush2.msra.mxu0 0.0
  %7732 = vmatprep.subr.mxu0 0.0
  %7733 = vmatpush2.msra.mxu0 0.0
  %7734 = vmatprep.subr.mxu0 0.0
  %7735 = vmatpush2.msra.mxu0 0.0
  %7736 = vmatprep.subr.mxu0 0.0
  %7737 = vmatpush2.msra.mxu0 0.0
  %7738 = vmatprep.mubr.f32.mxu0 0.0
  %7739 = vmatmul.mubr.f32.gmra.mxu0 %v7669
  %v7740 = vpop.f32.mrf.mxu0
  %v7741 = vadd.f32 0.0, %v7740
  %v7742 = vpop.f32.mrf.mxu0
  %7743 = vmatprep.mubr.f32.mxu0 0.0
  %7744 = vmatmul.mubr.f32.gmra.mxu0 %v7672
  %v7745 = vpop.f32.mrf.mxu0
  %v7746 = vadd.f32 0.0, %v7745
  %v7747 = vpop.f32.mrf.mxu0
  %7748 = vdwg.mxu0
  %v7750 = vsel %vm326, %v4374, 0
  %v7753 = vsel %vm326, %v4375, 0
  %7755 = vmatprep.subr.mxu0 0.0
  %7756 = vmatpush1.msra.mxu0 0.0
  %7757 = vmatprep.subr.mxu0 0.0
  %7758 = vmatpush1.msra.mxu0 0.0
  %7759 = vmatprep.subr.mxu0 0.0
  %7760 = vmatpush1.msra.mxu0 0.0
  %7761 = vmatprep.subr.mxu0 0.0
  %7762 = vmatpush1.msra.mxu0 0.0
  %7763 = vmatprep.subr.mxu0 0.0
  %7764 = vmatpush1.msra.mxu0 0.0
  %7765 = vmatprep.subr.mxu0 0.0
  %7766 = vmatpush1.msra.mxu0 0.0
  %7767 = vmatprep.subr.mxu0 0.0
  %7768 = vmatpush1.msra.mxu0 0.0
  %7769 = vmatprep.subr.mxu0 0.0
  %7770 = vmatpush1.msra.mxu0 0.0
  %7771 = vmatprep.subr.mxu0 0.0
  %7772 = vmatpush1.msra.mxu0 0.0
  %7773 = vmatprep.subr.mxu0 0.0
  %7774 = vmatpush1.msra.mxu0 0.0
  %7775 = vmatprep.subr.mxu0 0.0
  %7776 = vmatpush1.msra.mxu0 0.0
  %7777 = vmatprep.subr.mxu0 0.0
  %7778 = vmatpush1.msra.mxu0 0.0
  %7779 = vmatprep.subr.mxu0 0.0
  %7780 = vmatpush1.msra.mxu0 %v4553
  %7781 = vmatprep.subr.mxu0 0.0
  %7782 = vmatpush1.msra.mxu0 %v4552
  %7783 = vmatprep.subr.mxu0 0.0
  %7784 = vmatpush1.msra.mxu0 %v4551
  %7785 = vmatprep.subr.mxu0 0.0
  %7786 = vmatpush1.msra.mxu0 %v4550
  %7787 = vmatprep.subr.mxu0 0.0
  %7788 = vmatpush2.msra.mxu0 0.0
  %7789 = vmatprep.subr.mxu0 0.0
  %7790 = vmatpush2.msra.mxu0 0.0
  %7791 = vmatprep.subr.mxu0 0.0
  %7792 = vmatpush2.msra.mxu0 0.0
  %7793 = vmatprep.subr.mxu0 0.0
  %7794 = vmatpush2.msra.mxu0 0.0
  %7795 = vmatprep.subr.mxu0 0.0
  %7796 = vmatpush2.msra.mxu0 0.0
  %7797 = vmatprep.subr.mxu0 0.0
  %7798 = vmatpush2.msra.mxu0 0.0
  %7799 = vmatprep.subr.mxu0 0.0
  %7800 = vmatpush2.msra.mxu0 0.0
  %7801 = vmatprep.subr.mxu0 0.0
  %7802 = vmatpush2.msra.mxu0 0.0
  %7803 = vmatprep.subr.mxu0 0.0
  %7804 = vmatpush2.msra.mxu0 0.0
  %7805 = vmatprep.subr.mxu0 0.0
  %7806 = vmatpush2.msra.mxu0 0.0
  %7807 = vmatprep.subr.mxu0 0.0
  %7808 = vmatpush2.msra.mxu0 0.0
  %7809 = vmatprep.subr.mxu0 0.0
  %7810 = vmatpush2.msra.mxu0 0.0
  %7811 = vmatprep.subr.mxu0 0.0
  %7812 = vmatpush2.msra.mxu0 0.0
  %7813 = vmatprep.subr.mxu0 0.0
  %7814 = vmatpush2.msra.mxu0 0.0
  %7815 = vmatprep.subr.mxu0 0.0
  %7816 = vmatpush2.msra.mxu0 0.0
  %7817 = vmatprep.subr.mxu0 0.0
  %7818 = vmatpush2.msra.mxu0 0.0
  %7819 = vmatprep.mubr.f32.mxu0 0.0
  %7820 = vmatmul.mubr.f32.gmra.mxu0 %v7750
  %v7821 = vpop.f32.mrf.mxu0
  %v7822 = vadd.f32 0.0, %v7821
  %v7823 = vpop.f32.mrf.mxu0
  %7824 = vmatprep.mubr.f32.mxu0 0.0
  %7825 = vmatmul.mubr.f32.gmra.mxu0 %v7753
  %v7826 = vpop.f32.mrf.mxu0
  %v7827 = vadd.f32 0.0, %v7826
  %v7828 = vpop.f32.mrf.mxu0
  %7829 = vdwg.mxu0
  %v7831 = vsel %vm326, %v4376, 0
  %v7834 = vsel %vm326, %v4377, 0
  %7836 = vmatprep.subr.mxu0 0.0
  %7837 = vmatpush1.msra.mxu0 0.0
  %7838 = vmatprep.subr.mxu0 0.0
  %7839 = vmatpush1.msra.mxu0 0.0
  %7840 = vmatprep.subr.mxu0 0.0
  %7841 = vmatpush1.msra.mxu0 0.0
  %7842 = vmatprep.subr.mxu0 0.0
  %7843 = vmatpush1.msra.mxu0 0.0
  %7844 = vmatprep.subr.mxu0 0.0
  %7845 = vmatpush1.msra.mxu0 0.0
  %7846 = vmatprep.subr.mxu0 0.0
  %7847 = vmatpush1.msra.mxu0 0.0
  %7848 = vmatprep.subr.mxu0 0.0
  %7849 = vmatpush1.msra.mxu0 0.0
  %7850 = vmatprep.subr.mxu0 0.0
  %7851 = vmatpush1.msra.mxu0 0.0
  %7852 = vmatprep.subr.mxu0 0.0
  %7853 = vmatpush1.msra.mxu0 0.0
  %7854 = vmatprep.subr.mxu0 0.0
  %7855 = vmatpush1.msra.mxu0 0.0
  %7856 = vmatprep.subr.mxu0 0.0
  %7857 = vmatpush1.msra.mxu0 0.0
  %7858 = vmatprep.subr.mxu0 0.0
  %7859 = vmatpush1.msra.mxu0 0.0
  %7860 = vmatprep.subr.mxu0 0.0
  %7861 = vmatpush1.msra.mxu0 %v4557
  %7862 = vmatprep.subr.mxu0 0.0
  %7863 = vmatpush1.msra.mxu0 %v4556
  %7864 = vmatprep.subr.mxu0 0.0
  %7865 = vmatpush1.msra.mxu0 %v4555
  %7866 = vmatprep.subr.mxu0 0.0
  %7867 = vmatpush1.msra.mxu0 %v4554
  %7868 = vmatprep.subr.mxu0 0.0
  %7869 = vmatpush2.msra.mxu0 0.0
  %7870 = vmatprep.subr.mxu0 0.0
  %7871 = vmatpush2.msra.mxu0 0.0
  %7872 = vmatprep.subr.mxu0 0.0
  %7873 = vmatpush2.msra.mxu0 0.0
  %7874 = vmatprep.subr.mxu0 0.0
  %7875 = vmatpush2.msra.mxu0 0.0
  %7876 = vmatprep.subr.mxu0 0.0
  %7877 = vmatpush2.msra.mxu0 0.0
  %7878 = vmatprep.subr.mxu0 0.0
  %7879 = vmatpush2.msra.mxu0 0.0
  %7880 = vmatprep.subr.mxu0 0.0
  %7881 = vmatpush2.msra.mxu0 0.0
  %7882 = vmatprep.subr.mxu0 0.0
  %7883 = vmatpush2.msra.mxu0 0.0
  %7884 = vmatprep.subr.mxu0 0.0
  %7885 = vmatpush2.msra.mxu0 0.0
  %7886 = vmatprep.subr.mxu0 0.0
  %7887 = vmatpush2.msra.mxu0 0.0
  %7888 = vmatprep.subr.mxu0 0.0
  %7889 = vmatpush2.msra.mxu0 0.0
  %7890 = vmatprep.subr.mxu0 0.0
  %7891 = vmatpush2.msra.mxu0 0.0
  %7892 = vmatprep.subr.mxu0 0.0
  %7893 = vmatpush2.msra.mxu0 0.0
  %7894 = vmatprep.subr.mxu0 0.0
  %7895 = vmatpush2.msra.mxu0 0.0
  %7896 = vmatprep.subr.mxu0 0.0
  %7897 = vmatpush2.msra.mxu0 0.0
  %7898 = vmatprep.subr.mxu0 0.0
  %7899 = vmatpush2.msra.mxu0 0.0
  %7900 = vmatprep.mubr.f32.mxu0 0.0
  %7901 = vmatmul.mubr.f32.gmra.mxu0 %v7831
  %v7902 = vpop.f32.mrf.mxu0
  %v7903 = vadd.f32 0.0, %v7902
  %v7904 = vpop.f32.mrf.mxu0
  %7905 = vmatprep.mubr.f32.mxu0 0.0
  %7906 = vmatmul.mubr.f32.gmra.mxu0 %v7834
  %v7907 = vpop.f32.mrf.mxu0
  %v7908 = vadd.f32 0.0, %v7907
  %v7909 = vpop.f32.mrf.mxu0
  %7910 = vdwg.mxu0
  %v7912 = vsel %vm326, %v4378, 0
  %v7915 = vsel %vm326, %v4379, 0
  %7917 = vmatprep.subr.mxu0 0.0
  %7918 = vmatpush1.msra.mxu0 0.0
  %7919 = vmatprep.subr.mxu0 0.0
  %7920 = vmatpush1.msra.mxu0 0.0
  %7921 = vmatprep.subr.mxu0 0.0
  %7922 = vmatpush1.msra.mxu0 0.0
  %7923 = vmatprep.subr.mxu0 0.0
  %7924 = vmatpush1.msra.mxu0 0.0
  %7925 = vmatprep.subr.mxu0 0.0
  %7926 = vmatpush1.msra.mxu0 0.0
  %7927 = vmatprep.subr.mxu0 0.0
  %7928 = vmatpush1.msra.mxu0 0.0
  %7929 = vmatprep.subr.mxu0 0.0
  %7930 = vmatpush1.msra.mxu0 0.0
  %7931 = vmatprep.subr.mxu0 0.0
  %7932 = vmatpush1.msra.mxu0 0.0
  %7933 = vmatprep.subr.mxu0 0.0
  %7934 = vmatpush1.msra.mxu0 0.0
  %7935 = vmatprep.subr.mxu0 0.0
  %7936 = vmatpush1.msra.mxu0 0.0
  %7937 = vmatprep.subr.mxu0 0.0
  %7938 = vmatpush1.msra.mxu0 0.0
  %7939 = vmatprep.subr.mxu0 0.0
  %7940 = vmatpush1.msra.mxu0 0.0
  %7941 = vmatprep.subr.mxu0 0.0
  %7942 = vmatpush1.msra.mxu0 %v4561
  %7943 = vmatprep.subr.mxu0 0.0
  %7944 = vmatpush1.msra.mxu0 %v4560
  %7945 = vmatprep.subr.mxu0 0.0
  %7946 = vmatpush1.msra.mxu0 %v4559
  %7947 = vmatprep.subr.mxu0 0.0
  %7948 = vmatpush1.msra.mxu0 %v4558
  %7949 = vmatprep.subr.mxu0 0.0
  %7950 = vmatpush2.msra.mxu0 0.0
  %7951 = vmatprep.subr.mxu0 0.0
  %7952 = vmatpush2.msra.mxu0 0.0
  %7953 = vmatprep.subr.mxu0 0.0
  %7954 = vmatpush2.msra.mxu0 0.0
  %7955 = vmatprep.subr.mxu0 0.0
  %7956 = vmatpush2.msra.mxu0 0.0
  %7957 = vmatprep.subr.mxu0 0.0
  %7958 = vmatpush2.msra.mxu0 0.0
  %7959 = vmatprep.subr.mxu0 0.0
  %7960 = vmatpush2.msra.mxu0 0.0
  %7961 = vmatprep.subr.mxu0 0.0
  %7962 = vmatpush2.msra.mxu0 0.0
  %7963 = vmatprep.subr.mxu0 0.0
  %7964 = vmatpush2.msra.mxu0 0.0
  %7965 = vmatprep.subr.mxu0 0.0
  %7966 = vmatpush2.msra.mxu0 0.0
  %7967 = vmatprep.subr.mxu0 0.0
  %7968 = vmatpush2.msra.mxu0 0.0
  %7969 = vmatprep.subr.mxu0 0.0
  %7970 = vmatpush2.msra.mxu0 0.0
  %7971 = vmatprep.subr.mxu0 0.0
  %7972 = vmatpush2.msra.mxu0 0.0
  %7973 = vmatprep.subr.mxu0 0.0
  %7974 = vmatpush2.msra.mxu0 0.0
  %7975 = vmatprep.subr.mxu0 0.0
  %7976 = vmatpush2.msra.mxu0 0.0
  %7977 = vmatprep.subr.mxu0 0.0
  %7978 = vmatpush2.msra.mxu0 0.0
  %7979 = vmatprep.subr.mxu0 0.0
  %7980 = vmatpush2.msra.mxu0 0.0
  %7981 = vmatprep.mubr.f32.mxu0 0.0
  %7982 = vmatmul.mubr.f32.gmra.mxu0 %v7912
  %v7983 = vpop.f32.mrf.mxu0
  %v7984 = vadd.f32 0.0, %v7983
  %v7985 = vpop.f32.mrf.mxu0
  %7986 = vmatprep.mubr.f32.mxu0 0.0
  %7987 = vmatmul.mubr.f32.gmra.mxu0 %v7915
  %v7988 = vpop.f32.mrf.mxu0
  %v7989 = vadd.f32 0.0, %v7988
  %v7990 = vpop.f32.mrf.mxu0
  %7991 = vdwg.mxu0
  %v7993 = vsel %vm326, %v4380, 0
  %v7996 = vsel %vm326, %v4381, 0
  %7998 = vmatprep.subr.mxu0 0.0
  %7999 = vmatpush1.msra.mxu0 0.0
  %8000 = vmatprep.subr.mxu0 0.0
  %8001 = vmatpush1.msra.mxu0 0.0
  %8002 = vmatprep.subr.mxu0 0.0
  %8003 = vmatpush1.msra.mxu0 0.0
  %8004 = vmatprep.subr.mxu0 0.0
  %8005 = vmatpush1.msra.mxu0 0.0
  %8006 = vmatprep.subr.mxu0 0.0
  %8007 = vmatpush1.msra.mxu0 0.0
  %8008 = vmatprep.subr.mxu0 0.0
  %8009 = vmatpush1.msra.mxu0 0.0
  %8010 = vmatprep.subr.mxu0 0.0
  %8011 = vmatpush1.msra.mxu0 0.0
  %8012 = vmatprep.subr.mxu0 0.0
  %8013 = vmatpush1.msra.mxu0 0.0
  %8014 = vmatprep.subr.mxu0 0.0
  %8015 = vmatpush1.msra.mxu0 0.0
  %8016 = vmatprep.subr.mxu0 0.0
  %8017 = vmatpush1.msra.mxu0 0.0
  %8018 = vmatprep.subr.mxu0 0.0
  %8019 = vmatpush1.msra.mxu0 0.0
  %8020 = vmatprep.subr.mxu0 0.0
  %8021 = vmatpush1.msra.mxu0 0.0
  %8022 = vmatprep.subr.mxu0 0.0
  %8023 = vmatpush1.msra.mxu0 %v4565
  %8024 = vmatprep.subr.mxu0 0.0
  %8025 = vmatpush1.msra.mxu0 %v4564
  %8026 = vmatprep.subr.mxu0 0.0
  %8027 = vmatpush1.msra.mxu0 %v4563
  %8028 = vmatprep.subr.mxu0 0.0
  %8029 = vmatpush1.msra.mxu0 %v4562
  %8030 = vmatprep.subr.mxu0 0.0
  %8031 = vmatpush2.msra.mxu0 0.0
  %8032 = vmatprep.subr.mxu0 0.0
  %8033 = vmatpush2.msra.mxu0 0.0
  %8034 = vmatprep.subr.mxu0 0.0
  %8035 = vmatpush2.msra.mxu0 0.0
  %8036 = vmatprep.subr.mxu0 0.0
  %8037 = vmatpush2.msra.mxu0 0.0
  %8038 = vmatprep.subr.mxu0 0.0
  %8039 = vmatpush2.msra.mxu0 0.0
  %8040 = vmatprep.subr.mxu0 0.0
  %8041 = vmatpush2.msra.mxu0 0.0
  %8042 = vmatprep.subr.mxu0 0.0
  %8043 = vmatpush2.msra.mxu0 0.0
  %8044 = vmatprep.subr.mxu0 0.0
  %8045 = vmatpush2.msra.mxu0 0.0
  %8046 = vmatprep.subr.mxu0 0.0
  %8047 = vmatpush2.msra.mxu0 0.0
  %8048 = vmatprep.subr.mxu0 0.0
  %8049 = vmatpush2.msra.mxu0 0.0
  %8050 = vmatprep.subr.mxu0 0.0
  %8051 = vmatpush2.msra.mxu0 0.0
  %8052 = vmatprep.subr.mxu0 0.0
  %8053 = vmatpush2.msra.mxu0 0.0
  %8054 = vmatprep.subr.mxu0 0.0
  %8055 = vmatpush2.msra.mxu0 0.0
  %8056 = vmatprep.subr.mxu0 0.0
  %8057 = vmatpush2.msra.mxu0 0.0
  %8058 = vmatprep.subr.mxu0 0.0
  %8059 = vmatpush2.msra.mxu0 0.0
  %8060 = vmatprep.subr.mxu0 0.0
  %8061 = vmatpush2.msra.mxu0 0.0
  %8062 = vmatprep.mubr.f32.mxu0 0.0
  %8063 = vmatmul.mubr.f32.gmra.mxu0 %v7993
  %v8064 = vpop.f32.mrf.mxu0
  %v8065 = vadd.f32 0.0, %v8064
  %v8066 = vpop.f32.mrf.mxu0
  %8067 = vmatprep.mubr.f32.mxu0 0.0
  %8068 = vmatmul.mubr.f32.gmra.mxu0 %v7996
  %v8069 = vpop.f32.mrf.mxu0
  %v8070 = vadd.f32 0.0, %v8069
  %v8071 = vpop.f32.mrf.mxu0
  %8072 = vdwg.mxu0
  %v8074 = vsel %vm326, %v4382, 0
  %v8077 = vsel %vm326, %v4383, 0
  %8079 = vmatprep.subr.mxu0 0.0
  %8080 = vmatpush1.msra.mxu0 0.0
  %8081 = vmatprep.subr.mxu0 0.0
  %8082 = vmatpush1.msra.mxu0 0.0
  %8083 = vmatprep.subr.mxu0 0.0
  %8084 = vmatpush1.msra.mxu0 0.0
  %8085 = vmatprep.subr.mxu0 0.0
  %8086 = vmatpush1.msra.mxu0 0.0
  %8087 = vmatprep.subr.mxu0 0.0
  %8088 = vmatpush1.msra.mxu0 0.0
  %8089 = vmatprep.subr.mxu0 0.0
  %8090 = vmatpush1.msra.mxu0 0.0
  %8091 = vmatprep.subr.mxu0 0.0
  %8092 = vmatpush1.msra.mxu0 0.0
  %8093 = vmatprep.subr.mxu0 0.0
  %8094 = vmatpush1.msra.mxu0 0.0
  %8095 = vmatprep.subr.mxu0 0.0
  %8096 = vmatpush1.msra.mxu0 0.0
  %8097 = vmatprep.subr.mxu0 0.0
  %8098 = vmatpush1.msra.mxu0 0.0
  %8099 = vmatprep.subr.mxu0 0.0
  %8100 = vmatpush1.msra.mxu0 0.0
  %8101 = vmatprep.subr.mxu0 0.0
  %8102 = vmatpush1.msra.mxu0 0.0
  %8103 = vmatprep.subr.mxu0 0.0
  %8104 = vmatpush1.msra.mxu0 %v4569
  %8105 = vmatprep.subr.mxu0 0.0
  %8106 = vmatpush1.msra.mxu0 %v4568
  %8107 = vmatprep.subr.mxu0 0.0
  %8108 = vmatpush1.msra.mxu0 %v4567
  %8109 = vmatprep.subr.mxu0 0.0
  %8110 = vmatpush1.msra.mxu0 %v4566
  %8111 = vmatprep.subr.mxu0 0.0
  %8112 = vmatpush2.msra.mxu0 0.0
  %8113 = vmatprep.subr.mxu0 0.0
  %8114 = vmatpush2.msra.mxu0 0.0
  %8115 = vmatprep.subr.mxu0 0.0
  %8116 = vmatpush2.msra.mxu0 0.0
  %8117 = vmatprep.subr.mxu0 0.0
  %8118 = vmatpush2.msra.mxu0 0.0
  %8119 = vmatprep.subr.mxu0 0.0
  %8120 = vmatpush2.msra.mxu0 0.0
  %8121 = vmatprep.subr.mxu0 0.0
  %8122 = vmatpush2.msra.mxu0 0.0
  %8123 = vmatprep.subr.mxu0 0.0
  %8124 = vmatpush2.msra.mxu0 0.0
  %8125 = vmatprep.subr.mxu0 0.0
  %8126 = vmatpush2.msra.mxu0 0.0
  %8127 = vmatprep.subr.mxu0 0.0
  %8128 = vmatpush2.msra.mxu0 0.0
  %8129 = vmatprep.subr.mxu0 0.0
  %8130 = vmatpush2.msra.mxu0 0.0
  %8131 = vmatprep.subr.mxu0 0.0
  %8132 = vmatpush2.msra.mxu0 0.0
  %8133 = vmatprep.subr.mxu0 0.0
  %8134 = vmatpush2.msra.mxu0 0.0
  %8135 = vmatprep.subr.mxu0 0.0
  %8136 = vmatpush2.msra.mxu0 0.0
  %8137 = vmatprep.subr.mxu0 0.0
  %8138 = vmatpush2.msra.mxu0 0.0
  %8139 = vmatprep.subr.mxu0 0.0
  %8140 = vmatpush2.msra.mxu0 0.0
  %8141 = vmatprep.subr.mxu0 0.0
  %8142 = vmatpush2.msra.mxu0 0.0
  %8143 = vmatprep.mubr.f32.mxu0 0.0
  %8144 = vmatmul.mubr.f32.gmra.mxu0 %v8074
  %v8145 = vpop.f32.mrf.mxu0
  %v8146 = vadd.f32 0.0, %v8145
  %v8147 = vpop.f32.mrf.mxu0
  %8148 = vmatprep.mubr.f32.mxu0 0.0
  %8149 = vmatmul.mubr.f32.gmra.mxu0 %v8077
  %v8150 = vpop.f32.mrf.mxu0
  %v8151 = vadd.f32 0.0, %v8150
  %v8152 = vpop.f32.mrf.mxu0
  %8153 = vdwg.mxu0
  %v8155 = vsel %vm326, %v4384, 0
  %v8158 = vsel %vm326, %v4385, 0
  %8160 = vmatprep.subr.mxu0 0.0
  %8161 = vmatpush1.msra.mxu0 0.0
  %8162 = vmatprep.subr.mxu0 0.0
  %8163 = vmatpush1.msra.mxu0 0.0
  %8164 = vmatprep.subr.mxu0 0.0
  %8165 = vmatpush1.msra.mxu0 0.0
  %8166 = vmatprep.subr.mxu0 0.0
  %8167 = vmatpush1.msra.mxu0 0.0
  %8168 = vmatprep.subr.mxu0 0.0
  %8169 = vmatpush1.msra.mxu0 0.0
  %8170 = vmatprep.subr.mxu0 0.0
  %8171 = vmatpush1.msra.mxu0 0.0
  %8172 = vmatprep.subr.mxu0 0.0
  %8173 = vmatpush1.msra.mxu0 0.0
  %8174 = vmatprep.subr.mxu0 0.0
  %8175 = vmatpush1.msra.mxu0 0.0
  %8176 = vmatprep.subr.mxu0 0.0
  %8177 = vmatpush1.msra.mxu0 0.0
  %8178 = vmatprep.subr.mxu0 0.0
  %8179 = vmatpush1.msra.mxu0 0.0
  %8180 = vmatprep.subr.mxu0 0.0
  %8181 = vmatpush1.msra.mxu0 0.0
  %8182 = vmatprep.subr.mxu0 0.0
  %8183 = vmatpush1.msra.mxu0 0.0
  %8184 = vmatprep.subr.mxu0 0.0
  %8185 = vmatpush1.msra.mxu0 %v4573
  %8186 = vmatprep.subr.mxu0 0.0
  %8187 = vmatpush1.msra.mxu0 %v4572
  %8188 = vmatprep.subr.mxu0 0.0
  %8189 = vmatpush1.msra.mxu0 %v4571
  %8190 = vmatprep.subr.mxu0 0.0
  %8191 = vmatpush1.msra.mxu0 %v4570
  %8192 = vmatprep.subr.mxu0 0.0
  %8193 = vmatpush2.msra.mxu0 0.0
  %8194 = vmatprep.subr.mxu0 0.0
  %8195 = vmatpush2.msra.mxu0 0.0
  %8196 = vmatprep.subr.mxu0 0.0
  %8197 = vmatpush2.msra.mxu0 0.0
  %8198 = vmatprep.subr.mxu0 0.0
  %8199 = vmatpush2.msra.mxu0 0.0
  %8200 = vmatprep.subr.mxu0 0.0
  %8201 = vmatpush2.msra.mxu0 0.0
  %8202 = vmatprep.subr.mxu0 0.0
  %8203 = vmatpush2.msra.mxu0 0.0
  %8204 = vmatprep.subr.mxu0 0.0
  %8205 = vmatpush2.msra.mxu0 0.0
  %8206 = vmatprep.subr.mxu0 0.0
  %8207 = vmatpush2.msra.mxu0 0.0
  %8208 = vmatprep.subr.mxu0 0.0
  %8209 = vmatpush2.msra.mxu0 0.0
  %8210 = vmatprep.subr.mxu0 0.0
  %8211 = vmatpush2.msra.mxu0 0.0
  %8212 = vmatprep.subr.mxu0 0.0
  %8213 = vmatpush2.msra.mxu0 0.0
  %8214 = vmatprep.subr.mxu0 0.0
  %8215 = vmatpush2.msra.mxu0 0.0
  %8216 = vmatprep.subr.mxu0 0.0
  %8217 = vmatpush2.msra.mxu0 0.0
  %8218 = vmatprep.subr.mxu0 0.0
  %8219 = vmatpush2.msra.mxu0 0.0
  %8220 = vmatprep.subr.mxu0 0.0
  %8221 = vmatpush2.msra.mxu0 0.0
  %8222 = vmatprep.subr.mxu0 0.0
  %8223 = vmatpush2.msra.mxu0 0.0
  %8224 = vmatprep.mubr.f32.mxu0 0.0
  %8225 = vmatmul.mubr.f32.gmra.mxu0 %v8155
  %v8226 = vpop.f32.mrf.mxu0
  %v8227 = vadd.f32 0.0, %v8226
  %v8228 = vpop.f32.mrf.mxu0
  %8229 = vmatprep.mubr.f32.mxu0 0.0
  %8230 = vmatmul.mubr.f32.gmra.mxu0 %v8158
  %v8231 = vpop.f32.mrf.mxu0
  %v8232 = vadd.f32 0.0, %v8231
  %v8233 = vpop.f32.mrf.mxu0
  %8234 = vdwg.mxu0
  %v8236 = vsel %vm326, %v4386, 0
  %v8239 = vsel %vm326, %v4387, 0
  %8241 = vmatprep.subr.mxu0 0.0
  %8242 = vmatpush1.msra.mxu0 0.0
  %8243 = vmatprep.subr.mxu0 0.0
  %8244 = vmatpush1.msra.mxu0 0.0
  %8245 = vmatprep.subr.mxu0 0.0
  %8246 = vmatpush1.msra.mxu0 0.0
  %8247 = vmatprep.subr.mxu0 0.0
  %8248 = vmatpush1.msra.mxu0 0.0
  %8249 = vmatprep.subr.mxu0 0.0
  %8250 = vmatpush1.msra.mxu0 0.0
  %8251 = vmatprep.subr.mxu0 0.0
  %8252 = vmatpush1.msra.mxu0 0.0
  %8253 = vmatprep.subr.mxu0 0.0
  %8254 = vmatpush1.msra.mxu0 0.0
  %8255 = vmatprep.subr.mxu0 0.0
  %8256 = vmatpush1.msra.mxu0 0.0
  %8257 = vmatprep.subr.mxu0 0.0
  %8258 = vmatpush1.msra.mxu0 0.0
  %8259 = vmatprep.subr.mxu0 0.0
  %8260 = vmatpush1.msra.mxu0 0.0
  %8261 = vmatprep.subr.mxu0 0.0
  %8262 = vmatpush1.msra.mxu0 0.0
  %8263 = vmatprep.subr.mxu0 0.0
  %8264 = vmatpush1.msra.mxu0 0.0
  %8265 = vmatprep.subr.mxu0 0.0
  %8266 = vmatpush1.msra.mxu0 %v4577
  %8267 = vmatprep.subr.mxu0 0.0
  %8268 = vmatpush1.msra.mxu0 %v4576
  %8269 = vmatprep.subr.mxu0 0.0
  %8270 = vmatpush1.msra.mxu0 %v4575
  %8271 = vmatprep.subr.mxu0 0.0
  %8272 = vmatpush1.msra.mxu0 %v4574
  %8273 = vmatprep.subr.mxu0 0.0
  %8274 = vmatpush2.msra.mxu0 0.0
  %8275 = vmatprep.subr.mxu0 0.0
  %8276 = vmatpush2.msra.mxu0 0.0
  %8277 = vmatprep.subr.mxu0 0.0
  %8278 = vmatpush2.msra.mxu0 0.0
  %8279 = vmatprep.subr.mxu0 0.0
  %8280 = vmatpush2.msra.mxu0 0.0
  %8281 = vmatprep.subr.mxu0 0.0
  %8282 = vmatpush2.msra.mxu0 0.0
  %8283 = vmatprep.subr.mxu0 0.0
  %8284 = vmatpush2.msra.mxu0 0.0
  %8285 = vmatprep.subr.mxu0 0.0
  %8286 = vmatpush2.msra.mxu0 0.0
  %8287 = vmatprep.subr.mxu0 0.0
  %8288 = vmatpush2.msra.mxu0 0.0
  %8289 = vmatprep.subr.mxu0 0.0
  %8290 = vmatpush2.msra.mxu0 0.0
  %8291 = vmatprep.subr.mxu0 0.0
  %8292 = vmatpush2.msra.mxu0 0.0
  %8293 = vmatprep.subr.mxu0 0.0
  %8294 = vmatpush2.msra.mxu0 0.0
  %8295 = vmatprep.subr.mxu0 0.0
  %8296 = vmatpush2.msra.mxu0 0.0
  %8297 = vmatprep.subr.mxu0 0.0
  %8298 = vmatpush2.msra.mxu0 0.0
  %8299 = vmatprep.subr.mxu0 0.0
  %8300 = vmatpush2.msra.mxu0 0.0
  %8301 = vmatprep.subr.mxu0 0.0
  %8302 = vmatpush2.msra.mxu0 0.0
  %8303 = vmatprep.subr.mxu0 0.0
  %8304 = vmatpush2.msra.mxu0 0.0
  %8305 = vmatprep.mubr.f32.mxu0 0.0
  %8306 = vmatmul.mubr.f32.gmra.mxu0 %v8236
  %v8307 = vpop.f32.mrf.mxu0
  %v8308 = vadd.f32 0.0, %v8307
  %v8309 = vpop.f32.mrf.mxu0
  %8310 = vmatprep.mubr.f32.mxu0 0.0
  %8311 = vmatmul.mubr.f32.gmra.mxu0 %v8239
  %v8312 = vpop.f32.mrf.mxu0
  %v8313 = vadd.f32 0.0, %v8312
  %v8314 = vpop.f32.mrf.mxu0
  %8315 = vdwg.mxu0
  %v8317 = vsel %vm326, %v4388, 0
  %v8320 = vsel %vm326, %v4389, 0
  %8322 = vmatprep.subr.mxu0 0.0
  %8323 = vmatpush1.msra.mxu0 0.0
  %8324 = vmatprep.subr.mxu0 0.0
  %8325 = vmatpush1.msra.mxu0 0.0
  %8326 = vmatprep.subr.mxu0 0.0
  %8327 = vmatpush1.msra.mxu0 0.0
  %8328 = vmatprep.subr.mxu0 0.0
  %8329 = vmatpush1.msra.mxu0 0.0
  %8330 = vmatprep.subr.mxu0 0.0
  %8331 = vmatpush1.msra.mxu0 0.0
  %8332 = vmatprep.subr.mxu0 0.0
  %8333 = vmatpush1.msra.mxu0 0.0
  %8334 = vmatprep.subr.mxu0 0.0
  %8335 = vmatpush1.msra.mxu0 0.0
  %8336 = vmatprep.subr.mxu0 0.0
  %8337 = vmatpush1.msra.mxu0 0.0
  %8338 = vmatprep.subr.mxu0 0.0
  %8339 = vmatpush1.msra.mxu0 0.0
  %8340 = vmatprep.subr.mxu0 0.0
  %8341 = vmatpush1.msra.mxu0 0.0
  %8342 = vmatprep.subr.mxu0 0.0
  %8343 = vmatpush1.msra.mxu0 0.0
  %8344 = vmatprep.subr.mxu0 0.0
  %8345 = vmatpush1.msra.mxu0 0.0
  %8346 = vmatprep.subr.mxu0 0.0
  %8347 = vmatpush1.msra.mxu0 %v4581
  %8348 = vmatprep.subr.mxu0 0.0
  %8349 = vmatpush1.msra.mxu0 %v4580
  %8350 = vmatprep.subr.mxu0 0.0
  %8351 = vmatpush1.msra.mxu0 %v4579
  %8352 = vmatprep.subr.mxu0 0.0
  %8353 = vmatpush1.msra.mxu0 %v4578
  %8354 = vmatprep.subr.mxu0 0.0
  %8355 = vmatpush2.msra.mxu0 0.0
  %8356 = vmatprep.subr.mxu0 0.0
  %8357 = vmatpush2.msra.mxu0 0.0
  %8358 = vmatprep.subr.mxu0 0.0
  %8359 = vmatpush2.msra.mxu0 0.0
  %8360 = vmatprep.subr.mxu0 0.0
  %8361 = vmatpush2.msra.mxu0 0.0
  %8362 = vmatprep.subr.mxu0 0.0
  %8363 = vmatpush2.msra.mxu0 0.0
  %8364 = vmatprep.subr.mxu0 0.0
  %8365 = vmatpush2.msra.mxu0 0.0
  %8366 = vmatprep.subr.mxu0 0.0
  %8367 = vmatpush2.msra.mxu0 0.0
  %8368 = vmatprep.subr.mxu0 0.0
  %8369 = vmatpush2.msra.mxu0 0.0
  %8370 = vmatprep.subr.mxu0 0.0
  %8371 = vmatpush2.msra.mxu0 0.0
  %8372 = vmatprep.subr.mxu0 0.0
  %8373 = vmatpush2.msra.mxu0 0.0
  %8374 = vmatprep.subr.mxu0 0.0
  %8375 = vmatpush2.msra.mxu0 0.0
  %8376 = vmatprep.subr.mxu0 0.0
  %8377 = vmatpush2.msra.mxu0 0.0
  %8378 = vmatprep.subr.mxu0 0.0
  %8379 = vmatpush2.msra.mxu0 0.0
  %8380 = vmatprep.subr.mxu0 0.0
  %8381 = vmatpush2.msra.mxu0 0.0
  %8382 = vmatprep.subr.mxu0 0.0
  %8383 = vmatpush2.msra.mxu0 0.0
  %8384 = vmatprep.subr.mxu0 0.0
  %8385 = vmatpush2.msra.mxu0 0.0
  %8386 = vmatprep.mubr.f32.mxu0 0.0
  %8387 = vmatmul.mubr.f32.gmra.mxu0 %v8317
  %v8388 = vpop.f32.mrf.mxu0
  %v8389 = vadd.f32 0.0, %v8388
  %v8390 = vpop.f32.mrf.mxu0
  %8391 = vmatprep.mubr.f32.mxu0 0.0
  %8392 = vmatmul.mubr.f32.gmra.mxu0 %v8320
  %v8393 = vpop.f32.mrf.mxu0
  %v8394 = vadd.f32 0.0, %v8393
  %v8395 = vpop.f32.mrf.mxu0
  %8396 = vdwg.mxu0
  %v8398 = vsel %vm326, %v4390, 0
  %v8401 = vsel %vm326, %v4391, 0
  %8403 = vmatprep.subr.mxu0 0.0
  %8404 = vmatpush1.msra.mxu0 0.0
  %8405 = vmatprep.subr.mxu0 0.0
  %8406 = vmatpush1.msra.mxu0 0.0
  %8407 = vmatprep.subr.mxu0 0.0
  %8408 = vmatpush1.msra.mxu0 0.0
  %8409 = vmatprep.subr.mxu0 0.0
  %8410 = vmatpush1.msra.mxu0 0.0
  %8411 = vmatprep.subr.mxu0 0.0
  %8412 = vmatpush1.msra.mxu0 0.0
  %8413 = vmatprep.subr.mxu0 0.0
  %8414 = vmatpush1.msra.mxu0 0.0
  %8415 = vmatprep.subr.mxu0 0.0
  %8416 = vmatpush1.msra.mxu0 0.0
  %8417 = vmatprep.subr.mxu0 0.0
  %8418 = vmatpush1.msra.mxu0 0.0
  %8419 = vmatprep.subr.mxu0 0.0
  %8420 = vmatpush1.msra.mxu0 0.0
  %8421 = vmatprep.subr.mxu0 0.0
  %8422 = vmatpush1.msra.mxu0 0.0
  %8423 = vmatprep.subr.mxu0 0.0
  %8424 = vmatpush1.msra.mxu0 0.0
  %8425 = vmatprep.subr.mxu0 0.0
  %8426 = vmatpush1.msra.mxu0 0.0
  %8427 = vmatprep.subr.mxu0 0.0
  %8428 = vmatpush1.msra.mxu0 %v4585
  %8429 = vmatprep.subr.mxu0 0.0
  %8430 = vmatpush1.msra.mxu0 %v4584
  %8431 = vmatprep.subr.mxu0 0.0
  %8432 = vmatpush1.msra.mxu0 %v4583
  %8433 = vmatprep.subr.mxu0 0.0
  %8434 = vmatpush1.msra.mxu0 %v4582
  %8435 = vmatprep.subr.mxu0 0.0
  %8436 = vmatpush2.msra.mxu0 0.0
  %8437 = vmatprep.subr.mxu0 0.0
  %8438 = vmatpush2.msra.mxu0 0.0
  %8439 = vmatprep.subr.mxu0 0.0
  %8440 = vmatpush2.msra.mxu0 0.0
  %8441 = vmatprep.subr.mxu0 0.0
  %8442 = vmatpush2.msra.mxu0 0.0
  %8443 = vmatprep.subr.mxu0 0.0
  %8444 = vmatpush2.msra.mxu0 0.0
  %8445 = vmatprep.subr.mxu0 0.0
  %8446 = vmatpush2.msra.mxu0 0.0
  %8447 = vmatprep.subr.mxu0 0.0
  %8448 = vmatpush2.msra.mxu0 0.0
  %8449 = vmatprep.subr.mxu0 0.0
  %8450 = vmatpush2.msra.mxu0 0.0
  %8451 = vmatprep.subr.mxu0 0.0
  %8452 = vmatpush2.msra.mxu0 0.0
  %8453 = vmatprep.subr.mxu0 0.0
  %8454 = vmatpush2.msra.mxu0 0.0
  %8455 = vmatprep.subr.mxu0 0.0
  %8456 = vmatpush2.msra.mxu0 0.0
  %8457 = vmatprep.subr.mxu0 0.0
  %8458 = vmatpush2.msra.mxu0 0.0
  %8459 = vmatprep.subr.mxu0 0.0
  %8460 = vmatpush2.msra.mxu0 0.0
  %8461 = vmatprep.subr.mxu0 0.0
  %8462 = vmatpush2.msra.mxu0 0.0
  %8463 = vmatprep.subr.mxu0 0.0
  %8464 = vmatpush2.msra.mxu0 0.0
  %8465 = vmatprep.subr.mxu0 0.0
  %8466 = vmatpush2.msra.mxu0 0.0
  %8467 = vmatprep.mubr.f32.mxu0 0.0
  %8468 = vmatmul.mubr.f32.gmra.mxu0 %v8398
  %v8469 = vpop.f32.mrf.mxu0
  %v8470 = vadd.f32 0.0, %v8469
  %v8471 = vpop.f32.mrf.mxu0
  %8472 = vmatprep.mubr.f32.mxu0 0.0
  %8473 = vmatmul.mubr.f32.gmra.mxu0 %v8401
  %v8474 = vpop.f32.mrf.mxu0
  %v8475 = vadd.f32 0.0, %v8474
  %v8476 = vpop.f32.mrf.mxu0
  %8477 = vdwg.mxu0
  %v8479 = vsel %vm326, %v4392, 0
  %v8482 = vsel %vm326, %v4393, 0
  %8484 = vmatprep.subr.mxu0 0.0
  %8485 = vmatpush1.msra.mxu0 0.0
  %8486 = vmatprep.subr.mxu0 0.0
  %8487 = vmatpush1.msra.mxu0 0.0
  %8488 = vmatprep.subr.mxu0 0.0
  %8489 = vmatpush1.msra.mxu0 0.0
  %8490 = vmatprep.subr.mxu0 0.0
  %8491 = vmatpush1.msra.mxu0 0.0
  %8492 = vmatprep.subr.mxu0 0.0
  %8493 = vmatpush1.msra.mxu0 0.0
  %8494 = vmatprep.subr.mxu0 0.0
  %8495 = vmatpush1.msra.mxu0 0.0
  %8496 = vmatprep.subr.mxu0 0.0
  %8497 = vmatpush1.msra.mxu0 0.0
  %8498 = vmatprep.subr.mxu0 0.0
  %8499 = vmatpush1.msra.mxu0 0.0
  %8500 = vmatprep.subr.mxu0 0.0
  %8501 = vmatpush1.msra.mxu0 0.0
  %8502 = vmatprep.subr.mxu0 0.0
  %8503 = vmatpush1.msra.mxu0 0.0
  %8504 = vmatprep.subr.mxu0 0.0
  %8505 = vmatpush1.msra.mxu0 0.0
  %8506 = vmatprep.subr.mxu0 0.0
  %8507 = vmatpush1.msra.mxu0 0.0
  %8508 = vmatprep.subr.mxu0 0.0
  %8509 = vmatpush1.msra.mxu0 %v4589
  %8510 = vmatprep.subr.mxu0 0.0
  %8511 = vmatpush1.msra.mxu0 %v4588
  %8512 = vmatprep.subr.mxu0 0.0
  %8513 = vmatpush1.msra.mxu0 %v4587
  %8514 = vmatprep.subr.mxu0 0.0
  %8515 = vmatpush1.msra.mxu0 %v4586
  %8516 = vmatprep.subr.mxu0 0.0
  %8517 = vmatpush2.msra.mxu0 0.0
  %8518 = vmatprep.subr.mxu0 0.0
  %8519 = vmatpush2.msra.mxu0 0.0
  %8520 = vmatprep.subr.mxu0 0.0
  %8521 = vmatpush2.msra.mxu0 0.0
  %8522 = vmatprep.subr.mxu0 0.0
  %8523 = vmatpush2.msra.mxu0 0.0
  %8524 = vmatprep.subr.mxu0 0.0
  %8525 = vmatpush2.msra.mxu0 0.0
  %8526 = vmatprep.subr.mxu0 0.0
  %8527 = vmatpush2.msra.mxu0 0.0
  %8528 = vmatprep.subr.mxu0 0.0
  %8529 = vmatpush2.msra.mxu0 0.0
  %8530 = vmatprep.subr.mxu0 0.0
  %8531 = vmatpush2.msra.mxu0 0.0
  %8532 = vmatprep.subr.mxu0 0.0
  %8533 = vmatpush2.msra.mxu0 0.0
  %8534 = vmatprep.subr.mxu0 0.0
  %8535 = vmatpush2.msra.mxu0 0.0
  %8536 = vmatprep.subr.mxu0 0.0
  %8537 = vmatpush2.msra.mxu0 0.0
  %8538 = vmatprep.subr.mxu0 0.0
  %8539 = vmatpush2.msra.mxu0 0.0
  %8540 = vmatprep.subr.mxu0 0.0
  %8541 = vmatpush2.msra.mxu0 0.0
  %8542 = vmatprep.subr.mxu0 0.0
  %8543 = vmatpush2.msra.mxu0 0.0
  %8544 = vmatprep.subr.mxu0 0.0
  %8545 = vmatpush2.msra.mxu0 0.0
  %8546 = vmatprep.subr.mxu0 0.0
  %8547 = vmatpush2.msra.mxu0 0.0
  %8548 = vmatprep.mubr.f32.mxu0 0.0
  %8549 = vmatmul.mubr.f32.gmra.mxu0 %v8479
  %v8550 = vpop.f32.mrf.mxu0
  %v8551 = vadd.f32 0.0, %v8550
  %v8552 = vpop.f32.mrf.mxu0
  %8553 = vmatprep.mubr.f32.mxu0 0.0
  %8554 = vmatmul.mubr.f32.gmra.mxu0 %v8482
  %v8555 = vpop.f32.mrf.mxu0
  %v8556 = vadd.f32 0.0, %v8555
  %v8557 = vpop.f32.mrf.mxu0
  %8558 = vdwg.mxu0
  %v8559 = vadd.f32 %v4663, %v4744
  %v8560 = vadd.f32 %v8559, %v4825
  %v8561 = vadd.f32 %v8560, %v4906
  %v8562 = vadd.f32 %v8561, %v4987
  %v8563 = vadd.f32 %v8562, %v5068
  %v8564 = vadd.f32 %v8563, %v5149
  %v8565 = vadd.f32 %v8564, %v5230
  %v8566 = vadd.f32 %v8565, %v5311
  %v8567 = vadd.f32 %v8566, %v5392
  %v8568 = vadd.f32 %v8567, %v5473
  %v8569 = vadd.f32 %v8568, %v5554
  %v8570 = vadd.f32 %v8569, %v5635
  %v8571 = vadd.f32 %v8570, %v5716
  %v8572 = vadd.f32 %v8571, %v5797
  %v8573 = vadd.f32 %v8572, %v5878
  %v8574 = vadd.f32 %v8573, %v5959
  %v8575 = vadd.f32 %v8574, %v6040
  %v8576 = vadd.f32 %v8575, %v6121
  %v8577 = vadd.f32 %v8576, %v6202
  %v8578 = vadd.f32 %v8577, %v6283
  %v8579 = vadd.f32 %v8578, %v6364
  %v8580 = vadd.f32 %v8579, %v6445
  %v8581 = vadd.f32 %v8580, %v6526
  %v8582 = vadd.f32 %v8581, %v6607
  %v8583 = vadd.f32 %v8582, %v6688
  %v8584 = vadd.f32 %v8583, %v6769
  %v8585 = vadd.f32 %v8584, %v6850
  %v8586 = vadd.f32 %v8585, %v6931
  %v8587 = vadd.f32 %v8586, %v7012
  %v8588 = vadd.f32 %v8587, %v7093
  %v8589 = vadd.f32 %v8588, %v7174
  %v8590 = vadd.f32 %v8589, %v7255
  %v8591 = vadd.f32 %v8590, %v7336
  %v8592 = vadd.f32 %v8591, %v7417
  %v8593 = vadd.f32 %v8592, %v7498
  %v8594 = vadd.f32 %v8593, %v7579
  %v8595 = vadd.f32 %v8594, %v7660
  %v8596 = vadd.f32 %v8595, %v7741
  %v8597 = vadd.f32 %v8596, %v7822
  %v8598 = vadd.f32 %v8597, %v7903
  %v8599 = vadd.f32 %v8598, %v7984
  %v8600 = vadd.f32 %v8599, %v8065
  %v8601 = vadd.f32 %v8600, %v8146
  %v8602 = vadd.f32 %v8601, %v8227
  %v8603 = vadd.f32 %v8602, %v8308
  %v8604 = vadd.f32 %v8603, %v8389
  %v8605 = vadd.f32 %v8604, %v8470
  %v8606 = vadd.f32 %v8605, %v8551
  %v8607 = vadd.f32 %v4668, %v4749
  %v8608 = vadd.f32 %v8607, %v4830
  %v8609 = vadd.f32 %v8608, %v4911
  %v8610 = vadd.f32 %v8609, %v4992
  %v8611 = vadd.f32 %v8610, %v5073
  %v8612 = vadd.f32 %v8611, %v5154
  %v8613 = vadd.f32 %v8612, %v5235
  %v8614 = vadd.f32 %v8613, %v5316
  %v8615 = vadd.f32 %v8614, %v5397
  %v8616 = vadd.f32 %v8615, %v5478
  %v8617 = vadd.f32 %v8616, %v5559
  %v8618 = vadd.f32 %v8617, %v5640
  %v8619 = vadd.f32 %v8618, %v5721
  %v8620 = vadd.f32 %v8619, %v5802
  %v8621 = vadd.f32 %v8620, %v5883
  %v8622 = vadd.f32 %v8621, %v5964
  %v8623 = vadd.f32 %v8622, %v6045
  %v8624 = vadd.f32 %v8623, %v6126
  %v8625 = vadd.f32 %v8624, %v6207
  %v8626 = vadd.f32 %v8625, %v6288
  %v8627 = vadd.f32 %v8626, %v6369
  %v8628 = vadd.f32 %v8627, %v6450
  %v8629 = vadd.f32 %v8628, %v6531
  %v8630 = vadd.f32 %v8629, %v6612
  %v8631 = vadd.f32 %v8630, %v6693
  %v8632 = vadd.f32 %v8631, %v6774
  %v8633 = vadd.f32 %v8632, %v6855
  %v8634 = vadd.f32 %v8633, %v6936
  %v8635 = vadd.f32 %v8634, %v7017
  %v8636 = vadd.f32 %v8635, %v7098
  %v8637 = vadd.f32 %v8636, %v7179
  %v8638 = vadd.f32 %v8637, %v7260
  %v8639 = vadd.f32 %v8638, %v7341
  %v8640 = vadd.f32 %v8639, %v7422
  %v8641 = vadd.f32 %v8640, %v7503
  %v8642 = vadd.f32 %v8641, %v7584
  %v8643 = vadd.f32 %v8642, %v7665
  %v8644 = vadd.f32 %v8643, %v7746
  %v8645 = vadd.f32 %v8644, %v7827
  %v8646 = vadd.f32 %v8645, %v7908
  %v8647 = vadd.f32 %v8646, %v7989
  %v8648 = vadd.f32 %v8647, %v8070
  %v8649 = vadd.f32 %v8648, %v8151
  %v8650 = vadd.f32 %v8649, %v8232
  %v8651 = vadd.f32 %v8650, %v8313
  %v8652 = vadd.f32 %v8651, %v8394
  %v8653 = vadd.f32 %v8652, %v8475
  %v8654 = vadd.f32 %v8653, %v8556
  %v8655 = vld [vmem:[%s3] sm:$0x1]
  %v8657 = vlaneseq
  %v8658 = vshrl.u32 %v8657, 7
  %v8659 = vsub.s32 0, %v8658
  %v8660 = vrot.slane %v8655, %v8659
  %v8662 = vadd.f32 %v8606, %v8660
  %v8663 = vadd.f32 %v8654, %v8660
  %v8664 = vmax.f32 %v8662, 0.0
  %v8665 = vmax.f32 %v8663, 0.0
  %v8666 = vld [vmem:[%s4] sm:$0xff]
  %v8667 = vld [vmem:[%s4 + $0x8] sm:$0xff]
  %v8668 = vadd.f32 %v8664, %v8666
  %v8669 = vadd.f32 %v8665, %v8667
  %v8670 = vld [vmem:[%s6] sm:$0xff]
  %v8671 = vld [vmem:[%s6 + $0x8] sm:$0xff]
  %v8672 = vld [vmem:[%s6 + $0x10] sm:$0xff]
  %v8673 = vld [vmem:[%s6 + $0x38] sm:$0xff]
  %v8674 = vld [vmem:[%s6 + $0x40] sm:$0xff]
  %v8675 = vld [vmem:[%s6 + $0x48] sm:$0xff]
  %v8676 = vld [vmem:[%s6 + $0x70] sm:$0xff]
  %v8677 = vld [vmem:[%s6 + $0x78] sm:$0xff]
  %v8678 = vld [vmem:[%s6 + $0x80] sm:$0xff]
  %v8679 = vld [vmem:[%s6 + $0xa8] sm:$0xff]
  %v8680 = vld [vmem:[%s6 + $0xb0] sm:$0xff]
  %v8681 = vld [vmem:[%s6 + $0xb8] sm:$0xff]
  %v8682 = vld [vmem:[%s6 + $0xe0] sm:$0xff]
  %v8683 = vld [vmem:[%s6 + $0xe8] sm:$0xff]
  %v8684 = vld [vmem:[%s6 + $0xf0] sm:$0xff]
  %v8685 = vld [vmem:[%s6 + $0x118] sm:$0xff]
  %v8686 = vld [vmem:[%s6 + $0x120] sm:$0xff]
  %v8687 = vld [vmem:[%s6 + $0x128] sm:$0xff]
  %v8688 = vld [vmem:[%s6 + $0x150] sm:$0xff]
  %v8689 = vld [vmem:[%s6 + $0x158] sm:$0xff]
  %v8690 = vld [vmem:[%s6 + $0x160] sm:$0xff]
  %v8691 = vld [vmem:[%s6 + $0x188] sm:$0xff]
  %v8692 = vld [vmem:[%s6 + $0x190] sm:$0xff]
  %v8693 = vld [vmem:[%s6 + $0x198] sm:$0xff]
  %v8694 = vld [vmem:[%s6 + $0x1c0] sm:$0xff]
  %v8695 = vld [vmem:[%s6 + $0x1c8] sm:$0xff]
  %v8696 = vld [vmem:[%s6 + $0x1d0] sm:$0xff]
  %v8697 = vld [vmem:[%s6 + $0x1f8] sm:$0xff]
  %v8698 = vld [vmem:[%s6 + $0x200] sm:$0xff]
  %v8699 = vld [vmem:[%s6 + $0x208] sm:$0xff]
  %v8700 = vld [vmem:[%s6 + $0x230] sm:$0xff]
  %v8701 = vld [vmem:[%s6 + $0x238] sm:$0xff]
  %v8702 = vld [vmem:[%s6 + $0x240] sm:$0xff]
  %v8703 = vld [vmem:[%s6 + $0x268] sm:$0xff]
  %v8704 = vld [vmem:[%s6 + $0x270] sm:$0xff]
  %v8705 = vld [vmem:[%s6 + $0x278] sm:$0xff]
  %v8706 = vld [vmem:[%s6 + $0x2a0] sm:$0xff]
  %v8707 = vld [vmem:[%s6 + $0x2a8] sm:$0xff]
  %v8708 = vld [vmem:[%s6 + $0x2b0] sm:$0xff]
  %v8709 = vld [vmem:[%s6 + $0x2d8] sm:$0xff]
  %v8710 = vld [vmem:[%s6 + $0x2e0] sm:$0xff]
  %v8711 = vld [vmem:[%s6 + $0x2e8] sm:$0xff]
  %v8712 = vld [vmem:[%s6 + $0x310] sm:$0xff]
  %v8713 = vld [vmem:[%s6 + $0x318] sm:$0xff]
  %v8714 = vld [vmem:[%s6 + $0x320] sm:$0xff]
  %v8715 = vld [vmem:[%s6 + $0x348] sm:$0xff]
  %v8716 = vld [vmem:[%s6 + $0x350] sm:$0xff]
  %v8717 = vld [vmem:[%s6 + $0x358] sm:$0xff]
  %v8718 = vld [vmem:[%s6 + $0x18] sm:$0xff]
  %v8719 = vld [vmem:[%s6 + $0x50] sm:$0xff]
  %v8720 = vld [vmem:[%s6 + $0x88] sm:$0xff]
  %v8721 = vld [vmem:[%s6 + $0xc0] sm:$0xff]
  %v8722 = vld [vmem:[%s6 + $0xf8] sm:$0xff]
  %v8723 = vld [vmem:[%s6 + $0x130] sm:$0xff]
  %v8724 = vld [vmem:[%s6 + $0x168] sm:$0xff]
  %v8725 = vld [vmem:[%s6 + $0x1a0] sm:$0xff]
  %v8726 = vld [vmem:[%s6 + $0x1d8] sm:$0xff]
  %v8727 = vld [vmem:[%s6 + $0x210] sm:$0xff]
  %v8728 = vld [vmem:[%s6 + $0x248] sm:$0xff]
  %v8729 = vld [vmem:[%s6 + $0x280] sm:$0xff]
  %v8730 = vld [vmem:[%s6 + $0x2b8] sm:$0xff]
  %v8731 = vld [vmem:[%s6 + $0x2f0] sm:$0xff]
  %v8732 = vld [vmem:[%s6 + $0x328] sm:$0xff]
  %v8733 = vld [vmem:[%s6 + $0x360] sm:$0xff]
  %v8734 = vld [vmem:[%s6 + $0x20] sm:$0xff]
  %v8735 = vld [vmem:[%s6 + $0x28] sm:$0xff]
  %v8736 = vld [vmem:[%s6 + $0x58] sm:$0xff]
  %v8737 = vld [vmem:[%s6 + $0x60] sm:$0xff]
  %v8738 = vld [vmem:[%s6 + $0x90] sm:$0xff]
  %v8739 = vld [vmem:[%s6 + $0x98] sm:$0xff]
  %v8740 = vld [vmem:[%s6 + $0xc8] sm:$0xff]
  %v8741 = vld [vmem:[%s6 + $0xd0] sm:$0xff]
  %v8742 = vld [vmem:[%s6 + $0x100] sm:$0xff]
  %v8743 = vld [vmem:[%s6 + $0x108] sm:$0xff]
  %v8744 = vld [vmem:[%s6 + $0x138] sm:$0xff]
  %v8745 = vld [vmem:[%s6 + $0x140] sm:$0xff]
  %v8746 = vld [vmem:[%s6 + $0x170] sm:$0xff]
  %v8747 = vld [vmem:[%s6 + $0x178] sm:$0xff]
  %v8748 = vld [vmem:[%s6 + $0x1a8] sm:$0xff]
  %v8749 = vld [vmem:[%s6 + $0x1b0] sm:$0xff]
  %v8750 = vld [vmem:[%s6 + $0x1e0] sm:$0xff]
  %v8751 = vld [vmem:[%s6 + $0x1e8] sm:$0xff]
  %v8752 = vld [vmem:[%s6 + $0x218] sm:$0xff]
  %v8753 = vld [vmem:[%s6 + $0x220] sm:$0xff]
  %v8754 = vld [vmem:[%s6 + $0x250] sm:$0xff]
  %v8755 = vld [vmem:[%s6 + $0x258] sm:$0xff]
  %v8756 = vld [vmem:[%s6 + $0x288] sm:$0xff]
  %v8757 = vld [vmem:[%s6 + $0x290] sm:$0xff]
  %v8758 = vld [vmem:[%s6 + $0x2c0] sm:$0xff]
  %v8759 = vld [vmem:[%s6 + $0x2c8] sm:$0xff]
  %v8760 = vld [vmem:[%s6 + $0x2f8] sm:$0xff]
  %v8761 = vld [vmem:[%s6 + $0x300] sm:$0xff]
  %v8762 = vld [vmem:[%s6 + $0x330] sm:$0xff]
  %v8763 = vld [vmem:[%s6 + $0x338] sm:$0xff]
  %v8764 = vld [vmem:[%s6 + $0x368] sm:$0xff]
  %v8765 = vld [vmem:[%s6 + $0x370] sm:$0xff]
  %v8766 = vld [vmem:[%s6 + $0x30] sm:$0xff]
  %v8767 = vld [vmem:[%s6 + $0x68] sm:$0xff]
  %v8768 = vld [vmem:[%s6 + $0xa0] sm:$0xff]
  %v8769 = vld [vmem:[%s6 + $0xd8] sm:$0xff]
  %v8770 = vld [vmem:[%s6 + $0x110] sm:$0xff]
  %v8771 = vld [vmem:[%s6 + $0x148] sm:$0xff]
  %v8772 = vld [vmem:[%s6 + $0x180] sm:$0xff]
  %v8773 = vld [vmem:[%s6 + $0x1b8] sm:$0xff]
  %v8774 = vld [vmem:[%s6 + $0x1f0] sm:$0xff]
  %v8775 = vld [vmem:[%s6 + $0x228] sm:$0xff]
  %v8776 = vld [vmem:[%s6 + $0x260] sm:$0xff]
  %v8777 = vld [vmem:[%s6 + $0x298] sm:$0xff]
  %v8778 = vld [vmem:[%s6 + $0x2d0] sm:$0xff]
  %v8779 = vld [vmem:[%s6 + $0x308] sm:$0xff]
  %v8780 = vld [vmem:[%s6 + $0x340] sm:$0xff]
  %v8781 = vld [vmem:[%s6 + $0x378] sm:$0xff]
  %v8782 = vld [vmem:[%s8] ss:$8 sm:$0x7]
  %s8783 = scalar_lea.vmem %s8, 1
  %v8784 = vld [vmem:[%s8783] ss:$8 sm:$0x3]
  %v8785 = vld [vmem:[%s8 + $0x2] ss:$0 sm:$0xff]
  %v8786 = vld [vmem:[%s8 + $0x3] ss:$0 sm:$0xff]
  %v8787 = vld [vmem:[%s8 + $0x4] ss:$0 sm:$0xff]
  %v8788 = vld [vmem:[%s8 + $0x5] ss:$0 sm:$0xff]
  %v8789 = vld [vmem:[%s8 + $0x6] ss:$0 sm:$0xff]
  %v8790 = vld [vmem:[%s8 + $0x7] ss:$0 sm:$0xff]
  %v8791 = vld [vmem:[%s8 + $0x18] ss:$0 sm:$0xff]
  %v8793 = vlaneseq
  %v8794 = vshrl.u32 %v8793, 7
  %v8795 = vsub.s32 0, %v8794
  %v8796 = vrot.slane %v8782, %v8795
  %v8797 = vlaneseq
  %v8798 = vshrl.u32 %v8797, 7
  %v8799 = vsub.s32 1, %v8798
  %v8800 = vrot.slane %v8782, %v8799
  %v8801 = vlaneseq
  %v8802 = vshrl.u32 %v8801, 7
  %v8803 = vsub.s32 2, %v8802
  %v8804 = vrot.slane %v8782, %v8803
  %8808 = vmatprep.subr.mxu0 %v8716
  %8809 = vmatpush1.msra.mxu0 %v8715
  %8810 = vmatprep.subr.mxu0 %v8713
  %8811 = vmatpush1.msra.mxu0 %v8712
  %8812 = vmatprep.subr.mxu0 %v8710
  %8813 = vmatpush1.msra.mxu0 %v8709
  %8814 = vmatprep.subr.mxu0 %v8707
  %8815 = vmatpush1.msra.mxu0 %v8706
  %8816 = vmatprep.subr.mxu0 %v8704
  %8817 = vmatpush1.msra.mxu0 %v8703
  %8818 = vmatprep.subr.mxu0 %v8701
  %8819 = vmatpush1.msra.mxu0 %v8700
  %8820 = vmatprep.subr.mxu0 %v8698
  %8821 = vmatpush1.msra.mxu0 %v8697
  %8822 = vmatprep.subr.mxu0 %v8695
  %8823 = vmatpush1.msra.mxu0 %v8694
  %8824 = vmatprep.subr.mxu0 %v8692
  %8825 = vmatpush1.msra.mxu0 %v8691
  %8826 = vmatprep.subr.mxu0 %v8689
  %8827 = vmatpush1.msra.mxu0 %v8688
  %8828 = vmatprep.subr.mxu0 %v8686
  %8829 = vmatpush1.msra.mxu0 %v8685
  %8830 = vmatprep.subr.mxu0 %v8683
  %8831 = vmatpush1.msra.mxu0 %v8682
  %8832 = vmatprep.subr.mxu0 %v8680
  %8833 = vmatpush1.msra.mxu0 %v8679
  %8834 = vmatprep.subr.mxu0 %v8677
  %8835 = vmatpush1.msra.mxu0 %v8676
  %8836 = vmatprep.subr.mxu0 %v8674
  %8837 = vmatpush1.msra.mxu0 %v8673
  %8838 = vmatprep.subr.mxu0 %v8671
  %8839 = vmatpush1.msra.mxu0 %v8670
  %8840 = vmatprep.subr.mxu0 0.0
  %8841 = vmatpush2.msra.mxu0 0.0
  %8842 = vmatprep.subr.mxu0 0.0
  %8843 = vmatpush2.msra.mxu0 0.0
  %8844 = vmatprep.subr.mxu0 0.0
  %8845 = vmatpush2.msra.mxu0 0.0
  %8846 = vmatprep.subr.mxu0 0.0
  %8847 = vmatpush2.msra.mxu0 0.0
  %8848 = vmatprep.subr.mxu0 0.0
  %8849 = vmatpush2.msra.mxu0 0.0
  %8850 = vmatprep.subr.mxu0 0.0
  %8851 = vmatpush2.msra.mxu0 0.0
  %8852 = vmatprep.subr.mxu0 0.0
  %8853 = vmatpush2.msra.mxu0 0.0
  %8854 = vmatprep.subr.mxu0 0.0
  %8855 = vmatpush2.msra.mxu0 0.0
  %8856 = vmatprep.subr.mxu0 0.0
  %8857 = vmatpush2.msra.mxu0 0.0
  %8858 = vmatprep.subr.mxu0 0.0
  %8859 = vmatpush2.msra.mxu0 0.0
  %8860 = vmatprep.subr.mxu0 0.0
  %8861 = vmatpush2.msra.mxu0 0.0
  %8862 = vmatprep.subr.mxu0 0.0
  %8863 = vmatpush2.msra.mxu0 0.0
  %8864 = vmatprep.subr.mxu0 0.0
  %8865 = vmatpush2.msra.mxu0 0.0
  %8866 = vmatprep.subr.mxu0 0.0
  %8867 = vmatpush2.msra.mxu0 0.0
  %8868 = vmatprep.subr.mxu0 0.0
  %8869 = vmatpush2.msra.mxu0 0.0
  %8870 = vmatprep.subr.mxu0 0.0
  %8871 = vmatpush2.msra.mxu0 0.0
  %8872 = vmatprep.mubr.f32.mxu0 0.0
  %8873 = vmatmul.mubr.f32.gmra.mxu0 %v8668
  %v8874 = vpop.f32.mrf.mxu0
  %v8875 = vadd.f32 %v8796, %v8874
  %v8876 = vpop.f32.mrf.mxu0
  %v8877 = vadd.f32 %v8800, %v8876
  %8878 = vmatprep.mubr.f32.mxu0 0.0
  %8879 = vmatmul.mubr.f32.gmra.mxu0 %v8669
  %v8880 = vpop.f32.mrf.mxu0
  %v8881 = vadd.f32 %v8796, %v8880
  %v8882 = vpop.f32.mrf.mxu0
  %v8883 = vadd.f32 %v8800, %v8882
  %8884 = vdwg.mxu0
  %8885 = vmatprep.subr.mxu0 0.0
  %8886 = vmatpush1.msra.mxu0 %v8717
  %8887 = vmatprep.subr.mxu0 0.0
  %8888 = vmatpush1.msra.mxu0 %v8714
  %8889 = vmatprep.subr.mxu0 0.0
  %8890 = vmatpush1.msra.mxu0 %v8711
  %8891 = vmatprep.subr.mxu0 0.0
  %8892 = vmatpush1.msra.mxu0 %v8708
  %8893 = vmatprep.subr.mxu0 0.0
  %8894 = vmatpush1.msra.mxu0 %v8705
  %8895 = vmatprep.subr.mxu0 0.0
  %8896 = vmatpush1.msra.mxu0 %v8702
  %8897 = vmatprep.subr.mxu0 0.0
  %8898 = vmatpush1.msra.mxu0 %v8699
  %8899 = vmatprep.subr.mxu0 0.0
  %8900 = vmatpush1.msra.mxu0 %v8696
  %8901 = vmatprep.subr.mxu0 0.0
  %8902 = vmatpush1.msra.mxu0 %v8693
  %8903 = vmatprep.subr.mxu0 0.0
  %8904 = vmatpush1.msra.mxu0 %v8690
  %8905 = vmatprep.subr.mxu0 0.0
  %8906 = vmatpush1.msra.mxu0 %v8687
  %8907 = vmatprep.subr.mxu0 0.0
  %8908 = vmatpush1.msra.mxu0 %v8684
  %8909 = vmatprep.subr.mxu0 0.0
  %8910 = vmatpush1.msra.mxu0 %v8681
  %8911 = vmatprep.subr.mxu0 0.0
  %8912 = vmatpush1.msra.mxu0 %v8678
  %8913 = vmatprep.subr.mxu0 0.0
  %8914 = vmatpush1.msra.mxu0 %v8675
  %8915 = vmatprep.subr.mxu0 0.0
  %8916 = vmatpush1.msra.mxu0 %v8672
  %8917 = vmatprep.subr.mxu0 0.0
  %8918 = vmatpush2.msra.mxu0 0.0
  %8919 = vmatprep.subr.mxu0 0.0
  %8920 = vmatpush2.msra.mxu0 0.0
  %8921 = vmatprep.subr.mxu0 0.0
  %8922 = vmatpush2.msra.mxu0 0.0
  %8923 = vmatprep.subr.mxu0 0.0
  %8924 = vmatpush2.msra.mxu0 0.0
  %8925 = vmatprep.subr.mxu0 0.0
  %8926 = vmatpush2.msra.mxu0 0.0
  %8927 = vmatprep.subr.mxu0 0.0
  %8928 = vmatpush2.msra.mxu0 0.0
  %8929 = vmatprep.subr.mxu0 0.0
  %8930 = vmatpush2.msra.mxu0 0.0
  %8931 = vmatprep.subr.mxu0 0.0
  %8932 = vmatpush2.msra.mxu0 0.0
  %8933 = vmatprep.subr.mxu0 0.0
  %8934 = vmatpush2.msra.mxu0 0.0
  %8935 = vmatprep.subr.mxu0 0.0
  %8936 = vmatpush2.msra.mxu0 0.0
  %8937 = vmatprep.subr.mxu0 0.0
  %8938 = vmatpush2.msra.mxu0 0.0
  %8939 = vmatprep.subr.mxu0 0.0
  %8940 = vmatpush2.msra.mxu0 0.0
  %8941 = vmatprep.subr.mxu0 0.0
  %8942 = vmatpush2.msra.mxu0 0.0
  %8943 = vmatprep.subr.mxu0 0.0
  %8944 = vmatpush2.msra.mxu0 0.0
  %8945 = vmatprep.subr.mxu0 0.0
  %8946 = vmatpush2.msra.mxu0 0.0
  %8947 = vmatprep.subr.mxu0 0.0
  %8948 = vmatpush2.msra.mxu0 0.0
  %8949 = vmatprep.mubr.f32.mxu0 0.0
  %8950 = vmatmul.mubr.f32.gmra.mxu0 %v8668
  %v8951 = vpop.f32.mrf.mxu0
  %v8952 = vadd.f32 %v8804, %v8951
  %v8953 = vpop.f32.mrf.mxu0
  %8954 = vmatprep.mubr.f32.mxu0 0.0
  %8955 = vmatmul.mubr.f32.gmra.mxu0 %v8669
  %v8956 = vpop.f32.mrf.mxu0
  %v8957 = vadd.f32 %v8804, %v8956
  %v8958 = vpop.f32.mrf.mxu0
  %8959 = vdwg.mxu0
  %8960 = vmatprep.subr.mxu0 0.0
  %8961 = vmatpush1.xpose.msra.mxu0 0.0
  %8962 = vmatprep.subr.mxu0 0.0
  %8963 = vmatpush1.xpose.msra.mxu0 0.0
  %8964 = vmatprep.subr.mxu0 0.0
  %8965 = vmatpush1.xpose.msra.mxu0 0.0
  %8966 = vmatprep.subr.mxu0 0.0
  %8967 = vmatpush1.xpose.msra.mxu0 0.0
  %8968 = vmatprep.subr.mxu0 0.0
  %8969 = vmatpush1.xpose.msra.mxu0 0.0
  %8970 = vmatprep.subr.mxu0 0.0
  %8971 = vmatpush1.xpose.msra.mxu0 0.0
  %8972 = vmatprep.subr.mxu0 0.0
  %8973 = vmatpush1.xpose.msra.mxu0 0.0
  %8974 = vmatprep.subr.mxu0 0.0
  %8975 = vmatpush1.xpose.msra.mxu0 0.0
  %8976 = vmatprep.subr.mxu0 0.0
  %8977 = vmatpush1.xpose.msra.mxu0 0.0
  %8978 = vmatprep.subr.mxu0 0.0
  %8979 = vmatpush1.xpose.msra.mxu0 0.0
  %8980 = vmatprep.subr.mxu0 0.0
  %8981 = vmatpush1.xpose.msra.mxu0 0.0
  %8982 = vmatprep.subr.mxu0 0.0
  %8983 = vmatpush1.xpose.msra.mxu0 0.0
  %8984 = vmatprep.subr.mxu0 0.0
  %8985 = vmatpush1.xpose.msra.mxu0 0.0
  %8986 = vmatprep.subr.mxu0 0.0
  %8987 = vmatpush1.xpose.msra.mxu0 0.0
  %8988 = vmatprep.subr.mxu0 0.0
  %8989 = vmatpush1.xpose.msra.mxu0 0.0
  %8990 = vmatprep.subr.mxu0 0.0
  %8991 = vmatpush1.xpose.msra.mxu0 %v8877
  %8992 = vmatprep.subr.mxu0 0.0
  %8993 = vmatpush2.xpose.msra.mxu0 0.0
  %8994 = vmatprep.subr.mxu0 0.0
  %8995 = vmatpush2.xpose.msra.mxu0 0.0
  %8996 = vmatprep.subr.mxu0 0.0
  %8997 = vmatpush2.xpose.msra.mxu0 0.0
  %8998 = vmatprep.subr.mxu0 0.0
  %8999 = vmatpush2.xpose.msra.mxu0 0.0
  %9000 = vmatprep.subr.mxu0 0.0
  %9001 = vmatpush2.xpose.msra.mxu0 0.0
  %9002 = vmatprep.subr.mxu0 0.0
  %9003 = vmatpush2.xpose.msra.mxu0 0.0
  %9004 = vmatprep.subr.mxu0 0.0
  %9005 = vmatpush2.xpose.msra.mxu0 0.0
  %9006 = vmatprep.subr.mxu0 0.0
  %9007 = vmatpush2.xpose.msra.mxu0 0.0
  %9008 = vmatprep.subr.mxu0 0.0
  %9009 = vmatpush2.xpose.msra.mxu0 0.0
  %9010 = vmatprep.subr.mxu0 0.0
  %9011 = vmatpush2.xpose.msra.mxu0 0.0
  %9012 = vmatprep.subr.mxu0 0.0
  %9013 = vmatpush2.xpose.msra.mxu0 0.0
  %9014 = vmatprep.subr.mxu0 0.0
  %9015 = vmatpush2.xpose.msra.mxu0 0.0
  %9016 = vmatprep.subr.mxu0 0.0
  %9017 = vmatpush2.xpose.msra.mxu0 0.0
  %9018 = vmatprep.subr.mxu0 0.0
  %9019 = vmatpush2.xpose.msra.mxu0 0.0
  %9020 = vmatprep.subr.mxu0 0.0
  %9021 = vmatpush2.xpose.msra.mxu0 0.0
  %9022 = vmatprep.subr.mxu0 0.0
  %9023 = vmatpush2.xpose.msra.mxu0 0.0
  %9024 = vmatprep.mubr.f32.mxu0 0.0
  %9025 = vmatmul.mubr.f32.gmra.mxu0 %v8875
  %v9026 = vpop.f32.mrf.mxu0
  %v9027 = vadd.f32 0.0, %v9026
  %v9028 = vpop.f32.mrf.mxu0
  %9029 = vdwg.mxu0
  %9030 = vmatprep.subr.mxu0 0.0
  %9031 = vmatpush1.xpose.msra.mxu0 0.0
  %9032 = vmatprep.subr.mxu0 0.0
  %9033 = vmatpush1.xpose.msra.mxu0 0.0
  %9034 = vmatprep.subr.mxu0 0.0
  %9035 = vmatpush1.xpose.msra.mxu0 0.0
  %9036 = vmatprep.subr.mxu0 0.0
  %9037 = vmatpush1.xpose.msra.mxu0 0.0
  %9038 = vmatprep.subr.mxu0 0.0
  %9039 = vmatpush1.xpose.msra.mxu0 0.0
  %9040 = vmatprep.subr.mxu0 0.0
  %9041 = vmatpush1.xpose.msra.mxu0 0.0
  %9042 = vmatprep.subr.mxu0 0.0
  %9043 = vmatpush1.xpose.msra.mxu0 0.0
  %9044 = vmatprep.subr.mxu0 0.0
  %9045 = vmatpush1.xpose.msra.mxu0 0.0
  %9046 = vmatprep.subr.mxu0 0.0
  %9047 = vmatpush1.xpose.msra.mxu0 0.0
  %9048 = vmatprep.subr.mxu0 0.0
  %9049 = vmatpush1.xpose.msra.mxu0 0.0
  %9050 = vmatprep.subr.mxu0 0.0
  %9051 = vmatpush1.xpose.msra.mxu0 0.0
  %9052 = vmatprep.subr.mxu0 0.0
  %9053 = vmatpush1.xpose.msra.mxu0 0.0
  %9054 = vmatprep.subr.mxu0 0.0
  %9055 = vmatpush1.xpose.msra.mxu0 0.0
  %9056 = vmatprep.subr.mxu0 0.0
  %9057 = vmatpush1.xpose.msra.mxu0 0.0
  %9058 = vmatprep.subr.mxu0 0.0
  %9059 = vmatpush1.xpose.msra.mxu0 0.0
  %9060 = vmatprep.subr.mxu0 0.0
  %9061 = vmatpush1.xpose.msra.mxu0 %v8883
  %9062 = vmatprep.subr.mxu0 0.0
  %9063 = vmatpush2.xpose.msra.mxu0 0.0
  %9064 = vmatprep.subr.mxu0 0.0
  %9065 = vmatpush2.xpose.msra.mxu0 0.0
  %9066 = vmatprep.subr.mxu0 0.0
  %9067 = vmatpush2.xpose.msra.mxu0 0.0
  %9068 = vmatprep.subr.mxu0 0.0
  %9069 = vmatpush2.xpose.msra.mxu0 0.0
  %9070 = vmatprep.subr.mxu0 0.0
  %9071 = vmatpush2.xpose.msra.mxu0 0.0
  %9072 = vmatprep.subr.mxu0 0.0
  %9073 = vmatpush2.xpose.msra.mxu0 0.0
  %9074 = vmatprep.subr.mxu0 0.0
  %9075 = vmatpush2.xpose.msra.mxu0 0.0
  %9076 = vmatprep.subr.mxu0 0.0
  %9077 = vmatpush2.xpose.msra.mxu0 0.0
  %9078 = vmatprep.subr.mxu0 0.0
  %9079 = vmatpush2.xpose.msra.mxu0 0.0
  %9080 = vmatprep.subr.mxu0 0.0
  %9081 = vmatpush2.xpose.msra.mxu0 0.0
  %9082 = vmatprep.subr.mxu0 0.0
  %9083 = vmatpush2.xpose.msra.mxu0 0.0
  %9084 = vmatprep.subr.mxu0 0.0
  %9085 = vmatpush2.xpose.msra.mxu0 0.0
  %9086 = vmatprep.subr.mxu0 0.0
  %9087 = vmatpush2.xpose.msra.mxu0 0.0
  %9088 = vmatprep.subr.mxu0 0.0
  %9089 = vmatpush2.xpose.msra.mxu0 0.0
  %9090 = vmatprep.subr.mxu0 0.0
  %9091 = vmatpush2.xpose.msra.mxu0 0.0
  %9092 = vmatprep.subr.mxu0 0.0
  %9093 = vmatpush2.xpose.msra.mxu0 0.0
  %9094 = vmatprep.mubr.f32.mxu0 0.0
  %9095 = vmatmul.mubr.f32.gmra.mxu0 %v8881
  %v9096 = vpop.f32.mrf.mxu0
  %v9097 = vadd.f32 0.0, %v9096
  %v9098 = vpop.f32.mrf.mxu0
  %9099 = vdwg.mxu0
  %v9100 = vmul.f32 %v9027, 0.088388346
  %v9101 = vmul.f32 %v9097, 0.088388346
  %v9102 = vld [vmem:[%s5] sm:$0xff]
  %vm9103 = vcmp.gt.f32.partialorder %v9102, 0.0
  %v9104 = vsel %vm9103, 1, 0
  %vm9105 = vcmp.eq.s32.totalorder %v9104, 1
  %v9106 = vsel %vm9105, %v9100, -1e+09
  %v9107 = vsel %vm9105, %v9101, -1e+09
  %vm9108 = vcmask 64512
  %v9109 = vsel %vm9108, %v9106, -inf
  %9110 = vmax.xlane.f32.xlu0 %v9109
  %v9111 = vpop.xlane.xlu0 %9110
  %v9112 = vsel %vm9108, %v9107, -inf
  %9113 = vmax.xlane.f32.xlu0 %v9112
  %v9114 = vpop.xlane.xlu0 %9113
  %v9115 = vsub.f32 %v9106, %v9111
  %v9116 = vsub.f32 %v9107, %v9114
  %v9117 = vmul.f32 %v9115, 1.442695
  %v9118 = vpow.pop %v9117
  %v9119 = vmul.f32 %v9116, 1.442695
  %v9120 = vpow.pop %v9119
  %v9121 = vsel %vm9108, %v9118, 0.0
  %9122 = vadd.xlane.f32.xlu0 %v9121
  %v9123 = vpop.xlane.xlu0 %9122
  %v9124 = vsel %vm9108, %v9120, 0.0
  %9125 = vadd.xlane.f32.xlu0 %v9124
  %v9126 = vpop.xlane.xlu0 %9125
  %v9127 = vrcp.pop %v9123
  %v9128 = vrcp.pop %v9126
  %v9129 = vmul.f32 %v9118, %v9127
  %v9130 = vmul.f32 %v9120, %v9128
  %v9132 = vsel %vm9108, %v9129, 0
  %9134 = vmatprep.subr.mxu0 0.0
  %9135 = vmatpush1.msra.mxu0 0.0
  %9136 = vmatprep.subr.mxu0 0.0
  %9137 = vmatpush1.msra.mxu0 0.0
  %9138 = vmatprep.subr.mxu0 0.0
  %9139 = vmatpush1.msra.mxu0 0.0
  %9140 = vmatprep.subr.mxu0 0.0
  %9141 = vmatpush1.msra.mxu0 0.0
  %9142 = vmatprep.subr.mxu0 0.0
  %9143 = vmatpush1.msra.mxu0 0.0
  %9144 = vmatprep.subr.mxu0 0.0
  %9145 = vmatpush1.msra.mxu0 0.0
  %9146 = vmatprep.subr.mxu0 0.0
  %9147 = vmatpush1.msra.mxu0 0.0
  %9148 = vmatprep.subr.mxu0 0.0
  %9149 = vmatpush1.msra.mxu0 0.0
  %9150 = vmatprep.subr.mxu0 0.0
  %9151 = vmatpush1.msra.mxu0 0.0
  %9152 = vmatprep.subr.mxu0 0.0
  %9153 = vmatpush1.msra.mxu0 0.0
  %9154 = vmatprep.subr.mxu0 0.0
  %9155 = vmatpush1.msra.mxu0 0.0
  %9156 = vmatprep.subr.mxu0 0.0
  %9157 = vmatpush1.msra.mxu0 0.0
  %9158 = vmatprep.subr.mxu0 0.0
  %9159 = vmatpush1.msra.mxu0 0.0
  %9160 = vmatprep.subr.mxu0 0.0
  %9161 = vmatpush1.msra.mxu0 0.0
  %9162 = vmatprep.subr.mxu0 0.0
  %9163 = vmatpush1.msra.mxu0 0.0
  %9164 = vmatprep.subr.mxu0 0.0
  %9165 = vmatpush1.msra.mxu0 %v8952
  %9166 = vmatprep.subr.mxu0 0.0
  %9167 = vmatpush2.msra.mxu0 0.0
  %9168 = vmatprep.subr.mxu0 0.0
  %9169 = vmatpush2.msra.mxu0 0.0
  %9170 = vmatprep.subr.mxu0 0.0
  %9171 = vmatpush2.msra.mxu0 0.0
  %9172 = vmatprep.subr.mxu0 0.0
  %9173 = vmatpush2.msra.mxu0 0.0
  %9174 = vmatprep.subr.mxu0 0.0
  %9175 = vmatpush2.msra.mxu0 0.0
  %9176 = vmatprep.subr.mxu0 0.0
  %9177 = vmatpush2.msra.mxu0 0.0
  %9178 = vmatprep.subr.mxu0 0.0
  %9179 = vmatpush2.msra.mxu0 0.0
  %9180 = vmatprep.subr.mxu0 0.0
  %9181 = vmatpush2.msra.mxu0 0.0
  %9182 = vmatprep.subr.mxu0 0.0
  %9183 = vmatpush2.msra.mxu0 0.0
  %9184 = vmatprep.subr.mxu0 0.0
  %9185 = vmatpush2.msra.mxu0 0.0
  %9186 = vmatprep.subr.mxu0 0.0
  %9187 = vmatpush2.msra.mxu0 0.0
  %9188 = vmatprep.subr.mxu0 0.0
  %9189 = vmatpush2.msra.mxu0 0.0
  %9190 = vmatprep.subr.mxu0 0.0
  %9191 = vmatpush2.msra.mxu0 0.0
  %9192 = vmatprep.subr.mxu0 0.0
  %9193 = vmatpush2.msra.mxu0 0.0
  %9194 = vmatprep.subr.mxu0 0.0
  %9195 = vmatpush2.msra.mxu0 0.0
  %9196 = vmatprep.subr.mxu0 0.0
  %9197 = vmatpush2.msra.mxu0 0.0
  %9198 = vmatprep.mubr.f32.mxu0 0.0
  %9199 = vmatmul.mubr.f32.gmra.mxu0 %v9132
  %v9200 = vpop.f32.mrf.mxu0
  %v9201 = vadd.f32 0.0, %v9200
  %v9202 = vpop.f32.mrf.mxu0
  %9203 = vdwg.mxu0
  %v9205 = vsel %vm9108, %v9130, 0
  %9207 = vmatprep.subr.mxu0 0.0
  %9208 = vmatpush1.msra.mxu0 0.0
  %9209 = vmatprep.subr.mxu0 0.0
  %9210 = vmatpush1.msra.mxu0 0.0
  %9211 = vmatprep.subr.mxu0 0.0
  %9212 = vmatpush1.msra.mxu0 0.0
  %9213 = vmatprep.subr.mxu0 0.0
  %9214 = vmatpush1.msra.mxu0 0.0
  %9215 = vmatprep.subr.mxu0 0.0
  %9216 = vmatpush1.msra.mxu0 0.0
  %9217 = vmatprep.subr.mxu0 0.0
  %9218 = vmatpush1.msra.mxu0 0.0
  %9219 = vmatprep.subr.mxu0 0.0
  %9220 = vmatpush1.msra.mxu0 0.0
  %9221 = vmatprep.subr.mxu0 0.0
  %9222 = vmatpush1.msra.mxu0 0.0
  %9223 = vmatprep.subr.mxu0 0.0
  %9224 = vmatpush1.msra.mxu0 0.0
  %9225 = vmatprep.subr.mxu0 0.0
  %9226 = vmatpush1.msra.mxu0 0.0
  %9227 = vmatprep.subr.mxu0 0.0
  %9228 = vmatpush1.msra.mxu0 0.0
  %9229 = vmatprep.subr.mxu0 0.0
  %9230 = vmatpush1.msra.mxu0 0.0
  %9231 = vmatprep.subr.mxu0 0.0
  %9232 = vmatpush1.msra.mxu0 0.0
  %9233 = vmatprep.subr.mxu0 0.0
  %9234 = vmatpush1.msra.mxu0 0.0
  %9235 = vmatprep.subr.mxu0 0.0
  %9236 = vmatpush1.msra.mxu0 0.0
  %9237 = vmatprep.subr.mxu0 0.0
  %9238 = vmatpush1.msra.mxu0 %v8957
  %9239 = vmatprep.subr.mxu0 0.0
  %9240 = vmatpush2.msra.mxu0 0.0
  %9241 = vmatprep.subr.mxu0 0.0
  %9242 = vmatpush2.msra.mxu0 0.0
  %9243 = vmatprep.subr.mxu0 0.0
  %9244 = vmatpush2.msra.mxu0 0.0
  %9245 = vmatprep.subr.mxu0 0.0
  %9246 = vmatpush2.msra.mxu0 0.0
  %9247 = vmatprep.subr.mxu0 0.0
  %9248 = vmatpush2.msra.mxu0 0.0
  %9249 = vmatprep.subr.mxu0 0.0
  %9250 = vmatpush2.msra.mxu0 0.0
  %9251 = vmatprep.subr.mxu0 0.0
  %9252 = vmatpush2.msra.mxu0 0.0
  %9253 = vmatprep.subr.mxu0 0.0
  %9254 = vmatpush2.msra.mxu0 0.0
  %9255 = vmatprep.subr.mxu0 0.0
  %9256 = vmatpush2.msra.mxu0 0.0
  %9257 = vmatprep.subr.mxu0 0.0
  %9258 = vmatpush2.msra.mxu0 0.0
  %9259 = vmatprep.subr.mxu0 0.0
  %9260 = vmatpush2.msra.mxu0 0.0
  %9261 = vmatprep.subr.mxu0 0.0
  %9262 = vmatpush2.msra.mxu0 0.0
  %9263 = vmatprep.subr.mxu0 0.0
  %9264 = vmatpush2.msra.mxu0 0.0
  %9265 = vmatprep.subr.mxu0 0.0
  %9266 = vmatpush2.msra.mxu0 0.0
  %9267 = vmatprep.subr.mxu0 0.0
  %9268 = vmatpush2.msra.mxu0 0.0
  %9269 = vmatprep.subr.mxu0 0.0
  %9270 = vmatpush2.msra.mxu0 0.0
  %9271 = vmatprep.mubr.f32.mxu0 0.0
  %9272 = vmatmul.mubr.f32.gmra.mxu0 %v9205
  %v9273 = vpop.f32.mrf.mxu0
  %v9274 = vadd.f32 0.0, %v9273
  %v9275 = vpop.f32.mrf.mxu0
  %9276 = vdwg.mxu0
  %9277 = vmatprep.subr.mxu0 0.0
  %9278 = vmatpush1.msra.mxu0 %v8733
  %9279 = vmatprep.subr.mxu0 0.0
  %9280 = vmatpush1.msra.mxu0 %v8732
  %9281 = vmatprep.subr.mxu0 0.0
  %9282 = vmatpush1.msra.mxu0 %v8731
  %9283 = vmatprep.subr.mxu0 0.0
  %9284 = vmatpush1.msra.mxu0 %v8730
  %9285 = vmatprep.subr.mxu0 0.0
  %9286 = vmatpush1.msra.mxu0 %v8729
  %9287 = vmatprep.subr.mxu0 0.0
  %9288 = vmatpush1.msra.mxu0 %v8728
  %9289 = vmatprep.subr.mxu0 0.0
  %9290 = vmatpush1.msra.mxu0 %v8727
  %9291 = vmatprep.subr.mxu0 0.0
  %9292 = vmatpush1.msra.mxu0 %v8726
  %9293 = vmatprep.subr.mxu0 0.0
  %9294 = vmatpush1.msra.mxu0 %v8725
  %9295 = vmatprep.subr.mxu0 0.0
  %9296 = vmatpush1.msra.mxu0 %v8724
  %9297 = vmatprep.subr.mxu0 0.0
  %9298 = vmatpush1.msra.mxu0 %v8723
  %9299 = vmatprep.subr.mxu0 0.0
  %9300 = vmatpush1.msra.mxu0 %v8722
  %9301 = vmatprep.subr.mxu0 0.0
  %9302 = vmatpush1.msra.mxu0 %v8721
  %9303 = vmatprep.subr.mxu0 0.0
  %9304 = vmatpush1.msra.mxu0 %v8720
  %9305 = vmatprep.subr.mxu0 0.0
  %9306 = vmatpush1.msra.mxu0 %v8719
  %9307 = vmatprep.subr.mxu0 0.0
  %9308 = vmatpush1.msra.mxu0 %v8718
  %9309 = vmatprep.subr.mxu0 0.0
  %9310 = vmatpush2.msra.mxu0 0.0
  %9311 = vmatprep.subr.mxu0 0.0
  %9312 = vmatpush2.msra.mxu0 0.0
  %9313 = vmatprep.subr.mxu0 0.0
  %9314 = vmatpush2.msra.mxu0 0.0
  %9315 = vmatprep.subr.mxu0 0.0
  %9316 = vmatpush2.msra.mxu0 0.0
  %9317 = vmatprep.subr.mxu0 0.0
  %9318 = vmatpush2.msra.mxu0 0.0
  %9319 = vmatprep.subr.mxu0 0.0
  %9320 = vmatpush2.msra.mxu0 0.0
  %9321 = vmatprep.subr.mxu0 0.0
  %9322 = vmatpush2.msra.mxu0 0.0
  %9323 = vmatprep.subr.mxu0 0.0
  %9324 = vmatpush2.msra.mxu0 0.0
  %9325 = vmatprep.subr.mxu0 0.0
  %9326 = vmatpush2.msra.mxu0 0.0
  %9327 = vmatprep.subr.mxu0 0.0
  %9328 = vmatpush2.msra.mxu0 0.0
  %9329 = vmatprep.subr.mxu0 0.0
  %9330 = vmatpush2.msra.mxu0 0.0
  %9331 = vmatprep.subr.mxu0 0.0
  %9332 = vmatpush2.msra.mxu0 0.0
  %9333 = vmatprep.subr.mxu0 0.0
  %9334 = vmatpush2.msra.mxu0 0.0
  %9335 = vmatprep.subr.mxu0 0.0
  %9336 = vmatpush2.msra.mxu0 0.0
  %9337 = vmatprep.subr.mxu0 0.0
  %9338 = vmatpush2.msra.mxu0 0.0
  %9339 = vmatprep.subr.mxu0 0.0
  %9340 = vmatpush2.msra.mxu0 0.0
  %9341 = vmatprep.mubr.f32.mxu0 0.0
  %9342 = vmatmul.mubr.f32.gmra.mxu0 %v9201
  %v9343 = vpop.f32.mrf.mxu0
  %v9344 = vadd.f32 %v8785, %v9343
  %v9345 = vpop.f32.mrf.mxu0
  %9346 = vmatprep.mubr.f32.mxu0 0.0
  %9347 = vmatmul.mubr.f32.gmra.mxu0 %v9274
  %v9348 = vpop.f32.mrf.mxu0
  %v9349 = vadd.f32 %v8785, %v9348
  %v9350 = vpop.f32.mrf.mxu0
  %9351 = vdwg.mxu0
  %v9352 = vadd.f32 %v8668, %v9344
  %v9353 = vadd.f32 %v8669, %v9349
  %9354 = vadd.xlane.f32.xlu0 %v9352
  %v9355 = vpop.xlane.xlu0 %9354
  %9356 = vadd.xlane.f32.xlu0 %v9353
  %v9357 = vpop.xlane.xlu0 %9356
  %v9358 = vrcp.pop 128.0
  %v9359 = vmul.f32 %v9355, %v9358
  %v9360 = vmul.f32 %v9357, %v9358
  %v9361 = vsub.f32 %v9352, %v9359
  %v9362 = vsub.f32 %v9353, %v9360
  %v9363 = vmul.f32 %v9361, %v9361
  %v9364 = vmul.f32 %v9362, %v9362
  %9365 = vadd.xlane.f32.xlu0 %v9363
  %v9366 = vpop.xlane.xlu0 %9365
  %9367 = vadd.xlane.f32.xlu0 %v9364
  %v9368 = vpop.xlane.xlu0 %9367
  %v9369 = vmul.f32 %v9366, %v9358
  %v9370 = vmul.f32 %v9368, %v9358
  %v9371 = vadd.f32 %v9369, 1e-05
  %v9372 = vadd.f32 %v9370, 1e-05
  %v9373 = vrsqrt.pop %v9371
  %v9374 = vrsqrt.pop %v9372
  %v9375 = vmul.f32 %v9361, %v9373
  %v9376 = vmul.f32 %v9362, %v9374
  %v9377 = vmul.f32 %v9375, %v8786
  %v9378 = vmul.f32 %v9376, %v8786
  %v9379 = vadd.f32 %v9377, %v8787
  %v9380 = vadd.f32 %v9378, %v8787
  %v9382 = vlaneseq
  %v9383 = vshrl.u32 %v9382, 7
  %v9384 = vsub.s32 0, %v9383
  %v9385 = vrot.slane %v8784, %v9384
  %v9386 = vlaneseq
  %v9387 = vshrl.u32 %v9386, 7
  %v9388 = vsub.s32 1, %v9387
  %v9389 = vrot.slane %v8784, %v9388
  %9392 = vmatprep.subr.mxu0 %v8765
  %9393 = vmatpush1.msra.mxu0 %v8764
  %9394 = vmatprep.subr.mxu0 %v8763
  %9395 = vmatpush1.msra.mxu0 %v8762
  %9396 = vmatprep.subr.mxu0 %v8761
  %9397 = vmatpush1.msra.mxu0 %v8760
  %9398 = vmatprep.subr.mxu0 %v8759
  %9399 = vmatpush1.msra.mxu0 %v8758
  %9400 = vmatprep.subr.mxu0 %v8757
  %9401 = vmatpush1.msra.mxu0 %v8756
  %9402 = vmatprep.subr.mxu0 %v8755
  %9403 = vmatpush1.msra.mxu0 %v8754
  %9404 = vmatprep.subr.mxu0 %v8753
  %9405 = vmatpush1.msra.mxu0 %v8752
  %9406 = vmatprep.subr.mxu0 %v8751
  %9407 = vmatpush1.msra.mxu0 %v8750
  %9408 = vmatprep.subr.mxu0 %v8749
  %9409 = vmatpush1.msra.mxu0 %v8748
  %9410 = vmatprep.subr.mxu0 %v8747
  %9411 = vmatpush1.msra.mxu0 %v8746
  %9412 = vmatprep.subr.mxu0 %v8745
  %9413 = vmatpush1.msra.mxu0 %v8744
  %9414 = vmatprep.subr.mxu0 %v8743
  %9415 = vmatpush1.msra.mxu0 %v8742
  %9416 = vmatprep.subr.mxu0 %v8741
  %9417 = vmatpush1.msra.mxu0 %v8740
  %9418 = vmatprep.subr.mxu0 %v8739
  %9419 = vmatpush1.msra.mxu0 %v8738
  %9420 = vmatprep.subr.mxu0 %v8737
  %9421 = vmatpush1.msra.mxu0 %v8736
  %9422 = vmatprep.subr.mxu0 %v8735
  %9423 = vmatpush1.msra.mxu0 %v8734
  %9424 = vmatprep.subr.mxu0 0.0
  %9425 = vmatpush2.msra.mxu0 0.0
  %9426 = vmatprep.subr.mxu0 0.0
  %9427 = vmatpush2.msra.mxu0 0.0
  %9428 = vmatprep.subr.mxu0 0.0
  %9429 = vmatpush2.msra.mxu0 0.0
  %9430 = vmatprep.subr.mxu0 0.0
  %9431 = vmatpush2.msra.mxu0 0.0
  %9432 = vmatprep.subr.mxu0 0.0
  %9433 = vmatpush2.msra.mxu0 0.0
  %9434 = vmatprep.subr.mxu0 0.0
  %9435 = vmatpush2.msra.mxu0 0.0
  %9436 = vmatprep.subr.mxu0 0.0
  %9437 = vmatpush2.msra.mxu0 0.0
  %9438 = vmatprep.subr.mxu0 0.0
  %9439 = vmatpush2.msra.mxu0 0.0
  %9440 = vmatprep.subr.mxu0 0.0
  %9441 = vmatpush2.msra.mxu0 0.0
  %9442 = vmatprep.subr.mxu0 0.0
  %9443 = vmatpush2.msra.mxu0 0.0
  %9444 = vmatprep.subr.mxu0 0.0
  %9445 = vmatpush2.msra.mxu0 0.0
  %9446 = vmatprep.subr.mxu0 0.0
  %9447 = vmatpush2.msra.mxu0 0.0
  %9448 = vmatprep.subr.mxu0 0.0
  %9449 = vmatpush2.msra.mxu0 0.0
  %9450 = vmatprep.subr.mxu0 0.0
  %9451 = vmatpush2.msra.mxu0 0.0
  %9452 = vmatprep.subr.mxu0 0.0
  %9453 = vmatpush2.msra.mxu0 0.0
  %9454 = vmatprep.subr.mxu0 0.0
  %9455 = vmatpush2.msra.mxu0 0.0
  %9456 = vmatprep.mubr.f32.mxu0 0.0
  %9457 = vmatmul.mubr.f32.gmra.mxu0 %v9379
  %v9458 = vpop.f32.mrf.mxu0
  %v9459 = vadd.f32 %v9385, %v9458
  %v9460 = vpop.f32.mrf.mxu0
  %v9461 = vadd.f32 %v9389, %v9460
  %9462 = vmatprep.mubr.f32.mxu0 0.0
  %9463 = vmatmul.mubr.f32.gmra.mxu0 %v9380
  %v9464 = vpop.f32.mrf.mxu0
  %v9465 = vadd.f32 %v9385, %v9464
  %v9466 = vpop.f32.mrf.mxu0
  %v9467 = vadd.f32 %v9389, %v9466
  %9468 = vdwg.mxu0
  %v9469 = vmax.f32 %v9459, 0.0
  %v9470 = vmax.f32 %v9461, 0.0
  %v9471 = vmax.f32 %v9465, 0.0
  %v9472 = vmax.f32 %v9467, 0.0
  %v9473 = vld [vmem:[%s7] sm:$0xff]
  %v9474 = vld [vmem:[%s7 + $0x8] sm:$0xff]
  %v9475 = vld [vmem:[%s7 + $0x10] sm:$0xff]
  %v9476 = vld [vmem:[%s7 + $0x18] sm:$0xff]
  %v9477 = vld [vmem:[%s7 + $0x20] sm:$0xff]
  %v9478 = vld [vmem:[%s7 + $0x28] sm:$0xff]
  %v9479 = vld [vmem:[%s7 + $0x30] sm:$0xff]
  %v9480 = vld [vmem:[%s7 + $0x38] sm:$0xff]
  %v9481 = vld [vmem:[%s7 + $0x40] sm:$0xff]
  %v9482 = vld [vmem:[%s7 + $0x48] sm:$0xff]
  %v9483 = vld [vmem:[%s7 + $0x50] sm:$0xff]
  %v9484 = vld [vmem:[%s7 + $0x58] sm:$0xff]
  %v9485 = vld [vmem:[%s7 + $0x60] sm:$0xff]
  %v9486 = vld [vmem:[%s7 + $0x68] sm:$0xff]
  %v9487 = vld [vmem:[%s7 + $0x70] sm:$0xff]
  %v9488 = vld [vmem:[%s7 + $0x78] sm:$0xff]
  %v9489 = vld [vmem:[%s7 + $0x80] sm:$0xff]
  %v9490 = vld [vmem:[%s7 + $0x88] sm:$0xff]
  %v9491 = vld [vmem:[%s7 + $0x90] sm:$0xff]
  %v9492 = vld [vmem:[%s7 + $0x98] sm:$0xff]
  %v9493 = vld [vmem:[%s7 + $0xa0] sm:$0xff]
  %v9494 = vld [vmem:[%s7 + $0xa8] sm:$0xff]
  %v9495 = vld [vmem:[%s7 + $0xb0] sm:$0xff]
  %v9496 = vld [vmem:[%s7 + $0xb8] sm:$0xff]
  %v9497 = vld [vmem:[%s7 + $0xc0] sm:$0xff]
  %v9498 = vld [vmem:[%s7 + $0xc8] sm:$0xff]
  %v9499 = vld [vmem:[%s7 + $0xd0] sm:$0xff]
  %v9500 = vld [vmem:[%s7 + $0xd8] sm:$0xff]
  %v9501 = vld [vmem:[%s7 + $0xe0] sm:$0xff]
  %v9502 = vld [vmem:[%s7 + $0xe8] sm:$0xff]
  %v9503 = vld [vmem:[%s7 + $0xf0] sm:$0xff]
  %v9504 = vld [vmem:[%s7 + $0xf8] sm:$0xff]
  %9505 = vmatprep.subr.mxu0 0.0
  %9506 = vmatpush1.msra.mxu0 %v9488
  %9507 = vmatprep.subr.mxu0 0.0
  %9508 = vmatpush1.msra.mxu0 %v9487
  %9509 = vmatprep.subr.mxu0 0.0
  %9510 = vmatpush1.msra.mxu0 %v9486
  %9511 = vmatprep.subr.mxu0 0.0
  %9512 = vmatpush1.msra.mxu0 %v9485
  %9513 = vmatprep.subr.mxu0 0.0
  %9514 = vmatpush1.msra.mxu0 %v9484
  %9515 = vmatprep.subr.mxu0 0.0
  %9516 = vmatpush1.msra.mxu0 %v9483
  %9517 = vmatprep.subr.mxu0 0.0
  %9518 = vmatpush1.msra.mxu0 %v9482
  %9519 = vmatprep.subr.mxu0 0.0
  %9520 = vmatpush1.msra.mxu0 %v9481
  %9521 = vmatprep.subr.mxu0 0.0
  %9522 = vmatpush1.msra.mxu0 %v9480
  %9523 = vmatprep.subr.mxu0 0.0
  %9524 = vmatpush1.msra.mxu0 %v9479
  %9525 = vmatprep.subr.mxu0 0.0
  %9526 = vmatpush1.msra.mxu0 %v9478
  %9527 = vmatprep.subr.mxu0 0.0
  %9528 = vmatpush1.msra.mxu0 %v9477
  %9529 = vmatprep.subr.mxu0 0.0
  %9530 = vmatpush1.msra.mxu0 %v9476
  %9531 = vmatprep.subr.mxu0 0.0
  %9532 = vmatpush1.msra.mxu0 %v9475
  %9533 = vmatprep.subr.mxu0 0.0
  %9534 = vmatpush1.msra.mxu0 %v9474
  %9535 = vmatprep.subr.mxu0 0.0
  %9536 = vmatpush1.msra.mxu0 %v9473
  %9537 = vmatprep.subr.mxu0 0.0
  %9538 = vmatpush2.msra.mxu0 %v9504
  %9539 = vmatprep.subr.mxu0 0.0
  %9540 = vmatpush2.msra.mxu0 %v9503
  %9541 = vmatprep.subr.mxu0 0.0
  %9542 = vmatpush2.msra.mxu0 %v9502
  %9543 = vmatprep.subr.mxu0 0.0
  %9544 = vmatpush2.msra.mxu0 %v9501
  %9545 = vmatprep.subr.mxu0 0.0
  %9546 = vmatpush2.msra.mxu0 %v9500
  %9547 = vmatprep.subr.mxu0 0.0
  %9548 = vmatpush2.msra.mxu0 %v9499
  %9549 = vmatprep.subr.mxu0 0.0
  %9550 = vmatpush2.msra.mxu0 %v9498
  %9551 = vmatprep.subr.mxu0 0.0
  %9552 = vmatpush2.msra.mxu0 %v9497
  %9553 = vmatprep.subr.mxu0 0.0
  %9554 = vmatpush2.msra.mxu0 %v9496
  %9555 = vmatprep.subr.mxu0 0.0
  %9556 = vmatpush2.msra.mxu0 %v9495
  %9557 = vmatprep.subr.mxu0 0.0
  %9558 = vmatpush2.msra.mxu0 %v9494
  %9559 = vmatprep.subr.mxu0 0.0
  %9560 = vmatpush2.msra.mxu0 %v9493
  %9561 = vmatprep.subr.mxu0 0.0
  %9562 = vmatpush2.msra.mxu0 %v9492
  %9563 = vmatprep.subr.mxu0 0.0
  %9564 = vmatpush2.msra.mxu0 %v9491
  %9565 = vmatprep.subr.mxu0 0.0
  %9566 = vmatpush2.msra.mxu0 %v9490
  %9567 = vmatprep.subr.mxu0 0.0
  %9568 = vmatpush2.msra.mxu0 %v9489
  %9569 = vmatprep.mubr.f32.mxu0 %v9470
  %9570 = vmatmul.mubr.f32.gmra.mxu0 %v9469
  %v9571 = vpop.f32.mrf.mxu0
  %v9572 = vadd.f32 %v8788, %v9571
  %v9573 = vpop.f32.mrf.mxu0
  %9574 = vmatprep.mubr.f32.mxu0 %v9472
  %9575 = vmatmul.mubr.f32.gmra.mxu0 %v9471
  %v9576 = vpop.f32.mrf.mxu0
  %v9577 = vadd.f32 %v8788, %v9576
  %v9578 = vpop.f32.mrf.mxu0
  %9579 = vdwg.mxu0
  %v9580 = vadd.f32 %v9379, %v9572
  %v9581 = vadd.f32 %v9380, %v9577
  %9582 = vadd.xlane.f32.xlu0 %v9580
  %v9583 = vpop.xlane.xlu0 %9582
  %9584 = vadd.xlane.f32.xlu0 %v9581
  %v9585 = vpop.xlane.xlu0 %9584
  %v9586 = vmul.f32 %v9583, %v9358
  %v9587 = vmul.f32 %v9585, %v9358
  %v9588 = vsub.f32 %v9580, %v9586
  %v9589 = vsub.f32 %v9581, %v9587
  %v9590 = vmul.f32 %v9588, %v9588
  %v9591 = vmul.f32 %v9589, %v9589
  %9592 = vadd.xlane.f32.xlu0 %v9590
  %v9593 = vpop.xlane.xlu0 %9592
  %9594 = vadd.xlane.f32.xlu0 %v9591
  %v9595 = vpop.xlane.xlu0 %9594
  %v9596 = vmul.f32 %v9593, %v9358
  %v9597 = vmul.f32 %v9595, %v9358
  %v9598 = vadd.f32 %v9596, 1e-05
  %v9599 = vadd.f32 %v9597, 1e-05
  %v9600 = vrsqrt.pop %v9598
  %v9601 = vrsqrt.pop %v9599
  %v9602 = vmul.f32 %v9588, %v9600
  %v9603 = vmul.f32 %v9589, %v9601
  %v9604 = vmul.f32 %v9602, %v8789
  %v9605 = vmul.f32 %v9603, %v8789
  %v9606 = vadd.f32 %v9604, %v8790
  %v9607 = vadd.f32 %v9605, %v8790
  %9608 = vmatprep.subr.mxu0 0.0
  %9609 = vmatpush1.msra.mxu0 %v8781
  %9610 = vmatprep.subr.mxu0 0.0
  %9611 = vmatpush1.msra.mxu0 %v8780
  %9612 = vmatprep.subr.mxu0 0.0
  %9613 = vmatpush1.msra.mxu0 %v8779
  %9614 = vmatprep.subr.mxu0 0.0
  %9615 = vmatpush1.msra.mxu0 %v8778
  %9616 = vmatprep.subr.mxu0 0.0
  %9617 = vmatpush1.msra.mxu0 %v8777
  %9618 = vmatprep.subr.mxu0 0.0
  %9619 = vmatpush1.msra.mxu0 %v8776
  %9620 = vmatprep.subr.mxu0 0.0
  %9621 = vmatpush1.msra.mxu0 %v8775
  %9622 = vmatprep.subr.mxu0 0.0
  %9623 = vmatpush1.msra.mxu0 %v8774
  %9624 = vmatprep.subr.mxu0 0.0
  %9625 = vmatpush1.msra.mxu0 %v8773
  %9626 = vmatprep.subr.mxu0 0.0
  %9627 = vmatpush1.msra.mxu0 %v8772
  %9628 = vmatprep.subr.mxu0 0.0
  %9629 = vmatpush1.msra.mxu0 %v8771
  %9630 = vmatprep.subr.mxu0 0.0
  %9631 = vmatpush1.msra.mxu0 %v8770
  %9632 = vmatprep.subr.mxu0 0.0
  %9633 = vmatpush1.msra.mxu0 %v8769
  %9634 = vmatprep.subr.mxu0 0.0
  %9635 = vmatpush1.msra.mxu0 %v8768
  %9636 = vmatprep.subr.mxu0 0.0
  %9637 = vmatpush1.msra.mxu0 %v8767
  %9638 = vmatprep.subr.mxu0 0.0
  %9639 = vmatpush1.msra.mxu0 %v8766
  %9640 = vmatprep.subr.mxu0 0.0
  %9641 = vmatpush2.msra.mxu0 0.0
  %9642 = vmatprep.subr.mxu0 0.0
  %9643 = vmatpush2.msra.mxu0 0.0
  %9644 = vmatprep.subr.mxu0 0.0
  %9645 = vmatpush2.msra.mxu0 0.0
  %9646 = vmatprep.subr.mxu0 0.0
  %9647 = vmatpush2.msra.mxu0 0.0
  %9648 = vmatprep.subr.mxu0 0.0
  %9649 = vmatpush2.msra.mxu0 0.0
  %9650 = vmatprep.subr.mxu0 0.0
  %9651 = vmatpush2.msra.mxu0 0.0
  %9652 = vmatprep.subr.mxu0 0.0
  %9653 = vmatpush2.msra.mxu0 0.0
  %9654 = vmatprep.subr.mxu0 0.0
  %9655 = vmatpush2.msra.mxu0 0.0
  %9656 = vmatprep.subr.mxu0 0.0
  %9657 = vmatpush2.msra.mxu0 0.0
  %9658 = vmatprep.subr.mxu0 0.0
  %9659 = vmatpush2.msra.mxu0 0.0
  %9660 = vmatprep.subr.mxu0 0.0
  %9661 = vmatpush2.msra.mxu0 0.0
  %9662 = vmatprep.subr.mxu0 0.0
  %9663 = vmatpush2.msra.mxu0 0.0
  %9664 = vmatprep.subr.mxu0 0.0
  %9665 = vmatpush2.msra.mxu0 0.0
  %9666 = vmatprep.subr.mxu0 0.0
  %9667 = vmatpush2.msra.mxu0 0.0
  %9668 = vmatprep.subr.mxu0 0.0
  %9669 = vmatpush2.msra.mxu0 0.0
  %9670 = vmatprep.subr.mxu0 0.0
  %9671 = vmatpush2.msra.mxu0 0.0
  %9672 = vmatprep.mubr.f32.mxu0 0.0
  %9673 = vmatmul.mubr.f32.gmra.mxu0 %v9606
  %v9674 = vpop.f32.mrf.mxu0
  %v9675 = vadd.f32 %v8791, %v9674
  %v9676 = vpop.f32.mrf.mxu0
  %9677 = vmatprep.mubr.f32.mxu0 0.0
  %9678 = vmatmul.mubr.f32.gmra.mxu0 %v9607
  %v9679 = vpop.f32.mrf.mxu0
  %v9680 = vadd.f32 %v8791, %v9679
  %v9681 = vpop.f32.mrf.mxu0
  %9682 = vdwg.mxu0
  %v9683 = vlaneseq
  %v9684 = vand.u32 %v9683, 127
  %vm9685 = vcmp.lt.s32.totalorder %v9684, 16
  %v9686 = vsel %vm9685, %v9675, -1e+30
  %v9687 = vsel %vm9685, %v9680, -1e+30
  %9688 = vmax.xlane.f32.xlu0 %v9686
  %v9689 = vpop.xlane.xlu0 %9688
  %9690 = vmax.xlane.f32.xlu0 %v9687
  %v9691 = vpop.xlane.xlu0 %9690
  %v9692 = vsub.f32 %v9686, %v9689
  %v9693 = vsub.f32 %v9687, %v9691
  %v9694 = vmul.f32 %v9692, 1.442695
  %v9695 = vpow.pop %v9694
  %v9696 = vmul.f32 %v9693, 1.442695
  %v9697 = vpow.pop %v9696
  %9698 = vadd.xlane.f32.xlu0 %v9695
  %v9699 = vpop.xlane.xlu0 %9698
  %9700 = vadd.xlane.f32.xlu0 %v9697
  %v9701 = vpop.xlane.xlu0 %9700
  %v9702 = vrcp.pop %v9699
  %v9703 = vmul.f32 %v9695, %v9702
  %v9704 = vrcp.pop %v9701
  %v9705 = vmul.f32 %v9697, %v9704
  %v9706 = vsel %vm9685, %v9703, %v9675
  %v9707 = vsel %vm9685, %v9705, %v9680
  %9708 = vst [vmem:[%s9] sm:$0xff] %v9706
  %9709 = vst [vmem:[%s9 + $0x8] sm:$0xff] %v9707
  // Predicated region
  $region38: #{policy6_forward.1} parent=0 // pred_check
    _
  $region39: #{policy6_forward.1} parent=0 // pred_check_branch
    %9711 = sbr.rel (0) target = $region41
  $region40: #{policy6_forward.1} parent=0 // pred_region
    _
  $region41: #{policy6_forward.1} parent=0 // pred_fallthru
    _
  // Predicated region
  $region42: #{policy6_forward.1} parent=0 // pred_check
    _
  $region43: #{policy6_forward.1} parent=0 // pred_check_branch
    %9713 = sbr.rel (0) target = $region45
  $region44: #{policy6_forward.1} parent=0 // pred_region
    _
  $region45: #{policy6_forward.1} parent=0 // pred_fallthru
    _

</llo_original>
